<compile_context>
chip_gen: v7x
topology: tpu7x:2x2x1
jax: 0.10.0
libtpu: 0.0.40
codegen_flags: <defaults>
</compile_context>

<pallas_src>
import functools

import jax
import jax.numpy as jnp
from jax.experimental import pallas as pl
from jax.experimental.pallas import tpu as pltpu

_LANE = 128


# ----------------------------------------------------------------------------
# Small helpers
# ----------------------------------------------------------------------------
def _round_up(x, m):
    return ((x + m - 1) // m) * m


def _vmem_capacity_bytes():
    """Per-core VMEM capacity; conservative (v7x) fallback if the query fails."""
    try:
        cap = int(getattr(pltpu.get_tpu_info(), "vmem_capacity_bytes"))
        if cap > 0:
            return cap
    except Exception:
        pass
    return 64 * 1024 * 1024


def _vmem_limit_bytes():
    cap = _vmem_capacity_bytes()
    return int(max(32 * 1024 * 1024, min(int(cap * 0.8), cap - (8 << 20))))


def _pick_tile_h(H, per_row_bytes, fixed_bytes, budget_bytes):
    """Largest divisor of H whose estimated per-step VMEM footprint fits."""
    for th in range(H, 0, -1):
        if H % th:
            continue
        if fixed_bytes + th * per_row_bytes <= budget_bytes:
            return th
    return 1


def _gelu_tanh(y):
    # tanh-approximate GELU: the tanh runs on the EUP (otherwise-idle slot)
    # instead of the long erf VPU polynomial.  |error| vs exact erf ~1e-3.
    c0 = jnp.float32(0.7978845608028654)
    c1 = jnp.float32(0.044715)
    return jnp.float32(0.5) * y * (jnp.float32(1.0) + jnp.tanh(c0 * (y + c1 * y * y * y)))


# ----------------------------------------------------------------------------
# In-kernel helpers
# ----------------------------------------------------------------------------
def _fill_strip(xpad_ref, cur_ref, top_ref, bot_ref, lo, hi, th, wp,
                is_first, is_last):
    """Write halo-row / current-tile rows into lanes [lo:hi) of the flat scratch.

    Scratch row groups (each Wp rows):
      group 0        : unwritten (only its last row, the left pad of the top
                       halo row, is zeroed separately)
      group 1        : top halo image row (zero-masked at the image border)
      groups 2..th+1 : the current tile's th image rows
      group th+2     : bottom halo image row (zero-masked at the image border)
    All incoming rows already carry zeros in columns [W, Wp).
    """
    top = top_ref[0].astype(xpad_ref.dtype)
    bot = bot_ref[0].astype(xpad_ref.dtype)
    xpad_ref[pl.ds(wp, wp), lo:hi] = jnp.where(is_first, jnp.zeros_like(top), top)
    xpad_ref[pl.ds(2 * wp, th * wp), lo:hi] = cur_ref[0].astype(xpad_ref.dtype)
    xpad_ref[pl.ds((th + 2) * wp, wp), lo:hi] = jnp.where(
        is_last, jnp.zeros_like(bot), bot)


def _accum_conv3x3(acc, xpad_ref, w_ref, th, wp):
    """3x3 SAME conv over the flat padded scratch as 9 MXU matmuls.

    Output flat position p = y*wp + x reads tap (ky, kx) at scratch row
    p + (ky+1)*wp + kx - 1, so every tap's LHS is one contiguous row slice of
    the scratch -- no slice+reshape relayout copy per tap.
    """
    for ky in range(3):
        for kx in range(3):
            off = (ky + 1) * wp + kx - 1
            lhs = xpad_ref[pl.ds(off, th * wp), :]
            acc = acc + jnp.dot(lhs, w_ref[ky * 3 + kx],
                                preferred_element_type=jnp.float32)
    return acc


# ----------------------------------------------------------------------------
# Kernels
# ----------------------------------------------------------------------------
def _conv3_bn_gelu_kernel(cur_ref, top_ref, bot_ref, w_ref, bias_ref,
                          o_ref, xpad_ref, *, th, w, wp):
    # cur_ref:  (1, th*wp, Cin)   current row tile (W-padded flat layout)
    # top/bot:  (1, wp, Cin)      1-row halos (clamped; zero-masked at borders)
    # w_ref:    (9, Cin, Cout)    bf16 weights with BN scale pre-folded
    # bias_ref: (1, Cout)         folded BN bias (f32)
    # o_ref:    (1, th*wp, Cout)  same W-padded flat layout, pad columns zeroed
    cin = xpad_ref.shape[-1]
    cout = o_ref.shape[-1]
    ht = pl.program_id(1)
    is_first = ht == 0
    is_last = ht == pl.num_programs(1) - 1

    # The only scratch row that is read but never overwritten: the left pad of
    # the top halo row (group 0, column wp-1).
    xpad_ref[pl.ds(wp - 1, 1), :] = jnp.zeros((1, cin), xpad_ref.dtype)
    _fill_strip(xpad_ref, cur_ref, top_ref, bot_ref, 0, cin, th, wp,
                is_first, is_last)

    acc = jnp.zeros((th * wp, cout), jnp.float32)
    acc = _accum_conv3x3(acc, xpad_ref, w_ref, th, wp)
    y = _gelu_tanh(acc + bias_ref[0])                       # epilogue in f32

    # Zero the W-padding columns so downstream kernels reuse them as SAME
    # padding.  Use `where` (not multiply): junk lanes may hold non-finite bits.
    col = jax.lax.broadcasted_iota(jnp.int32, (th * wp, 1), 0) % wp
    y = jnp.where(col < w, y, jnp.zeros_like(y))
    o_ref[0] = y.astype(o_ref.dtype)


def _convcat_cls_kernel(xa_cur, xa_top, xa_bot, xb_cur, xb_top, xb_bot,
                        w_ref, bias_ref, cw_ref, cb_ref, o_ref, xpad_ref,
                        *, th, wp, ca):
    # conv_cat(concat([x, convs(x)])) + BN + GELU + fused 1x1 classifier.
    # The channel concat is assembled in the lane dimension of one scratch, so
    # each tap is a single matmul with K = Ca + Cb (no split-K, no HBM concat).
    ck = xpad_ref.shape[-1]                                 # Ca + Cb
    cout = w_ref.shape[-1]
    ht = pl.program_id(1)
    is_first = ht == 0
    is_last = ht == pl.num_programs(1) - 1

    xpad_ref[pl.ds(wp - 1, 1), :] = jnp.zeros((1, ck), xpad_ref.dtype)
    _fill_strip(xpad_ref, xa_cur, xa_top, xa_bot, 0, ca, th, wp, is_first, is_last)
    _fill_strip(xpad_ref, xb_cur, xb_top, xb_bot, ca, ck, th, wp, is_first, is_last)

    acc = jnp.zeros((th * wp, cout), jnp.float32)
    acc = _accum_conv3x3(acc, xpad_ref, w_ref, th, wp)
    y = _gelu_tanh(acc + bias_ref[0])

    # Fused 1x1 classifier.  Junk W-padding rows of the output are never read
    # by the wrapper, so no masking is needed here.
    logits = jnp.dot(y.astype(cw_ref.dtype), cw_ref[...],
                     preferred_element_type=jnp.float32) + cb_ref[0]
    o_ref[0] = logits.astype(o_ref.dtype)


# ----------------------------------------------------------------------------
# BlockSpec helpers
# ----------------------------------------------------------------------------
def _act_specs(TH, Wp, C, H):
    """Current row-tile plus 1-row top/bottom halos in the flat padded layout."""
    cur = pl.BlockSpec((1, TH * Wp, C), lambda n, h: (n, h, 0))
    top = pl.BlockSpec((1, Wp, C),
                       lambda n, h: (n, jnp.maximum(h * TH - 1, 0), 0))
    bot = pl.BlockSpec((1, Wp, C),
                       lambda n, h: (n, jnp.minimum(h * TH + TH, H - 1), 0))
    return cur, top, bot


def _const_spec(shape):
    nd = len(shape)
    return pl.BlockSpec(shape, lambda n, h: (0,) * nd)


# ----------------------------------------------------------------------------
# Wrappers
# ----------------------------------------------------------------------------
def conv3_bn_gelu(xp, H, W, Wp, w_hwio, bn_scale, bn_bias, *, tile_h=None,
                  matmul_dtype=jnp.bfloat16, out_dtype=jnp.bfloat16):
    """3x3 SAME conv (bias-free) + folded eval-mode BatchNorm + GELU.

    `xp` is the W-padded, row-flattened activation (N, H*Wp, Cin); the output
    uses the same layout with its pad columns zeroed.
    """
    N, HWp, Cin = xp.shape
    assert HWp == H * Wp, (HWp, H, Wp)
    Cout = w_hwio.shape[-1]
    vlimit = _vmem_limit_bytes()

    if tile_h is None:
        per_row = Wp * (10 * Cin + 8 * Cout)                 # blocks+scratch+acc
        fixed = (2 * 9 * Cin * Cout * 2                      # dbl-buffered weights
                 + 8 * Wp * Cin + (3 * Wp + 8) * Cin * 2)    # halos + scratch tail
        tile_h = _pick_tile_h(H, per_row, fixed, int(vlimit * 0.75))
    TH = tile_h
    assert H % TH == 0, (H, TH)

    w9 = (w_hwio * bn_scale).reshape(9, Cin, Cout).astype(matmul_dtype)
    bias = bn_bias.reshape(1, Cout).astype(jnp.float32)
    nrows = (TH + 3) * Wp + 8

    cur, top, bot = _act_specs(TH, Wp, Cin, H)
    kern = functools.partial(_conv3_bn_gelu_kernel, th=TH, w=W, wp=Wp)
    return pl.pallas_call(
        kern,
        out_shape=jax.ShapeDtypeStruct((N, H * Wp, Cout), out_dtype),
        grid=(N, H // TH),
        in_specs=[cur, top, bot,
                  _const_spec((9, Cin, Cout)),
                  _const_spec((1, Cout))],
        out_specs=pl.BlockSpec((1, TH * Wp, Cout), lambda n, h: (n, h, 0)),
        scratch_shapes=[pltpu.VMEM((nrows, Cin), matmul_dtype)],
        compiler_params=pltpu.CompilerParams(
            dimension_semantics=("parallel", "parallel"),
            vmem_limit_bytes=vlimit),
    )(xp, xp, xp, w9, bias)


def convcat_cls(xa, xb, H, W, Wp, w_hwio, bn_scale, bn_bias, cls_w, cls_b, *,
                tile_h=None, matmul_dtype=jnp.bfloat16, out_dtype=jnp.bfloat16):
    """conv_cat(concat([xa, xb])) + BN + GELU + fused 1x1 classifier.

    Returns the lane-padded classifier output (N, H*Wp, ncls_pad) in bf16.
    """
    N, HWp, Ca = xa.shape
    Cb = xb.shape[-1]
    assert HWp == H * Wp and xb.shape[1] == HWp
    Cout = w_hwio.shape[-1]
    ncls = cls_w.shape[-1]
    ncls_pad = _round_up(ncls, _LANE)
    vlimit = _vmem_limit_bytes()

    if tile_h is None:
        ck = Ca + Cb
        per_row = Wp * (10 * ck + 4 * Cout + 8 * ncls_pad)
        fixed = (2 * 9 * ck * Cout * 2 + 2 * Cout * ncls_pad * 2
                 + 8 * Wp * ck + (3 * Wp + 8) * ck * 2)
        tile_h = _pick_tile_h(H, per_row, fixed, int(vlimit * 0.75))
    TH = tile_h
    assert H % TH == 0, (H, TH)

    w_cat = (w_hwio * bn_scale).reshape(9, Ca + Cb, Cout).astype(matmul_dtype)
    bias = bn_bias.reshape(1, Cout).astype(jnp.float32)
    cw = jnp.zeros((Cout, ncls_pad), matmul_dtype).at[:, :ncls].set(
        cls_w.astype(matmul_dtype))
    cb = jnp.zeros((1, ncls_pad), jnp.float32).at[0, :ncls].set(
        cls_b.astype(jnp.float32))
    nrows = (TH + 3) * Wp + 8

    cura, topa, bota = _act_specs(TH, Wp, Ca, H)
    curb, topb, botb = _act_specs(TH, Wp, Cb, H)
    kern = functools.partial(_convcat_cls_kernel, th=TH, wp=Wp, ca=Ca)
    return pl.pallas_call(
        kern,
        out_shape=jax.ShapeDtypeStruct((N, H * Wp, ncls_pad), out_dtype),
        grid=(N, H // TH),
        in_specs=[cura, topa, bota, curb, topb, botb,
                  _const_spec((9, Ca + Cb, Cout)),
                  _const_spec((1, Cout)),
                  _const_spec((Cout, ncls_pad)),
                  _const_spec((1, ncls_pad))],
        out_specs=pl.BlockSpec((1, TH * Wp, ncls_pad), lambda n, h: (n, h, 0)),
        scratch_shapes=[pltpu.VMEM((nrows, Ca + Cb), matmul_dtype)],
        compiler_params=pltpu.CompilerParams(
            dimension_semantics=("parallel", "parallel"),
            vmem_limit_bytes=vlimit),
    )(xa, xa, xa, xb, xb, xb, w_cat, bias, cw, cb)


# ----------------------------------------------------------------------------
# FCNHead parameters + forward
# ----------------------------------------------------------------------------
def init_fcn_head_params(key, channels, n_cls):
    """Deterministic synthetic parameters (eval-mode BatchNorm is folded)."""
    ks = jax.random.split(key, 8)
    eps = 1e-5

    def conv_block(kw, kbn, cin, cout):
        w = jax.random.normal(kw, (3, 3, cin, cout), jnp.float32) * 0.05
        kb = jax.random.split(kbn, 4)
        gamma = 1.0 + 0.1 * jax.random.normal(kb[0], (cout,), jnp.float32)
        beta = 0.1 * jax.random.normal(kb[1], (cout,), jnp.float32)
        mean = 0.1 * jax.random.normal(kb[2], (cout,), jnp.float32)
        var = jnp.abs(1.0 + 0.1 * jax.random.normal(kb[3], (cout,), jnp.float32))
        scale = gamma / jnp.sqrt(var + eps)
        bias = beta - mean * scale
        return dict(w=w, scale=scale, bias=bias)

    return dict(
        conv0=conv_block(ks[0], ks[1], channels, channels),
        conv1=conv_block(ks[2], ks[3], channels, channels),
        conv_cat=conv_block(ks[4], ks[5], 2 * channels, channels),
        cls_w=jax.random.normal(ks[6], (channels, n_cls), jnp.float32) * 0.05,
        cls_b=0.1 * jax.random.normal(ks[7], (n_cls,), jnp.float32),
    )


def fcn_head_forward(params, x_nchw, *, tile_h=None):
    """FCNHead.forward (BatchNorm in eval mode).  NCHW in -> NCHW out."""
    act_dtype = jnp.bfloat16
    N, C, H, W = x_nchw.shape
    Wp = _round_up(W + 1, 8)
    n_cls = params["cls_w"].shape[-1]
    ncls_pad = _round_up(n_cls, _LANE)

    # NCHW -> NHWC, bf16, W-pad to Wp and flatten rows; the pad zeros serve as
    # the SAME padding for every conv (fuses with the transpose in XLA).
    x = jnp.transpose(x_nchw, (0, 2, 3, 1)).astype(act_dtype)
    xp = jnp.pad(x, ((0, 0), (0, 0), (0, Wp - W), (0, 0))).reshape(N, H * Wp, C)

    c0, c1, cc = params["conv0"], params["conv1"], params["conv_cat"]
    a = conv3_bn_gelu(xp, H, W, Wp, c0["w"], c0["scale"], c0["bias"], tile_h=tile_h)
    a = conv3_bn_gelu(a, H, W, Wp, c1["w"], c1["scale"], c1["bias"], tile_h=tile_h)
    # concat + conv_cat + classifier fused; single K=2C matmul per tap.
    logits = convcat_cls(xp, a, H, W, Wp, cc["w"], cc["scale"], cc["bias"],
                         params["cls_w"], params["cls_b"], tile_h=tile_h)
    out = logits.reshape(N, H, Wp, ncls_pad)[:, :, :W, :n_cls].astype(jnp.float32)
    return jnp.transpose(out, (0, 3, 1, 2))                  # NHWC -> NCHW


# ----------------------------------------------------------------------------
# Pure-JAX f32 reference (for correctness check)
# ----------------------------------------------------------------------------
def _ref_conv_block(x, w, scale, bias):
    y = jax.lax.conv_general_dilated(
        x, w, window_strides=(1, 1), padding="SAME",
        dimension_numbers=("NHWC", "HWIO", "NHWC"))
    y = y * scale + bias
    return jax.nn.gelu(y, approximate=False)


def fcn_head_reference(params, x_nchw):
    x = jnp.transpose(x_nchw, (0, 2, 3, 1))
    out = _ref_conv_block(x, params["conv0"]["w"],
                          params["conv0"]["scale"], params["conv0"]["bias"])
    out = _ref_conv_block(out, params["conv1"]["w"],
                          params["conv1"]["scale"], params["conv1"]["bias"])
    cat = jnp.concatenate([x, out], axis=-1)
    out = _ref_conv_block(cat, params["conv_cat"]["w"],
                          params["conv_cat"]["scale"], params["conv_cat"]["bias"])
    out = jnp.einsum("nhwc,ck->nhwk", out, params["cls_w"]) + params["cls_b"]
    return jnp.transpose(out, (0, 3, 1, 2))


# ----------------------------------------------------------------------------
if __name__ == "__main__":
    # Small, module-consistent shapes (original defaults: channels=384, n_cls=19)
    N, C, H, W = 2, 32, 16, 16
    N_CLS = 8
    TILE_H = 8        # 2 row-tiles per image -> exercises the halo path

    key = jax.random.PRNGKey(0)
    k_x, k_p = jax.random.split(key)
    x = jax.random.normal(k_x, (N, C, H, W), jnp.float32)        # NCHW like PyTorch
    params = init_fcn_head_params(k_p, C, N_CLS)

    fwd = jax.jit(functools.partial(fcn_head_forward, params, tile_h=TILE_H))
    out = fwd(x)
    jax.block_until_ready(out)
    assert out.shape == (N, N_CLS, H, W), out.shape

    ref = fcn_head_reference(params, x)
    jax.block_until_ready(ref)
    # Tolerance sized for bf16 MXU operands / bf16 intermediates, tanh-approx
    # GELU and bf16 classifier output vs. the exact-erf f32 reference.
    err = float(jnp.max(jnp.abs(out - ref)))
    assert jnp.allclose(out, ref, rtol=4e-2, atol=6e-2), err

    print("KERNEL_OK")
</pallas_src>

<mosaic_0001>
module attributes {stable_mosaic.version = 11 : i64} {
  func.func @_conv3_bn_gelu_kernel(%arg0: i32, %arg1: i32, %arg2: memref<1x192x32xbf16, #tpu.memory_space<vmem>>, %arg3: memref<1x24x32xbf16, #tpu.memory_space<vmem>>, %arg4: memref<1x24x32xbf16, #tpu.memory_space<vmem>>, %arg5: memref<9x32x32xbf16, #tpu.memory_space<vmem>>, %arg6: memref<1x32xf32, #tpu.memory_space<vmem>>, %arg7: memref<1x192x32xbf16, #tpu.memory_space<vmem>>, %arg8: memref<272x32xbf16, #tpu.memory_space<vmem>>) attributes {dimension_semantics = [#tpu.dimension_semantics<parallel>, #tpu.dimension_semantics<parallel>], iteration_bounds = array<i64: 2, 2>, scalar_prefetch = 0 : i64, scratch_operands = 1 : i64, tpu.core_type = #tpu.core_type<tc>, window_params = [{transform_indices = @transform_0, window_bounds = array<i64: 1, 192, 32>}, {transform_indices = @transform_1, window_bounds = array<i64: 1, 24, 32>}, {transform_indices = @transform_2, window_bounds = array<i64: 1, 24, 32>}, {pipeline_mode = #tpu.pipeline_mode<synchronous>, transform_indices = @transform_3, window_bounds = array<i64: 9, 32, 32>}, {pipeline_mode = #tpu.pipeline_mode<synchronous>, transform_indices = @transform_4, window_bounds = array<i64: 1, 32>}, {transform_indices = @transform_5, window_bounds = array<i64: 1, 192, 32>}]} {
    %c0_i32 = arith.constant 0 : i32
    %0 = arith.cmpi eq, %arg1, %c0_i32 : i32
    %c1_i32 = arith.constant 1 : i32
    %1 = arith.cmpi eq, %arg1, %c1_i32 : i32
    %cst = arith.constant 0.000000e+00 : bf16
    %2 = vector.broadcast %cst : bf16 to vector<1x32xbf16>
    %c23 = arith.constant 23 : index
    %c0 = arith.constant 0 : index
    %3 = vector.load %arg8[%c23, %c0] : memref<272x32xbf16, #tpu.memory_space<vmem>>, vector<1x32xbf16>
    tpu.vector_store %arg8[%c23, %c0], %2 {strides = array<i32>} : memref<272x32xbf16, #tpu.memory_space<vmem>>, vector<1x32xbf16>,
    %c0_0 = arith.constant 0 : index
    %c0_1 = arith.constant 0 : index
    %c0_2 = arith.constant 0 : index
    %4 = vector.load %arg3[%c0_0, %c0_1, %c0_2] : memref<1x24x32xbf16, #tpu.memory_space<vmem>>, vector<1x24x32xbf16>
    %5 = vector.shape_cast %4 : vector<1x24x32xbf16> to vector<24x32xbf16>
    %c0_3 = arith.constant 0 : index
    %c0_4 = arith.constant 0 : index
    %c0_5 = arith.constant 0 : index
    %6 = vector.load %arg4[%c0_3, %c0_4, %c0_5] : memref<1x24x32xbf16, #tpu.memory_space<vmem>>, vector<1x24x32xbf16>
    %7 = vector.shape_cast %6 : vector<1x24x32xbf16> to vector<24x32xbf16>
    %cst_6 = arith.constant 0.000000e+00 : bf16
    %8 = vector.broadcast %cst_6 : bf16 to vector<24x32xbf16>
    %9 = arith.select %0, %8, %5 : vector<24x32xbf16>
    %c24 = arith.constant 24 : index
    %c0_7 = arith.constant 0 : index
    %10 = vector.load %arg8[%c24, %c0_7] : memref<272x32xbf16, #tpu.memory_space<vmem>>, vector<24x32xbf16>
    tpu.vector_store %arg8[%c24, %c0_7], %9 {strides = array<i32>} : memref<272x32xbf16, #tpu.memory_space<vmem>>, vector<24x32xbf16>,
    %c0_8 = arith.constant 0 : index
    %c0_9 = arith.constant 0 : index
    %c0_10 = arith.constant 0 : index
    %11 = vector.load %arg2[%c0_8, %c0_9, %c0_10] : memref<1x192x32xbf16, #tpu.memory_space<vmem>>, vector<1x192x32xbf16>
    %12 = vector.shape_cast %11 : vector<1x192x32xbf16> to vector<192x32xbf16>
    %c48 = arith.constant 48 : index
    %c0_11 = arith.constant 0 : index
    %13 = vector.load %arg8[%c48, %c0_11] : memref<272x32xbf16, #tpu.memory_space<vmem>>, vector<192x32xbf16>
    tpu.vector_store %arg8[%c48, %c0_11], %12 {strides = array<i32>} : memref<272x32xbf16, #tpu.memory_space<vmem>>, vector<192x32xbf16>,
    %cst_12 = arith.constant 0.000000e+00 : bf16
    %14 = vector.broadcast %cst_12 : bf16 to vector<24x32xbf16>
    %15 = arith.select %1, %14, %7 : vector<24x32xbf16>
    %c240 = arith.constant 240 : index
    %c0_13 = arith.constant 0 : index
    %16 = vector.load %arg8[%c240, %c0_13] : memref<272x32xbf16, #tpu.memory_space<vmem>>, vector<24x32xbf16>
    tpu.vector_store %arg8[%c240, %c0_13], %15 {strides = array<i32>} : memref<272x32xbf16, #tpu.memory_space<vmem>>, vector<24x32xbf16>,
    %cst_14 = arith.constant 0.000000e+00 : f32
    %17 = vector.broadcast %cst_14 : f32 to vector<192x32xf32>
    %c23_15 = arith.constant 23 : index
    %c0_16 = arith.constant 0 : index
    %18 = vector.load %arg8[%c23_15, %c0_16] : memref<272x32xbf16, #tpu.memory_space<vmem>>, vector<192x32xbf16>
    %c0_17 = arith.constant 0 : index
    %c0_18 = arith.constant 0 : index
    %c0_19 = arith.constant 0 : index
    %19 = vector.load %arg5[%c0_17, %c0_18, %c0_19] : memref<9x32x32xbf16, #tpu.memory_space<vmem>>, vector<1x32x32xbf16>
    %20 = vector.shape_cast %19 : vector<1x32x32xbf16> to vector<32x32xbf16>
    %cst_20 = arith.constant dense<0.000000e+00> : vector<192x32xf32>
    %21 = tpu.matmul %18, %20, %cst_20 {dimension_numbers = #tpu.dot_dimension_numbers<[1], [0], [0], [1], [0, 0, 1, 1], [], []>} : vector<192x32xbf16>, vector<32x32xbf16>, vector<192x32xf32> -> vector<192x32xf32>
    %22 = arith.addf %17, %21 : vector<192x32xf32>
    %c24_21 = arith.constant 24 : index
    %c0_22 = arith.constant 0 : index
    %23 = vector.load %arg8[%c24_21, %c0_22] : memref<272x32xbf16, #tpu.memory_space<vmem>>, vector<192x32xbf16>
    %c1 = arith.constant 1 : index
    %c0_23 = arith.constant 0 : index
    %c0_24 = arith.constant 0 : index
    %24 = vector.load %arg5[%c1, %c0_23, %c0_24] : memref<9x32x32xbf16, #tpu.memory_space<vmem>>, vector<1x32x32xbf16>
    %25 = vector.shape_cast %24 : vector<1x32x32xbf16> to vector<32x32xbf16>
    %cst_25 = arith.constant dense<0.000000e+00> : vector<192x32xf32>
    %26 = tpu.matmul %23, %25, %cst_25 {dimension_numbers = #tpu.dot_dimension_numbers<[1], [0], [0], [1], [0, 0, 1, 1], [], []>} : vector<192x32xbf16>, vector<32x32xbf16>, vector<192x32xf32> -> vector<192x32xf32>
    %27 = arith.addf %22, %26 : vector<192x32xf32>
    %c25 = arith.constant 25 : index
    %c0_26 = arith.constant 0 : index
    %28 = vector.load %arg8[%c25, %c0_26] : memref<272x32xbf16, #tpu.memory_space<vmem>>, vector<192x32xbf16>
    %c2 = arith.constant 2 : index
    %c0_27 = arith.constant 0 : index
    %c0_28 = arith.constant 0 : index
    %29 = vector.load %arg5[%c2, %c0_27, %c0_28] : memref<9x32x32xbf16, #tpu.memory_space<vmem>>, vector<1x32x32xbf16>
    %30 = vector.shape_cast %29 : vector<1x32x32xbf16> to vector<32x32xbf16>
    %cst_29 = arith.constant dense<0.000000e+00> : vector<192x32xf32>
    %31 = tpu.matmul %28, %30, %cst_29 {dimension_numbers = #tpu.dot_dimension_numbers<[1], [0], [0], [1], [0, 0, 1, 1], [], []>} : vector<192x32xbf16>, vector<32x32xbf16>, vector<192x32xf32> -> vector<192x32xf32>
    %32 = arith.addf %27, %31 : vector<192x32xf32>
    %c47 = arith.constant 47 : index
    %c0_30 = arith.constant 0 : index
    %33 = vector.load %arg8[%c47, %c0_30] : memref<272x32xbf16, #tpu.memory_space<vmem>>, vector<192x32xbf16>
    %c3 = arith.constant 3 : index
    %c0_31 = arith.constant 0 : index
    %c0_32 = arith.constant 0 : index
    %34 = vector.load %arg5[%c3, %c0_31, %c0_32] : memref<9x32x32xbf16, #tpu.memory_space<vmem>>, vector<1x32x32xbf16>
    %35 = vector.shape_cast %34 : vector<1x32x32xbf16> to vector<32x32xbf16>
    %cst_33 = arith.constant dense<0.000000e+00> : vector<192x32xf32>
    %36 = tpu.matmul %33, %35, %cst_33 {dimension_numbers = #tpu.dot_dimension_numbers<[1], [0], [0], [1], [0, 0, 1, 1], [], []>} : vector<192x32xbf16>, vector<32x32xbf16>, vector<192x32xf32> -> vector<192x32xf32>
    %37 = arith.addf %32, %36 : vector<192x32xf32>
    %c48_34 = arith.constant 48 : index
    %c0_35 = arith.constant 0 : index
    %38 = vector.load %arg8[%c48_34, %c0_35] : memref<272x32xbf16, #tpu.memory_space<vmem>>, vector<192x32xbf16>
    %c4 = arith.constant 4 : index
    %c0_36 = arith.constant 0 : index
    %c0_37 = arith.constant 0 : index
    %39 = vector.load %arg5[%c4, %c0_36, %c0_37] : memref<9x32x32xbf16, #tpu.memory_space<vmem>>, vector<1x32x32xbf16>
    %40 = vector.shape_cast %39 : vector<1x32x32xbf16> to vector<32x32xbf16>
    %cst_38 = arith.constant dense<0.000000e+00> : vector<192x32xf32>
    %41 = tpu.matmul %38, %40, %cst_38 {dimension_numbers = #tpu.dot_dimension_numbers<[1], [0], [0], [1], [0, 0, 1, 1], [], []>} : vector<192x32xbf16>, vector<32x32xbf16>, vector<192x32xf32> -> vector<192x32xf32>
    %42 = arith.addf %37, %41 : vector<192x32xf32>
    %c49 = arith.constant 49 : index
    %c0_39 = arith.constant 0 : index
    %43 = vector.load %arg8[%c49, %c0_39] : memref<272x32xbf16, #tpu.memory_space<vmem>>, vector<192x32xbf16>
    %c5 = arith.constant 5 : index
    %c0_40 = arith.constant 0 : index
    %c0_41 = arith.constant 0 : index
    %44 = vector.load %arg5[%c5, %c0_40, %c0_41] : memref<9x32x32xbf16, #tpu.memory_space<vmem>>, vector<1x32x32xbf16>
    %45 = vector.shape_cast %44 : vector<1x32x32xbf16> to vector<32x32xbf16>
    %cst_42 = arith.constant dense<0.000000e+00> : vector<192x32xf32>
    %46 = tpu.matmul %43, %45, %cst_42 {dimension_numbers = #tpu.dot_dimension_numbers<[1], [0], [0], [1], [0, 0, 1, 1], [], []>} : vector<192x32xbf16>, vector<32x32xbf16>, vector<192x32xf32> -> vector<192x32xf32>
    %47 = arith.addf %42, %46 : vector<192x32xf32>
    %c71 = arith.constant 71 : index
    %c0_43 = arith.constant 0 : index
    %48 = vector.load %arg8[%c71, %c0_43] : memref<272x32xbf16, #tpu.memory_space<vmem>>, vector<192x32xbf16>
    %c6 = arith.constant 6 : index
    %c0_44 = arith.constant 0 : index
    %c0_45 = arith.constant 0 : index
    %49 = vector.load %arg5[%c6, %c0_44, %c0_45] : memref<9x32x32xbf16, #tpu.memory_space<vmem>>, vector<1x32x32xbf16>
    %50 = vector.shape_cast %49 : vector<1x32x32xbf16> to vector<32x32xbf16>
    %cst_46 = arith.constant dense<0.000000e+00> : vector<192x32xf32>
    %51 = tpu.matmul %48, %50, %cst_46 {dimension_numbers = #tpu.dot_dimension_numbers<[1], [0], [0], [1], [0, 0, 1, 1], [], []>} : vector<192x32xbf16>, vector<32x32xbf16>, vector<192x32xf32> -> vector<192x32xf32>
    %52 = arith.addf %47, %51 : vector<192x32xf32>
    %c72 = arith.constant 72 : index
    %c0_47 = arith.constant 0 : index
    %53 = vector.load %arg8[%c72, %c0_47] : memref<272x32xbf16, #tpu.memory_space<vmem>>, vector<192x32xbf16>
    %c7 = arith.constant 7 : index
    %c0_48 = arith.constant 0 : index
    %c0_49 = arith.constant 0 : index
    %54 = vector.load %arg5[%c7, %c0_48, %c0_49] : memref<9x32x32xbf16, #tpu.memory_space<vmem>>, vector<1x32x32xbf16>
    %55 = vector.shape_cast %54 : vector<1x32x32xbf16> to vector<32x32xbf16>
    %cst_50 = arith.constant dense<0.000000e+00> : vector<192x32xf32>
    %56 = tpu.matmul %53, %55, %cst_50 {dimension_numbers = #tpu.dot_dimension_numbers<[1], [0], [0], [1], [0, 0, 1, 1], [], []>} : vector<192x32xbf16>, vector<32x32xbf16>, vector<192x32xf32> -> vector<192x32xf32>
    %57 = arith.addf %52, %56 : vector<192x32xf32>
    %c73 = arith.constant 73 : index
    %c0_51 = arith.constant 0 : index
    %58 = vector.load %arg8[%c73, %c0_51] : memref<272x32xbf16, #tpu.memory_space<vmem>>, vector<192x32xbf16>
    %c8 = arith.constant 8 : index
    %c0_52 = arith.constant 0 : index
    %c0_53 = arith.constant 0 : index
    %59 = vector.load %arg5[%c8, %c0_52, %c0_53] : memref<9x32x32xbf16, #tpu.memory_space<vmem>>, vector<1x32x32xbf16>
    %60 = vector.shape_cast %59 : vector<1x32x32xbf16> to vector<32x32xbf16>
    %cst_54 = arith.constant dense<0.000000e+00> : vector<192x32xf32>
    %61 = tpu.matmul %58, %60, %cst_54 {dimension_numbers = #tpu.dot_dimension_numbers<[1], [0], [0], [1], [0, 0, 1, 1], [], []>} : vector<192x32xbf16>, vector<32x32xbf16>, vector<192x32xf32> -> vector<192x32xf32>
    %62 = arith.addf %57, %61 : vector<192x32xf32>
    %c0_55 = arith.constant 0 : index
    %c0_56 = arith.constant 0 : index
    %63 = vector.load %arg6[%c0_55, %c0_56] : memref<1x32xf32, #tpu.memory_space<vmem>>, vector<1x32xf32>
    %64 = vector.shape_cast %63 : vector<1x32xf32> to vector<32xf32>
    %65 = vector.shape_cast %64 : vector<32xf32> to vector<1x32xf32>
    %66 = vector.broadcast %65 : vector<1x32xf32> to vector<192x32xf32>
    %67 = arith.addf %62, %66 : vector<192x32xf32>
    %cst_57 = arith.constant 5.000000e-01 : f32
    %68 = vector.broadcast %cst_57 : f32 to vector<192x32xf32>
    %69 = arith.mulf %68, %67 : vector<192x32xf32>
    %cst_58 = arith.constant 4.471500e-02 : f32
    %70 = vector.broadcast %cst_58 : f32 to vector<192x32xf32>
    %71 = arith.mulf %70, %67 : vector<192x32xf32>
    %72 = arith.mulf %71, %67 : vector<192x32xf32>
    %73 = arith.mulf %72, %67 : vector<192x32xf32>
    %74 = arith.addf %67, %73 : vector<192x32xf32>
    %cst_59 = arith.constant 0.797884583 : f32
    %75 = vector.broadcast %cst_59 : f32 to vector<192x32xf32>
    %76 = arith.mulf %75, %74 : vector<192x32xf32>
    %77 = math.tanh %76 : vector<192x32xf32>
    %cst_60 = arith.constant 1.000000e+00 : f32
    %78 = vector.broadcast %cst_60 : f32 to vector<192x32xf32>
    %79 = arith.addf %78, %77 : vector<192x32xf32>
    %80 = arith.mulf %69, %79 : vector<192x32xf32>
    %81 = tpu.iota {dimensions = array<i32: 0>} : vector<192x1xi32>
    %c24_i32 = arith.constant 24 : i32
    %c0_i32_61 = arith.constant 0 : i32
    %82 = arith.cmpi eq, %c24_i32, %c0_i32_61 : i32
    %c1_i32_62 = arith.constant 1 : i32
    %83 = arith.select %82, %c1_i32_62, %c24_i32 : i32
    %84 = vector.broadcast %83 : i32 to vector<192x1xi32>
    %85 = arith.remsi %81, %84 : vector<192x1xi32>
    %c0_i32_63 = arith.constant 0 : i32
    %86 = vector.broadcast %c0_i32_63 : i32 to vector<192x1xi32>
    %87 = arith.cmpi ne, %85, %86 : vector<192x1xi32>
    %c0_i32_64 = arith.constant 0 : i32
    %88 = vector.broadcast %c0_i32_64 : i32 to vector<192x1xi32>
    %89 = arith.cmpi slt, %85, %88 : vector<192x1xi32>
    %c0_i32_65 = arith.constant 0 : i32
    %90 = arith.cmpi slt, %83, %c0_i32_65 : i32
    %91 = vector.broadcast %90 : i1 to vector<192x1xi1>
    %92 = vector.broadcast %91 : vector<192x1xi1> to vector<192x1xi1>
    %93 = arith.xori %89, %92 : vector<192x1xi1>
    %94 = arith.andi %93, %87 : vector<192x1xi1>
    %95 = vector.broadcast %83 : i32 to vector<192x1xi32>
    %96 = arith.addi %85, %95 : vector<192x1xi32>
    %97 = arith.select %94, %96, %85 : vector<192x1xi1>, vector<192x1xi32>
    %c16_i32 = arith.constant 16 : i32
    %98 = vector.broadcast %c16_i32 : i32 to vector<192x1xi32>
    %99 = arith.cmpi slt, %97, %98 : vector<192x1xi32>
    %cst_66 = arith.constant 0.000000e+00 : f32
    %100 = vector.broadcast %cst_66 : f32 to vector<192x32xf32>
    %101 = vector.shape_cast %99 : vector<192x1xi1> to vector<192x1xi1>
    %102 = vector.broadcast %101 : vector<192x1xi1> to vector<192x32xi1>
    %103 = arith.select %102, %80, %100 : vector<192x32xi1>, vector<192x32xf32>
    %104 = arith.truncf %103 : vector<192x32xf32> to vector<192x32xbf16>
    %c0_67 = arith.constant 0 : index
    %c0_68 = arith.constant 0 : index
    %c0_69 = arith.constant 0 : index
    %105 = vector.load %arg7[%c0_67, %c0_68, %c0_69] : memref<1x192x32xbf16, #tpu.memory_space<vmem>>, vector<1x192x32xbf16>
    %106 = vector.shape_cast %105 : vector<1x192x32xbf16> to vector<192x32xbf16>
    %107 = vector.shape_cast %104 : vector<192x32xbf16> to vector<1x192x32xbf16>
    tpu.vector_store %arg7[%c0_67, %c0_68, %c0_69], %107 {strides = array<i32>} : memref<1x192x32xbf16, #tpu.memory_space<vmem>>, vector<1x192x32xbf16>,
    return
  }
  func.func @transform_0(%arg0: i32, %arg1: i32) -> (i32, i32, i32) {
    %c0_i32 = arith.constant 0 : i32
    %c0_i32_0 = arith.constant 0 : i32
    return %arg0, %arg1, %c0_i32 : i32, i32, i32
  }
  func.func @transform_1(%arg0: i32, %arg1: i32) -> (i32, i32, i32) {
    %c8_i32 = arith.constant 8 : i32
    %0 = arith.muli %arg1, %c8_i32 : i32
    %c1_i32 = arith.constant 1 : i32
    %1 = arith.subi %0, %c1_i32 : i32
    %c0_i32 = arith.constant 0 : i32
    %2 = arith.maxsi %1, %c0_i32 : i32
    %c0_i32_0 = arith.constant 0 : i32
    %c0_i32_1 = arith.constant 0 : i32
    return %arg0, %2, %c0_i32_0 : i32, i32, i32
  }
  func.func @transform_2(%arg0: i32, %arg1: i32) -> (i32, i32, i32) {
    %c8_i32 = arith.constant 8 : i32
    %0 = arith.muli %arg1, %c8_i32 : i32
    %c8_i32_0 = arith.constant 8 : i32
    %1 = arith.addi %0, %c8_i32_0 : i32
    %c15_i32 = arith.constant 15 : i32
    %2 = arith.minsi %1, %c15_i32 : i32
    %c0_i32 = arith.constant 0 : i32
    %c0_i32_1 = arith.constant 0 : i32
    return %arg0, %2, %c0_i32 : i32, i32, i32
  }
  func.func @transform_3(%arg0: i32, %arg1: i32) -> (i32, i32, i32) {
    %c0_i32 = arith.constant 0 : i32
    %c0_i32_0 = arith.constant 0 : i32
    %c0_i32_1 = arith.constant 0 : i32
    %c0_i32_2 = arith.constant 0 : i32
    return %c0_i32, %c0_i32_0, %c0_i32_1 : i32, i32, i32
  }
  func.func @transform_4(%arg0: i32, %arg1: i32) -> (i32, i32) {
    %c0_i32 = arith.constant 0 : i32
    %c0_i32_0 = arith.constant 0 : i32
    %c0_i32_1 = arith.constant 0 : i32
    return %c0_i32, %c0_i32_0 : i32, i32
  }
  func.func @transform_5(%arg0: i32, %arg1: i32) -> (i32, i32, i32) {
    %c0_i32 = arith.constant 0 : i32
    %c0_i32_0 = arith.constant 0 : i32
    return %arg0, %arg1, %c0_i32 : i32, i32, i32
  }
}

module attributes {stable_mosaic.version = 11 : i64} {
  func.func @_convcat_cls_kernel(%arg0: i32, %arg1: i32, %arg2: memref<1x192x32xbf16, #tpu.memory_space<vmem>>, %arg3: memref<1x24x32xbf16, #tpu.memory_space<vmem>>, %arg4: memref<1x24x32xbf16, #tpu.memory_space<vmem>>, %arg5: memref<1x192x32xbf16, #tpu.memory_space<vmem>>, %arg6: memref<1x24x32xbf16, #tpu.memory_space<vmem>>, %arg7: memref<1x24x32xbf16, #tpu.memory_space<vmem>>, %arg8: memref<9x64x32xbf16, #tpu.memory_space<vmem>>, %arg9: memref<1x32xf32, #tpu.memory_space<vmem>>, %arg10: memref<32x128xbf16, #tpu.memory_space<vmem>>, %arg11: memref<1x128xf32, #tpu.memory_space<vmem>>, %arg12: memref<1x192x128xbf16, #tpu.memory_space<vmem>>, %arg13: memref<272x64xbf16, #tpu.memory_space<vmem>>) attributes {dimension_semantics = [#tpu.dimension_semantics<parallel>, #tpu.dimension_semantics<parallel>], iteration_bounds = array<i64: 2, 2>, scalar_prefetch = 0 : i64, scratch_operands = 1 : i64, tpu.core_type = #tpu.core_type<tc>, window_params = [{transform_indices = @transform_0, window_bounds = array<i64: 1, 192, 32>}, {transform_indices = @transform_1, window_bounds = array<i64: 1, 24, 32>}, {transform_indices = @transform_2, window_bounds = array<i64: 1, 24, 32>}, {transform_indices = @transform_3, window_bounds = array<i64: 1, 192, 32>}, {transform_indices = @transform_4, window_bounds = array<i64: 1, 24, 32>}, {transform_indices = @transform_5, window_bounds = array<i64: 1, 24, 32>}, {pipeline_mode = #tpu.pipeline_mode<synchronous>, transform_indices = @transform_6, window_bounds = array<i64: 9, 64, 32>}, {pipeline_mode = #tpu.pipeline_mode<synchronous>, transform_indices = @transform_7, window_bounds = array<i64: 1, 32>}, {pipeline_mode = #tpu.pipeline_mode<synchronous>, transform_indices = @transform_8, window_bounds = array<i64: 32, 128>}, {pipeline_mode = #tpu.pipeline_mode<synchronous>, transform_indices = @transform_9, window_bounds = array<i64: 1, 128>}, {transform_indices = @transform_10, window_bounds = array<i64: 1, 192, 128>}]} {
    %c0_i32 = arith.constant 0 : i32
    %0 = arith.cmpi eq, %arg1, %c0_i32 : i32
    %c1_i32 = arith.constant 1 : i32
    %1 = arith.cmpi eq, %arg1, %c1_i32 : i32
    %cst = arith.constant 0.000000e+00 : bf16
    %2 = vector.broadcast %cst : bf16 to vector<1x64xbf16>
    %c23 = arith.constant 23 : index
    %c0 = arith.constant 0 : index
    %3 = vector.load %arg13[%c23, %c0] : memref<272x64xbf16, #tpu.memory_space<vmem>>, vector<1x64xbf16>
    tpu.vector_store %arg13[%c23, %c0], %2 {strides = array<i32>} : memref<272x64xbf16, #tpu.memory_space<vmem>>, vector<1x64xbf16>,
    %c0_0 = arith.constant 0 : index
    %c0_1 = arith.constant 0 : index
    %c0_2 = arith.constant 0 : index
    %4 = vector.load %arg3[%c0_0, %c0_1, %c0_2] : memref<1x24x32xbf16, #tpu.memory_space<vmem>>, vector<1x24x32xbf16>
    %5 = vector.shape_cast %4 : vector<1x24x32xbf16> to vector<24x32xbf16>
    %c0_3 = arith.constant 0 : index
    %c0_4 = arith.constant 0 : index
    %c0_5 = arith.constant 0 : index
    %6 = vector.load %arg4[%c0_3, %c0_4, %c0_5] : memref<1x24x32xbf16, #tpu.memory_space<vmem>>, vector<1x24x32xbf16>
    %7 = vector.shape_cast %6 : vector<1x24x32xbf16> to vector<24x32xbf16>
    %cst_6 = arith.constant 0.000000e+00 : bf16
    %8 = vector.broadcast %cst_6 : bf16 to vector<24x32xbf16>
    %9 = arith.select %0, %8, %5 : vector<24x32xbf16>
    %c24 = arith.constant 24 : index
    %c0_7 = arith.constant 0 : index
    %10 = vector.load %arg13[%c24, %c0_7] : memref<272x64xbf16, #tpu.memory_space<vmem>>, vector<24x32xbf16>
    tpu.vector_store %arg13[%c24, %c0_7], %9 {strides = array<i32>} : memref<272x64xbf16, #tpu.memory_space<vmem>>, vector<24x32xbf16>,
    %c0_8 = arith.constant 0 : index
    %c0_9 = arith.constant 0 : index
    %c0_10 = arith.constant 0 : index
    %11 = vector.load %arg2[%c0_8, %c0_9, %c0_10] : memref<1x192x32xbf16, #tpu.memory_space<vmem>>, vector<1x192x32xbf16>
    %12 = vector.shape_cast %11 : vector<1x192x32xbf16> to vector<192x32xbf16>
    %c48 = arith.constant 48 : index
    %c0_11 = arith.constant 0 : index
    %13 = vector.load %arg13[%c48, %c0_11] : memref<272x64xbf16, #tpu.memory_space<vmem>>, vector<192x32xbf16>
    tpu.vector_store %arg13[%c48, %c0_11], %12 {strides = array<i32>} : memref<272x64xbf16, #tpu.memory_space<vmem>>, vector<192x32xbf16>,
    %cst_12 = arith.constant 0.000000e+00 : bf16
    %14 = vector.broadcast %cst_12 : bf16 to vector<24x32xbf16>
    %15 = arith.select %1, %14, %7 : vector<24x32xbf16>
    %c240 = arith.constant 240 : index
    %c0_13 = arith.constant 0 : index
    %16 = vector.load %arg13[%c240, %c0_13] : memref<272x64xbf16, #tpu.memory_space<vmem>>, vector<24x32xbf16>
    tpu.vector_store %arg13[%c240, %c0_13], %15 {strides = array<i32>} : memref<272x64xbf16, #tpu.memory_space<vmem>>, vector<24x32xbf16>,
    %c0_14 = arith.constant 0 : index
    %c0_15 = arith.constant 0 : index
    %c0_16 = arith.constant 0 : index
    %17 = vector.load %arg6[%c0_14, %c0_15, %c0_16] : memref<1x24x32xbf16, #tpu.memory_space<vmem>>, vector<1x24x32xbf16>
    %18 = vector.shape_cast %17 : vector<1x24x32xbf16> to vector<24x32xbf16>
    %c0_17 = arith.constant 0 : index
    %c0_18 = arith.constant 0 : index
    %c0_19 = arith.constant 0 : index
    %19 = vector.load %arg7[%c0_17, %c0_18, %c0_19] : memref<1x24x32xbf16, #tpu.memory_space<vmem>>, vector<1x24x32xbf16>
    %20 = vector.shape_cast %19 : vector<1x24x32xbf16> to vector<24x32xbf16>
    %cst_20 = arith.constant 0.000000e+00 : bf16
    %21 = vector.broadcast %cst_20 : bf16 to vector<24x32xbf16>
    %22 = arith.select %0, %21, %18 : vector<24x32xbf16>
    %c24_21 = arith.constant 24 : index
    %c32 = arith.constant 32 : index
    %23 = vector.load %arg13[%c24_21, %c32] : memref<272x64xbf16, #tpu.memory_space<vmem>>, vector<24x32xbf16>
    tpu.vector_store %arg13[%c24_21, %c32], %22 {strides = array<i32>} : memref<272x64xbf16, #tpu.memory_space<vmem>>, vector<24x32xbf16>,
    %c0_22 = arith.constant 0 : index
    %c0_23 = arith.constant 0 : index
    %c0_24 = arith.constant 0 : index
    %24 = vector.load %arg5[%c0_22, %c0_23, %c0_24] : memref<1x192x32xbf16, #tpu.memory_space<vmem>>, vector<1x192x32xbf16>
    %25 = vector.shape_cast %24 : vector<1x192x32xbf16> to vector<192x32xbf16>
    %c48_25 = arith.constant 48 : index
    %c32_26 = arith.constant 32 : index
    %26 = vector.load %arg13[%c48_25, %c32_26] : memref<272x64xbf16, #tpu.memory_space<vmem>>, vector<192x32xbf16>
    tpu.vector_store %arg13[%c48_25, %c32_26], %25 {strides = array<i32>} : memref<272x64xbf16, #tpu.memory_space<vmem>>, vector<192x32xbf16>,
    %cst_27 = arith.constant 0.000000e+00 : bf16
    %27 = vector.broadcast %cst_27 : bf16 to vector<24x32xbf16>
    %28 = arith.select %1, %27, %20 : vector<24x32xbf16>
    %c240_28 = arith.constant 240 : index
    %c32_29 = arith.constant 32 : index
    %29 = vector.load %arg13[%c240_28, %c32_29] : memref<272x64xbf16, #tpu.memory_space<vmem>>, vector<24x32xbf16>
    tpu.vector_store %arg13[%c240_28, %c32_29], %28 {strides = array<i32>} : memref<272x64xbf16, #tpu.memory_space<vmem>>, vector<24x32xbf16>,
    %cst_30 = arith.constant 0.000000e+00 : f32
    %30 = vector.broadcast %cst_30 : f32 to vector<192x32xf32>
    %c23_31 = arith.constant 23 : index
    %c0_32 = arith.constant 0 : index
    %31 = vector.load %arg13[%c23_31, %c0_32] : memref<272x64xbf16, #tpu.memory_space<vmem>>, vector<192x64xbf16>
    %c0_33 = arith.constant 0 : index
    %c0_34 = arith.constant 0 : index
    %c0_35 = arith.constant 0 : index
    %32 = vector.load %arg8[%c0_33, %c0_34, %c0_35] : memref<9x64x32xbf16, #tpu.memory_space<vmem>>, vector<1x64x32xbf16>
    %33 = vector.shape_cast %32 : vector<1x64x32xbf16> to vector<64x32xbf16>
    %cst_36 = arith.constant dense<0.000000e+00> : vector<192x32xf32>
    %34 = tpu.matmul %31, %33, %cst_36 {dimension_numbers = #tpu.dot_dimension_numbers<[1], [0], [0], [1], [0, 0, 1, 1], [], []>} : vector<192x64xbf16>, vector<64x32xbf16>, vector<192x32xf32> -> vector<192x32xf32>
    %35 = arith.addf %30, %34 : vector<192x32xf32>
    %c24_37 = arith.constant 24 : index
    %c0_38 = arith.constant 0 : index
    %36 = vector.load %arg13[%c24_37, %c0_38] : memref<272x64xbf16, #tpu.memory_space<vmem>>, vector<192x64xbf16>
    %c1 = arith.constant 1 : index
    %c0_39 = arith.constant 0 : index
    %c0_40 = arith.constant 0 : index
    %37 = vector.load %arg8[%c1, %c0_39, %c0_40] : memref<9x64x32xbf16, #tpu.memory_space<vmem>>, vector<1x64x32xbf16>
    %38 = vector.shape_cast %37 : vector<1x64x32xbf16> to vector<64x32xbf16>
    %cst_41 = arith.constant dense<0.000000e+00> : vector<192x32xf32>
    %39 = tpu.matmul %36, %38, %cst_41 {dimension_numbers = #tpu.dot_dimension_numbers<[1], [0], [0], [1], [0, 0, 1, 1], [], []>} : vector<192x64xbf16>, vector<64x32xbf16>, vector<192x32xf32> -> vector<192x32xf32>
    %40 = arith.addf %35, %39 : vector<192x32xf32>
    %c25 = arith.constant 25 : index
    %c0_42 = arith.constant 0 : index
    %41 = vector.load %arg13[%c25, %c0_42] : memref<272x64xbf16, #tpu.memory_space<vmem>>, vector<192x64xbf16>
    %c2 = arith.constant 2 : index
    %c0_43 = arith.constant 0 : index
    %c0_44 = arith.constant 0 : index
    %42 = vector.load %arg8[%c2, %c0_43, %c0_44] : memref<9x64x32xbf16, #tpu.memory_space<vmem>>, vector<1x64x32xbf16>
    %43 = vector.shape_cast %42 : vector<1x64x32xbf16> to vector<64x32xbf16>
    %cst_45 = arith.constant dense<0.000000e+00> : vector<192x32xf32>
    %44 = tpu.matmul %41, %43, %cst_45 {dimension_numbers = #tpu.dot_dimension_numbers<[1], [0], [0], [1], [0, 0, 1, 1], [], []>} : vector<192x64xbf16>, vector<64x32xbf16>, vector<192x32xf32> -> vector<192x32xf32>
    %45 = arith.addf %40, %44 : vector<192x32xf32>
    %c47 = arith.constant 47 : index
    %c0_46 = arith.constant 0 : index
    %46 = vector.load %arg13[%c47, %c0_46] : memref<272x64xbf16, #tpu.memory_space<vmem>>, vector<192x64xbf16>
    %c3 = arith.constant 3 : index
    %c0_47 = arith.constant 0 : index
    %c0_48 = arith.constant 0 : index
    %47 = vector.load %arg8[%c3, %c0_47, %c0_48] : memref<9x64x32xbf16, #tpu.memory_space<vmem>>, vector<1x64x32xbf16>
    %48 = vector.shape_cast %47 : vector<1x64x32xbf16> to vector<64x32xbf16>
    %cst_49 = arith.constant dense<0.000000e+00> : vector<192x32xf32>
    %49 = tpu.matmul %46, %48, %cst_49 {dimension_numbers = #tpu.dot_dimension_numbers<[1], [0], [0], [1], [0, 0, 1, 1], [], []>} : vector<192x64xbf16>, vector<64x32xbf16>, vector<192x32xf32> -> vector<192x32xf32>
    %50 = arith.addf %45, %49 : vector<192x32xf32>
    %c48_50 = arith.constant 48 : index
    %c0_51 = arith.constant 0 : index
    %51 = vector.load %arg13[%c48_50, %c0_51] : memref<272x64xbf16, #tpu.memory_space<vmem>>, vector<192x64xbf16>
    %c4 = arith.constant 4 : index
    %c0_52 = arith.constant 0 : index
    %c0_53 = arith.constant 0 : index
    %52 = vector.load %arg8[%c4, %c0_52, %c0_53] : memref<9x64x32xbf16, #tpu.memory_space<vmem>>, vector<1x64x32xbf16>
    %53 = vector.shape_cast %52 : vector<1x64x32xbf16> to vector<64x32xbf16>
    %cst_54 = arith.constant dense<0.000000e+00> : vector<192x32xf32>
    %54 = tpu.matmul %51, %53, %cst_54 {dimension_numbers = #tpu.dot_dimension_numbers<[1], [0], [0], [1], [0, 0, 1, 1], [], []>} : vector<192x64xbf16>, vector<64x32xbf16>, vector<192x32xf32> -> vector<192x32xf32>
    %55 = arith.addf %50, %54 : vector<192x32xf32>
    %c49 = arith.constant 49 : index
    %c0_55 = arith.constant 0 : index
    %56 = vector.load %arg13[%c49, %c0_55] : memref<272x64xbf16, #tpu.memory_space<vmem>>, vector<192x64xbf16>
    %c5 = arith.constant 5 : index
    %c0_56 = arith.constant 0 : index
    %c0_57 = arith.constant 0 : index
    %57 = vector.load %arg8[%c5, %c0_56, %c0_57] : memref<9x64x32xbf16, #tpu.memory_space<vmem>>, vector<1x64x32xbf16>
    %58 = vector.shape_cast %57 : vector<1x64x32xbf16> to vector<64x32xbf16>
    %cst_58 = arith.constant dense<0.000000e+00> : vector<192x32xf32>
    %59 = tpu.matmul %56, %58, %cst_58 {dimension_numbers = #tpu.dot_dimension_numbers<[1], [0], [0], [1], [0, 0, 1, 1], [], []>} : vector<192x64xbf16>, vector<64x32xbf16>, vector<192x32xf32> -> vector<192x32xf32>
    %60 = arith.addf %55, %59 : vector<192x32xf32>
    %c71 = arith.constant 71 : index
    %c0_59 = arith.constant 0 : index
    %61 = vector.load %arg13[%c71, %c0_59] : memref<272x64xbf16, #tpu.memory_space<vmem>>, vector<192x64xbf16>
    %c6 = arith.constant 6 : index
    %c0_60 = arith.constant 0 : index
    %c0_61 = arith.constant 0 : index
    %62 = vector.load %arg8[%c6, %c0_60, %c0_61] : memref<9x64x32xbf16, #tpu.memory_space<vmem>>, vector<1x64x32xbf16>
    %63 = vector.shape_cast %62 : vector<1x64x32xbf16> to vector<64x32xbf16>
    %cst_62 = arith.constant dense<0.000000e+00> : vector<192x32xf32>
    %64 = tpu.matmul %61, %63, %cst_62 {dimension_numbers = #tpu.dot_dimension_numbers<[1], [0], [0], [1], [0, 0, 1, 1], [], []>} : vector<192x64xbf16>, vector<64x32xbf16>, vector<192x32xf32> -> vector<192x32xf32>
    %65 = arith.addf %60, %64 : vector<192x32xf32>
    %c72 = arith.constant 72 : index
    %c0_63 = arith.constant 0 : index
    %66 = vector.load %arg13[%c72, %c0_63] : memref<272x64xbf16, #tpu.memory_space<vmem>>, vector<192x64xbf16>
    %c7 = arith.constant 7 : index
    %c0_64 = arith.constant 0 : index
    %c0_65 = arith.constant 0 : index
    %67 = vector.load %arg8[%c7, %c0_64, %c0_65] : memref<9x64x32xbf16, #tpu.memory_space<vmem>>, vector<1x64x32xbf16>
    %68 = vector.shape_cast %67 : vector<1x64x32xbf16> to vector<64x32xbf16>
    %cst_66 = arith.constant dense<0.000000e+00> : vector<192x32xf32>
    %69 = tpu.matmul %66, %68, %cst_66 {dimension_numbers = #tpu.dot_dimension_numbers<[1], [0], [0], [1], [0, 0, 1, 1], [], []>} : vector<192x64xbf16>, vector<64x32xbf16>, vector<192x32xf32> -> vector<192x32xf32>
    %70 = arith.addf %65, %69 : vector<192x32xf32>
    %c73 = arith.constant 73 : index
    %c0_67 = arith.constant 0 : index
    %71 = vector.load %arg13[%c73, %c0_67] : memref<272x64xbf16, #tpu.memory_space<vmem>>, vector<192x64xbf16>
    %c8 = arith.constant 8 : index
    %c0_68 = arith.constant 0 : index
    %c0_69 = arith.constant 0 : index
    %72 = vector.load %arg8[%c8, %c0_68, %c0_69] : memref<9x64x32xbf16, #tpu.memory_space<vmem>>, vector<1x64x32xbf16>
    %73 = vector.shape_cast %72 : vector<1x64x32xbf16> to vector<64x32xbf16>
    %cst_70 = arith.constant dense<0.000000e+00> : vector<192x32xf32>
    %74 = tpu.matmul %71, %73, %cst_70 {dimension_numbers = #tpu.dot_dimension_numbers<[1], [0], [0], [1], [0, 0, 1, 1], [], []>} : vector<192x64xbf16>, vector<64x32xbf16>, vector<192x32xf32> -> vector<192x32xf32>
    %75 = arith.addf %70, %74 : vector<192x32xf32>
    %c0_71 = arith.constant 0 : index
    %c0_72 = arith.constant 0 : index
    %76 = vector.load %arg9[%c0_71, %c0_72] : memref<1x32xf32, #tpu.memory_space<vmem>>, vector<1x32xf32>
    %77 = vector.shape_cast %76 : vector<1x32xf32> to vector<32xf32>
    %78 = vector.shape_cast %77 : vector<32xf32> to vector<1x32xf32>
    %79 = vector.broadcast %78 : vector<1x32xf32> to vector<192x32xf32>
    %80 = arith.addf %75, %79 : vector<192x32xf32>
    %cst_73 = arith.constant 5.000000e-01 : f32
    %81 = vector.broadcast %cst_73 : f32 to vector<192x32xf32>
    %82 = arith.mulf %81, %80 : vector<192x32xf32>
    %cst_74 = arith.constant 4.471500e-02 : f32
    %83 = vector.broadcast %cst_74 : f32 to vector<192x32xf32>
    %84 = arith.mulf %83, %80 : vector<192x32xf32>
    %85 = arith.mulf %84, %80 : vector<192x32xf32>
    %86 = arith.mulf %85, %80 : vector<192x32xf32>
    %87 = arith.addf %80, %86 : vector<192x32xf32>
    %cst_75 = arith.constant 0.797884583 : f32
    %88 = vector.broadcast %cst_75 : f32 to vector<192x32xf32>
    %89 = arith.mulf %88, %87 : vector<192x32xf32>
    %90 = math.tanh %89 : vector<192x32xf32>
    %cst_76 = arith.constant 1.000000e+00 : f32
    %91 = vector.broadcast %cst_76 : f32 to vector<192x32xf32>
    %92 = arith.addf %91, %90 : vector<192x32xf32>
    %93 = arith.mulf %82, %92 : vector<192x32xf32>
    %94 = arith.truncf %93 : vector<192x32xf32> to vector<192x32xbf16>
    %c0_77 = arith.constant 0 : index
    %c0_78 = arith.constant 0 : index
    %95 = vector.load %arg10[%c0_77, %c0_78] : memref<32x128xbf16, #tpu.memory_space<vmem>>, vector<32x128xbf16>
    %cst_79 = arith.constant dense<0.000000e+00> : vector<192x128xf32>
    %96 = tpu.matmul %94, %95, %cst_79 {dimension_numbers = #tpu.dot_dimension_numbers<[1], [0], [0], [1], [0, 0, 1, 1], [], []>} : vector<192x32xbf16>, vector<32x128xbf16>, vector<192x128xf32> -> vector<192x128xf32>
    %c0_80 = arith.constant 0 : index
    %c0_81 = arith.constant 0 : index
    %97 = vector.load %arg11[%c0_80, %c0_81] : memref<1x128xf32, #tpu.memory_space<vmem>>, vector<1x128xf32>
    %98 = vector.shape_cast %97 : vector<1x128xf32> to vector<128xf32>
    %99 = vector.shape_cast %98 : vector<128xf32> to vector<1x128xf32>
    %100 = vector.broadcast %99 : vector<1x128xf32> to vector<192x128xf32>
    %101 = arith.addf %96, %100 : vector<192x128xf32>
    %102 = arith.truncf %101 : vector<192x128xf32> to vector<192x128xbf16>
    %c0_82 = arith.constant 0 : index
    %c0_83 = arith.constant 0 : index
    %c0_84 = arith.constant 0 : index
    %103 = vector.load %arg12[%c0_82, %c0_83, %c0_84] : memref<1x192x128xbf16, #tpu.memory_space<vmem>>, vector<1x192x128xbf16>
    %104 = vector.shape_cast %103 : vector<1x192x128xbf16> to vector<192x128xbf16>
    %105 = vector.shape_cast %102 : vector<192x128xbf16> to vector<1x192x128xbf16>
    tpu.vector_store %arg12[%c0_82, %c0_83, %c0_84], %105 {strides = array<i32>} : memref<1x192x128xbf16, #tpu.memory_space<vmem>>, vector<1x192x128xbf16>,
    return
  }
  func.func @transform_0(%arg0: i32, %arg1: i32) -> (i32, i32, i32) {
    %c0_i32 = arith.constant 0 : i32
    %c0_i32_0 = arith.constant 0 : i32
    return %arg0, %arg1, %c0_i32 : i32, i32, i32
  }
  func.func @transform_1(%arg0: i32, %arg1: i32) -> (i32, i32, i32) {
    %c8_i32 = arith.constant 8 : i32
    %0 = arith.muli %arg1, %c8_i32 : i32
    %c1_i32 = arith.constant 1 : i32
    %1 = arith.subi %0, %c1_i32 : i32
    %c0_i32 = arith.constant 0 : i32
    %2 = arith.maxsi %1, %c0_i32 : i32
    %c0_i32_0 = arith.constant 0 : i32
    %c0_i32_1 = arith.constant 0 : i32
    return %arg0, %2, %c0_i32_0 : i32, i32, i32
  }
  func.func @transform_2(%arg0: i32, %arg1: i32) -> (i32, i32, i32) {
    %c8_i32 = arith.constant 8 : i32
    %0 = arith.muli %arg1, %c8_i32 : i32
    %c8_i32_0 = arith.constant 8 : i32
    %1 = arith.addi %0, %c8_i32_0 : i32
    %c15_i32 = arith.constant 15 : i32
    %2 = arith.minsi %1, %c15_i32 : i32
    %c0_i32 = arith.constant 0 : i32
    %c0_i32_1 = arith.constant 0 : i32
    return %arg0, %2, %c0_i32 : i32, i32, i32
  }
  func.func @transform_3(%arg0: i32, %arg1: i32) -> (i32, i32, i32) {
    %c0_i32 = arith.constant 0 : i32
    %c0_i32_0 = arith.constant 0 : i32
    return %arg0, %arg1, %c0_i32 : i32, i32, i32
  }
  func.func @transform_4(%arg0: i32, %arg1: i32) -> (i32, i32, i32) {
    %c8_i32 = arith.constant 8 : i32
    %0 = arith.muli %arg1, %c8_i32 : i32
    %c1_i32 = arith.constant 1 : i32
    %1 = arith.subi %0, %c1_i32 : i32
    %c0_i32 = arith.constant 0 : i32
    %2 = arith.maxsi %1, %c0_i32 : i32
    %c0_i32_0 = arith.constant 0 : i32
    %c0_i32_1 = arith.constant 0 : i32
    return %arg0, %2, %c0_i32_0 : i32, i32, i32
  }
  func.func @transform_5(%arg0: i32, %arg1: i32) -> (i32, i32, i32) {
    %c8_i32 = arith.constant 8 : i32
    %0 = arith.muli %arg1, %c8_i32 : i32
    %c8_i32_0 = arith.constant 8 : i32
    %1 = arith.addi %0, %c8_i32_0 : i32
    %c15_i32 = arith.constant 15 : i32
    %2 = arith.minsi %1, %c15_i32 : i32
    %c0_i32 = arith.constant 0 : i32
    %c0_i32_1 = arith.constant 0 : i32
    return %arg0, %2, %c0_i32 : i32, i32, i32
  }
  func.func @transform_6(%arg0: i32, %arg1: i32) -> (i32, i32, i32) {
    %c0_i32 = arith.constant 0 : i32
    %c0_i32_0 = arith.constant 0 : i32
    %c0_i32_1 = arith.constant 0 : i32
    %c0_i32_2 = arith.constant 0 : i32
    return %c0_i32, %c0_i32_0, %c0_i32_1 : i32, i32, i32
  }
  func.func @transform_7(%arg0: i32, %arg1: i32) -> (i32, i32) {
    %c0_i32 = arith.constant 0 : i32
    %c0_i32_0 = arith.constant 0 : i32
    %c0_i32_1 = arith.constant 0 : i32
    return %c0_i32, %c0_i32_0 : i32, i32
  }
  func.func @transform_8(%arg0: i32, %arg1: i32) -> (i32, i32) {
    %c0_i32 = arith.constant 0 : i32
    %c0_i32_0 = arith.constant 0 : i32
    %c0_i32_1 = arith.constant 0 : i32
    return %c0_i32, %c0_i32_0 : i32, i32
  }
  func.func @transform_9(%arg0: i32, %arg1: i32) -> (i32, i32) {
    %c0_i32 = arith.constant 0 : i32
    %c0_i32_0 = arith.constant 0 : i32
    %c0_i32_1 = arith.constant 0 : i32
    return %c0_i32, %c0_i32_0 : i32, i32
  }
  func.func @transform_10(%arg0: i32, %arg1: i32) -> (i32, i32, i32) {
    %c0_i32 = arith.constant 0 : i32
    %c0_i32_0 = arith.constant 0 : i32
    return %arg0, %arg1, %c0_i32 : i32, i32, i32
  }
}

</mosaic_0001>

<llo_original>
// kernel: fcn_head_forward.3
$region0: #{fcn_head_forward.3}
  #allocation0 [shape = 'u32[]', space=smem, size = 0x4, offset = 0x4, fixed_abs, tag = 'smem constant byte address 0x4 - core index']
  #allocation1 [shape = 'u32[144,128]{1,0:T(1,128)}', space=vmem, size = 0x12000, scoped, tag = 'internal scratch']
  #allocation2 [shape = 'bf16[272,32]{1,0:T(16,128)(2,1)}', space=vmem, size = 0x11000, scoped, tag = 'scratch operand']
  %s0 = inlined_call_operand.vmem [shape: bf16[2,384,32], index: 0, kind: input, shape index: {}, may-alias: {0,1,2}]
  %s1 = inlined_call_operand.vmem [shape: bf16[2,384,32], index: 1, kind: input, shape index: {}, may-alias: {0,1,2}]
  %s2 = inlined_call_operand.vmem [shape: bf16[2,384,32], index: 2, kind: input, shape index: {}, may-alias: {0,1,2}]
  %s3 = inlined_call_operand.vmem [shape: bf16[9,32,32], index: 3, kind: input, shape index: {}]
  %s4 = inlined_call_operand.vmem [shape: f32[1,32], index: 4, kind: input, shape index: {}]
  %s5 = inlined_call_operand.vmem [shape: bf16[2,384,32], index: 5, kind: output, shape index: {}]
  %s6 = sld [smem:[#allocation0]]
  $region53: #{fcn_head_forward.3} parent=0
    _
  %s8 = ssub.s32 1, %s6
  %s9 = scalar_select 0, %s8, %s6
  loop: start=0, step=1, limit=6
  $region2: #{fcn_head_forward.3} parent=0 // loop_pre_header
    _
  $region3: #{fcn_head_forward.3} parent=0 // loop_header
    %s11 = sphi 0, %s15
    %p12 = scmp.ge.s32.totalorder %s11, 6
    %s18 = sphi 0, %s30
    %s19 = sphi 0, %s26
    %s20 = sphi 0, %s18
    %s21 = sphi 0, %s19
    %s22 = sphi 0, %s20
    %s23 = sphi 0, %s21
    %s35 = sphi 0, %s37
    %s38 = sphi 0, %s35
    %s39 = sphi 0, %s38
    %s55 = sphi 0, %s39
    %s71 = sphi 0, %s73
    %s74 = sphi 0, %s71
    %s75 = sphi 0, %s74
    %s91 = sphi 0, %s75
    %s107 = sphi 0, %s109
    %s110 = sphi 0, %s107
    %s111 = sphi 0, %s110
    %s127 = sphi 0, %s111
    %s131 = sphi 0, %s131
    %s133 = sphi 0, %s131
    %s134 = sphi 0, %s133
    %s148 = sphi 0, %s134
    %s152 = sphi 0, %s152
    %s154 = sphi 0, %s152
    %s155 = sphi 0, %s154
    %s169 = sphi 0, %s155
    %s177 = sphi 0, %s179
    %s180 = sphi 0, %s177
    %s181 = sphi 0, %s180
    %s197 = sphi 0, %s181
  $region4: #{fcn_head_forward.3} parent=0 // loop_header_branch
    %14 = sbr.rel (%p12) target = $region8
  $region5: #{fcn_head_forward.3} parent=0 // loop_body
    %s16 = ssub.s32 %s11, 1
    %s17 = ssub.s32 %s11, 2
    %s24 = sadd.s32 1, %s19
    %p25 = scmp.ge.s32.totalorder %s24, 2
    %s26 = scalar_select %p25, 0, %s24
    %s27 = sadd.s32 1, %s18
    %s28 = scalar_select %p25, %s27, %s18
    %p29 = scmp.ge.s32.totalorder %s28, 2
    %s30 = scalar_select %p29, 0, %s28
    %s31 = ssub.s32 %s18, %s30
    %s32 = ssub.s32 %s19, %s26
    %s33 = sor.u32 %s31, %s32
    %p34 = scmp.eq.s32.totalorder %s33, 0
    %s36 = sadd.s32 %s35, 1
    %s37 = scalar_select %p34, %s35, %s36
    %p40 = pneg %p34
    %p41 = scmp.eq.s32.totalorder %s11, 3
    %p42 = por %p40, %p41
    %p43 = scmp.ne.s32.totalorder %s35, %s38
    %p44 = scmp.eq.s32.totalorder %s11, 0
    %p45 = por %p43, %p44
    %p46 = scmp.ne.s32.totalorder %s35, %s38
    %p47 = scmp.eq.s32.totalorder %s16, 3
    %p48 = por %p46, %p47
    %p49 = scmp.ne.s32.totalorder %s38, %s39
    %p50 = scmp.eq.s32.totalorder %s16, 0
    %p51 = por %p49, %p50
    %p52 = scmp.ne.s32.totalorder %s38, %s39
    %p53 = scmp.eq.s32.totalorder %s17, 3
    %p54 = por %p52, %p53
    %p56 = scmp.ne.s32.totalorder %s39, %s55
    %p57 = scmp.eq.s32.totalorder %s17, 0
    %p58 = por %p56, %p57
    %s59 = smul.u32 %s19, 8
    %s60 = ssub.s32 %s59, 1
    %p61 = scmp.gt.s32.totalorder %s60, 0
    %s62 = scalar_select %p61, %s60, 0
    %s63 = smul.u32 %s26, 8
    %s64 = ssub.s32 %s63, 1
    %p65 = scmp.gt.s32.totalorder %s64, 0
    %s66 = scalar_select %p65, %s64, 0
    %s67 = ssub.s32 %s18, %s30
    %s68 = ssub.s32 %s62, %s66
    %s69 = sor.u32 %s67, %s68
    %p70 = scmp.eq.s32.totalorder %s69, 0
    %s72 = sadd.s32 %s71, 1
    %s73 = scalar_select %p70, %s71, %s72
    %p76 = pneg %p70
    %p77 = scmp.eq.s32.totalorder %s11, 3
    %p78 = por %p76, %p77
    %p79 = scmp.ne.s32.totalorder %s71, %s74
    %p80 = scmp.eq.s32.totalorder %s11, 0
    %p81 = por %p79, %p80
    %p82 = scmp.ne.s32.totalorder %s71, %s74
    %p83 = scmp.eq.s32.totalorder %s16, 3
    %p84 = por %p82, %p83
    %p85 = scmp.ne.s32.totalorder %s74, %s75
    %p86 = scmp.eq.s32.totalorder %s16, 0
    %p87 = por %p85, %p86
    %p88 = scmp.ne.s32.totalorder %s74, %s75
    %p89 = scmp.eq.s32.totalorder %s17, 3
    %p90 = por %p88, %p89
    %p92 = scmp.ne.s32.totalorder %s75, %s91
    %p93 = scmp.eq.s32.totalorder %s17, 0
    %p94 = por %p92, %p93
    %s95 = smul.u32 %s19, 8
    %s96 = sadd.s32 %s95, 8
    %p97 = scmp.lt.s32.totalorder %s96, 15
    %s98 = scalar_select %p97, %s96, 15
    %s99 = smul.u32 %s26, 8
    %s100 = sadd.s32 %s99, 8
    %p101 = scmp.lt.s32.totalorder %s100, 15
    %s102 = scalar_select %p101, %s100, 15
    %s103 = ssub.s32 %s18, %s30
    %s104 = ssub.s32 %s98, %s102
    %s105 = sor.u32 %s103, %s104
    %p106 = scmp.eq.s32.totalorder %s105, 0
    %s108 = sadd.s32 %s107, 1
    %s109 = scalar_select %p106, %s107, %s108
    %p112 = pneg %p106
    %p113 = scmp.eq.s32.totalorder %s11, 3
    %p114 = por %p112, %p113
    %p115 = scmp.ne.s32.totalorder %s107, %s110
    %p116 = scmp.eq.s32.totalorder %s11, 0
    %p117 = por %p115, %p116
    %p118 = scmp.ne.s32.totalorder %s107, %s110
    %p119 = scmp.eq.s32.totalorder %s16, 3
    %p120 = por %p118, %p119
    %p121 = scmp.ne.s32.totalorder %s110, %s111
    %p122 = scmp.eq.s32.totalorder %s16, 0
    %p123 = por %p121, %p122
    %p124 = scmp.ne.s32.totalorder %s110, %s111
    %p125 = scmp.eq.s32.totalorder %s17, 3
    %p126 = por %p124, %p125
    %p128 = scmp.ne.s32.totalorder %s111, %s127
    %p129 = scmp.eq.s32.totalorder %s17, 0
    %p130 = por %p128, %p129
    %s132 = sadd.s32 %s131, 1
    %p135 = scmp.eq.s32.totalorder %s11, 3
    %p136 = scmp.ne.s32.totalorder %s131, %s133
    %p137 = scmp.eq.s32.totalorder %s11, 0
    %p138 = por %p136, %p137
    %p139 = scmp.ne.s32.totalorder %s131, %s133
    %p140 = scmp.eq.s32.totalorder %s16, 3
    %p141 = por %p139, %p140
    %p142 = scmp.ne.s32.totalorder %s133, %s134
    %p143 = scmp.eq.s32.totalorder %s16, 0
    %p144 = por %p142, %p143
    %p145 = scmp.ne.s32.totalorder %s133, %s134
    %p146 = scmp.eq.s32.totalorder %s17, 3
    %p147 = por %p145, %p146
    %p149 = scmp.ne.s32.totalorder %s134, %s148
    %p150 = scmp.eq.s32.totalorder %s17, 0
    %p151 = por %p149, %p150
    %s153 = sadd.s32 %s152, 1
    %p156 = scmp.eq.s32.totalorder %s11, 3
    %p157 = scmp.ne.s32.totalorder %s152, %s154
    %p158 = scmp.eq.s32.totalorder %s11, 0
    %p159 = por %p157, %p158
    %p160 = scmp.ne.s32.totalorder %s152, %s154
    %p161 = scmp.eq.s32.totalorder %s16, 3
    %p162 = por %p160, %p161
    %p163 = scmp.ne.s32.totalorder %s154, %s155
    %p164 = scmp.eq.s32.totalorder %s16, 0
    %p165 = por %p163, %p164
    %p166 = scmp.ne.s32.totalorder %s154, %s155
    %p167 = scmp.eq.s32.totalorder %s17, 3
    %p168 = por %p166, %p167
    %p170 = scmp.ne.s32.totalorder %s155, %s169
    %p171 = scmp.eq.s32.totalorder %s17, 0
    %p172 = por %p170, %p171
    %s173 = ssub.s32 %s18, %s30
    %s174 = ssub.s32 %s19, %s26
    %s175 = sor.u32 %s173, %s174
    %p176 = scmp.eq.s32.totalorder %s175, 0
    %s178 = sadd.s32 %s177, 1
    %s179 = scalar_select %p176, %s177, %s178
    %p182 = pneg %p176
    %p183 = scmp.eq.s32.totalorder %s11, 3
    %p184 = por %p182, %p183
    %p185 = scmp.ne.s32.totalorder %s177, %s180
    %p186 = scmp.eq.s32.totalorder %s11, 0
    %p187 = por %p185, %p186
    %p188 = scmp.ne.s32.totalorder %s177, %s180
    %p189 = scmp.eq.s32.totalorder %s16, 3
    %p190 = por %p188, %p189
    %p191 = scmp.ne.s32.totalorder %s180, %s181
    %p192 = scmp.eq.s32.totalorder %s16, 0
    %p193 = por %p191, %p192
    %p194 = scmp.ne.s32.totalorder %s180, %s181
    %p195 = scmp.eq.s32.totalorder %s17, 3
    %p196 = por %p194, %p195
    %p198 = scmp.ne.s32.totalorder %s181, %s197
    %p199 = scmp.eq.s32.totalorder %s17, 0
    %p200 = por %p198, %p199
    %p201 = scmp.le.s32.totalorder 1, %s11
    %p202 = scmp.lt.s32.totalorder %s11, 5
    %p203 = pnand %p201, %p202
    %p204 = pneg %p203
    // Predicated region
    $region9: #{fcn_head_forward.3} parent=5 // pred_check
      _
    $region10: #{fcn_head_forward.3} parent=5 // pred_check_branch
      %206 = sbr.rel (%p203) target = $region12
    $region11: #{fcn_head_forward.3} parent=5 // pred_region
      %s207 = ssub.s32 %s11, 1
      // Predicated region
      $region13: #{fcn_head_forward.3} parent=11 // pred_check
        %p208 = pneg %p144
      $region14: #{fcn_head_forward.3} parent=11 // pred_check_branch
        %210 = sbr.rel (%p208) target = $region16
      $region15: #{fcn_head_forward.3} parent=11 // pred_region
        _
      $region16: #{fcn_head_forward.3} parent=11 // pred_fallthru
        _
      // Predicated region
      $region17: #{fcn_head_forward.3} parent=11 // pred_check
        %p211 = pneg %p165
      $region18: #{fcn_head_forward.3} parent=11 // pred_check_branch
        %213 = sbr.rel (%p211) target = $region20
      $region19: #{fcn_head_forward.3} parent=11 // pred_region
        _
      $region20: #{fcn_head_forward.3} parent=11 // pred_fallthru
        _
    $region12: #{fcn_head_forward.3} parent=5 // pred_fallthru
      _
    %p214 = scmp.lt.s32.totalorder %s11, 4
    // Predicated region
    $region21: #{fcn_head_forward.3} parent=5 // pred_check
      %p215 = pneg %p214
    $region22: #{fcn_head_forward.3} parent=5 // pred_check_branch
      %217 = sbr.rel (%p215) target = $region24
    $region23: #{fcn_head_forward.3} parent=5 // pred_region
      // Predicated region
      $region25: #{fcn_head_forward.3} parent=23 // pred_check
        %p218 = pneg %p45
      $region26: #{fcn_head_forward.3} parent=23 // pred_check_branch
        %220 = sbr.rel (%p218) target = $region28
      $region27: #{fcn_head_forward.3} parent=23 // pred_region
        %s221 = smul.u32 24, %s19
        %p222 = scmp.lt.s32.totalorder %s18, 1
        %s223 = scalar_select %p222, %s18, 1
        %p224 = scmp.lt.s32.totalorder %s221, 47
        %s225 = scalar_select %p224, %s221, 47
        %s226 = smul.addr %s223, 48
        %s227 = sadd.s32 %s225, %s226
        %s228 = smul.addr %s227, 4
        %s229 = scalar_lea.vmem %s0, %s228
        %s230 = smul.u32 24, %s19
      $region28: #{fcn_head_forward.3} parent=23 // pred_fallthru
        _
      // Predicated region
      $region29: #{fcn_head_forward.3} parent=23 // pred_check
        %p231 = pneg %p81
      $region30: #{fcn_head_forward.3} parent=23 // pred_check_branch
        %233 = sbr.rel (%p231) target = $region32
      $region31: #{fcn_head_forward.3} parent=23 // pred_region
        %s234 = smul.u32 %s19, 8
        %s235 = ssub.s32 %s234, 1
        %p236 = scmp.gt.s32.totalorder %s235, 0
        %s237 = scalar_select %p236, %s235, 0
        %s238 = smul.u32 3, %s237
        %p239 = scmp.lt.s32.totalorder %s18, 1
        %s240 = scalar_select %p239, %s18, 1
        %p241 = scmp.lt.s32.totalorder %s238, 47
        %s242 = scalar_select %p241, %s238, 47
        %s243 = smul.addr %s240, 48
        %s244 = sadd.s32 %s242, %s243
        %s245 = smul.addr %s244, 4
        %s246 = scalar_lea.vmem %s1, %s245
        %s247 = smul.u32 %s19, 8
        %s248 = ssub.s32 %s247, 1
        %p249 = scmp.gt.s32.totalorder %s248, 0
        %s250 = scalar_select %p249, %s248, 0
        %s251 = smul.u32 3, %s250
      $region32: #{fcn_head_forward.3} parent=23 // pred_fallthru
        _
      // Predicated region
      $region33: #{fcn_head_forward.3} parent=23 // pred_check
        %p252 = pneg %p117
      $region34: #{fcn_head_forward.3} parent=23 // pred_check_branch
        %254 = sbr.rel (%p252) target = $region36
      $region35: #{fcn_head_forward.3} parent=23 // pred_region
        %s255 = smul.u32 %s19, 8
        %s256 = sadd.s32 %s255, 8
        %p257 = scmp.lt.s32.totalorder %s256, 15
        %s258 = scalar_select %p257, %s256, 15
        %s259 = smul.u32 3, %s258
        %p260 = scmp.lt.s32.totalorder %s18, 1
        %s261 = scalar_select %p260, %s18, 1
        %p262 = scmp.lt.s32.totalorder %s259, 47
        %s263 = scalar_select %p262, %s259, 47
        %s264 = smul.addr %s261, 48
        %s265 = sadd.s32 %s263, %s264
        %s266 = smul.addr %s265, 4
        %s267 = scalar_lea.vmem %s2, %s266
        %s268 = smul.u32 %s19, 8
        %s269 = sadd.s32 %s268, 8
        %p270 = scmp.lt.s32.totalorder %s269, 15
        %s271 = scalar_select %p270, %s269, 15
        %s272 = smul.u32 3, %s271
      $region36: #{fcn_head_forward.3} parent=23 // pred_fallthru
        _
    $region24: #{fcn_head_forward.3} parent=5 // pred_fallthru
      _
    %p273 = scmp.le.s32.totalorder 1, %s11
    %p274 = scmp.lt.s32.totalorder %s11, 5
    %p275 = pnand %p273, %p274
    %p276 = pneg %p275
    // Predicated region
    $region37: #{fcn_head_forward.3} parent=5 // pred_check
      _
    $region38: #{fcn_head_forward.3} parent=5 // pred_check_branch
      %278 = sbr.rel (%p275) target = $region40
    $region39: #{fcn_head_forward.3} parent=5 // pred_region
      %s279 = ssub.s32 %s11, 1
      %s280 = smul.u32 24, %s21
      %p281 = scmp.lt.s32.totalorder %s20, 1
      %s282 = scalar_select %p281, %s20, 1
      %p283 = scmp.lt.s32.totalorder %s280, 47
      %s284 = scalar_select %p283, %s280, 47
      %s285 = smul.addr %s282, 48
      %s286 = sadd.s32 %s284, %s285
      %s287 = smul.addr %s286, 4
      %s288 = scalar_lea.vmem %s0, %s287
      %p289 = pneg %p51
      %p290 = pneg %p48
      %s291 = smul.u32 %s21, 8
      %s292 = ssub.s32 %s291, 1
      %p293 = scmp.gt.s32.totalorder %s292, 0
      %s294 = scalar_select %p293, %s292, 0
      %s295 = smul.u32 3, %s294
      %p296 = scmp.lt.s32.totalorder %s20, 1
      %s297 = scalar_select %p296, %s20, 1
      %p298 = scmp.lt.s32.totalorder %s295, 47
      %s299 = scalar_select %p298, %s295, 47
      %s300 = smul.addr %s297, 48
      %s301 = sadd.s32 %s299, %s300
      %s302 = smul.addr %s301, 4
      %s303 = scalar_lea.vmem %s1, %s302
      %p304 = pneg %p87
      %p305 = pneg %p84
      %s306 = smul.u32 %s21, 8
      %s307 = sadd.s32 %s306, 8
      %p308 = scmp.lt.s32.totalorder %s307, 15
      %s309 = scalar_select %p308, %s307, 15
      %s310 = smul.u32 3, %s309
      %p311 = scmp.lt.s32.totalorder %s20, 1
      %s312 = scalar_select %p311, %s20, 1
      %p313 = scmp.lt.s32.totalorder %s310, 47
      %s314 = scalar_select %p313, %s310, 47
      %s315 = smul.addr %s312, 48
      %s316 = sadd.s32 %s314, %s315
      %s317 = smul.addr %s316, 4
      %s318 = scalar_lea.vmem %s2, %s317
      %p319 = pneg %p123
      %p320 = pneg %p120
      %p321 = pneg %p144
      %p322 = pneg %p141
      %p323 = pneg %p165
      %p324 = pneg %p162
      %p325 = pneg %p193
      %p326 = pneg %p190
      %s327 = smul.u32 24, %s21
      %p328 = scmp.lt.s32.totalorder %s20, 1
      %s329 = scalar_select %p328, %s20, 1
      %p330 = scmp.lt.s32.totalorder %s327, 47
      %s331 = scalar_select %p330, %s327, 47
      %s332 = smul.addr %s329, 48
      %s333 = sadd.s32 %s331, %s332
      %s334 = smul.addr %s333, 4
      %s335 = scalar_lea.vmem %s5, %s334
      %s336 = smul.u32 24, %s21
      %p337 = scmp.lt.s32.totalorder %s20, 1
      %s338 = scalar_select %p337, %s20, 1
      %p339 = scmp.lt.s32.totalorder %s336, 47
      %s340 = scalar_select %p339, %s336, 47
      %s341 = smul.addr %s338, 48
      %s342 = sadd.s32 %s340, %s341
      %s343 = smul.addr %s342, 4
      %s344 = scalar_lea.vmem %s0, %s343
      %s345 = smul.u32 24, %s21
      %s346 = smul.u32 %s21, 8
      %s347 = ssub.s32 %s346, 1
      %p348 = scmp.gt.s32.totalorder %s347, 0
      %s349 = scalar_select %p348, %s347, 0
      %s350 = smul.u32 3, %s349
      %p351 = scmp.lt.s32.totalorder %s20, 1
      %s352 = scalar_select %p351, %s20, 1
      %p353 = scmp.lt.s32.totalorder %s350, 47
      %s354 = scalar_select %p353, %s350, 47
      %s355 = smul.addr %s352, 48
      %s356 = sadd.s32 %s354, %s355
      %s357 = smul.addr %s356, 4
      %s358 = scalar_lea.vmem %s1, %s357
      %s359 = smul.u32 %s21, 8
      %s360 = ssub.s32 %s359, 1
      %p361 = scmp.gt.s32.totalorder %s360, 0
      %s362 = scalar_select %p361, %s360, 0
      %s363 = smul.u32 3, %s362
      %s364 = smul.u32 %s21, 8
      %s365 = sadd.s32 %s364, 8
      %p366 = scmp.lt.s32.totalorder %s365, 15
      %s367 = scalar_select %p366, %s365, 15
      %s368 = smul.u32 3, %s367
      %p369 = scmp.lt.s32.totalorder %s20, 1
      %s370 = scalar_select %p369, %s20, 1
      %p371 = scmp.lt.s32.totalorder %s368, 47
      %s372 = scalar_select %p371, %s368, 47
      %s373 = smul.addr %s370, 48
      %s374 = sadd.s32 %s372, %s373
      %s375 = smul.addr %s374, 4
      %s376 = scalar_lea.vmem %s2, %s375
      %s377 = smul.u32 %s21, 8
      %s378 = sadd.s32 %s377, 8
      %p379 = scmp.lt.s32.totalorder %s378, 15
      %s380 = scalar_select %p379, %s378, 15
      %s381 = smul.u32 3, %s380
      %s382 = smul.u32 24, %s21
      %p383 = scmp.lt.s32.totalorder %s20, 1
      %s384 = scalar_select %p383, %s20, 1
      %p385 = scmp.lt.s32.totalorder %s382, 47
      %s386 = scalar_select %p385, %s382, 47
      %s387 = smul.addr %s384, 48
      %s388 = sadd.s32 %s386, %s387
      %s389 = smul.addr %s388, 4
      %s390 = scalar_lea.vmem %s5, %s389
      %s391 = smul.u32 24, %s21
      %p393 = scmp.eq.s32.totalorder %s21, 0
      %p394 = scmp.eq.s32.totalorder %s21, 1
      %vm395 = vcmask 257027
      %vm396 = vsmask.f32 7950
      %vm397 = vmand %vm395, %vm396
      %v398 = vld [vmem:[#allocation2 + $0x8] sm:$0x8]
      %v399 = vsel %vm397, 0, %v398
      %400 = vst [vmem:[#allocation2 + $0x8] sm:$0x8] %v399
      %v401 = vld [vmem:[%s358] sm:$0xf]
      %v402 = vld [vmem:[%s358 + $0x4] sm:$0xf]
      %v403 = vld [vmem:[%s358 + $0x8] sm:$0xf]
      %v404 = vld [vmem:[%s376] sm:$0xf]
      %v405 = vld [vmem:[%s376 + $0x4] sm:$0xf]
      %v406 = vld [vmem:[%s376 + $0x8] sm:$0xf]
      %s407 = scalar_select %p393, 1, 0
      %v408 = vstv %s407
      %vm409 = vcmp.eq.s32.totalorder %v408, 1
      %v410 = vsel %vm409, 0, %v401
      %v411 = vsel %vm409, 0, %v402
      %v412 = vsel %vm409, 0, %v403
      %v416 = vunpack.c.l.b16 %v410
      %v417 = vunpack.c.l.b16 %v411
      %v418 = vunpack.c.l.b16 %v412
      %v419 = vpack.c.b16 %v416, %v416
      %v420 = vpack.c.b16 %v418, %v417
      %vm423 = vcmask 261124
      %424 = vst.msk [vmem:[#allocation2 + $0x8] sm:$0xf0] %vm423, %v419
      %vm425 = vcmask 261120
      %426 = vst.msk [vmem:[#allocation2 + $0x10] sm:$0xff] %vm425, %v420
      %v427 = vld [vmem:[%s344] sm:$0xf]
      %v428 = vld [vmem:[%s344 + $0x4] sm:$0xf]
      %v429 = vld [vmem:[%s344 + $0x8] sm:$0xf]
      %v430 = vld [vmem:[%s344 + $0xc] sm:$0xf]
      %v431 = vld [vmem:[%s344 + $0x10] sm:$0xf]
      %v432 = vld [vmem:[%s344 + $0x14] sm:$0xf]
      %v433 = vld [vmem:[%s344 + $0x18] sm:$0xf]
      %v434 = vld [vmem:[%s344 + $0x1c] sm:$0xf]
      %v435 = vld [vmem:[%s344 + $0x20] sm:$0xf]
      %v436 = vld [vmem:[%s344 + $0x24] sm:$0xf]
      %v437 = vld [vmem:[%s344 + $0x28] sm:$0xf]
      %v438 = vld [vmem:[%s344 + $0x2c] sm:$0xf]
      %v439 = vld [vmem:[%s344 + $0x30] sm:$0xf]
      %v440 = vld [vmem:[%s344 + $0x34] sm:$0xf]
      %v441 = vld [vmem:[%s344 + $0x38] sm:$0xf]
      %v442 = vld [vmem:[%s344 + $0x3c] sm:$0xf]
      %v443 = vld [vmem:[%s344 + $0x40] sm:$0xf]
      %v444 = vld [vmem:[%s344 + $0x44] sm:$0xf]
      %v445 = vld [vmem:[%s344 + $0x48] sm:$0xf]
      %v446 = vld [vmem:[%s344 + $0x4c] sm:$0xf]
      %v447 = vld [vmem:[%s344 + $0x50] sm:$0xf]
      %v448 = vld [vmem:[%s344 + $0x54] sm:$0xf]
      %v449 = vld [vmem:[%s344 + $0x58] sm:$0xf]
      %v450 = vld [vmem:[%s344 + $0x5c] sm:$0xf]
      %v475 = vunpack.c.l.b16 %v427
      %v476 = vunpack.c.l.b16 %v428
      %v477 = vunpack.c.l.b16 %v429
      %v478 = vunpack.c.l.b16 %v430
      %v479 = vunpack.c.l.b16 %v431
      %v480 = vunpack.c.l.b16 %v432
      %v481 = vunpack.c.l.b16 %v433
      %v482 = vunpack.c.l.b16 %v434
      %v483 = vunpack.c.l.b16 %v435
      %v484 = vunpack.c.l.b16 %v436
      %v485 = vunpack.c.l.b16 %v437
      %v486 = vunpack.c.l.b16 %v438
      %v487 = vunpack.c.l.b16 %v439
      %v488 = vunpack.c.l.b16 %v440
      %v489 = vunpack.c.l.b16 %v441
      %v490 = vunpack.c.l.b16 %v442
      %v491 = vunpack.c.l.b16 %v443
      %v492 = vunpack.c.l.b16 %v444
      %v493 = vunpack.c.l.b16 %v445
      %v494 = vunpack.c.l.b16 %v446
      %v495 = vunpack.c.l.b16 %v447
      %v496 = vunpack.c.l.b16 %v448
      %v497 = vunpack.c.l.b16 %v449
      %v498 = vunpack.c.l.b16 %v450
      %v499 = vpack.c.b16 %v476, %v475
      %v500 = vpack.c.b16 %v478, %v477
      %v501 = vpack.c.b16 %v480, %v479
      %v502 = vpack.c.b16 %v482, %v481
      %v503 = vpack.c.b16 %v484, %v483
      %v504 = vpack.c.b16 %v486, %v485
      %v505 = vpack.c.b16 %v488, %v487
      %v506 = vpack.c.b16 %v490, %v489
      %v507 = vpack.c.b16 %v492, %v491
      %v508 = vpack.c.b16 %v494, %v493
      %v509 = vpack.c.b16 %v496, %v495
      %v510 = vpack.c.b16 %v498, %v497
      %523 = vst.msk [vmem:[#allocation2 + $0x18] sm:$0xff] %vm425, %v499
      %524 = vst.msk [vmem:[#allocation2 + $0x20] sm:$0xff] %vm425, %v500
      %525 = vst.msk [vmem:[#allocation2 + $0x28] sm:$0xff] %vm425, %v501
      %526 = vst.msk [vmem:[#allocation2 + $0x30] sm:$0xff] %vm425, %v502
      %527 = vst.msk [vmem:[#allocation2 + $0x38] sm:$0xff] %vm425, %v503
      %528 = vst.msk [vmem:[#allocation2 + $0x40] sm:$0xff] %vm425, %v504
      %529 = vst.msk [vmem:[#allocation2 + $0x48] sm:$0xff] %vm425, %v505
      %530 = vst.msk [vmem:[#allocation2 + $0x50] sm:$0xff] %vm425, %v506
      %531 = vst.msk [vmem:[#allocation2 + $0x58] sm:$0xff] %vm425, %v507
      %532 = vst.msk [vmem:[#allocation2 + $0x60] sm:$0xff] %vm425, %v508
      %533 = vst.msk [vmem:[#allocation2 + $0x68] sm:$0xff] %vm425, %v509
      %534 = vst.msk [vmem:[#allocation2 + $0x70] sm:$0xff] %vm425, %v510
      %s535 = scalar_select %p394, 1, 0
      %v536 = vstv %s535
      %vm537 = vcmp.eq.s32.totalorder %v536, 1
      %v538 = vsel %vm537, 0, %v404
      %v539 = vsel %vm537, 0, %v405
      %v540 = vsel %vm537, 0, %v406
      %v544 = vunpack.c.l.b16 %v538
      %v545 = vunpack.c.l.b16 %v539
      %v546 = vunpack.c.l.b16 %v540
      %v547 = vpack.c.b16 %v545, %v544
      %v548 = vpack.c.b16 %v546, %v546
      %551 = vst.msk [vmem:[#allocation2 + $0x78] sm:$0xff] %vm425, %v547
      %vm552 = vcmask 257024
      %553 = vst.msk [vmem:[#allocation2 + $0x80] sm:$0xf] %vm552, %v548
      %v554 = vld [vmem:[#allocation2 + $0x8] sm:$0xf8]
      %v555 = vld [vmem:[#allocation2 + $0x10] sm:$0xff]
      %v556 = vld [vmem:[#allocation2 + $0x18] sm:$0xff]
      %v557 = vld [vmem:[#allocation2 + $0x20] sm:$0xff]
      %v558 = vld [vmem:[#allocation2 + $0x28] sm:$0xff]
      %v559 = vld [vmem:[#allocation2 + $0x30] sm:$0xff]
      %v560 = vld [vmem:[#allocation2 + $0x38] sm:$0xff]
      %v561 = vld [vmem:[#allocation2 + $0x40] sm:$0xff]
      %v562 = vld [vmem:[#allocation2 + $0x48] sm:$0xff]
      %v563 = vld [vmem:[#allocation2 + $0x50] sm:$0xff]
      %v564 = vld [vmem:[#allocation2 + $0x58] sm:$0xff]
      %v565 = vld [vmem:[#allocation2 + $0x60] sm:$0xff]
      %v566 = vld [vmem:[#allocation2 + $0x68] sm:$0xf]
      %v567 = vld [vmem:[%s3] sm:$0xf]
      %v568 = vld [vmem:[%s3 + $0x4] sm:$0xf]
      %v569 = vld [vmem:[%s3 + $0x8] sm:$0xf]
      %v570 = vld [vmem:[%s3 + $0xc] sm:$0xf]
      %v571 = vld [vmem:[#allocation2 + $0x8] sm:$0xf0]
      %s572 = scalar_lea.vmem %s3, 16
      %v573 = vld [vmem:[%s572] sm:$0xf]
      %v574 = vld [vmem:[%s572 + $0x4] sm:$0xf]
      %v575 = vld [vmem:[%s572 + $0x8] sm:$0xf]
      %v576 = vld [vmem:[%s572 + $0xc] sm:$0xf]
      %vm590 = vcmask 1043456
      %v591 = vrot.slane %v571, 4
      %v592 = vrot.slane %v555, 4
      %v593 = vsel %vm590, %v591, %v592
      %v594 = vrot.slane %v556, 4
      %v595 = vsel %vm590, %v592, %v594
      %v596 = vrot.slane %v557, 4
      %v597 = vsel %vm590, %v594, %v596
      %v598 = vrot.slane %v558, 4
      %v599 = vsel %vm590, %v596, %v598
      %v600 = vrot.slane %v559, 4
      %v601 = vsel %vm590, %v598, %v600
      %v602 = vrot.slane %v560, 4
      %v603 = vsel %vm590, %v600, %v602
      %v604 = vrot.slane %v561, 4
      %v605 = vsel %vm590, %v602, %v604
      %v606 = vrot.slane %v562, 4
      %v607 = vsel %vm590, %v604, %v606
      %v608 = vrot.slane %v563, 4
      %v609 = vsel %vm590, %v606, %v608
      %v610 = vrot.slane %v564, 4
      %v611 = vsel %vm590, %v608, %v610
      %v612 = vrot.slane %v565, 4
      %v613 = vsel %vm590, %v610, %v612
      %v614 = vrot.slane %v566, 4
      %v615 = vsel %vm590, %v612, %v614
      %v620 = vunpack.c.l.b16 %v573
      %v621 = vunpack.c.l.b16 %v574
      %v622 = vunpack.c.l.b16 %v575
      %v623 = vunpack.c.l.b16 %v576
      %v624 = vpack.c.b16 %v621, %v620
      %v625 = vpack.c.b16 %v623, %v622
      %v629 = vsel %vm425, %v593, 0
      %v632 = vsel %vm425, %v595, 0
      %v635 = vsel %vm425, %v597, 0
      %v638 = vsel %vm425, %v599, 0
      %v641 = vsel %vm425, %v601, 0
      %v644 = vsel %vm425, %v603, 0
      %v647 = vsel %vm425, %v605, 0
      %v650 = vsel %vm425, %v607, 0
      %v653 = vsel %vm425, %v609, 0
      %v656 = vsel %vm425, %v611, 0
      %v659 = vsel %vm425, %v613, 0
      %v662 = vsel %vm425, %v615, 0
      %664 = vmatprep.subr.bf16.mxu0 0
      %665 = vmatpush1.bf16.msra.mxu0 %v624
      %666 = vmatprep.subr.bf16.mxu0 0
      %667 = vmatpush1.bf16.msra.mxu0 %v625
      %668 = vmatprep.subr.bf16.mxu0 0
      %669 = vmatpush1.bf16.msra.mxu0 0
      %670 = vmatprep.subr.bf16.mxu0 0
      %671 = vmatpush1.bf16.msra.mxu0 0
      %672 = vmatprep.subr.bf16.mxu0 0
      %673 = vmatpush1.bf16.msra.mxu0 0
      %674 = vmatprep.subr.bf16.mxu0 0
      %675 = vmatpush1.bf16.msra.mxu0 0
      %676 = vmatprep.subr.bf16.mxu0 0
      %677 = vmatpush1.bf16.msra.mxu0 0
      %678 = vmatprep.subr.bf16.mxu0 0
      %679 = vmatpush1.bf16.msra.mxu0 0
      %680 = vmatprep.subr.bf16.mxu0 0
      %681 = vmatpush1.bf16.msra.mxu0 0
      %682 = vmatprep.subr.bf16.mxu0 0
      %683 = vmatpush1.bf16.msra.mxu0 0
      %684 = vmatprep.subr.bf16.mxu0 0
      %685 = vmatpush1.bf16.msra.mxu0 0
      %686 = vmatprep.subr.bf16.mxu0 0
      %687 = vmatpush1.bf16.msra.mxu0 0
      %688 = vmatprep.subr.bf16.mxu0 0
      %689 = vmatpush1.bf16.msra.mxu0 0
      %690 = vmatprep.subr.bf16.mxu0 0
      %691 = vmatpush1.bf16.msra.mxu0 0
      %692 = vmatprep.subr.bf16.mxu0 0
      %693 = vmatpush1.bf16.msra.mxu0 0
      %694 = vmatprep.subr.bf16.mxu0 0
      %695 = vmatpush1.bf16.msra.mxu0 0
      %696 = vmatprep.mubr.bf16.mxu0 0
      %697 = vmatmul.mubr.bf16.gmra.mrb[0].mxu0 %v629
      %v698 = vpop.f32.mrb[0].mxu0
      %v699 = vadd.f32 0.0, %v698
      %v700 = vpop.f32.mrb[0].mxu0
      %v701 = vpop.f32.mrb[0].mxu0
      %v702 = vadd.f32 0.0, %v701
      %v703 = vpop.f32.mrb[0].mxu0
      %704 = vmatprep.mubr.bf16.mxu0 0
      %705 = vmatmul.mubr.bf16.gmra.mrb[0].mxu0 %v632
      %v706 = vpop.f32.mrb[0].mxu0
      %v707 = vadd.f32 0.0, %v706
      %v708 = vpop.f32.mrb[0].mxu0
      %v709 = vpop.f32.mrb[0].mxu0
      %v710 = vadd.f32 0.0, %v709
      %v711 = vpop.f32.mrb[0].mxu0
      %712 = vmatprep.mubr.bf16.mxu0 0
      %713 = vmatmul.mubr.bf16.gmra.mrb[0].mxu0 %v635
      %v714 = vpop.f32.mrb[0].mxu0
      %v715 = vadd.f32 0.0, %v714
      %v716 = vpop.f32.mrb[0].mxu0
      %v717 = vpop.f32.mrb[0].mxu0
      %v718 = vadd.f32 0.0, %v717
      %v719 = vpop.f32.mrb[0].mxu0
      %720 = vmatprep.mubr.bf16.mxu0 0
      %721 = vmatmul.mubr.bf16.gmra.mrb[0].mxu0 %v638
      %v722 = vpop.f32.mrb[0].mxu0
      %v723 = vadd.f32 0.0, %v722
      %v724 = vpop.f32.mrb[0].mxu0
      %v725 = vpop.f32.mrb[0].mxu0
      %v726 = vadd.f32 0.0, %v725
      %v727 = vpop.f32.mrb[0].mxu0
      %728 = vmatprep.mubr.bf16.mxu0 0
      %729 = vmatmul.mubr.bf16.gmra.mrb[0].mxu0 %v641
      %v730 = vpop.f32.mrb[0].mxu0
      %v731 = vadd.f32 0.0, %v730
      %v732 = vpop.f32.mrb[0].mxu0
      %v733 = vpop.f32.mrb[0].mxu0
      %v734 = vadd.f32 0.0, %v733
      %v735 = vpop.f32.mrb[0].mxu0
      %736 = vmatprep.mubr.bf16.mxu0 0
      %737 = vmatmul.mubr.bf16.gmra.mrb[0].mxu0 %v644
      %v738 = vpop.f32.mrb[0].mxu0
      %v739 = vadd.f32 0.0, %v738
      %v740 = vpop.f32.mrb[0].mxu0
      %v741 = vpop.f32.mrb[0].mxu0
      %v742 = vadd.f32 0.0, %v741
      %v743 = vpop.f32.mrb[0].mxu0
      %744 = vmatprep.mubr.bf16.mxu0 0
      %745 = vmatmul.mubr.bf16.gmra.mrb[0].mxu0 %v647
      %v746 = vpop.f32.mrb[0].mxu0
      %v747 = vadd.f32 0.0, %v746
      %v748 = vpop.f32.mrb[0].mxu0
      %v749 = vpop.f32.mrb[0].mxu0
      %v750 = vadd.f32 0.0, %v749
      %v751 = vpop.f32.mrb[0].mxu0
      %752 = vmatprep.mubr.bf16.mxu0 0
      %753 = vmatmul.mubr.bf16.gmra.mrb[0].mxu0 %v650
      %v754 = vpop.f32.mrb[0].mxu0
      %v755 = vadd.f32 0.0, %v754
      %v756 = vpop.f32.mrb[0].mxu0
      %v757 = vpop.f32.mrb[0].mxu0
      %v758 = vadd.f32 0.0, %v757
      %v759 = vpop.f32.mrb[0].mxu0
      %760 = vmatprep.mubr.bf16.mxu0 0
      %761 = vmatmul.mubr.bf16.gmra.mrb[0].mxu0 %v653
      %v762 = vpop.f32.mrb[0].mxu0
      %v763 = vadd.f32 0.0, %v762
      %v764 = vpop.f32.mrb[0].mxu0
      %v765 = vpop.f32.mrb[0].mxu0
      %v766 = vadd.f32 0.0, %v765
      %v767 = vpop.f32.mrb[0].mxu0
      %768 = vmatprep.mubr.bf16.mxu0 0
      %769 = vmatmul.mubr.bf16.gmra.mrb[0].mxu0 %v656
      %v770 = vpop.f32.mrb[0].mxu0
      %v771 = vadd.f32 0.0, %v770
      %v772 = vpop.f32.mrb[0].mxu0
      %v773 = vpop.f32.mrb[0].mxu0
      %v774 = vadd.f32 0.0, %v773
      %v775 = vpop.f32.mrb[0].mxu0
      %776 = vmatprep.mubr.bf16.mxu0 0
      %777 = vmatmul.mubr.bf16.gmra.mrb[0].mxu0 %v659
      %v778 = vpop.f32.mrb[0].mxu0
      %v779 = vadd.f32 0.0, %v778
      %v780 = vpop.f32.mrb[0].mxu0
      %v781 = vpop.f32.mrb[0].mxu0
      %v782 = vadd.f32 0.0, %v781
      %v783 = vpop.f32.mrb[0].mxu0
      %784 = vmatprep.mubr.bf16.mxu0 0
      %785 = vmatmul.mubr.bf16.gmra.mrb[0].mxu0 %v662
      %v786 = vpop.f32.mrb[0].mxu0
      %v787 = vadd.f32 0.0, %v786
      %v788 = vpop.f32.mrb[0].mxu0
      %v789 = vpop.f32.mrb[0].mxu0
      %v790 = vadd.f32 0.0, %v789
      %v791 = vpop.f32.mrb[0].mxu0
      %792 = vdwg.mxu0
      %vm793 = vsmask.f32 4352
      %v795 = vshrl.u32 %v554, 16
      %v797 = vrot.slane %v795, 3
      %v798 = vshll.u32 %v554, 16
      %v800 = vrot.slane %v798, 4
      %v801 = vor.u32 %v797, %v800
      %v803 = vshrl.u32 %v555, 16
      %v805 = vrot.slane %v803, 3
      %v806 = vshll.u32 %v555, 16
      %v808 = vrot.slane %v806, 4
      %v809 = vor.u32 %v805, %v808
      %v810 = vsel %vm793, %v801, %v809
      %v812 = vshrl.u32 %v556, 16
      %v814 = vrot.slane %v812, 3
      %v815 = vshll.u32 %v556, 16
      %v817 = vrot.slane %v815, 4
      %v818 = vor.u32 %v814, %v817
      %v819 = vsel %vm793, %v809, %v818
      %v821 = vshrl.u32 %v557, 16
      %v823 = vrot.slane %v821, 3
      %v824 = vshll.u32 %v557, 16
      %v826 = vrot.slane %v824, 4
      %v827 = vor.u32 %v823, %v826
      %v828 = vsel %vm793, %v818, %v827
      %v830 = vshrl.u32 %v558, 16
      %v832 = vrot.slane %v830, 3
      %v833 = vshll.u32 %v558, 16
      %v835 = vrot.slane %v833, 4
      %v836 = vor.u32 %v832, %v835
      %v837 = vsel %vm793, %v827, %v836
      %v839 = vshrl.u32 %v559, 16
      %v841 = vrot.slane %v839, 3
      %v842 = vshll.u32 %v559, 16
      %v844 = vrot.slane %v842, 4
      %v845 = vor.u32 %v841, %v844
      %v846 = vsel %vm793, %v836, %v845
      %v848 = vshrl.u32 %v560, 16
      %v850 = vrot.slane %v848, 3
      %v851 = vshll.u32 %v560, 16
      %v853 = vrot.slane %v851, 4
      %v854 = vor.u32 %v850, %v853
      %v855 = vsel %vm793, %v845, %v854
      %v857 = vshrl.u32 %v561, 16
      %v859 = vrot.slane %v857, 3
      %v860 = vshll.u32 %v561, 16
      %v862 = vrot.slane %v860, 4
      %v863 = vor.u32 %v859, %v862
      %v864 = vsel %vm793, %v854, %v863
      %v866 = vshrl.u32 %v562, 16
      %v868 = vrot.slane %v866, 3
      %v869 = vshll.u32 %v562, 16
      %v871 = vrot.slane %v869, 4
      %v872 = vor.u32 %v868, %v871
      %v873 = vsel %vm793, %v863, %v872
      %v875 = vshrl.u32 %v563, 16
      %v877 = vrot.slane %v875, 3
      %v878 = vshll.u32 %v563, 16
      %v880 = vrot.slane %v878, 4
      %v881 = vor.u32 %v877, %v880
      %v882 = vsel %vm793, %v872, %v881
      %v884 = vshrl.u32 %v564, 16
      %v886 = vrot.slane %v884, 3
      %v887 = vshll.u32 %v564, 16
      %v889 = vrot.slane %v887, 4
      %v890 = vor.u32 %v886, %v889
      %v891 = vsel %vm793, %v881, %v890
      %v893 = vshrl.u32 %v565, 16
      %v895 = vrot.slane %v893, 3
      %v896 = vshll.u32 %v565, 16
      %v898 = vrot.slane %v896, 4
      %v899 = vor.u32 %v895, %v898
      %v900 = vsel %vm793, %v890, %v899
      %v902 = vshrl.u32 %v566, 16
      %v904 = vrot.slane %v902, 3
      %v905 = vshll.u32 %v566, 16
      %v907 = vrot.slane %v905, 4
      %v908 = vor.u32 %v904, %v907
      %v909 = vsel %vm793, %v899, %v908
      %v914 = vunpack.c.l.b16 %v567
      %v915 = vunpack.c.l.b16 %v568
      %v916 = vunpack.c.l.b16 %v569
      %v917 = vunpack.c.l.b16 %v570
      %v918 = vpack.c.b16 %v915, %v914
      %v919 = vpack.c.b16 %v917, %v916
      %v923 = vsel %vm425, %v810, 0
      %v926 = vsel %vm425, %v819, 0
      %v929 = vsel %vm425, %v828, 0
      %v932 = vsel %vm425, %v837, 0
      %v935 = vsel %vm425, %v846, 0
      %v938 = vsel %vm425, %v855, 0
      %v941 = vsel %vm425, %v864, 0
      %v944 = vsel %vm425, %v873, 0
      %v947 = vsel %vm425, %v882, 0
      %v950 = vsel %vm425, %v891, 0
      %v953 = vsel %vm425, %v900, 0
      %v956 = vsel %vm425, %v909, 0
      %958 = vmatprep.subr.bf16.mxu0 0
      %959 = vmatpush1.bf16.msra.mxu0 %v918
      %960 = vmatprep.subr.bf16.mxu0 0
      %961 = vmatpush1.bf16.msra.mxu0 %v919
      %962 = vmatprep.subr.bf16.mxu0 0
      %963 = vmatpush1.bf16.msra.mxu0 0
      %964 = vmatprep.subr.bf16.mxu0 0
      %965 = vmatpush1.bf16.msra.mxu0 0
      %966 = vmatprep.subr.bf16.mxu0 0
      %967 = vmatpush1.bf16.msra.mxu0 0
      %968 = vmatprep.subr.bf16.mxu0 0
      %969 = vmatpush1.bf16.msra.mxu0 0
      %970 = vmatprep.subr.bf16.mxu0 0
      %971 = vmatpush1.bf16.msra.mxu0 0
      %972 = vmatprep.subr.bf16.mxu0 0
      %973 = vmatpush1.bf16.msra.mxu0 0
      %974 = vmatprep.subr.bf16.mxu0 0
      %975 = vmatpush1.bf16.msra.mxu0 0
      %976 = vmatprep.subr.bf16.mxu0 0
      %977 = vmatpush1.bf16.msra.mxu0 0
      %978 = vmatprep.subr.bf16.mxu0 0
      %979 = vmatpush1.bf16.msra.mxu0 0
      %980 = vmatprep.subr.bf16.mxu0 0
      %981 = vmatpush1.bf16.msra.mxu0 0
      %982 = vmatprep.subr.bf16.mxu0 0
      %983 = vmatpush1.bf16.msra.mxu0 0
      %984 = vmatprep.subr.bf16.mxu0 0
      %985 = vmatpush1.bf16.msra.mxu0 0
      %986 = vmatprep.subr.bf16.mxu0 0
      %987 = vmatpush1.bf16.msra.mxu0 0
      %988 = vmatprep.subr.bf16.mxu0 0
      %989 = vmatpush1.bf16.msra.mxu0 0
      %990 = vmatprep.mubr.bf16.mxu0 0
      %991 = vmatmul.mubr.bf16.gmra.mrb[0].mxu0 %v923
      %v992 = vpop.f32.mrb[0].mxu0
      %v993 = vadd.f32 %v699, %v992
      %v994 = vpop.f32.mrb[0].mxu0
      %v995 = vpop.f32.mrb[0].mxu0
      %v996 = vadd.f32 %v702, %v995
      %v997 = vpop.f32.mrb[0].mxu0
      %998 = vmatprep.mubr.bf16.mxu0 0
      %999 = vmatmul.mubr.bf16.gmra.mrb[0].mxu0 %v926
      %v1000 = vpop.f32.mrb[0].mxu0
      %v1001 = vadd.f32 %v707, %v1000
      %v1002 = vpop.f32.mrb[0].mxu0
      %v1003 = vpop.f32.mrb[0].mxu0
      %v1004 = vadd.f32 %v710, %v1003
      %v1005 = vpop.f32.mrb[0].mxu0
      %1006 = vmatprep.mubr.bf16.mxu0 0
      %1007 = vmatmul.mubr.bf16.gmra.mrb[0].mxu0 %v929
      %v1008 = vpop.f32.mrb[0].mxu0
      %v1009 = vadd.f32 %v715, %v1008
      %v1010 = vpop.f32.mrb[0].mxu0
      %v1011 = vpop.f32.mrb[0].mxu0
      %v1012 = vadd.f32 %v718, %v1011
      %v1013 = vpop.f32.mrb[0].mxu0
      %1014 = vmatprep.mubr.bf16.mxu0 0
      %1015 = vmatmul.mubr.bf16.gmra.mrb[0].mxu0 %v932
      %v1016 = vpop.f32.mrb[0].mxu0
      %v1017 = vadd.f32 %v723, %v1016
      %v1018 = vpop.f32.mrb[0].mxu0
      %v1019 = vpop.f32.mrb[0].mxu0
      %v1020 = vadd.f32 %v726, %v1019
      %v1021 = vpop.f32.mrb[0].mxu0
      %1022 = vmatprep.mubr.bf16.mxu0 0
      %1023 = vmatmul.mubr.bf16.gmra.mrb[0].mxu0 %v935
      %v1024 = vpop.f32.mrb[0].mxu0
      %v1025 = vadd.f32 %v731, %v1024
      %v1026 = vpop.f32.mrb[0].mxu0
      %v1027 = vpop.f32.mrb[0].mxu0
      %v1028 = vadd.f32 %v734, %v1027
      %v1029 = vpop.f32.mrb[0].mxu0
      %1030 = vmatprep.mubr.bf16.mxu0 0
      %1031 = vmatmul.mubr.bf16.gmra.mrb[0].mxu0 %v938
      %v1032 = vpop.f32.mrb[0].mxu0
      %v1033 = vadd.f32 %v739, %v1032
      %v1034 = vpop.f32.mrb[0].mxu0
      %v1035 = vpop.f32.mrb[0].mxu0
      %v1036 = vadd.f32 %v742, %v1035
      %v1037 = vpop.f32.mrb[0].mxu0
      %1038 = vmatprep.mubr.bf16.mxu0 0
      %1039 = vmatmul.mubr.bf16.gmra.mrb[0].mxu0 %v941
      %v1040 = vpop.f32.mrb[0].mxu0
      %v1041 = vadd.f32 %v747, %v1040
      %v1042 = vpop.f32.mrb[0].mxu0
      %v1043 = vpop.f32.mrb[0].mxu0
      %v1044 = vadd.f32 %v750, %v1043
      %v1045 = vpop.f32.mrb[0].mxu0
      %1046 = vmatprep.mubr.bf16.mxu0 0
      %1047 = vmatmul.mubr.bf16.gmra.mrb[0].mxu0 %v944
      %v1048 = vpop.f32.mrb[0].mxu0
      %v1049 = vadd.f32 %v755, %v1048
      %v1050 = vpop.f32.mrb[0].mxu0
      %v1051 = vpop.f32.mrb[0].mxu0
      %v1052 = vadd.f32 %v758, %v1051
      %v1053 = vpop.f32.mrb[0].mxu0
      %1054 = vmatprep.mubr.bf16.mxu0 0
      %1055 = vmatmul.mubr.bf16.gmra.mrb[0].mxu0 %v947
      %v1056 = vpop.f32.mrb[0].mxu0
      %v1057 = vadd.f32 %v763, %v1056
      %v1058 = vpop.f32.mrb[0].mxu0
      %v1059 = vpop.f32.mrb[0].mxu0
      %v1060 = vadd.f32 %v766, %v1059
      %v1061 = vpop.f32.mrb[0].mxu0
      %1062 = vmatprep.mubr.bf16.mxu0 0
      %1063 = vmatmul.mubr.bf16.gmra.mrb[0].mxu0 %v950
      %v1064 = vpop.f32.mrb[0].mxu0
      %v1065 = vadd.f32 %v771, %v1064
      %v1066 = vpop.f32.mrb[0].mxu0
      %v1067 = vpop.f32.mrb[0].mxu0
      %v1068 = vadd.f32 %v774, %v1067
      %v1069 = vpop.f32.mrb[0].mxu0
      %1070 = vmatprep.mubr.bf16.mxu0 0
      %1071 = vmatmul.mubr.bf16.gmra.mrb[0].mxu0 %v953
      %v1072 = vpop.f32.mrb[0].mxu0
      %v1073 = vadd.f32 %v779, %v1072
      %v1074 = vpop.f32.mrb[0].mxu0
      %v1075 = vpop.f32.mrb[0].mxu0
      %v1076 = vadd.f32 %v782, %v1075
      %v1077 = vpop.f32.mrb[0].mxu0
      %1078 = vmatprep.mubr.bf16.mxu0 0
      %1079 = vmatmul.mubr.bf16.gmra.mrb[0].mxu0 %v956
      %v1080 = vpop.f32.mrb[0].mxu0
      %v1081 = vadd.f32 %v787, %v1080
      %v1082 = vpop.f32.mrb[0].mxu0
      %v1083 = vpop.f32.mrb[0].mxu0
      %v1084 = vadd.f32 %v790, %v1083
      %v1085 = vpop.f32.mrb[0].mxu0
      %1086 = vdwg.mxu0
      %v1087 = vld [vmem:[#allocation2 + $0x68] sm:$0x1f]
      %s1088 = scalar_lea.vmem %s3, 32
      %v1089 = vld [vmem:[%s1088] sm:$0xf]
      %v1090 = vld [vmem:[%s1088 + $0x4] sm:$0xf]
      %v1091 = vld [vmem:[%s1088 + $0x8] sm:$0xf]
      %v1092 = vld [vmem:[%s1088 + $0xc] sm:$0xf]
      %vm1093 = vsmask.f32 3328
      %v1095 = vshrl.u32 %v571, 16
      %v1097 = vrot.slane %v1095, 4
      %v1098 = vshll.u32 %v571, 16
      %v1100 = vrot.slane %v1098, 5
      %v1101 = vor.u32 %v1097, %v1100
      %v1102 = vrot.slane %v803, 4
      %v1103 = vrot.slane %v806, 5
      %v1104 = vor.u32 %v1102, %v1103
      %v1105 = vsel %vm1093, %v1101, %v1104
      %v1106 = vrot.slane %v812, 4
      %v1107 = vrot.slane %v815, 5
      %v1108 = vor.u32 %v1106, %v1107
      %v1109 = vsel %vm1093, %v1104, %v1108
      %v1110 = vrot.slane %v821, 4
      %v1111 = vrot.slane %v824, 5
      %v1112 = vor.u32 %v1110, %v1111
      %v1113 = vsel %vm1093, %v1108, %v1112
      %v1114 = vrot.slane %v830, 4
      %v1115 = vrot.slane %v833, 5
      %v1116 = vor.u32 %v1114, %v1115
      %v1117 = vsel %vm1093, %v1112, %v1116
      %v1118 = vrot.slane %v839, 4
      %v1119 = vrot.slane %v842, 5
      %v1120 = vor.u32 %v1118, %v1119
      %v1121 = vsel %vm1093, %v1116, %v1120
      %v1122 = vrot.slane %v848, 4
      %v1123 = vrot.slane %v851, 5
      %v1124 = vor.u32 %v1122, %v1123
      %v1125 = vsel %vm1093, %v1120, %v1124
      %v1126 = vrot.slane %v857, 4
      %v1127 = vrot.slane %v860, 5
      %v1128 = vor.u32 %v1126, %v1127
      %v1129 = vsel %vm1093, %v1124, %v1128
      %v1130 = vrot.slane %v866, 4
      %v1131 = vrot.slane %v869, 5
      %v1132 = vor.u32 %v1130, %v1131
      %v1133 = vsel %vm1093, %v1128, %v1132
      %v1134 = vrot.slane %v875, 4
      %v1135 = vrot.slane %v878, 5
      %v1136 = vor.u32 %v1134, %v1135
      %v1137 = vsel %vm1093, %v1132, %v1136
      %v1138 = vrot.slane %v884, 4
      %v1139 = vrot.slane %v887, 5
      %v1140 = vor.u32 %v1138, %v1139
      %v1141 = vsel %vm1093, %v1136, %v1140
      %v1142 = vrot.slane %v893, 4
      %v1143 = vrot.slane %v896, 5
      %v1144 = vor.u32 %v1142, %v1143
      %v1145 = vsel %vm1093, %v1140, %v1144
      %v1147 = vshrl.u32 %v1087, 16
      %v1149 = vrot.slane %v1147, 4
      %v1150 = vshll.u32 %v1087, 16
      %v1152 = vrot.slane %v1150, 5
      %v1153 = vor.u32 %v1149, %v1152
      %v1154 = vsel %vm1093, %v1144, %v1153
      %v1159 = vunpack.c.l.b16 %v1089
      %v1160 = vunpack.c.l.b16 %v1090
      %v1161 = vunpack.c.l.b16 %v1091
      %v1162 = vunpack.c.l.b16 %v1092
      %v1163 = vpack.c.b16 %v1160, %v1159
      %v1164 = vpack.c.b16 %v1162, %v1161
      %v1168 = vsel %vm425, %v1105, 0
      %v1171 = vsel %vm425, %v1109, 0
      %v1174 = vsel %vm425, %v1113, 0
      %v1177 = vsel %vm425, %v1117, 0
      %v1180 = vsel %vm425, %v1121, 0
      %v1183 = vsel %vm425, %v1125, 0
      %v1186 = vsel %vm425, %v1129, 0
      %v1189 = vsel %vm425, %v1133, 0
      %v1192 = vsel %vm425, %v1137, 0
      %v1195 = vsel %vm425, %v1141, 0
      %v1198 = vsel %vm425, %v1145, 0
      %v1201 = vsel %vm425, %v1154, 0
      %1203 = vmatprep.subr.bf16.mxu0 0
      %1204 = vmatpush1.bf16.msra.mxu0 %v1163
      %1205 = vmatprep.subr.bf16.mxu0 0
      %1206 = vmatpush1.bf16.msra.mxu0 %v1164
      %1207 = vmatprep.subr.bf16.mxu0 0
      %1208 = vmatpush1.bf16.msra.mxu0 0
      %1209 = vmatprep.subr.bf16.mxu0 0
      %1210 = vmatpush1.bf16.msra.mxu0 0
      %1211 = vmatprep.subr.bf16.mxu0 0
      %1212 = vmatpush1.bf16.msra.mxu0 0
      %1213 = vmatprep.subr.bf16.mxu0 0
      %1214 = vmatpush1.bf16.msra.mxu0 0
      %1215 = vmatprep.subr.bf16.mxu0 0
      %1216 = vmatpush1.bf16.msra.mxu0 0
      %1217 = vmatprep.subr.bf16.mxu0 0
      %1218 = vmatpush1.bf16.msra.mxu0 0
      %1219 = vmatprep.subr.bf16.mxu0 0
      %1220 = vmatpush1.bf16.msra.mxu0 0
      %1221 = vmatprep.subr.bf16.mxu0 0
      %1222 = vmatpush1.bf16.msra.mxu0 0
      %1223 = vmatprep.subr.bf16.mxu0 0
      %1224 = vmatpush1.bf16.msra.mxu0 0
      %1225 = vmatprep.subr.bf16.mxu0 0
      %1226 = vmatpush1.bf16.msra.mxu0 0
      %1227 = vmatprep.subr.bf16.mxu0 0
      %1228 = vmatpush1.bf16.msra.mxu0 0
      %1229 = vmatprep.subr.bf16.mxu0 0
      %1230 = vmatpush1.bf16.msra.mxu0 0
      %1231 = vmatprep.subr.bf16.mxu0 0
      %1232 = vmatpush1.bf16.msra.mxu0 0
      %1233 = vmatprep.subr.bf16.mxu0 0
      %1234 = vmatpush1.bf16.msra.mxu0 0
      %1235 = vmatprep.mubr.bf16.mxu0 0
      %1236 = vmatmul.mubr.bf16.gmra.mrb[0].mxu0 %v1168
      %v1237 = vpop.f32.mrb[0].mxu0
      %v1238 = vadd.f32 0.0, %v1237
      %v1239 = vpop.f32.mrb[0].mxu0
      %v1240 = vpop.f32.mrb[0].mxu0
      %v1241 = vadd.f32 0.0, %v1240
      %v1242 = vpop.f32.mrb[0].mxu0
      %1243 = vmatprep.mubr.bf16.mxu0 0
      %1244 = vmatmul.mubr.bf16.gmra.mrb[0].mxu0 %v1171
      %v1245 = vpop.f32.mrb[0].mxu0
      %v1246 = vadd.f32 0.0, %v1245
      %v1247 = vpop.f32.mrb[0].mxu0
      %v1248 = vpop.f32.mrb[0].mxu0
      %v1249 = vadd.f32 0.0, %v1248
      %v1250 = vpop.f32.mrb[0].mxu0
      %1251 = vmatprep.mubr.bf16.mxu0 0
      %1252 = vmatmul.mubr.bf16.gmra.mrb[0].mxu0 %v1174
      %v1253 = vpop.f32.mrb[0].mxu0
      %v1254 = vadd.f32 0.0, %v1253
      %v1255 = vpop.f32.mrb[0].mxu0
      %v1256 = vpop.f32.mrb[0].mxu0
      %v1257 = vadd.f32 0.0, %v1256
      %v1258 = vpop.f32.mrb[0].mxu0
      %1259 = vmatprep.mubr.bf16.mxu0 0
      %1260 = vmatmul.mubr.bf16.gmra.mrb[0].mxu0 %v1177
      %v1261 = vpop.f32.mrb[0].mxu0
      %v1262 = vadd.f32 0.0, %v1261
      %v1263 = vpop.f32.mrb[0].mxu0
      %v1264 = vpop.f32.mrb[0].mxu0
      %v1265 = vadd.f32 0.0, %v1264
      %v1266 = vpop.f32.mrb[0].mxu0
      %1267 = vmatprep.mubr.bf16.mxu0 0
      %1268 = vmatmul.mubr.bf16.gmra.mrb[0].mxu0 %v1180
      %v1269 = vpop.f32.mrb[0].mxu0
      %v1270 = vadd.f32 0.0, %v1269
      %v1271 = vpop.f32.mrb[0].mxu0
      %v1272 = vpop.f32.mrb[0].mxu0
      %v1273 = vadd.f32 0.0, %v1272
      %v1274 = vpop.f32.mrb[0].mxu0
      %1275 = vmatprep.mubr.bf16.mxu0 0
      %1276 = vmatmul.mubr.bf16.gmra.mrb[0].mxu0 %v1183
      %v1277 = vpop.f32.mrb[0].mxu0
      %v1278 = vadd.f32 0.0, %v1277
      %v1279 = vpop.f32.mrb[0].mxu0
      %v1280 = vpop.f32.mrb[0].mxu0
      %v1281 = vadd.f32 0.0, %v1280
      %v1282 = vpop.f32.mrb[0].mxu0
      %1283 = vmatprep.mubr.bf16.mxu0 0
      %1284 = vmatmul.mubr.bf16.gmra.mrb[0].mxu0 %v1186
      %v1285 = vpop.f32.mrb[0].mxu0
      %v1286 = vadd.f32 0.0, %v1285
      %v1287 = vpop.f32.mrb[0].mxu0
      %v1288 = vpop.f32.mrb[0].mxu0
      %v1289 = vadd.f32 0.0, %v1288
      %v1290 = vpop.f32.mrb[0].mxu0
      %1291 = vmatprep.mubr.bf16.mxu0 0
      %1292 = vmatmul.mubr.bf16.gmra.mrb[0].mxu0 %v1189
      %v1293 = vpop.f32.mrb[0].mxu0
      %v1294 = vadd.f32 0.0, %v1293
      %v1295 = vpop.f32.mrb[0].mxu0
      %v1296 = vpop.f32.mrb[0].mxu0
      %v1297 = vadd.f32 0.0, %v1296
      %v1298 = vpop.f32.mrb[0].mxu0
      %1299 = vmatprep.mubr.bf16.mxu0 0
      %1300 = vmatmul.mubr.bf16.gmra.mrb[0].mxu0 %v1192
      %v1301 = vpop.f32.mrb[0].mxu0
      %v1302 = vadd.f32 0.0, %v1301
      %v1303 = vpop.f32.mrb[0].mxu0
      %v1304 = vpop.f32.mrb[0].mxu0
      %v1305 = vadd.f32 0.0, %v1304
      %v1306 = vpop.f32.mrb[0].mxu0
      %1307 = vmatprep.mubr.bf16.mxu0 0
      %1308 = vmatmul.mubr.bf16.gmra.mrb[0].mxu0 %v1195
      %v1309 = vpop.f32.mrb[0].mxu0
      %v1310 = vadd.f32 0.0, %v1309
      %v1311 = vpop.f32.mrb[0].mxu0
      %v1312 = vpop.f32.mrb[0].mxu0
      %v1313 = vadd.f32 0.0, %v1312
      %v1314 = vpop.f32.mrb[0].mxu0
      %1315 = vmatprep.mubr.bf16.mxu0 0
      %1316 = vmatmul.mubr.bf16.gmra.mrb[0].mxu0 %v1198
      %v1317 = vpop.f32.mrb[0].mxu0
      %v1318 = vadd.f32 0.0, %v1317
      %v1319 = vpop.f32.mrb[0].mxu0
      %v1320 = vpop.f32.mrb[0].mxu0
      %v1321 = vadd.f32 0.0, %v1320
      %v1322 = vpop.f32.mrb[0].mxu0
      %1323 = vmatprep.mubr.bf16.mxu0 0
      %1324 = vmatmul.mubr.bf16.gmra.mrb[0].mxu0 %v1201
      %v1325 = vpop.f32.mrb[0].mxu0
      %v1326 = vadd.f32 0.0, %v1325
      %v1327 = vpop.f32.mrb[0].mxu0
      %v1328 = vpop.f32.mrb[0].mxu0
      %v1329 = vadd.f32 0.0, %v1328
      %v1330 = vpop.f32.mrb[0].mxu0
      %1331 = vdwg.mxu0
      %v1332 = vadd.f32 %v993, %v1238
      %v1333 = vadd.f32 %v996, %v1241
      %v1334 = vadd.f32 %v1001, %v1246
      %v1335 = vadd.f32 %v1004, %v1249
      %v1336 = vadd.f32 %v1009, %v1254
      %v1337 = vadd.f32 %v1012, %v1257
      %v1338 = vadd.f32 %v1017, %v1262
      %v1339 = vadd.f32 %v1020, %v1265
      %v1340 = vadd.f32 %v1025, %v1270
      %v1341 = vadd.f32 %v1028, %v1273
      %v1342 = vadd.f32 %v1033, %v1278
      %v1343 = vadd.f32 %v1036, %v1281
      %v1344 = vadd.f32 %v1041, %v1286
      %v1345 = vadd.f32 %v1044, %v1289
      %v1346 = vadd.f32 %v1049, %v1294
      %v1347 = vadd.f32 %v1052, %v1297
      %v1348 = vadd.f32 %v1057, %v1302
      %v1349 = vadd.f32 %v1060, %v1305
      %v1350 = vadd.f32 %v1065, %v1310
      %v1351 = vadd.f32 %v1068, %v1313
      %v1352 = vadd.f32 %v1073, %v1318
      %v1353 = vadd.f32 %v1076, %v1321
      %v1354 = vadd.f32 %v1081, %v1326
      %v1355 = vadd.f32 %v1084, %v1329
      %v1356 = vld [vmem:[#allocation2 + $0x10] sm:$0x80]
      %v1357 = vld [vmem:[#allocation2 + $0x18] sm:$0xff]
      %v1358 = vld [vmem:[#allocation2 + $0x20] sm:$0xff]
      %v1359 = vld [vmem:[#allocation2 + $0x28] sm:$0xff]
      %v1360 = vld [vmem:[#allocation2 + $0x30] sm:$0xff]
      %v1361 = vld [vmem:[#allocation2 + $0x38] sm:$0xff]
      %v1362 = vld [vmem:[#allocation2 + $0x40] sm:$0xff]
      %v1363 = vld [vmem:[#allocation2 + $0x48] sm:$0xff]
      %v1364 = vld [vmem:[#allocation2 + $0x50] sm:$0xff]
      %v1365 = vld [vmem:[#allocation2 + $0x58] sm:$0xff]
      %v1366 = vld [vmem:[#allocation2 + $0x60] sm:$0xff]
      %v1367 = vld [vmem:[#allocation2 + $0x68] sm:$0xff]
      %v1368 = vld [vmem:[#allocation2 + $0x70] sm:$0xff]
      %s1369 = scalar_lea.vmem %s3, 48
      %v1370 = vld [vmem:[%s1369] sm:$0xf]
      %v1371 = vld [vmem:[%s1369 + $0x4] sm:$0xf]
      %v1372 = vld [vmem:[%s1369 + $0x8] sm:$0xf]
      %v1373 = vld [vmem:[%s1369 + $0xc] sm:$0xf]
      %vm1374 = vsmask.f32 256
      %v1376 = vshrl.u32 %v1356, 16
      %v1378 = vrot.slane %v1376, 7
      %v1380 = vshrl.u32 %v1357, 16
      %v1382 = vrot.slane %v1380, 7
      %v1383 = vshll.u32 %v1357, 16
      %v1385 = vor.u32 %v1382, %v1383
      %v1386 = vsel %vm1374, %v1378, %v1385
      %v1388 = vshrl.u32 %v1358, 16
      %v1390 = vrot.slane %v1388, 7
      %v1391 = vshll.u32 %v1358, 16
      %v1393 = vor.u32 %v1390, %v1391
      %v1394 = vsel %vm1374, %v1382, %v1393
      %v1396 = vshrl.u32 %v1359, 16
      %v1398 = vrot.slane %v1396, 7
      %v1399 = vshll.u32 %v1359, 16
      %v1401 = vor.u32 %v1398, %v1399
      %v1402 = vsel %vm1374, %v1390, %v1401
      %v1404 = vshrl.u32 %v1360, 16
      %v1406 = vrot.slane %v1404, 7
      %v1407 = vshll.u32 %v1360, 16
      %v1409 = vor.u32 %v1406, %v1407
      %v1410 = vsel %vm1374, %v1398, %v1409
      %v1412 = vshrl.u32 %v1361, 16
      %v1414 = vrot.slane %v1412, 7
      %v1415 = vshll.u32 %v1361, 16
      %v1417 = vor.u32 %v1414, %v1415
      %v1418 = vsel %vm1374, %v1406, %v1417
      %v1420 = vshrl.u32 %v1362, 16
      %v1422 = vrot.slane %v1420, 7
      %v1423 = vshll.u32 %v1362, 16
      %v1425 = vor.u32 %v1422, %v1423
      %v1426 = vsel %vm1374, %v1414, %v1425
      %v1428 = vshrl.u32 %v1363, 16
      %v1430 = vrot.slane %v1428, 7
      %v1431 = vshll.u32 %v1363, 16
      %v1433 = vor.u32 %v1430, %v1431
      %v1434 = vsel %vm1374, %v1422, %v1433
      %v1436 = vshrl.u32 %v1364, 16
      %v1438 = vrot.slane %v1436, 7
      %v1439 = vshll.u32 %v1364, 16
      %v1441 = vor.u32 %v1438, %v1439
      %v1442 = vsel %vm1374, %v1430, %v1441
      %v1444 = vshrl.u32 %v1365, 16
      %v1446 = vrot.slane %v1444, 7
      %v1447 = vshll.u32 %v1365, 16
      %v1449 = vor.u32 %v1446, %v1447
      %v1450 = vsel %vm1374, %v1438, %v1449
      %v1452 = vshrl.u32 %v1366, 16
      %v1454 = vrot.slane %v1452, 7
      %v1455 = vshll.u32 %v1366, 16
      %v1457 = vor.u32 %v1454, %v1455
      %v1458 = vsel %vm1374, %v1446, %v1457
      %v1460 = vshrl.u32 %v1367, 16
      %v1462 = vrot.slane %v1460, 7
      %v1463 = vshll.u32 %v1367, 16
      %v1465 = vor.u32 %v1462, %v1463
      %v1466 = vsel %vm1374, %v1454, %v1465
      %v1468 = vshrl.u32 %v1368, 16
      %v1470 = vrot.slane %v1468, 7
      %v1471 = vshll.u32 %v1368, 16
      %v1473 = vor.u32 %v1470, %v1471
      %v1474 = vsel %vm1374, %v1462, %v1473
      %v1479 = vunpack.c.l.b16 %v1370
      %v1480 = vunpack.c.l.b16 %v1371
      %v1481 = vunpack.c.l.b16 %v1372
      %v1482 = vunpack.c.l.b16 %v1373
      %v1483 = vpack.c.b16 %v1480, %v1479
      %v1484 = vpack.c.b16 %v1482, %v1481
      %v1488 = vsel %vm425, %v1386, 0
      %v1491 = vsel %vm425, %v1394, 0
      %v1494 = vsel %vm425, %v1402, 0
      %v1497 = vsel %vm425, %v1410, 0
      %v1500 = vsel %vm425, %v1418, 0
      %v1503 = vsel %vm425, %v1426, 0
      %v1506 = vsel %vm425, %v1434, 0
      %v1509 = vsel %vm425, %v1442, 0
      %v1512 = vsel %vm425, %v1450, 0
      %v1515 = vsel %vm425, %v1458, 0
      %v1518 = vsel %vm425, %v1466, 0
      %v1521 = vsel %vm425, %v1474, 0
      %1523 = vmatprep.subr.bf16.mxu0 0
      %1524 = vmatpush1.bf16.msra.mxu0 %v1483
      %1525 = vmatprep.subr.bf16.mxu0 0
      %1526 = vmatpush1.bf16.msra.mxu0 %v1484
      %1527 = vmatprep.subr.bf16.mxu0 0
      %1528 = vmatpush1.bf16.msra.mxu0 0
      %1529 = vmatprep.subr.bf16.mxu0 0
      %1530 = vmatpush1.bf16.msra.mxu0 0
      %1531 = vmatprep.subr.bf16.mxu0 0
      %1532 = vmatpush1.bf16.msra.mxu0 0
      %1533 = vmatprep.subr.bf16.mxu0 0
      %1534 = vmatpush1.bf16.msra.mxu0 0
      %1535 = vmatprep.subr.bf16.mxu0 0
      %1536 = vmatpush1.bf16.msra.mxu0 0
      %1537 = vmatprep.subr.bf16.mxu0 0
      %1538 = vmatpush1.bf16.msra.mxu0 0
      %1539 = vmatprep.subr.bf16.mxu0 0
      %1540 = vmatpush1.bf16.msra.mxu0 0
      %1541 = vmatprep.subr.bf16.mxu0 0
      %1542 = vmatpush1.bf16.msra.mxu0 0
      %1543 = vmatprep.subr.bf16.mxu0 0
      %1544 = vmatpush1.bf16.msra.mxu0 0
      %1545 = vmatprep.subr.bf16.mxu0 0
      %1546 = vmatpush1.bf16.msra.mxu0 0
      %1547 = vmatprep.subr.bf16.mxu0 0
      %1548 = vmatpush1.bf16.msra.mxu0 0
      %1549 = vmatprep.subr.bf16.mxu0 0
      %1550 = vmatpush1.bf16.msra.mxu0 0
      %1551 = vmatprep.subr.bf16.mxu0 0
      %1552 = vmatpush1.bf16.msra.mxu0 0
      %1553 = vmatprep.subr.bf16.mxu0 0
      %1554 = vmatpush1.bf16.msra.mxu0 0
      %1555 = vmatprep.mubr.bf16.mxu0 0
      %1556 = vmatmul.mubr.bf16.gmra.mrb[0].mxu0 %v1488
      %v1557 = vpop.f32.mrb[0].mxu0
      %v1558 = vadd.f32 0.0, %v1557
      %v1559 = vpop.f32.mrb[0].mxu0
      %v1560 = vpop.f32.mrb[0].mxu0
      %v1561 = vadd.f32 0.0, %v1560
      %v1562 = vpop.f32.mrb[0].mxu0
      %1563 = vmatprep.mubr.bf16.mxu0 0
      %1564 = vmatmul.mubr.bf16.gmra.mrb[0].mxu0 %v1491
      %v1565 = vpop.f32.mrb[0].mxu0
      %v1566 = vadd.f32 0.0, %v1565
      %v1567 = vpop.f32.mrb[0].mxu0
      %v1568 = vpop.f32.mrb[0].mxu0
      %v1569 = vadd.f32 0.0, %v1568
      %v1570 = vpop.f32.mrb[0].mxu0
      %1571 = vmatprep.mubr.bf16.mxu0 0
      %1572 = vmatmul.mubr.bf16.gmra.mrb[0].mxu0 %v1494
      %v1573 = vpop.f32.mrb[0].mxu0
      %v1574 = vadd.f32 0.0, %v1573
      %v1575 = vpop.f32.mrb[0].mxu0
      %v1576 = vpop.f32.mrb[0].mxu0
      %v1577 = vadd.f32 0.0, %v1576
      %v1578 = vpop.f32.mrb[0].mxu0
      %1579 = vmatprep.mubr.bf16.mxu0 0
      %1580 = vmatmul.mubr.bf16.gmra.mrb[0].mxu0 %v1497
      %v1581 = vpop.f32.mrb[0].mxu0
      %v1582 = vadd.f32 0.0, %v1581
      %v1583 = vpop.f32.mrb[0].mxu0
      %v1584 = vpop.f32.mrb[0].mxu0
      %v1585 = vadd.f32 0.0, %v1584
      %v1586 = vpop.f32.mrb[0].mxu0
      %1587 = vmatprep.mubr.bf16.mxu0 0
      %1588 = vmatmul.mubr.bf16.gmra.mrb[0].mxu0 %v1500
      %v1589 = vpop.f32.mrb[0].mxu0
      %v1590 = vadd.f32 0.0, %v1589
      %v1591 = vpop.f32.mrb[0].mxu0
      %v1592 = vpop.f32.mrb[0].mxu0
      %v1593 = vadd.f32 0.0, %v1592
      %v1594 = vpop.f32.mrb[0].mxu0
      %1595 = vmatprep.mubr.bf16.mxu0 0
      %1596 = vmatmul.mubr.bf16.gmra.mrb[0].mxu0 %v1503
      %v1597 = vpop.f32.mrb[0].mxu0
      %v1598 = vadd.f32 0.0, %v1597
      %v1599 = vpop.f32.mrb[0].mxu0
      %v1600 = vpop.f32.mrb[0].mxu0
      %v1601 = vadd.f32 0.0, %v1600
      %v1602 = vpop.f32.mrb[0].mxu0
      %1603 = vmatprep.mubr.bf16.mxu0 0
      %1604 = vmatmul.mubr.bf16.gmra.mrb[0].mxu0 %v1506
      %v1605 = vpop.f32.mrb[0].mxu0
      %v1606 = vadd.f32 0.0, %v1605
      %v1607 = vpop.f32.mrb[0].mxu0
      %v1608 = vpop.f32.mrb[0].mxu0
      %v1609 = vadd.f32 0.0, %v1608
      %v1610 = vpop.f32.mrb[0].mxu0
      %1611 = vmatprep.mubr.bf16.mxu0 0
      %1612 = vmatmul.mubr.bf16.gmra.mrb[0].mxu0 %v1509
      %v1613 = vpop.f32.mrb[0].mxu0
      %v1614 = vadd.f32 0.0, %v1613
      %v1615 = vpop.f32.mrb[0].mxu0
      %v1616 = vpop.f32.mrb[0].mxu0
      %v1617 = vadd.f32 0.0, %v1616
      %v1618 = vpop.f32.mrb[0].mxu0
      %1619 = vmatprep.mubr.bf16.mxu0 0
      %1620 = vmatmul.mubr.bf16.gmra.mrb[0].mxu0 %v1512
      %v1621 = vpop.f32.mrb[0].mxu0
      %v1622 = vadd.f32 0.0, %v1621
      %v1623 = vpop.f32.mrb[0].mxu0
      %v1624 = vpop.f32.mrb[0].mxu0
      %v1625 = vadd.f32 0.0, %v1624
      %v1626 = vpop.f32.mrb[0].mxu0
      %1627 = vmatprep.mubr.bf16.mxu0 0
      %1628 = vmatmul.mubr.bf16.gmra.mrb[0].mxu0 %v1515
      %v1629 = vpop.f32.mrb[0].mxu0
      %v1630 = vadd.f32 0.0, %v1629
      %v1631 = vpop.f32.mrb[0].mxu0
      %v1632 = vpop.f32.mrb[0].mxu0
      %v1633 = vadd.f32 0.0, %v1632
      %v1634 = vpop.f32.mrb[0].mxu0
      %1635 = vmatprep.mubr.bf16.mxu0 0
      %1636 = vmatmul.mubr.bf16.gmra.mrb[0].mxu0 %v1518
      %v1637 = vpop.f32.mrb[0].mxu0
      %v1638 = vadd.f32 0.0, %v1637
      %v1639 = vpop.f32.mrb[0].mxu0
      %v1640 = vpop.f32.mrb[0].mxu0
      %v1641 = vadd.f32 0.0, %v1640
      %v1642 = vpop.f32.mrb[0].mxu0
      %1643 = vmatprep.mubr.bf16.mxu0 0
      %1644 = vmatmul.mubr.bf16.gmra.mrb[0].mxu0 %v1521
      %v1645 = vpop.f32.mrb[0].mxu0
      %v1646 = vadd.f32 0.0, %v1645
      %v1647 = vpop.f32.mrb[0].mxu0
      %v1648 = vpop.f32.mrb[0].mxu0
      %v1649 = vadd.f32 0.0, %v1648
      %v1650 = vpop.f32.mrb[0].mxu0
      %1651 = vdwg.mxu0
      %v1652 = vadd.f32 %v1332, %v1558
      %v1653 = vadd.f32 %v1333, %v1561
      %v1654 = vadd.f32 %v1334, %v1566
      %v1655 = vadd.f32 %v1335, %v1569
      %v1656 = vadd.f32 %v1336, %v1574
      %v1657 = vadd.f32 %v1337, %v1577
      %v1658 = vadd.f32 %v1338, %v1582
      %v1659 = vadd.f32 %v1339, %v1585
      %v1660 = vadd.f32 %v1340, %v1590
      %v1661 = vadd.f32 %v1341, %v1593
      %v1662 = vadd.f32 %v1342, %v1598
      %v1663 = vadd.f32 %v1343, %v1601
      %v1664 = vadd.f32 %v1344, %v1606
      %v1665 = vadd.f32 %v1345, %v1609
      %v1666 = vadd.f32 %v1346, %v1614
      %v1667 = vadd.f32 %v1347, %v1617
      %v1668 = vadd.f32 %v1348, %v1622
      %v1669 = vadd.f32 %v1349, %v1625
      %v1670 = vadd.f32 %v1350, %v1630
      %v1671 = vadd.f32 %v1351, %v1633
      %v1672 = vadd.f32 %v1352, %v1638
      %v1673 = vadd.f32 %v1353, %v1641
      %v1674 = vadd.f32 %v1354, %v1646
      %v1675 = vadd.f32 %v1355, %v1649
      %s1676 = scalar_lea.vmem %s3, 64
      %v1677 = vld [vmem:[%s1676] sm:$0xf]
      %v1678 = vld [vmem:[%s1676 + $0x4] sm:$0xf]
      %v1679 = vld [vmem:[%s1676 + $0x8] sm:$0xf]
      %v1680 = vld [vmem:[%s1676 + $0xc] sm:$0xf]
      %v1685 = vunpack.c.l.b16 %v1677
      %v1686 = vunpack.c.l.b16 %v1678
      %v1687 = vunpack.c.l.b16 %v1679
      %v1688 = vunpack.c.l.b16 %v1680
      %v1689 = vpack.c.b16 %v1686, %v1685
      %v1690 = vpack.c.b16 %v1688, %v1687
      %v1693 = vsel %vm425, %v1357, 0
      %v1695 = vsel %vm425, %v1358, 0
      %v1697 = vsel %vm425, %v1359, 0
      %v1699 = vsel %vm425, %v1360, 0
      %v1701 = vsel %vm425, %v1361, 0
      %v1703 = vsel %vm425, %v1362, 0
      %v1705 = vsel %vm425, %v1363, 0
      %v1707 = vsel %vm425, %v1364, 0
      %v1709 = vsel %vm425, %v1365, 0
      %v1711 = vsel %vm425, %v1366, 0
      %v1713 = vsel %vm425, %v1367, 0
      %v1715 = vsel %vm425, %v1368, 0
      %1717 = vmatprep.subr.bf16.mxu0 0
      %1718 = vmatpush1.bf16.msra.mxu0 %v1689
      %1719 = vmatprep.subr.bf16.mxu0 0
      %1720 = vmatpush1.bf16.msra.mxu0 %v1690
      %1721 = vmatprep.subr.bf16.mxu0 0
      %1722 = vmatpush1.bf16.msra.mxu0 0
      %1723 = vmatprep.subr.bf16.mxu0 0
      %1724 = vmatpush1.bf16.msra.mxu0 0
      %1725 = vmatprep.subr.bf16.mxu0 0
      %1726 = vmatpush1.bf16.msra.mxu0 0
      %1727 = vmatprep.subr.bf16.mxu0 0
      %1728 = vmatpush1.bf16.msra.mxu0 0
      %1729 = vmatprep.subr.bf16.mxu0 0
      %1730 = vmatpush1.bf16.msra.mxu0 0
      %1731 = vmatprep.subr.bf16.mxu0 0
      %1732 = vmatpush1.bf16.msra.mxu0 0
      %1733 = vmatprep.subr.bf16.mxu0 0
      %1734 = vmatpush1.bf16.msra.mxu0 0
      %1735 = vmatprep.subr.bf16.mxu0 0
      %1736 = vmatpush1.bf16.msra.mxu0 0
      %1737 = vmatprep.subr.bf16.mxu0 0
      %1738 = vmatpush1.bf16.msra.mxu0 0
      %1739 = vmatprep.subr.bf16.mxu0 0
      %1740 = vmatpush1.bf16.msra.mxu0 0
      %1741 = vmatprep.subr.bf16.mxu0 0
      %1742 = vmatpush1.bf16.msra.mxu0 0
      %1743 = vmatprep.subr.bf16.mxu0 0
      %1744 = vmatpush1.bf16.msra.mxu0 0
      %1745 = vmatprep.subr.bf16.mxu0 0
      %1746 = vmatpush1.bf16.msra.mxu0 0
      %1747 = vmatprep.subr.bf16.mxu0 0
      %1748 = vmatpush1.bf16.msra.mxu0 0
      %1749 = vmatprep.mubr.bf16.mxu0 0
      %1750 = vmatmul.mubr.bf16.gmra.mrb[0].mxu0 %v1693
      %v1751 = vpop.f32.mrb[0].mxu0
      %v1752 = vadd.f32 0.0, %v1751
      %v1753 = vpop.f32.mrb[0].mxu0
      %v1754 = vpop.f32.mrb[0].mxu0
      %v1755 = vadd.f32 0.0, %v1754
      %v1756 = vpop.f32.mrb[0].mxu0
      %1757 = vmatprep.mubr.bf16.mxu0 0
      %1758 = vmatmul.mubr.bf16.gmra.mrb[0].mxu0 %v1695
      %v1759 = vpop.f32.mrb[0].mxu0
      %v1760 = vadd.f32 0.0, %v1759
      %v1761 = vpop.f32.mrb[0].mxu0
      %v1762 = vpop.f32.mrb[0].mxu0
      %v1763 = vadd.f32 0.0, %v1762
      %v1764 = vpop.f32.mrb[0].mxu0
      %1765 = vmatprep.mubr.bf16.mxu0 0
      %1766 = vmatmul.mubr.bf16.gmra.mrb[0].mxu0 %v1697
      %v1767 = vpop.f32.mrb[0].mxu0
      %v1768 = vadd.f32 0.0, %v1767
      %v1769 = vpop.f32.mrb[0].mxu0
      %v1770 = vpop.f32.mrb[0].mxu0
      %v1771 = vadd.f32 0.0, %v1770
      %v1772 = vpop.f32.mrb[0].mxu0
      %1773 = vmatprep.mubr.bf16.mxu0 0
      %1774 = vmatmul.mubr.bf16.gmra.mrb[0].mxu0 %v1699
      %v1775 = vpop.f32.mrb[0].mxu0
      %v1776 = vadd.f32 0.0, %v1775
      %v1777 = vpop.f32.mrb[0].mxu0
      %v1778 = vpop.f32.mrb[0].mxu0
      %v1779 = vadd.f32 0.0, %v1778
      %v1780 = vpop.f32.mrb[0].mxu0
      %1781 = vmatprep.mubr.bf16.mxu0 0
      %1782 = vmatmul.mubr.bf16.gmra.mrb[0].mxu0 %v1701
      %v1783 = vpop.f32.mrb[0].mxu0
      %v1784 = vadd.f32 0.0, %v1783
      %v1785 = vpop.f32.mrb[0].mxu0
      %v1786 = vpop.f32.mrb[0].mxu0
      %v1787 = vadd.f32 0.0, %v1786
      %v1788 = vpop.f32.mrb[0].mxu0
      %1789 = vmatprep.mubr.bf16.mxu0 0
      %1790 = vmatmul.mubr.bf16.gmra.mrb[0].mxu0 %v1703
      %v1791 = vpop.f32.mrb[0].mxu0
      %v1792 = vadd.f32 0.0, %v1791
      %v1793 = vpop.f32.mrb[0].mxu0
      %v1794 = vpop.f32.mrb[0].mxu0
      %v1795 = vadd.f32 0.0, %v1794
      %v1796 = vpop.f32.mrb[0].mxu0
      %1797 = vmatprep.mubr.bf16.mxu0 0
      %1798 = vmatmul.mubr.bf16.gmra.mrb[0].mxu0 %v1705
      %v1799 = vpop.f32.mrb[0].mxu0
      %v1800 = vadd.f32 0.0, %v1799
      %v1801 = vpop.f32.mrb[0].mxu0
      %v1802 = vpop.f32.mrb[0].mxu0
      %v1803 = vadd.f32 0.0, %v1802
      %v1804 = vpop.f32.mrb[0].mxu0
      %1805 = vmatprep.mubr.bf16.mxu0 0
      %1806 = vmatmul.mubr.bf16.gmra.mrb[0].mxu0 %v1707
      %v1807 = vpop.f32.mrb[0].mxu0
      %v1808 = vadd.f32 0.0, %v1807
      %v1809 = vpop.f32.mrb[0].mxu0
      %v1810 = vpop.f32.mrb[0].mxu0
      %v1811 = vadd.f32 0.0, %v1810
      %v1812 = vpop.f32.mrb[0].mxu0
      %1813 = vmatprep.mubr.bf16.mxu0 0
      %1814 = vmatmul.mubr.bf16.gmra.mrb[0].mxu0 %v1709
      %v1815 = vpop.f32.mrb[0].mxu0
      %v1816 = vadd.f32 0.0, %v1815
      %v1817 = vpop.f32.mrb[0].mxu0
      %v1818 = vpop.f32.mrb[0].mxu0
      %v1819 = vadd.f32 0.0, %v1818
      %v1820 = vpop.f32.mrb[0].mxu0
      %1821 = vmatprep.mubr.bf16.mxu0 0
      %1822 = vmatmul.mubr.bf16.gmra.mrb[0].mxu0 %v1711
      %v1823 = vpop.f32.mrb[0].mxu0
      %v1824 = vadd.f32 0.0, %v1823
      %v1825 = vpop.f32.mrb[0].mxu0
      %v1826 = vpop.f32.mrb[0].mxu0
      %v1827 = vadd.f32 0.0, %v1826
      %v1828 = vpop.f32.mrb[0].mxu0
      %1829 = vmatprep.mubr.bf16.mxu0 0
      %1830 = vmatmul.mubr.bf16.gmra.mrb[0].mxu0 %v1713
      %v1831 = vpop.f32.mrb[0].mxu0
      %v1832 = vadd.f32 0.0, %v1831
      %v1833 = vpop.f32.mrb[0].mxu0
      %v1834 = vpop.f32.mrb[0].mxu0
      %v1835 = vadd.f32 0.0, %v1834
      %v1836 = vpop.f32.mrb[0].mxu0
      %1837 = vmatprep.mubr.bf16.mxu0 0
      %1838 = vmatmul.mubr.bf16.gmra.mrb[0].mxu0 %v1715
      %v1839 = vpop.f32.mrb[0].mxu0
      %v1840 = vadd.f32 0.0, %v1839
      %v1841 = vpop.f32.mrb[0].mxu0
      %v1842 = vpop.f32.mrb[0].mxu0
      %v1843 = vadd.f32 0.0, %v1842
      %v1844 = vpop.f32.mrb[0].mxu0
      %1845 = vdwg.mxu0
      %v1846 = vadd.f32 %v1652, %v1752
      %v1847 = vadd.f32 %v1653, %v1755
      %v1848 = vadd.f32 %v1654, %v1760
      %v1849 = vadd.f32 %v1655, %v1763
      %v1850 = vadd.f32 %v1656, %v1768
      %v1851 = vadd.f32 %v1657, %v1771
      %v1852 = vadd.f32 %v1658, %v1776
      %v1853 = vadd.f32 %v1659, %v1779
      %v1854 = vadd.f32 %v1660, %v1784
      %v1855 = vadd.f32 %v1661, %v1787
      %v1856 = vadd.f32 %v1662, %v1792
      %v1857 = vadd.f32 %v1663, %v1795
      %v1858 = vadd.f32 %v1664, %v1800
      %v1859 = vadd.f32 %v1665, %v1803
      %v1860 = vadd.f32 %v1666, %v1808
      %v1861 = vadd.f32 %v1667, %v1811
      %v1862 = vadd.f32 %v1668, %v1816
      %v1863 = vadd.f32 %v1669, %v1819
      %v1864 = vadd.f32 %v1670, %v1824
      %v1865 = vadd.f32 %v1671, %v1827
      %v1866 = vadd.f32 %v1672, %v1832
      %v1867 = vadd.f32 %v1673, %v1835
      %v1868 = vadd.f32 %v1674, %v1840
      %v1869 = vadd.f32 %v1675, %v1843
      %v1870 = vld [vmem:[#allocation2 + $0x18] sm:$0xff]
      %v1871 = vld [vmem:[#allocation2 + $0x20] sm:$0xff]
      %v1872 = vld [vmem:[#allocation2 + $0x28] sm:$0xff]
      %v1873 = vld [vmem:[#allocation2 + $0x30] sm:$0xff]
      %v1874 = vld [vmem:[#allocation2 + $0x38] sm:$0xff]
      %v1875 = vld [vmem:[#allocation2 + $0x40] sm:$0xff]
      %v1876 = vld [vmem:[#allocation2 + $0x48] sm:$0xff]
      %v1877 = vld [vmem:[#allocation2 + $0x50] sm:$0xff]
      %v1878 = vld [vmem:[#allocation2 + $0x58] sm:$0xff]
      %v1879 = vld [vmem:[#allocation2 + $0x60] sm:$0xff]
      %v1880 = vld [vmem:[#allocation2 + $0x68] sm:$0xff]
      %v1881 = vld [vmem:[#allocation2 + $0x70] sm:$0xff]
      %v1882 = vld [vmem:[#allocation2 + $0x78] sm:$0x1]
      %s1883 = scalar_lea.vmem %s3, 80
      %v1884 = vld [vmem:[%s1883] sm:$0xf]
      %v1885 = vld [vmem:[%s1883 + $0x4] sm:$0xf]
      %v1886 = vld [vmem:[%s1883 + $0x8] sm:$0xf]
      %v1887 = vld [vmem:[%s1883 + $0xc] sm:$0xf]
      %vm1888 = vsmask.f32 7424
      %v1890 = vshrl.u32 %v1870, 16
      %v1892 = vshll.u32 %v1870, 16
      %v1894 = vrot.slane %v1892, 1
      %v1895 = vor.u32 %v1890, %v1894
      %v1897 = vshll.u32 %v1871, 16
      %v1899 = vrot.slane %v1897, 1
      %v1900 = vsel %vm1888, %v1895, %v1899
      %v1901 = vshrl.u32 %v1871, 16
      %v1903 = vor.u32 %v1901, %v1899
      %v1905 = vshll.u32 %v1872, 16
      %v1907 = vrot.slane %v1905, 1
      %v1908 = vsel %vm1888, %v1903, %v1907
      %v1909 = vshrl.u32 %v1872, 16
      %v1911 = vor.u32 %v1909, %v1907
      %v1913 = vshll.u32 %v1873, 16
      %v1915 = vrot.slane %v1913, 1
      %v1916 = vsel %vm1888, %v1911, %v1915
      %v1917 = vshrl.u32 %v1873, 16
      %v1919 = vor.u32 %v1917, %v1915
      %v1921 = vshll.u32 %v1874, 16
      %v1923 = vrot.slane %v1921, 1
      %v1924 = vsel %vm1888, %v1919, %v1923
      %v1925 = vshrl.u32 %v1874, 16
      %v1927 = vor.u32 %v1925, %v1923
      %v1929 = vshll.u32 %v1875, 16
      %v1931 = vrot.slane %v1929, 1
      %v1932 = vsel %vm1888, %v1927, %v1931
      %v1933 = vshrl.u32 %v1875, 16
      %v1935 = vor.u32 %v1933, %v1931
      %v1937 = vshll.u32 %v1876, 16
      %v1939 = vrot.slane %v1937, 1
      %v1940 = vsel %vm1888, %v1935, %v1939
      %v1941 = vshrl.u32 %v1876, 16
      %v1943 = vor.u32 %v1941, %v1939
      %v1945 = vshll.u32 %v1877, 16
      %v1947 = vrot.slane %v1945, 1
      %v1948 = vsel %vm1888, %v1943, %v1947
      %v1949 = vshrl.u32 %v1877, 16
      %v1951 = vor.u32 %v1949, %v1947
      %v1953 = vshll.u32 %v1878, 16
      %v1955 = vrot.slane %v1953, 1
      %v1956 = vsel %vm1888, %v1951, %v1955
      %v1957 = vshrl.u32 %v1878, 16
      %v1959 = vor.u32 %v1957, %v1955
      %v1961 = vshll.u32 %v1879, 16
      %v1963 = vrot.slane %v1961, 1
      %v1964 = vsel %vm1888, %v1959, %v1963
      %v1965 = vshrl.u32 %v1879, 16
      %v1967 = vor.u32 %v1965, %v1963
      %v1969 = vshll.u32 %v1880, 16
      %v1971 = vrot.slane %v1969, 1
      %v1972 = vsel %vm1888, %v1967, %v1971
      %v1973 = vshrl.u32 %v1880, 16
      %v1975 = vor.u32 %v1973, %v1971
      %v1977 = vshll.u32 %v1881, 16
      %v1979 = vrot.slane %v1977, 1
      %v1980 = vsel %vm1888, %v1975, %v1979
      %v1981 = vshrl.u32 %v1881, 16
      %v1983 = vor.u32 %v1981, %v1979
      %v1985 = vshll.u32 %v1882, 16
      %v1987 = vrot.slane %v1985, 1
      %v1988 = vsel %vm1888, %v1983, %v1987
      %v1993 = vunpack.c.l.b16 %v1884
      %v1994 = vunpack.c.l.b16 %v1885
      %v1995 = vunpack.c.l.b16 %v1886
      %v1996 = vunpack.c.l.b16 %v1887
      %v1997 = vpack.c.b16 %v1994, %v1993
      %v1998 = vpack.c.b16 %v1996, %v1995
      %v2002 = vsel %vm425, %v1900, 0
      %v2005 = vsel %vm425, %v1908, 0
      %v2008 = vsel %vm425, %v1916, 0
      %v2011 = vsel %vm425, %v1924, 0
      %v2014 = vsel %vm425, %v1932, 0
      %v2017 = vsel %vm425, %v1940, 0
      %v2020 = vsel %vm425, %v1948, 0
      %v2023 = vsel %vm425, %v1956, 0
      %v2026 = vsel %vm425, %v1964, 0
      %v2029 = vsel %vm425, %v1972, 0
      %v2032 = vsel %vm425, %v1980, 0
      %v2035 = vsel %vm425, %v1988, 0
      %2037 = vmatprep.subr.bf16.mxu0 0
      %2038 = vmatpush1.bf16.msra.mxu0 %v1997
      %2039 = vmatprep.subr.bf16.mxu0 0
      %2040 = vmatpush1.bf16.msra.mxu0 %v1998
      %2041 = vmatprep.subr.bf16.mxu0 0
      %2042 = vmatpush1.bf16.msra.mxu0 0
      %2043 = vmatprep.subr.bf16.mxu0 0
      %2044 = vmatpush1.bf16.msra.mxu0 0
      %2045 = vmatprep.subr.bf16.mxu0 0
      %2046 = vmatpush1.bf16.msra.mxu0 0
      %2047 = vmatprep.subr.bf16.mxu0 0
      %2048 = vmatpush1.bf16.msra.mxu0 0
      %2049 = vmatprep.subr.bf16.mxu0 0
      %2050 = vmatpush1.bf16.msra.mxu0 0
      %2051 = vmatprep.subr.bf16.mxu0 0
      %2052 = vmatpush1.bf16.msra.mxu0 0
      %2053 = vmatprep.subr.bf16.mxu0 0
      %2054 = vmatpush1.bf16.msra.mxu0 0
      %2055 = vmatprep.subr.bf16.mxu0 0
      %2056 = vmatpush1.bf16.msra.mxu0 0
      %2057 = vmatprep.subr.bf16.mxu0 0
      %2058 = vmatpush1.bf16.msra.mxu0 0
      %2059 = vmatprep.subr.bf16.mxu0 0
      %2060 = vmatpush1.bf16.msra.mxu0 0
      %2061 = vmatprep.subr.bf16.mxu0 0
      %2062 = vmatpush1.bf16.msra.mxu0 0
      %2063 = vmatprep.subr.bf16.mxu0 0
      %2064 = vmatpush1.bf16.msra.mxu0 0
      %2065 = vmatprep.subr.bf16.mxu0 0
      %2066 = vmatpush1.bf16.msra.mxu0 0
      %2067 = vmatprep.subr.bf16.mxu0 0
      %2068 = vmatpush1.bf16.msra.mxu0 0
      %2069 = vmatprep.mubr.bf16.mxu0 0
      %2070 = vmatmul.mubr.bf16.gmra.mrb[0].mxu0 %v2002
      %v2071 = vpop.f32.mrb[0].mxu0
      %v2072 = vadd.f32 0.0, %v2071
      %v2073 = vpop.f32.mrb[0].mxu0
      %v2074 = vpop.f32.mrb[0].mxu0
      %v2075 = vadd.f32 0.0, %v2074
      %v2076 = vpop.f32.mrb[0].mxu0
      %2077 = vmatprep.mubr.bf16.mxu0 0
      %2078 = vmatmul.mubr.bf16.gmra.mrb[0].mxu0 %v2005
      %v2079 = vpop.f32.mrb[0].mxu0
      %v2080 = vadd.f32 0.0, %v2079
      %v2081 = vpop.f32.mrb[0].mxu0
      %v2082 = vpop.f32.mrb[0].mxu0
      %v2083 = vadd.f32 0.0, %v2082
      %v2084 = vpop.f32.mrb[0].mxu0
      %2085 = vmatprep.mubr.bf16.mxu0 0
      %2086 = vmatmul.mubr.bf16.gmra.mrb[0].mxu0 %v2008
      %v2087 = vpop.f32.mrb[0].mxu0
      %v2088 = vadd.f32 0.0, %v2087
      %v2089 = vpop.f32.mrb[0].mxu0
      %v2090 = vpop.f32.mrb[0].mxu0
      %v2091 = vadd.f32 0.0, %v2090
      %v2092 = vpop.f32.mrb[0].mxu0
      %2093 = vmatprep.mubr.bf16.mxu0 0
      %2094 = vmatmul.mubr.bf16.gmra.mrb[0].mxu0 %v2011
      %v2095 = vpop.f32.mrb[0].mxu0
      %v2096 = vadd.f32 0.0, %v2095
      %v2097 = vpop.f32.mrb[0].mxu0
      %v2098 = vpop.f32.mrb[0].mxu0
      %v2099 = vadd.f32 0.0, %v2098
      %v2100 = vpop.f32.mrb[0].mxu0
      %2101 = vmatprep.mubr.bf16.mxu0 0
      %2102 = vmatmul.mubr.bf16.gmra.mrb[0].mxu0 %v2014
      %v2103 = vpop.f32.mrb[0].mxu0
      %v2104 = vadd.f32 0.0, %v2103
      %v2105 = vpop.f32.mrb[0].mxu0
      %v2106 = vpop.f32.mrb[0].mxu0
      %v2107 = vadd.f32 0.0, %v2106
      %v2108 = vpop.f32.mrb[0].mxu0
      %2109 = vmatprep.mubr.bf16.mxu0 0
      %2110 = vmatmul.mubr.bf16.gmra.mrb[0].mxu0 %v2017
      %v2111 = vpop.f32.mrb[0].mxu0
      %v2112 = vadd.f32 0.0, %v2111
      %v2113 = vpop.f32.mrb[0].mxu0
      %v2114 = vpop.f32.mrb[0].mxu0
      %v2115 = vadd.f32 0.0, %v2114
      %v2116 = vpop.f32.mrb[0].mxu0
      %2117 = vmatprep.mubr.bf16.mxu0 0
      %2118 = vmatmul.mubr.bf16.gmra.mrb[0].mxu0 %v2020
      %v2119 = vpop.f32.mrb[0].mxu0
      %v2120 = vadd.f32 0.0, %v2119
      %v2121 = vpop.f32.mrb[0].mxu0
      %v2122 = vpop.f32.mrb[0].mxu0
      %v2123 = vadd.f32 0.0, %v2122
      %v2124 = vpop.f32.mrb[0].mxu0
      %2125 = vmatprep.mubr.bf16.mxu0 0
      %2126 = vmatmul.mubr.bf16.gmra.mrb[0].mxu0 %v2023
      %v2127 = vpop.f32.mrb[0].mxu0
      %v2128 = vadd.f32 0.0, %v2127
      %v2129 = vpop.f32.mrb[0].mxu0
      %v2130 = vpop.f32.mrb[0].mxu0
      %v2131 = vadd.f32 0.0, %v2130
      %v2132 = vpop.f32.mrb[0].mxu0
      %2133 = vmatprep.mubr.bf16.mxu0 0
      %2134 = vmatmul.mubr.bf16.gmra.mrb[0].mxu0 %v2026
      %v2135 = vpop.f32.mrb[0].mxu0
      %v2136 = vadd.f32 0.0, %v2135
      %v2137 = vpop.f32.mrb[0].mxu0
      %v2138 = vpop.f32.mrb[0].mxu0
      %v2139 = vadd.f32 0.0, %v2138
      %v2140 = vpop.f32.mrb[0].mxu0
      %2141 = vmatprep.mubr.bf16.mxu0 0
      %2142 = vmatmul.mubr.bf16.gmra.mrb[0].mxu0 %v2029
      %v2143 = vpop.f32.mrb[0].mxu0
      %v2144 = vadd.f32 0.0, %v2143
      %v2145 = vpop.f32.mrb[0].mxu0
      %v2146 = vpop.f32.mrb[0].mxu0
      %v2147 = vadd.f32 0.0, %v2146
      %v2148 = vpop.f32.mrb[0].mxu0
      %2149 = vmatprep.mubr.bf16.mxu0 0
      %2150 = vmatmul.mubr.bf16.gmra.mrb[0].mxu0 %v2032
      %v2151 = vpop.f32.mrb[0].mxu0
      %v2152 = vadd.f32 0.0, %v2151
      %v2153 = vpop.f32.mrb[0].mxu0
      %v2154 = vpop.f32.mrb[0].mxu0
      %v2155 = vadd.f32 0.0, %v2154
      %v2156 = vpop.f32.mrb[0].mxu0
      %2157 = vmatprep.mubr.bf16.mxu0 0
      %2158 = vmatmul.mubr.bf16.gmra.mrb[0].mxu0 %v2035
      %v2159 = vpop.f32.mrb[0].mxu0
      %v2160 = vadd.f32 0.0, %v2159
      %v2161 = vpop.f32.mrb[0].mxu0
      %v2162 = vpop.f32.mrb[0].mxu0
      %v2163 = vadd.f32 0.0, %v2162
      %v2164 = vpop.f32.mrb[0].mxu0
      %2165 = vdwg.mxu0
      %v2166 = vadd.f32 %v1846, %v2072
      %v2167 = vadd.f32 %v1847, %v2075
      %v2168 = vadd.f32 %v1848, %v2080
      %v2169 = vadd.f32 %v1849, %v2083
      %v2170 = vadd.f32 %v1850, %v2088
      %v2171 = vadd.f32 %v1851, %v2091
      %v2172 = vadd.f32 %v1852, %v2096
      %v2173 = vadd.f32 %v1853, %v2099
      %v2174 = vadd.f32 %v1854, %v2104
      %v2175 = vadd.f32 %v1855, %v2107
      %v2176 = vadd.f32 %v1856, %v2112
      %v2177 = vadd.f32 %v1857, %v2115
      %v2178 = vadd.f32 %v1858, %v2120
      %v2179 = vadd.f32 %v1859, %v2123
      %v2180 = vadd.f32 %v1860, %v2128
      %v2181 = vadd.f32 %v1861, %v2131
      %v2182 = vadd.f32 %v1862, %v2136
      %v2183 = vadd.f32 %v1863, %v2139
      %v2184 = vadd.f32 %v1864, %v2144
      %v2185 = vadd.f32 %v1865, %v2147
      %v2186 = vadd.f32 %v1866, %v2152
      %v2187 = vadd.f32 %v1867, %v2155
      %v2188 = vadd.f32 %v1868, %v2160
      %v2189 = vadd.f32 %v1869, %v2163
      %v2190 = vld [vmem:[#allocation2 + $0x20] sm:$0xf8]
      %v2191 = vld [vmem:[#allocation2 + $0x28] sm:$0xff]
      %v2192 = vld [vmem:[#allocation2 + $0x30] sm:$0xff]
      %v2193 = vld [vmem:[#allocation2 + $0x38] sm:$0xff]
      %v2194 = vld [vmem:[#allocation2 + $0x40] sm:$0xff]
      %v2195 = vld [vmem:[#allocation2 + $0x48] sm:$0xff]
      %v2196 = vld [vmem:[#allocation2 + $0x50] sm:$0xff]
      %v2197 = vld [vmem:[#allocation2 + $0x58] sm:$0xff]
      %v2198 = vld [vmem:[#allocation2 + $0x60] sm:$0xff]
      %v2199 = vld [vmem:[#allocation2 + $0x68] sm:$0xff]
      %v2200 = vld [vmem:[#allocation2 + $0x70] sm:$0xff]
      %v2201 = vld [vmem:[#allocation2 + $0x78] sm:$0xff]
      %v2202 = vld [vmem:[#allocation2 + $0x80] sm:$0xf]
      %s2203 = scalar_lea.vmem %s3, 96
      %v2204 = vld [vmem:[%s2203] sm:$0xf]
      %v2205 = vld [vmem:[%s2203 + $0x4] sm:$0xf]
      %v2206 = vld [vmem:[%s2203 + $0x8] sm:$0xf]
      %v2207 = vld [vmem:[%s2203 + $0xc] sm:$0xf]
      %v2209 = vshrl.u32 %v2190, 16
      %v2211 = vrot.slane %v2209, 3
      %v2212 = vshll.u32 %v2190, 16
      %v2214 = vrot.slane %v2212, 4
      %v2215 = vor.u32 %v2211, %v2214
      %v2217 = vshrl.u32 %v2191, 16
      %v2219 = vrot.slane %v2217, 3
      %v2220 = vshll.u32 %v2191, 16
      %v2222 = vrot.slane %v2220, 4
      %v2223 = vor.u32 %v2219, %v2222
      %v2224 = vsel %vm793, %v2215, %v2223
      %v2226 = vshrl.u32 %v2192, 16
      %v2228 = vrot.slane %v2226, 3
      %v2229 = vshll.u32 %v2192, 16
      %v2231 = vrot.slane %v2229, 4
      %v2232 = vor.u32 %v2228, %v2231
      %v2233 = vsel %vm793, %v2223, %v2232
      %v2235 = vshrl.u32 %v2193, 16
      %v2237 = vrot.slane %v2235, 3
      %v2238 = vshll.u32 %v2193, 16
      %v2240 = vrot.slane %v2238, 4
      %v2241 = vor.u32 %v2237, %v2240
      %v2242 = vsel %vm793, %v2232, %v2241
      %v2244 = vshrl.u32 %v2194, 16
      %v2246 = vrot.slane %v2244, 3
      %v2247 = vshll.u32 %v2194, 16
      %v2249 = vrot.slane %v2247, 4
      %v2250 = vor.u32 %v2246, %v2249
      %v2251 = vsel %vm793, %v2241, %v2250
      %v2253 = vshrl.u32 %v2195, 16
      %v2255 = vrot.slane %v2253, 3
      %v2256 = vshll.u32 %v2195, 16
      %v2258 = vrot.slane %v2256, 4
      %v2259 = vor.u32 %v2255, %v2258
      %v2260 = vsel %vm793, %v2250, %v2259
      %v2262 = vshrl.u32 %v2196, 16
      %v2264 = vrot.slane %v2262, 3
      %v2265 = vshll.u32 %v2196, 16
      %v2267 = vrot.slane %v2265, 4
      %v2268 = vor.u32 %v2264, %v2267
      %v2269 = vsel %vm793, %v2259, %v2268
      %v2271 = vshrl.u32 %v2197, 16
      %v2273 = vrot.slane %v2271, 3
      %v2274 = vshll.u32 %v2197, 16
      %v2276 = vrot.slane %v2274, 4
      %v2277 = vor.u32 %v2273, %v2276
      %v2278 = vsel %vm793, %v2268, %v2277
      %v2280 = vshrl.u32 %v2198, 16
      %v2282 = vrot.slane %v2280, 3
      %v2283 = vshll.u32 %v2198, 16
      %v2285 = vrot.slane %v2283, 4
      %v2286 = vor.u32 %v2282, %v2285
      %v2287 = vsel %vm793, %v2277, %v2286
      %v2289 = vshrl.u32 %v2199, 16
      %v2291 = vrot.slane %v2289, 3
      %v2292 = vshll.u32 %v2199, 16
      %v2294 = vrot.slane %v2292, 4
      %v2295 = vor.u32 %v2291, %v2294
      %v2296 = vsel %vm793, %v2286, %v2295
      %v2298 = vshrl.u32 %v2200, 16
      %v2300 = vrot.slane %v2298, 3
      %v2301 = vshll.u32 %v2200, 16
      %v2303 = vrot.slane %v2301, 4
      %v2304 = vor.u32 %v2300, %v2303
      %v2305 = vsel %vm793, %v2295, %v2304
      %v2307 = vshrl.u32 %v2201, 16
      %v2309 = vrot.slane %v2307, 3
      %v2310 = vshll.u32 %v2201, 16
      %v2312 = vrot.slane %v2310, 4
      %v2313 = vor.u32 %v2309, %v2312
      %v2314 = vsel %vm793, %v2304, %v2313
      %v2316 = vshrl.u32 %v2202, 16
      %v2318 = vrot.slane %v2316, 3
      %v2319 = vshll.u32 %v2202, 16
      %v2321 = vrot.slane %v2319, 4
      %v2322 = vor.u32 %v2318, %v2321
      %v2323 = vsel %vm793, %v2313, %v2322
      %v2328 = vunpack.c.l.b16 %v2204
      %v2329 = vunpack.c.l.b16 %v2205
      %v2330 = vunpack.c.l.b16 %v2206
      %v2331 = vunpack.c.l.b16 %v2207
      %v2332 = vpack.c.b16 %v2329, %v2328
      %v2333 = vpack.c.b16 %v2331, %v2330
      %v2337 = vsel %vm425, %v2224, 0
      %v2340 = vsel %vm425, %v2233, 0
      %v2343 = vsel %vm425, %v2242, 0
      %v2346 = vsel %vm425, %v2251, 0
      %v2349 = vsel %vm425, %v2260, 0
      %v2352 = vsel %vm425, %v2269, 0
      %v2355 = vsel %vm425, %v2278, 0
      %v2358 = vsel %vm425, %v2287, 0
      %v2361 = vsel %vm425, %v2296, 0
      %v2364 = vsel %vm425, %v2305, 0
      %v2367 = vsel %vm425, %v2314, 0
      %v2370 = vsel %vm425, %v2323, 0
      %2372 = vmatprep.subr.bf16.mxu0 0
      %2373 = vmatpush1.bf16.msra.mxu0 %v2332
      %2374 = vmatprep.subr.bf16.mxu0 0
      %2375 = vmatpush1.bf16.msra.mxu0 %v2333
      %2376 = vmatprep.subr.bf16.mxu0 0
      %2377 = vmatpush1.bf16.msra.mxu0 0
      %2378 = vmatprep.subr.bf16.mxu0 0
      %2379 = vmatpush1.bf16.msra.mxu0 0
      %2380 = vmatprep.subr.bf16.mxu0 0
      %2381 = vmatpush1.bf16.msra.mxu0 0
      %2382 = vmatprep.subr.bf16.mxu0 0
      %2383 = vmatpush1.bf16.msra.mxu0 0
      %2384 = vmatprep.subr.bf16.mxu0 0
      %2385 = vmatpush1.bf16.msra.mxu0 0
      %2386 = vmatprep.subr.bf16.mxu0 0
      %2387 = vmatpush1.bf16.msra.mxu0 0
      %2388 = vmatprep.subr.bf16.mxu0 0
      %2389 = vmatpush1.bf16.msra.mxu0 0
      %2390 = vmatprep.subr.bf16.mxu0 0
      %2391 = vmatpush1.bf16.msra.mxu0 0
      %2392 = vmatprep.subr.bf16.mxu0 0
      %2393 = vmatpush1.bf16.msra.mxu0 0
      %2394 = vmatprep.subr.bf16.mxu0 0
      %2395 = vmatpush1.bf16.msra.mxu0 0
      %2396 = vmatprep.subr.bf16.mxu0 0
      %2397 = vmatpush1.bf16.msra.mxu0 0
      %2398 = vmatprep.subr.bf16.mxu0 0
      %2399 = vmatpush1.bf16.msra.mxu0 0
      %2400 = vmatprep.subr.bf16.mxu0 0
      %2401 = vmatpush1.bf16.msra.mxu0 0
      %2402 = vmatprep.subr.bf16.mxu0 0
      %2403 = vmatpush1.bf16.msra.mxu0 0
      %2404 = vmatprep.mubr.bf16.mxu0 0
      %2405 = vmatmul.mubr.bf16.gmra.mrb[0].mxu0 %v2337
      %v2406 = vpop.f32.mrb[0].mxu0
      %v2407 = vadd.f32 0.0, %v2406
      %v2408 = vpop.f32.mrb[0].mxu0
      %v2409 = vpop.f32.mrb[0].mxu0
      %v2410 = vadd.f32 0.0, %v2409
      %v2411 = vpop.f32.mrb[0].mxu0
      %2412 = vmatprep.mubr.bf16.mxu0 0
      %2413 = vmatmul.mubr.bf16.gmra.mrb[0].mxu0 %v2340
      %v2414 = vpop.f32.mrb[0].mxu0
      %v2415 = vadd.f32 0.0, %v2414
      %v2416 = vpop.f32.mrb[0].mxu0
      %v2417 = vpop.f32.mrb[0].mxu0
      %v2418 = vadd.f32 0.0, %v2417
      %v2419 = vpop.f32.mrb[0].mxu0
      %2420 = vmatprep.mubr.bf16.mxu0 0
      %2421 = vmatmul.mubr.bf16.gmra.mrb[0].mxu0 %v2343
      %v2422 = vpop.f32.mrb[0].mxu0
      %v2423 = vadd.f32 0.0, %v2422
      %v2424 = vpop.f32.mrb[0].mxu0
      %v2425 = vpop.f32.mrb[0].mxu0
      %v2426 = vadd.f32 0.0, %v2425
      %v2427 = vpop.f32.mrb[0].mxu0
      %2428 = vmatprep.mubr.bf16.mxu0 0
      %2429 = vmatmul.mubr.bf16.gmra.mrb[0].mxu0 %v2346
      %v2430 = vpop.f32.mrb[0].mxu0
      %v2431 = vadd.f32 0.0, %v2430
      %v2432 = vpop.f32.mrb[0].mxu0
      %v2433 = vpop.f32.mrb[0].mxu0
      %v2434 = vadd.f32 0.0, %v2433
      %v2435 = vpop.f32.mrb[0].mxu0
      %2436 = vmatprep.mubr.bf16.mxu0 0
      %2437 = vmatmul.mubr.bf16.gmra.mrb[0].mxu0 %v2349
      %v2438 = vpop.f32.mrb[0].mxu0
      %v2439 = vadd.f32 0.0, %v2438
      %v2440 = vpop.f32.mrb[0].mxu0
      %v2441 = vpop.f32.mrb[0].mxu0
      %v2442 = vadd.f32 0.0, %v2441
      %v2443 = vpop.f32.mrb[0].mxu0
      %2444 = vmatprep.mubr.bf16.mxu0 0
      %2445 = vmatmul.mubr.bf16.gmra.mrb[0].mxu0 %v2352
      %v2446 = vpop.f32.mrb[0].mxu0
      %v2447 = vadd.f32 0.0, %v2446
      %v2448 = vpop.f32.mrb[0].mxu0
      %v2449 = vpop.f32.mrb[0].mxu0
      %v2450 = vadd.f32 0.0, %v2449
      %v2451 = vpop.f32.mrb[0].mxu0
      %2452 = vmatprep.mubr.bf16.mxu0 0
      %2453 = vmatmul.mubr.bf16.gmra.mrb[0].mxu0 %v2355
      %v2454 = vpop.f32.mrb[0].mxu0
      %v2455 = vadd.f32 0.0, %v2454
      %v2456 = vpop.f32.mrb[0].mxu0
      %v2457 = vpop.f32.mrb[0].mxu0
      %v2458 = vadd.f32 0.0, %v2457
      %v2459 = vpop.f32.mrb[0].mxu0
      %2460 = vmatprep.mubr.bf16.mxu0 0
      %2461 = vmatmul.mubr.bf16.gmra.mrb[0].mxu0 %v2358
      %v2462 = vpop.f32.mrb[0].mxu0
      %v2463 = vadd.f32 0.0, %v2462
      %v2464 = vpop.f32.mrb[0].mxu0
      %v2465 = vpop.f32.mrb[0].mxu0
      %v2466 = vadd.f32 0.0, %v2465
      %v2467 = vpop.f32.mrb[0].mxu0
      %2468 = vmatprep.mubr.bf16.mxu0 0
      %2469 = vmatmul.mubr.bf16.gmra.mrb[0].mxu0 %v2361
      %v2470 = vpop.f32.mrb[0].mxu0
      %v2471 = vadd.f32 0.0, %v2470
      %v2472 = vpop.f32.mrb[0].mxu0
      %v2473 = vpop.f32.mrb[0].mxu0
      %v2474 = vadd.f32 0.0, %v2473
      %v2475 = vpop.f32.mrb[0].mxu0
      %2476 = vmatprep.mubr.bf16.mxu0 0
      %2477 = vmatmul.mubr.bf16.gmra.mrb[0].mxu0 %v2364
      %v2478 = vpop.f32.mrb[0].mxu0
      %v2479 = vadd.f32 0.0, %v2478
      %v2480 = vpop.f32.mrb[0].mxu0
      %v2481 = vpop.f32.mrb[0].mxu0
      %v2482 = vadd.f32 0.0, %v2481
      %v2483 = vpop.f32.mrb[0].mxu0
      %2484 = vmatprep.mubr.bf16.mxu0 0
      %2485 = vmatmul.mubr.bf16.gmra.mrb[0].mxu0 %v2367
      %v2486 = vpop.f32.mrb[0].mxu0
      %v2487 = vadd.f32 0.0, %v2486
      %v2488 = vpop.f32.mrb[0].mxu0
      %v2489 = vpop.f32.mrb[0].mxu0
      %v2490 = vadd.f32 0.0, %v2489
      %v2491 = vpop.f32.mrb[0].mxu0
      %2492 = vmatprep.mubr.bf16.mxu0 0
      %2493 = vmatmul.mubr.bf16.gmra.mrb[0].mxu0 %v2370
      %v2494 = vpop.f32.mrb[0].mxu0
      %v2495 = vadd.f32 0.0, %v2494
      %v2496 = vpop.f32.mrb[0].mxu0
      %v2497 = vpop.f32.mrb[0].mxu0
      %v2498 = vadd.f32 0.0, %v2497
      %v2499 = vpop.f32.mrb[0].mxu0
      %2500 = vdwg.mxu0
      %v2501 = vadd.f32 %v2166, %v2407
      %v2502 = vadd.f32 %v2167, %v2410
      %v2503 = vadd.f32 %v2168, %v2415
      %v2504 = vadd.f32 %v2169, %v2418
      %v2505 = vadd.f32 %v2170, %v2423
      %v2506 = vadd.f32 %v2171, %v2426
      %v2507 = vadd.f32 %v2172, %v2431
      %v2508 = vadd.f32 %v2173, %v2434
      %v2509 = vadd.f32 %v2174, %v2439
      %v2510 = vadd.f32 %v2175, %v2442
      %v2511 = vadd.f32 %v2176, %v2447
      %v2512 = vadd.f32 %v2177, %v2450
      %v2513 = vadd.f32 %v2178, %v2455
      %v2514 = vadd.f32 %v2179, %v2458
      %v2515 = vadd.f32 %v2180, %v2463
      %v2516 = vadd.f32 %v2181, %v2466
      %v2517 = vadd.f32 %v2182, %v2471
      %v2518 = vadd.f32 %v2183, %v2474
      %v2519 = vadd.f32 %v2184, %v2479
      %v2520 = vadd.f32 %v2185, %v2482
      %v2521 = vadd.f32 %v2186, %v2487
      %v2522 = vadd.f32 %v2187, %v2490
      %v2523 = vadd.f32 %v2188, %v2495
      %v2524 = vadd.f32 %v2189, %v2498
      %v2525 = vld [vmem:[#allocation2 + $0x20] sm:$0xf0]
      %s2526 = scalar_lea.vmem %s3, 112
      %v2527 = vld [vmem:[%s2526] sm:$0xf]
      %v2528 = vld [vmem:[%s2526 + $0x4] sm:$0xf]
      %v2529 = vld [vmem:[%s2526 + $0x8] sm:$0xf]
      %v2530 = vld [vmem:[%s2526 + $0xc] sm:$0xf]
      %v2544 = vrot.slane %v2525, 4
      %v2545 = vrot.slane %v2191, 4
      %v2546 = vsel %vm590, %v2544, %v2545
      %v2547 = vrot.slane %v2192, 4
      %v2548 = vsel %vm590, %v2545, %v2547
      %v2549 = vrot.slane %v2193, 4
      %v2550 = vsel %vm590, %v2547, %v2549
      %v2551 = vrot.slane %v2194, 4
      %v2552 = vsel %vm590, %v2549, %v2551
      %v2553 = vrot.slane %v2195, 4
      %v2554 = vsel %vm590, %v2551, %v2553
      %v2555 = vrot.slane %v2196, 4
      %v2556 = vsel %vm590, %v2553, %v2555
      %v2557 = vrot.slane %v2197, 4
      %v2558 = vsel %vm590, %v2555, %v2557
      %v2559 = vrot.slane %v2198, 4
      %v2560 = vsel %vm590, %v2557, %v2559
      %v2561 = vrot.slane %v2199, 4
      %v2562 = vsel %vm590, %v2559, %v2561
      %v2563 = vrot.slane %v2200, 4
      %v2564 = vsel %vm590, %v2561, %v2563
      %v2565 = vrot.slane %v2201, 4
      %v2566 = vsel %vm590, %v2563, %v2565
      %v2567 = vrot.slane %v2202, 4
      %v2568 = vsel %vm590, %v2565, %v2567
      %v2573 = vunpack.c.l.b16 %v2527
      %v2574 = vunpack.c.l.b16 %v2528
      %v2575 = vunpack.c.l.b16 %v2529
      %v2576 = vunpack.c.l.b16 %v2530
      %v2577 = vpack.c.b16 %v2574, %v2573
      %v2578 = vpack.c.b16 %v2576, %v2575
      %v2582 = vsel %vm425, %v2546, 0
      %v2585 = vsel %vm425, %v2548, 0
      %v2588 = vsel %vm425, %v2550, 0
      %v2591 = vsel %vm425, %v2552, 0
      %v2594 = vsel %vm425, %v2554, 0
      %v2597 = vsel %vm425, %v2556, 0
      %v2600 = vsel %vm425, %v2558, 0
      %v2603 = vsel %vm425, %v2560, 0
      %v2606 = vsel %vm425, %v2562, 0
      %v2609 = vsel %vm425, %v2564, 0
      %v2612 = vsel %vm425, %v2566, 0
      %v2615 = vsel %vm425, %v2568, 0
      %2617 = vmatprep.subr.bf16.mxu0 0
      %2618 = vmatpush1.bf16.msra.mxu0 %v2577
      %2619 = vmatprep.subr.bf16.mxu0 0
      %2620 = vmatpush1.bf16.msra.mxu0 %v2578
      %2621 = vmatprep.subr.bf16.mxu0 0
      %2622 = vmatpush1.bf16.msra.mxu0 0
      %2623 = vmatprep.subr.bf16.mxu0 0
      %2624 = vmatpush1.bf16.msra.mxu0 0
      %2625 = vmatprep.subr.bf16.mxu0 0
      %2626 = vmatpush1.bf16.msra.mxu0 0
      %2627 = vmatprep.subr.bf16.mxu0 0
      %2628 = vmatpush1.bf16.msra.mxu0 0
      %2629 = vmatprep.subr.bf16.mxu0 0
      %2630 = vmatpush1.bf16.msra.mxu0 0
      %2631 = vmatprep.subr.bf16.mxu0 0
      %2632 = vmatpush1.bf16.msra.mxu0 0
      %2633 = vmatprep.subr.bf16.mxu0 0
      %2634 = vmatpush1.bf16.msra.mxu0 0
      %2635 = vmatprep.subr.bf16.mxu0 0
      %2636 = vmatpush1.bf16.msra.mxu0 0
      %2637 = vmatprep.subr.bf16.mxu0 0
      %2638 = vmatpush1.bf16.msra.mxu0 0
      %2639 = vmatprep.subr.bf16.mxu0 0
      %2640 = vmatpush1.bf16.msra.mxu0 0
      %2641 = vmatprep.subr.bf16.mxu0 0
      %2642 = vmatpush1.bf16.msra.mxu0 0
      %2643 = vmatprep.subr.bf16.mxu0 0
      %2644 = vmatpush1.bf16.msra.mxu0 0
      %2645 = vmatprep.subr.bf16.mxu0 0
      %2646 = vmatpush1.bf16.msra.mxu0 0
      %2647 = vmatprep.subr.bf16.mxu0 0
      %2648 = vmatpush1.bf16.msra.mxu0 0
      %2649 = vmatprep.mubr.bf16.mxu0 0
      %2650 = vmatmul.mubr.bf16.gmra.mrb[0].mxu0 %v2582
      %v2651 = vpop.f32.mrb[0].mxu0
      %v2652 = vadd.f32 0.0, %v2651
      %v2653 = vpop.f32.mrb[0].mxu0
      %v2654 = vpop.f32.mrb[0].mxu0
      %v2655 = vadd.f32 0.0, %v2654
      %v2656 = vpop.f32.mrb[0].mxu0
      %2657 = vmatprep.mubr.bf16.mxu0 0
      %2658 = vmatmul.mubr.bf16.gmra.mrb[0].mxu0 %v2585
      %v2659 = vpop.f32.mrb[0].mxu0
      %v2660 = vadd.f32 0.0, %v2659
      %v2661 = vpop.f32.mrb[0].mxu0
      %v2662 = vpop.f32.mrb[0].mxu0
      %v2663 = vadd.f32 0.0, %v2662
      %v2664 = vpop.f32.mrb[0].mxu0
      %2665 = vmatprep.mubr.bf16.mxu0 0
      %2666 = vmatmul.mubr.bf16.gmra.mrb[0].mxu0 %v2588
      %v2667 = vpop.f32.mrb[0].mxu0
      %v2668 = vadd.f32 0.0, %v2667
      %v2669 = vpop.f32.mrb[0].mxu0
      %v2670 = vpop.f32.mrb[0].mxu0
      %v2671 = vadd.f32 0.0, %v2670
      %v2672 = vpop.f32.mrb[0].mxu0
      %2673 = vmatprep.mubr.bf16.mxu0 0
      %2674 = vmatmul.mubr.bf16.gmra.mrb[0].mxu0 %v2591
      %v2675 = vpop.f32.mrb[0].mxu0
      %v2676 = vadd.f32 0.0, %v2675
      %v2677 = vpop.f32.mrb[0].mxu0
      %v2678 = vpop.f32.mrb[0].mxu0
      %v2679 = vadd.f32 0.0, %v2678
      %v2680 = vpop.f32.mrb[0].mxu0
      %2681 = vmatprep.mubr.bf16.mxu0 0
      %2682 = vmatmul.mubr.bf16.gmra.mrb[0].mxu0 %v2594
      %v2683 = vpop.f32.mrb[0].mxu0
      %v2684 = vadd.f32 0.0, %v2683
      %v2685 = vpop.f32.mrb[0].mxu0
      %v2686 = vpop.f32.mrb[0].mxu0
      %v2687 = vadd.f32 0.0, %v2686
      %v2688 = vpop.f32.mrb[0].mxu0
      %2689 = vmatprep.mubr.bf16.mxu0 0
      %2690 = vmatmul.mubr.bf16.gmra.mrb[0].mxu0 %v2597
      %v2691 = vpop.f32.mrb[0].mxu0
      %v2692 = vadd.f32 0.0, %v2691
      %v2693 = vpop.f32.mrb[0].mxu0
      %v2694 = vpop.f32.mrb[0].mxu0
      %v2695 = vadd.f32 0.0, %v2694
      %v2696 = vpop.f32.mrb[0].mxu0
      %2697 = vmatprep.mubr.bf16.mxu0 0
      %2698 = vmatmul.mubr.bf16.gmra.mrb[0].mxu0 %v2600
      %v2699 = vpop.f32.mrb[0].mxu0
      %v2700 = vadd.f32 0.0, %v2699
      %v2701 = vpop.f32.mrb[0].mxu0
      %v2702 = vpop.f32.mrb[0].mxu0
      %v2703 = vadd.f32 0.0, %v2702
      %v2704 = vpop.f32.mrb[0].mxu0
      %2705 = vmatprep.mubr.bf16.mxu0 0
      %2706 = vmatmul.mubr.bf16.gmra.mrb[0].mxu0 %v2603
      %v2707 = vpop.f32.mrb[0].mxu0
      %v2708 = vadd.f32 0.0, %v2707
      %v2709 = vpop.f32.mrb[0].mxu0
      %v2710 = vpop.f32.mrb[0].mxu0
      %v2711 = vadd.f32 0.0, %v2710
      %v2712 = vpop.f32.mrb[0].mxu0
      %2713 = vmatprep.mubr.bf16.mxu0 0
      %2714 = vmatmul.mubr.bf16.gmra.mrb[0].mxu0 %v2606
      %v2715 = vpop.f32.mrb[0].mxu0
      %v2716 = vadd.f32 0.0, %v2715
      %v2717 = vpop.f32.mrb[0].mxu0
      %v2718 = vpop.f32.mrb[0].mxu0
      %v2719 = vadd.f32 0.0, %v2718
      %v2720 = vpop.f32.mrb[0].mxu0
      %2721 = vmatprep.mubr.bf16.mxu0 0
      %2722 = vmatmul.mubr.bf16.gmra.mrb[0].mxu0 %v2609
      %v2723 = vpop.f32.mrb[0].mxu0
      %v2724 = vadd.f32 0.0, %v2723
      %v2725 = vpop.f32.mrb[0].mxu0
      %v2726 = vpop.f32.mrb[0].mxu0
      %v2727 = vadd.f32 0.0, %v2726
      %v2728 = vpop.f32.mrb[0].mxu0
      %2729 = vmatprep.mubr.bf16.mxu0 0
      %2730 = vmatmul.mubr.bf16.gmra.mrb[0].mxu0 %v2612
      %v2731 = vpop.f32.mrb[0].mxu0
      %v2732 = vadd.f32 0.0, %v2731
      %v2733 = vpop.f32.mrb[0].mxu0
      %v2734 = vpop.f32.mrb[0].mxu0
      %v2735 = vadd.f32 0.0, %v2734
      %v2736 = vpop.f32.mrb[0].mxu0
      %2737 = vmatprep.mubr.bf16.mxu0 0
      %2738 = vmatmul.mubr.bf16.gmra.mrb[0].mxu0 %v2615
      %v2739 = vpop.f32.mrb[0].mxu0
      %v2740 = vadd.f32 0.0, %v2739
      %v2741 = vpop.f32.mrb[0].mxu0
      %v2742 = vpop.f32.mrb[0].mxu0
      %v2743 = vadd.f32 0.0, %v2742
      %v2744 = vpop.f32.mrb[0].mxu0
      %2745 = vdwg.mxu0
      %v2746 = vadd.f32 %v2501, %v2652
      %v2747 = vadd.f32 %v2502, %v2655
      %v2748 = vadd.f32 %v2503, %v2660
      %v2749 = vadd.f32 %v2504, %v2663
      %v2750 = vadd.f32 %v2505, %v2668
      %v2751 = vadd.f32 %v2506, %v2671
      %v2752 = vadd.f32 %v2507, %v2676
      %v2753 = vadd.f32 %v2508, %v2679
      %v2754 = vadd.f32 %v2509, %v2684
      %v2755 = vadd.f32 %v2510, %v2687
      %v2756 = vadd.f32 %v2511, %v2692
      %v2757 = vadd.f32 %v2512, %v2695
      %v2758 = vadd.f32 %v2513, %v2700
      %v2759 = vadd.f32 %v2514, %v2703
      %v2760 = vadd.f32 %v2515, %v2708
      %v2761 = vadd.f32 %v2516, %v2711
      %v2762 = vadd.f32 %v2517, %v2716
      %v2763 = vadd.f32 %v2518, %v2719
      %v2764 = vadd.f32 %v2519, %v2724
      %v2765 = vadd.f32 %v2520, %v2727
      %v2766 = vadd.f32 %v2521, %v2732
      %v2767 = vadd.f32 %v2522, %v2735
      %v2768 = vadd.f32 %v2523, %v2740
      %v2769 = vadd.f32 %v2524, %v2743
      %v2770 = vld [vmem:[#allocation2 + $0x80] sm:$0x1f]
      %s2771 = scalar_lea.vmem %s3, 128
      %v2772 = vld [vmem:[%s2771] sm:$0xf]
      %v2773 = vld [vmem:[%s2771 + $0x4] sm:$0xf]
      %v2774 = vld [vmem:[%s2771 + $0x8] sm:$0xf]
      %v2775 = vld [vmem:[%s2771 + $0xc] sm:$0xf]
      %v2777 = vshrl.u32 %v2525, 16
      %v2779 = vrot.slane %v2777, 4
      %v2780 = vshll.u32 %v2525, 16
      %v2782 = vrot.slane %v2780, 5
      %v2783 = vor.u32 %v2779, %v2782
      %v2784 = vrot.slane %v2217, 4
      %v2785 = vrot.slane %v2220, 5
      %v2786 = vor.u32 %v2784, %v2785
      %v2787 = vsel %vm1093, %v2783, %v2786
      %v2788 = vrot.slane %v2226, 4
      %v2789 = vrot.slane %v2229, 5
      %v2790 = vor.u32 %v2788, %v2789
      %v2791 = vsel %vm1093, %v2786, %v2790
      %v2792 = vrot.slane %v2235, 4
      %v2793 = vrot.slane %v2238, 5
      %v2794 = vor.u32 %v2792, %v2793
      %v2795 = vsel %vm1093, %v2790, %v2794
      %v2796 = vrot.slane %v2244, 4
      %v2797 = vrot.slane %v2247, 5
      %v2798 = vor.u32 %v2796, %v2797
      %v2799 = vsel %vm1093, %v2794, %v2798
      %v2800 = vrot.slane %v2253, 4
      %v2801 = vrot.slane %v2256, 5
      %v2802 = vor.u32 %v2800, %v2801
      %v2803 = vsel %vm1093, %v2798, %v2802
      %v2804 = vrot.slane %v2262, 4
      %v2805 = vrot.slane %v2265, 5
      %v2806 = vor.u32 %v2804, %v2805
      %v2807 = vsel %vm1093, %v2802, %v2806
      %v2808 = vrot.slane %v2271, 4
      %v2809 = vrot.slane %v2274, 5
      %v2810 = vor.u32 %v2808, %v2809
      %v2811 = vsel %vm1093, %v2806, %v2810
      %v2812 = vrot.slane %v2280, 4
      %v2813 = vrot.slane %v2283, 5
      %v2814 = vor.u32 %v2812, %v2813
      %v2815 = vsel %vm1093, %v2810, %v2814
      %v2816 = vrot.slane %v2289, 4
      %v2817 = vrot.slane %v2292, 5
      %v2818 = vor.u32 %v2816, %v2817
      %v2819 = vsel %vm1093, %v2814, %v2818
      %v2820 = vrot.slane %v2298, 4
      %v2821 = vrot.slane %v2301, 5
      %v2822 = vor.u32 %v2820, %v2821
      %v2823 = vsel %vm1093, %v2818, %v2822
      %v2824 = vrot.slane %v2307, 4
      %v2825 = vrot.slane %v2310, 5
      %v2826 = vor.u32 %v2824, %v2825
      %v2827 = vsel %vm1093, %v2822, %v2826
      %v2829 = vshrl.u32 %v2770, 16
      %v2831 = vrot.slane %v2829, 4
      %v2832 = vshll.u32 %v2770, 16
      %v2834 = vrot.slane %v2832, 5
      %v2835 = vor.u32 %v2831, %v2834
      %v2836 = vsel %vm1093, %v2826, %v2835
      %v2841 = vunpack.c.l.b16 %v2772
      %v2842 = vunpack.c.l.b16 %v2773
      %v2843 = vunpack.c.l.b16 %v2774
      %v2844 = vunpack.c.l.b16 %v2775
      %v2845 = vpack.c.b16 %v2842, %v2841
      %v2846 = vpack.c.b16 %v2844, %v2843
      %v2850 = vsel %vm425, %v2787, 0
      %v2853 = vsel %vm425, %v2791, 0
      %v2856 = vsel %vm425, %v2795, 0
      %v2859 = vsel %vm425, %v2799, 0
      %v2862 = vsel %vm425, %v2803, 0
      %v2865 = vsel %vm425, %v2807, 0
      %v2868 = vsel %vm425, %v2811, 0
      %v2871 = vsel %vm425, %v2815, 0
      %v2874 = vsel %vm425, %v2819, 0
      %v2877 = vsel %vm425, %v2823, 0
      %v2880 = vsel %vm425, %v2827, 0
      %v2883 = vsel %vm425, %v2836, 0
      %2885 = vmatprep.subr.bf16.mxu0 0
      %2886 = vmatpush1.bf16.msra.mxu0 %v2845
      %2887 = vmatprep.subr.bf16.mxu0 0
      %2888 = vmatpush1.bf16.msra.mxu0 %v2846
      %2889 = vmatprep.subr.bf16.mxu0 0
      %2890 = vmatpush1.bf16.msra.mxu0 0
      %2891 = vmatprep.subr.bf16.mxu0 0
      %2892 = vmatpush1.bf16.msra.mxu0 0
      %2893 = vmatprep.subr.bf16.mxu0 0
      %2894 = vmatpush1.bf16.msra.mxu0 0
      %2895 = vmatprep.subr.bf16.mxu0 0
      %2896 = vmatpush1.bf16.msra.mxu0 0
      %2897 = vmatprep.subr.bf16.mxu0 0
      %2898 = vmatpush1.bf16.msra.mxu0 0
      %2899 = vmatprep.subr.bf16.mxu0 0
      %2900 = vmatpush1.bf16.msra.mxu0 0
      %2901 = vmatprep.subr.bf16.mxu0 0
      %2902 = vmatpush1.bf16.msra.mxu0 0
      %2903 = vmatprep.subr.bf16.mxu0 0
      %2904 = vmatpush1.bf16.msra.mxu0 0
      %2905 = vmatprep.subr.bf16.mxu0 0
      %2906 = vmatpush1.bf16.msra.mxu0 0
      %2907 = vmatprep.subr.bf16.mxu0 0
      %2908 = vmatpush1.bf16.msra.mxu0 0
      %2909 = vmatprep.subr.bf16.mxu0 0
      %2910 = vmatpush1.bf16.msra.mxu0 0
      %2911 = vmatprep.subr.bf16.mxu0 0
      %2912 = vmatpush1.bf16.msra.mxu0 0
      %2913 = vmatprep.subr.bf16.mxu0 0
      %2914 = vmatpush1.bf16.msra.mxu0 0
      %2915 = vmatprep.subr.bf16.mxu0 0
      %2916 = vmatpush1.bf16.msra.mxu0 0
      %2917 = vmatprep.mubr.bf16.mxu0 0
      %2918 = vmatmul.mubr.bf16.gmra.mrb[0].mxu0 %v2850
      %v2919 = vpop.f32.mrb[0].mxu0
      %v2920 = vadd.f32 0.0, %v2919
      %v2921 = vpop.f32.mrb[0].mxu0
      %v2922 = vpop.f32.mrb[0].mxu0
      %v2923 = vadd.f32 0.0, %v2922
      %v2924 = vpop.f32.mrb[0].mxu0
      %2925 = vmatprep.mubr.bf16.mxu0 0
      %2926 = vmatmul.mubr.bf16.gmra.mrb[0].mxu0 %v2853
      %v2927 = vpop.f32.mrb[0].mxu0
      %v2928 = vadd.f32 0.0, %v2927
      %v2929 = vpop.f32.mrb[0].mxu0
      %v2930 = vpop.f32.mrb[0].mxu0
      %v2931 = vadd.f32 0.0, %v2930
      %v2932 = vpop.f32.mrb[0].mxu0
      %2933 = vmatprep.mubr.bf16.mxu0 0
      %2934 = vmatmul.mubr.bf16.gmra.mrb[0].mxu0 %v2856
      %v2935 = vpop.f32.mrb[0].mxu0
      %v2936 = vadd.f32 0.0, %v2935
      %v2937 = vpop.f32.mrb[0].mxu0
      %v2938 = vpop.f32.mrb[0].mxu0
      %v2939 = vadd.f32 0.0, %v2938
      %v2940 = vpop.f32.mrb[0].mxu0
      %2941 = vmatprep.mubr.bf16.mxu0 0
      %2942 = vmatmul.mubr.bf16.gmra.mrb[0].mxu0 %v2859
      %v2943 = vpop.f32.mrb[0].mxu0
      %v2944 = vadd.f32 0.0, %v2943
      %v2945 = vpop.f32.mrb[0].mxu0
      %v2946 = vpop.f32.mrb[0].mxu0
      %v2947 = vadd.f32 0.0, %v2946
      %v2948 = vpop.f32.mrb[0].mxu0
      %2949 = vmatprep.mubr.bf16.mxu0 0
      %2950 = vmatmul.mubr.bf16.gmra.mrb[0].mxu0 %v2862
      %v2951 = vpop.f32.mrb[0].mxu0
      %v2952 = vadd.f32 0.0, %v2951
      %v2953 = vpop.f32.mrb[0].mxu0
      %v2954 = vpop.f32.mrb[0].mxu0
      %v2955 = vadd.f32 0.0, %v2954
      %v2956 = vpop.f32.mrb[0].mxu0
      %2957 = vmatprep.mubr.bf16.mxu0 0
      %2958 = vmatmul.mubr.bf16.gmra.mrb[0].mxu0 %v2865
      %v2959 = vpop.f32.mrb[0].mxu0
      %v2960 = vadd.f32 0.0, %v2959
      %v2961 = vpop.f32.mrb[0].mxu0
      %v2962 = vpop.f32.mrb[0].mxu0
      %v2963 = vadd.f32 0.0, %v2962
      %v2964 = vpop.f32.mrb[0].mxu0
      %2965 = vmatprep.mubr.bf16.mxu0 0
      %2966 = vmatmul.mubr.bf16.gmra.mrb[0].mxu0 %v2868
      %v2967 = vpop.f32.mrb[0].mxu0
      %v2968 = vadd.f32 0.0, %v2967
      %v2969 = vpop.f32.mrb[0].mxu0
      %v2970 = vpop.f32.mrb[0].mxu0
      %v2971 = vadd.f32 0.0, %v2970
      %v2972 = vpop.f32.mrb[0].mxu0
      %2973 = vmatprep.mubr.bf16.mxu0 0
      %2974 = vmatmul.mubr.bf16.gmra.mrb[0].mxu0 %v2871
      %v2975 = vpop.f32.mrb[0].mxu0
      %v2976 = vadd.f32 0.0, %v2975
      %v2977 = vpop.f32.mrb[0].mxu0
      %v2978 = vpop.f32.mrb[0].mxu0
      %v2979 = vadd.f32 0.0, %v2978
      %v2980 = vpop.f32.mrb[0].mxu0
      %2981 = vmatprep.mubr.bf16.mxu0 0
      %2982 = vmatmul.mubr.bf16.gmra.mrb[0].mxu0 %v2874
      %v2983 = vpop.f32.mrb[0].mxu0
      %v2984 = vadd.f32 0.0, %v2983
      %v2985 = vpop.f32.mrb[0].mxu0
      %v2986 = vpop.f32.mrb[0].mxu0
      %v2987 = vadd.f32 0.0, %v2986
      %v2988 = vpop.f32.mrb[0].mxu0
      %2989 = vmatprep.mubr.bf16.mxu0 0
      %2990 = vmatmul.mubr.bf16.gmra.mrb[0].mxu0 %v2877
      %v2991 = vpop.f32.mrb[0].mxu0
      %v2992 = vadd.f32 0.0, %v2991
      %v2993 = vpop.f32.mrb[0].mxu0
      %v2994 = vpop.f32.mrb[0].mxu0
      %v2995 = vadd.f32 0.0, %v2994
      %v2996 = vpop.f32.mrb[0].mxu0
      %2997 = vmatprep.mubr.bf16.mxu0 0
      %2998 = vmatmul.mubr.bf16.gmra.mrb[0].mxu0 %v2880
      %v2999 = vpop.f32.mrb[0].mxu0
      %v3000 = vadd.f32 0.0, %v2999
      %v3001 = vpop.f32.mrb[0].mxu0
      %v3002 = vpop.f32.mrb[0].mxu0
      %v3003 = vadd.f32 0.0, %v3002
      %v3004 = vpop.f32.mrb[0].mxu0
      %3005 = vmatprep.mubr.bf16.mxu0 0
      %3006 = vmatmul.mubr.bf16.gmra.mrb[0].mxu0 %v2883
      %v3007 = vpop.f32.mrb[0].mxu0
      %v3008 = vadd.f32 0.0, %v3007
      %v3009 = vpop.f32.mrb[0].mxu0
      %v3010 = vpop.f32.mrb[0].mxu0
      %v3011 = vadd.f32 0.0, %v3010
      %v3012 = vpop.f32.mrb[0].mxu0
      %3013 = vdwg.mxu0
      %v3014 = vadd.f32 %v2746, %v2920
      %v3015 = vadd.f32 %v2747, %v2923
      %v3016 = vadd.f32 %v2748, %v2928
      %v3017 = vadd.f32 %v2749, %v2931
      %v3018 = vadd.f32 %v2750, %v2936
      %v3019 = vadd.f32 %v2751, %v2939
      %v3020 = vadd.f32 %v2752, %v2944
      %v3021 = vadd.f32 %v2753, %v2947
      %v3022 = vadd.f32 %v2754, %v2952
      %v3023 = vadd.f32 %v2755, %v2955
      %v3024 = vadd.f32 %v2756, %v2960
      %v3025 = vadd.f32 %v2757, %v2963
      %v3026 = vadd.f32 %v2758, %v2968
      %v3027 = vadd.f32 %v2759, %v2971
      %v3028 = vadd.f32 %v2760, %v2976
      %v3029 = vadd.f32 %v2761, %v2979
      %v3030 = vadd.f32 %v2762, %v2984
      %v3031 = vadd.f32 %v2763, %v2987
      %v3032 = vadd.f32 %v2764, %v2992
      %v3033 = vadd.f32 %v2765, %v2995
      %v3034 = vadd.f32 %v2766, %v3000
      %v3035 = vadd.f32 %v2767, %v3003
      %v3036 = vadd.f32 %v2768, %v3008
      %v3037 = vadd.f32 %v2769, %v3011
      %v3038 = vld [vmem:[%s4] sm:$0x1]
      %v3040 = vlaneseq
      %v3041 = vshrl.u32 %v3040, 7
      %v3042 = vsub.s32 0, %v3041
      %v3043 = vrot.slane %v3038, %v3042
      %v3045 = vadd.f32 %v3014, %v3043
      %v3046 = vadd.f32 %v3015, %v3043
      %v3047 = vadd.f32 %v3016, %v3043
      %v3048 = vadd.f32 %v3017, %v3043
      %v3049 = vadd.f32 %v3018, %v3043
      %v3050 = vadd.f32 %v3019, %v3043
      %v3051 = vadd.f32 %v3020, %v3043
      %v3052 = vadd.f32 %v3021, %v3043
      %v3053 = vadd.f32 %v3022, %v3043
      %v3054 = vadd.f32 %v3023, %v3043
      %v3055 = vadd.f32 %v3024, %v3043
      %v3056 = vadd.f32 %v3025, %v3043
      %v3057 = vadd.f32 %v3026, %v3043
      %v3058 = vadd.f32 %v3027, %v3043
      %v3059 = vadd.f32 %v3028, %v3043
      %v3060 = vadd.f32 %v3029, %v3043
      %v3061 = vadd.f32 %v3030, %v3043
      %v3062 = vadd.f32 %v3031, %v3043
      %v3063 = vadd.f32 %v3032, %v3043
      %v3064 = vadd.f32 %v3033, %v3043
      %v3065 = vadd.f32 %v3034, %v3043
      %v3066 = vadd.f32 %v3035, %v3043
      %v3067 = vadd.f32 %v3036, %v3043
      %v3068 = vadd.f32 %v3037, %v3043
      %v3069 = vmul.f32 %v3045, 0.5
      %v3070 = vmul.f32 %v3046, 0.5
      %v3071 = vmul.f32 %v3047, 0.5
      %v3072 = vmul.f32 %v3048, 0.5
      %v3073 = vmul.f32 %v3049, 0.5
      %v3074 = vmul.f32 %v3050, 0.5
      %v3075 = vmul.f32 %v3051, 0.5
      %v3076 = vmul.f32 %v3052, 0.5
      %v3077 = vmul.f32 %v3053, 0.5
      %v3078 = vmul.f32 %v3054, 0.5
      %v3079 = vmul.f32 %v3055, 0.5
      %v3080 = vmul.f32 %v3056, 0.5
      %v3081 = vmul.f32 %v3057, 0.5
      %v3082 = vmul.f32 %v3058, 0.5
      %v3083 = vmul.f32 %v3059, 0.5
      %v3084 = vmul.f32 %v3060, 0.5
      %v3085 = vmul.f32 %v3061, 0.5
      %v3086 = vmul.f32 %v3062, 0.5
      %v3087 = vmul.f32 %v3063, 0.5
      %v3088 = vmul.f32 %v3064, 0.5
      %v3089 = vmul.f32 %v3065, 0.5
      %v3090 = vmul.f32 %v3066, 0.5
      %v3091 = vmul.f32 %v3067, 0.5
      %v3092 = vmul.f32 %v3068, 0.5
      %v3093 = vmul.f32 %v3045, 0.044715
      %v3094 = vmul.f32 %v3046, 0.044715
      %v3095 = vmul.f32 %v3047, 0.044715
      %v3096 = vmul.f32 %v3048, 0.044715
      %v3097 = vmul.f32 %v3049, 0.044715
      %v3098 = vmul.f32 %v3050, 0.044715
      %v3099 = vmul.f32 %v3051, 0.044715
      %v3100 = vmul.f32 %v3052, 0.044715
      %v3101 = vmul.f32 %v3053, 0.044715
      %v3102 = vmul.f32 %v3054, 0.044715
      %v3103 = vmul.f32 %v3055, 0.044715
      %v3104 = vmul.f32 %v3056, 0.044715
      %v3105 = vmul.f32 %v3057, 0.044715
      %v3106 = vmul.f32 %v3058, 0.044715
      %v3107 = vmul.f32 %v3059, 0.044715
      %v3108 = vmul.f32 %v3060, 0.044715
      %v3109 = vmul.f32 %v3061, 0.044715
      %v3110 = vmul.f32 %v3062, 0.044715
      %v3111 = vmul.f32 %v3063, 0.044715
      %v3112 = vmul.f32 %v3064, 0.044715
      %v3113 = vmul.f32 %v3065, 0.044715
      %v3114 = vmul.f32 %v3066, 0.044715
      %v3115 = vmul.f32 %v3067, 0.044715
      %v3116 = vmul.f32 %v3068, 0.044715
      %v3117 = vmul.f32 %v3093, %v3045
      %v3118 = vmul.f32 %v3094, %v3046
      %v3119 = vmul.f32 %v3095, %v3047
      %v3120 = vmul.f32 %v3096, %v3048
      %v3121 = vmul.f32 %v3097, %v3049
      %v3122 = vmul.f32 %v3098, %v3050
      %v3123 = vmul.f32 %v3099, %v3051
      %v3124 = vmul.f32 %v3100, %v3052
      %v3125 = vmul.f32 %v3101, %v3053
      %v3126 = vmul.f32 %v3102, %v3054
      %v3127 = vmul.f32 %v3103, %v3055
      %v3128 = vmul.f32 %v3104, %v3056
      %v3129 = vmul.f32 %v3105, %v3057
      %v3130 = vmul.f32 %v3106, %v3058
      %v3131 = vmul.f32 %v3107, %v3059
      %v3132 = vmul.f32 %v3108, %v3060
      %v3133 = vmul.f32 %v3109, %v3061
      %v3134 = vmul.f32 %v3110, %v3062
      %v3135 = vmul.f32 %v3111, %v3063
      %v3136 = vmul.f32 %v3112, %v3064
      %v3137 = vmul.f32 %v3113, %v3065
      %v3138 = vmul.f32 %v3114, %v3066
      %v3139 = vmul.f32 %v3115, %v3067
      %v3140 = vmul.f32 %v3116, %v3068
      %v3141 = vmul.f32 %v3117, %v3045
      %v3142 = vmul.f32 %v3118, %v3046
      %v3143 = vmul.f32 %v3119, %v3047
      %v3144 = vmul.f32 %v3120, %v3048
      %v3145 = vmul.f32 %v3121, %v3049
      %v3146 = vmul.f32 %v3122, %v3050
      %v3147 = vmul.f32 %v3123, %v3051
      %v3148 = vmul.f32 %v3124, %v3052
      %v3149 = vmul.f32 %v3125, %v3053
      %v3150 = vmul.f32 %v3126, %v3054
      %v3151 = vmul.f32 %v3127, %v3055
      %v3152 = vmul.f32 %v3128, %v3056
      %v3153 = vmul.f32 %v3129, %v3057
      %v3154 = vmul.f32 %v3130, %v3058
      %v3155 = vmul.f32 %v3131, %v3059
      %v3156 = vmul.f32 %v3132, %v3060
      %v3157 = vmul.f32 %v3133, %v3061
      %v3158 = vmul.f32 %v3134, %v3062
      %v3159 = vmul.f32 %v3135, %v3063
      %v3160 = vmul.f32 %v3136, %v3064
      %v3161 = vmul.f32 %v3137, %v3065
      %v3162 = vmul.f32 %v3138, %v3066
      %v3163 = vmul.f32 %v3139, %v3067
      %v3164 = vmul.f32 %v3140, %v3068
      %v3165 = vadd.f32 %v3045, %v3141
      %v3166 = vadd.f32 %v3046, %v3142
      %v3167 = vadd.f32 %v3047, %v3143
      %v3168 = vadd.f32 %v3048, %v3144
      %v3169 = vadd.f32 %v3049, %v3145
      %v3170 = vadd.f32 %v3050, %v3146
      %v3171 = vadd.f32 %v3051, %v3147
      %v3172 = vadd.f32 %v3052, %v3148
      %v3173 = vadd.f32 %v3053, %v3149
      %v3174 = vadd.f32 %v3054, %v3150
      %v3175 = vadd.f32 %v3055, %v3151
      %v3176 = vadd.f32 %v3056, %v3152
      %v3177 = vadd.f32 %v3057, %v3153
      %v3178 = vadd.f32 %v3058, %v3154
      %v3179 = vadd.f32 %v3059, %v3155
      %v3180 = vadd.f32 %v3060, %v3156
      %v3181 = vadd.f32 %v3061, %v3157
      %v3182 = vadd.f32 %v3062, %v3158
      %v3183 = vadd.f32 %v3063, %v3159
      %v3184 = vadd.f32 %v3064, %v3160
      %v3185 = vadd.f32 %v3065, %v3161
      %v3186 = vadd.f32 %v3066, %v3162
      %v3187 = vadd.f32 %v3067, %v3163
      %v3188 = vadd.f32 %v3068, %v3164
      %v3189 = vmul.f32 %v3165, 0.7978846
      %v3190 = vmul.f32 %v3166, 0.7978846
      %v3191 = vmul.f32 %v3167, 0.7978846
      %v3192 = vmul.f32 %v3168, 0.7978846
      %v3193 = vmul.f32 %v3169, 0.7978846
      %v3194 = vmul.f32 %v3170, 0.7978846
      %v3195 = vmul.f32 %v3171, 0.7978846
      %v3196 = vmul.f32 %v3172, 0.7978846
      %v3197 = vmul.f32 %v3173, 0.7978846
      %v3198 = vmul.f32 %v3174, 0.7978846
      %v3199 = vmul.f32 %v3175, 0.7978846
      %v3200 = vmul.f32 %v3176, 0.7978846
      %v3201 = vmul.f32 %v3177, 0.7978846
      %v3202 = vmul.f32 %v3178, 0.7978846
      %v3203 = vmul.f32 %v3179, 0.7978846
      %v3204 = vmul.f32 %v3180, 0.7978846
      %v3205 = vmul.f32 %v3181, 0.7978846
      %v3206 = vmul.f32 %v3182, 0.7978846
      %v3207 = vmul.f32 %v3183, 0.7978846
      %v3208 = vmul.f32 %v3184, 0.7978846
      %v3209 = vmul.f32 %v3185, 0.7978846
      %v3210 = vmul.f32 %v3186, 0.7978846
      %v3211 = vmul.f32 %v3187, 0.7978846
      %v3212 = vmul.f32 %v3188, 0.7978846
      %v3213 = vtanh.pop %v3189
      %v3214 = vtanh.pop %v3190
      %v3215 = vtanh.pop %v3191
      %v3216 = vtanh.pop %v3192
      %v3217 = vtanh.pop %v3193
      %v3218 = vtanh.pop %v3194
      %v3219 = vtanh.pop %v3195
      %v3220 = vtanh.pop %v3196
      %v3221 = vtanh.pop %v3197
      %v3222 = vtanh.pop %v3198
      %v3223 = vtanh.pop %v3199
      %v3224 = vtanh.pop %v3200
      %v3225 = vtanh.pop %v3201
      %v3226 = vtanh.pop %v3202
      %v3227 = vtanh.pop %v3203
      %v3228 = vtanh.pop %v3204
      %v3229 = vtanh.pop %v3205
      %v3230 = vtanh.pop %v3206
      %v3231 = vtanh.pop %v3207
      %v3232 = vtanh.pop %v3208
      %v3233 = vtanh.pop %v3209
      %v3234 = vtanh.pop %v3210
      %v3235 = vtanh.pop %v3211
      %v3236 = vtanh.pop %v3212
      %v3237 = vadd.f32 %v3213, 1.0
      %v3238 = vadd.f32 %v3214, 1.0
      %v3239 = vadd.f32 %v3215, 1.0
      %v3240 = vadd.f32 %v3216, 1.0
      %v3241 = vadd.f32 %v3217, 1.0
      %v3242 = vadd.f32 %v3218, 1.0
      %v3243 = vadd.f32 %v3219, 1.0
      %v3244 = vadd.f32 %v3220, 1.0
      %v3245 = vadd.f32 %v3221, 1.0
      %v3246 = vadd.f32 %v3222, 1.0
      %v3247 = vadd.f32 %v3223, 1.0
      %v3248 = vadd.f32 %v3224, 1.0
      %v3249 = vadd.f32 %v3225, 1.0
      %v3250 = vadd.f32 %v3226, 1.0
      %v3251 = vadd.f32 %v3227, 1.0
      %v3252 = vadd.f32 %v3228, 1.0
      %v3253 = vadd.f32 %v3229, 1.0
      %v3254 = vadd.f32 %v3230, 1.0
      %v3255 = vadd.f32 %v3231, 1.0
      %v3256 = vadd.f32 %v3232, 1.0
      %v3257 = vadd.f32 %v3233, 1.0
      %v3258 = vadd.f32 %v3234, 1.0
      %v3259 = vadd.f32 %v3235, 1.0
      %v3260 = vadd.f32 %v3236, 1.0
      %v3261 = vmul.f32 %v3069, %v3237
      %v3262 = vmul.f32 %v3070, %v3238
      %v3263 = vmul.f32 %v3071, %v3239
      %v3264 = vmul.f32 %v3072, %v3240
      %v3265 = vmul.f32 %v3073, %v3241
      %v3266 = vmul.f32 %v3074, %v3242
      %v3267 = vmul.f32 %v3075, %v3243
      %v3268 = vmul.f32 %v3076, %v3244
      %v3269 = vmul.f32 %v3077, %v3245
      %v3270 = vmul.f32 %v3078, %v3246
      %v3271 = vmul.f32 %v3079, %v3247
      %v3272 = vmul.f32 %v3080, %v3248
      %v3273 = vmul.f32 %v3081, %v3249
      %v3274 = vmul.f32 %v3082, %v3250
      %v3275 = vmul.f32 %v3083, %v3251
      %v3276 = vmul.f32 %v3084, %v3252
      %v3277 = vmul.f32 %v3085, %v3253
      %v3278 = vmul.f32 %v3086, %v3254
      %v3279 = vmul.f32 %v3087, %v3255
      %v3280 = vmul.f32 %v3088, %v3256
      %v3281 = vmul.f32 %v3089, %v3257
      %v3282 = vmul.f32 %v3090, %v3258
      %v3283 = vmul.f32 %v3091, %v3259
      %v3284 = vmul.f32 %v3092, %v3260
      %v3285 = vlaneseq
      %v3286 = vshrl.u32 %v3285, 7
      %v3287 = vadd.s32 %v3286, 8
      %v3288 = vadd.s32 %v3286, 16
      %v3289 = vadd.s32 %v3286, 24
      %v3290 = vadd.s32 %v3286, 32
      %v3291 = vadd.s32 %v3286, 40
      %v3292 = vadd.s32 %v3286, 48
      %v3293 = vadd.s32 %v3286, 56
      %v3294 = vadd.s32 %v3286, 64
      %v3295 = vadd.s32 %v3286, 72
      %v3296 = vadd.s32 %v3286, 80
      %v3297 = vadd.s32 %v3286, 88
      %v3298 = vadd.s32 %v3286, 96
      %v3299 = vadd.s32 %v3286, 104
      %v3300 = vadd.s32 %v3286, 112
      %v3301 = vadd.s32 %v3286, 120
      %v3302 = vadd.s32 %v3286, 128
      %v3303 = vadd.s32 %v3286, 136
      %v3304 = vadd.s32 %v3286, 144
      %v3305 = vadd.s32 %v3286, 152
      %v3306 = vadd.s32 %v3286, 160
      %v3307 = vadd.s32 %v3286, 168
      %v3308 = vadd.s32 %v3286, 176
      %v3309 = vadd.s32 %v3286, 184
      %vm3310 = vcmp.lt.s32.totalorder %v3286, 0
      %v3311 = vsub.s32 0, %v3286
      %v3312 = vsel %vm3310, %v3311, %v3286
      %v3313 = vmul.u32.u64.compose %v3312, 2863311531
      %v3314 = vextract.low.u32 %v3313
      %v3315 = vextract.high.u32 %v3313
      %v3316 = vshrl.u32 %v3315, 4
      %v3317 = vmul.u32 %v3316, 24
      %v3318 = vsub.s32 %v3312, %v3317
      %v3319 = vsub.s32 0, %v3318
      %v3320 = vsel %vm3310, %v3319, %v3318
      %vm3321 = vcmp.lt.s32.totalorder %v3287, 0
      %v3322 = vsub.s32 0, %v3287
      %v3323 = vsel %vm3321, %v3322, %v3287
      %v3324 = vmul.u32.u64.compose %v3323, 2863311531
      %v3325 = vextract.low.u32 %v3324
      %v3326 = vextract.high.u32 %v3324
      %v3327 = vshrl.u32 %v3326, 4
      %v3328 = vmul.u32 %v3327, 24
      %v3329 = vsub.s32 %v3323, %v3328
      %v3330 = vsub.s32 0, %v3329
      %v3331 = vsel %vm3321, %v3330, %v3329
      %vm3332 = vcmp.lt.s32.totalorder %v3288, 0
      %v3333 = vsub.s32 0, %v3288
      %v3334 = vsel %vm3332, %v3333, %v3288
      %v3335 = vmul.u32.u64.compose %v3334, 2863311531
      %v3336 = vextract.low.u32 %v3335
      %v3337 = vextract.high.u32 %v3335
      %v3338 = vshrl.u32 %v3337, 4
      %v3339 = vmul.u32 %v3338, 24
      %v3340 = vsub.s32 %v3334, %v3339
      %v3341 = vsub.s32 0, %v3340
      %v3342 = vsel %vm3332, %v3341, %v3340
      %vm3343 = vcmp.lt.s32.totalorder %v3289, 0
      %v3344 = vsub.s32 0, %v3289
      %v3345 = vsel %vm3343, %v3344, %v3289
      %v3346 = vmul.u32.u64.compose %v3345, 2863311531
      %v3347 = vextract.low.u32 %v3346
      %v3348 = vextract.high.u32 %v3346
      %v3349 = vshrl.u32 %v3348, 4
      %v3350 = vmul.u32 %v3349, 24
      %v3351 = vsub.s32 %v3345, %v3350
      %v3352 = vsub.s32 0, %v3351
      %v3353 = vsel %vm3343, %v3352, %v3351
      %vm3354 = vcmp.lt.s32.totalorder %v3290, 0
      %v3355 = vsub.s32 0, %v3290
      %v3356 = vsel %vm3354, %v3355, %v3290
      %v3357 = vmul.u32.u64.compose %v3356, 2863311531
      %v3358 = vextract.low.u32 %v3357
      %v3359 = vextract.high.u32 %v3357
      %v3360 = vshrl.u32 %v3359, 4
      %v3361 = vmul.u32 %v3360, 24
      %v3362 = vsub.s32 %v3356, %v3361
      %v3363 = vsub.s32 0, %v3362
      %v3364 = vsel %vm3354, %v3363, %v3362
      %vm3365 = vcmp.lt.s32.totalorder %v3291, 0
      %v3366 = vsub.s32 0, %v3291
      %v3367 = vsel %vm3365, %v3366, %v3291
      %v3368 = vmul.u32.u64.compose %v3367, 2863311531
      %v3369 = vextract.low.u32 %v3368
      %v3370 = vextract.high.u32 %v3368
      %v3371 = vshrl.u32 %v3370, 4
      %v3372 = vmul.u32 %v3371, 24
      %v3373 = vsub.s32 %v3367, %v3372
      %v3374 = vsub.s32 0, %v3373
      %v3375 = vsel %vm3365, %v3374, %v3373
      %vm3376 = vcmp.lt.s32.totalorder %v3292, 0
      %v3377 = vsub.s32 0, %v3292
      %v3378 = vsel %vm3376, %v3377, %v3292
      %v3379 = vmul.u32.u64.compose %v3378, 2863311531
      %v3380 = vextract.low.u32 %v3379
      %v3381 = vextract.high.u32 %v3379
      %v3382 = vshrl.u32 %v3381, 4
      %v3383 = vmul.u32 %v3382, 24
      %v3384 = vsub.s32 %v3378, %v3383
      %v3385 = vsub.s32 0, %v3384
      %v3386 = vsel %vm3376, %v3385, %v3384
      %vm3387 = vcmp.lt.s32.totalorder %v3293, 0
      %v3388 = vsub.s32 0, %v3293
      %v3389 = vsel %vm3387, %v3388, %v3293
      %v3390 = vmul.u32.u64.compose %v3389, 2863311531
      %v3391 = vextract.low.u32 %v3390
      %v3392 = vextract.high.u32 %v3390
      %v3393 = vshrl.u32 %v3392, 4
      %v3394 = vmul.u32 %v3393, 24
      %v3395 = vsub.s32 %v3389, %v3394
      %v3396 = vsub.s32 0, %v3395
      %v3397 = vsel %vm3387, %v3396, %v3395
      %vm3398 = vcmp.lt.s32.totalorder %v3294, 0
      %v3399 = vsub.s32 0, %v3294
      %v3400 = vsel %vm3398, %v3399, %v3294
      %v3401 = vmul.u32.u64.compose %v3400, 2863311531
      %v3402 = vextract.low.u32 %v3401
      %v3403 = vextract.high.u32 %v3401
      %v3404 = vshrl.u32 %v3403, 4
      %v3405 = vmul.u32 %v3404, 24
      %v3406 = vsub.s32 %v3400, %v3405
      %v3407 = vsub.s32 0, %v3406
      %v3408 = vsel %vm3398, %v3407, %v3406
      %vm3409 = vcmp.lt.s32.totalorder %v3295, 0
      %v3410 = vsub.s32 0, %v3295
      %v3411 = vsel %vm3409, %v3410, %v3295
      %v3412 = vmul.u32.u64.compose %v3411, 2863311531
      %v3413 = vextract.low.u32 %v3412
      %v3414 = vextract.high.u32 %v3412
      %v3415 = vshrl.u32 %v3414, 4
      %v3416 = vmul.u32 %v3415, 24
      %v3417 = vsub.s32 %v3411, %v3416
      %v3418 = vsub.s32 0, %v3417
      %v3419 = vsel %vm3409, %v3418, %v3417
      %vm3420 = vcmp.lt.s32.totalorder %v3296, 0
      %v3421 = vsub.s32 0, %v3296
      %v3422 = vsel %vm3420, %v3421, %v3296
      %v3423 = vmul.u32.u64.compose %v3422, 2863311531
      %v3424 = vextract.low.u32 %v3423
      %v3425 = vextract.high.u32 %v3423
      %v3426 = vshrl.u32 %v3425, 4
      %v3427 = vmul.u32 %v3426, 24
      %v3428 = vsub.s32 %v3422, %v3427
      %v3429 = vsub.s32 0, %v3428
      %v3430 = vsel %vm3420, %v3429, %v3428
      %vm3431 = vcmp.lt.s32.totalorder %v3297, 0
      %v3432 = vsub.s32 0, %v3297
      %v3433 = vsel %vm3431, %v3432, %v3297
      %v3434 = vmul.u32.u64.compose %v3433, 2863311531
      %v3435 = vextract.low.u32 %v3434
      %v3436 = vextract.high.u32 %v3434
      %v3437 = vshrl.u32 %v3436, 4
      %v3438 = vmul.u32 %v3437, 24
      %v3439 = vsub.s32 %v3433, %v3438
      %v3440 = vsub.s32 0, %v3439
      %v3441 = vsel %vm3431, %v3440, %v3439
      %vm3442 = vcmp.lt.s32.totalorder %v3298, 0
      %v3443 = vsub.s32 0, %v3298
      %v3444 = vsel %vm3442, %v3443, %v3298
      %v3445 = vmul.u32.u64.compose %v3444, 2863311531
      %v3446 = vextract.low.u32 %v3445
      %v3447 = vextract.high.u32 %v3445
      %v3448 = vshrl.u32 %v3447, 4
      %v3449 = vmul.u32 %v3448, 24
      %v3450 = vsub.s32 %v3444, %v3449
      %v3451 = vsub.s32 0, %v3450
      %v3452 = vsel %vm3442, %v3451, %v3450
      %vm3453 = vcmp.lt.s32.totalorder %v3299, 0
      %v3454 = vsub.s32 0, %v3299
      %v3455 = vsel %vm3453, %v3454, %v3299
      %v3456 = vmul.u32.u64.compose %v3455, 2863311531
      %v3457 = vextract.low.u32 %v3456
      %v3458 = vextract.high.u32 %v3456
      %v3459 = vshrl.u32 %v3458, 4
      %v3460 = vmul.u32 %v3459, 24
      %v3461 = vsub.s32 %v3455, %v3460
      %v3462 = vsub.s32 0, %v3461
      %v3463 = vsel %vm3453, %v3462, %v3461
      %vm3464 = vcmp.lt.s32.totalorder %v3300, 0
      %v3465 = vsub.s32 0, %v3300
      %v3466 = vsel %vm3464, %v3465, %v3300
      %v3467 = vmul.u32.u64.compose %v3466, 2863311531
      %v3468 = vextract.low.u32 %v3467
      %v3469 = vextract.high.u32 %v3467
      %v3470 = vshrl.u32 %v3469, 4
      %v3471 = vmul.u32 %v3470, 24
      %v3472 = vsub.s32 %v3466, %v3471
      %v3473 = vsub.s32 0, %v3472
      %v3474 = vsel %vm3464, %v3473, %v3472
      %vm3475 = vcmp.lt.s32.totalorder %v3301, 0
      %v3476 = vsub.s32 0, %v3301
      %v3477 = vsel %vm3475, %v3476, %v3301
      %v3478 = vmul.u32.u64.compose %v3477, 2863311531
      %v3479 = vextract.low.u32 %v3478
      %v3480 = vextract.high.u32 %v3478
      %v3481 = vshrl.u32 %v3480, 4
      %v3482 = vmul.u32 %v3481, 24
      %v3483 = vsub.s32 %v3477, %v3482
      %v3484 = vsub.s32 0, %v3483
      %v3485 = vsel %vm3475, %v3484, %v3483
      %vm3486 = vcmp.lt.s32.totalorder %v3302, 0
      %v3487 = vsub.s32 0, %v3302
      %v3488 = vsel %vm3486, %v3487, %v3302
      %v3489 = vmul.u32.u64.compose %v3488, 2863311531
      %v3490 = vextract.low.u32 %v3489
      %v3491 = vextract.high.u32 %v3489
      %v3492 = vshrl.u32 %v3491, 4
      %v3493 = vmul.u32 %v3492, 24
      %v3494 = vsub.s32 %v3488, %v3493
      %v3495 = vsub.s32 0, %v3494
      %v3496 = vsel %vm3486, %v3495, %v3494
      %vm3497 = vcmp.lt.s32.totalorder %v3303, 0
      %v3498 = vsub.s32 0, %v3303
      %v3499 = vsel %vm3497, %v3498, %v3303
      %v3500 = vmul.u32.u64.compose %v3499, 2863311531
      %v3501 = vextract.low.u32 %v3500
      %v3502 = vextract.high.u32 %v3500
      %v3503 = vshrl.u32 %v3502, 4
      %v3504 = vmul.u32 %v3503, 24
      %v3505 = vsub.s32 %v3499, %v3504
      %v3506 = vsub.s32 0, %v3505
      %v3507 = vsel %vm3497, %v3506, %v3505
      %vm3508 = vcmp.lt.s32.totalorder %v3304, 0
      %v3509 = vsub.s32 0, %v3304
      %v3510 = vsel %vm3508, %v3509, %v3304
      %v3511 = vmul.u32.u64.compose %v3510, 2863311531
      %v3512 = vextract.low.u32 %v3511
      %v3513 = vextract.high.u32 %v3511
      %v3514 = vshrl.u32 %v3513, 4
      %v3515 = vmul.u32 %v3514, 24
      %v3516 = vsub.s32 %v3510, %v3515
      %v3517 = vsub.s32 0, %v3516
      %v3518 = vsel %vm3508, %v3517, %v3516
      %vm3519 = vcmp.lt.s32.totalorder %v3305, 0
      %v3520 = vsub.s32 0, %v3305
      %v3521 = vsel %vm3519, %v3520, %v3305
      %v3522 = vmul.u32.u64.compose %v3521, 2863311531
      %v3523 = vextract.low.u32 %v3522
      %v3524 = vextract.high.u32 %v3522
      %v3525 = vshrl.u32 %v3524, 4
      %v3526 = vmul.u32 %v3525, 24
      %v3527 = vsub.s32 %v3521, %v3526
      %v3528 = vsub.s32 0, %v3527
      %v3529 = vsel %vm3519, %v3528, %v3527
      %vm3530 = vcmp.lt.s32.totalorder %v3306, 0
      %v3531 = vsub.s32 0, %v3306
      %v3532 = vsel %vm3530, %v3531, %v3306
      %v3533 = vmul.u32.u64.compose %v3532, 2863311531
      %v3534 = vextract.low.u32 %v3533
      %v3535 = vextract.high.u32 %v3533
      %v3536 = vshrl.u32 %v3535, 4
      %v3537 = vmul.u32 %v3536, 24
      %v3538 = vsub.s32 %v3532, %v3537
      %v3539 = vsub.s32 0, %v3538
      %v3540 = vsel %vm3530, %v3539, %v3538
      %vm3541 = vcmp.lt.s32.totalorder %v3307, 0
      %v3542 = vsub.s32 0, %v3307
      %v3543 = vsel %vm3541, %v3542, %v3307
      %v3544 = vmul.u32.u64.compose %v3543, 2863311531
      %v3545 = vextract.low.u32 %v3544
      %v3546 = vextract.high.u32 %v3544
      %v3547 = vshrl.u32 %v3546, 4
      %v3548 = vmul.u32 %v3547, 24
      %v3549 = vsub.s32 %v3543, %v3548
      %v3550 = vsub.s32 0, %v3549
      %v3551 = vsel %vm3541, %v3550, %v3549
      %vm3552 = vcmp.lt.s32.totalorder %v3308, 0
      %v3553 = vsub.s32 0, %v3308
      %v3554 = vsel %vm3552, %v3553, %v3308
      %v3555 = vmul.u32.u64.compose %v3554, 2863311531
      %v3556 = vextract.low.u32 %v3555
      %v3557 = vextract.high.u32 %v3555
      %v3558 = vshrl.u32 %v3557, 4
      %v3559 = vmul.u32 %v3558, 24
      %v3560 = vsub.s32 %v3554, %v3559
      %v3561 = vsub.s32 0, %v3560
      %v3562 = vsel %vm3552, %v3561, %v3560
      %vm3563 = vcmp.lt.s32.totalorder %v3309, 0
      %v3564 = vsub.s32 0, %v3309
      %v3565 = vsel %vm3563, %v3564, %v3309
      %v3566 = vmul.u32.u64.compose %v3565, 2863311531
      %v3567 = vextract.low.u32 %v3566
      %v3568 = vextract.high.u32 %v3566
      %v3569 = vshrl.u32 %v3568, 4
      %v3570 = vmul.u32 %v3569, 24
      %v3571 = vsub.s32 %v3565, %v3570
      %v3572 = vsub.s32 0, %v3571
      %v3573 = vsel %vm3563, %v3572, %v3571
      %vm3574 = vcmp.ne.s32.totalorder %v3320, 0
      %vm3575 = vcmp.ne.s32.totalorder %v3331, 0
      %vm3576 = vcmp.ne.s32.totalorder %v3342, 0
      %vm3577 = vcmp.ne.s32.totalorder %v3353, 0
      %vm3578 = vcmp.ne.s32.totalorder %v3364, 0
      %vm3579 = vcmp.ne.s32.totalorder %v3375, 0
      %vm3580 = vcmp.ne.s32.totalorder %v3386, 0
      %vm3581 = vcmp.ne.s32.totalorder %v3397, 0
      %vm3582 = vcmp.ne.s32.totalorder %v3408, 0
      %vm3583 = vcmp.ne.s32.totalorder %v3419, 0
      %vm3584 = vcmp.ne.s32.totalorder %v3430, 0
      %vm3585 = vcmp.ne.s32.totalorder %v3441, 0
      %vm3586 = vcmp.ne.s32.totalorder %v3452, 0
      %vm3587 = vcmp.ne.s32.totalorder %v3463, 0
      %vm3588 = vcmp.ne.s32.totalorder %v3474, 0
      %vm3589 = vcmp.ne.s32.totalorder %v3485, 0
      %vm3590 = vcmp.ne.s32.totalorder %v3496, 0
      %vm3591 = vcmp.ne.s32.totalorder %v3507, 0
      %vm3592 = vcmp.ne.s32.totalorder %v3518, 0
      %vm3593 = vcmp.ne.s32.totalorder %v3529, 0
      %vm3594 = vcmp.ne.s32.totalorder %v3540, 0
      %vm3595 = vcmp.ne.s32.totalorder %v3551, 0
      %vm3596 = vcmp.ne.s32.totalorder %v3562, 0
      %vm3597 = vcmp.ne.s32.totalorder %v3573, 0
      %vm3598 = vcmp.lt.s32.totalorder %v3320, 0
      %vm3599 = vcmp.lt.s32.totalorder %v3331, 0
      %vm3600 = vcmp.lt.s32.totalorder %v3342, 0
      %vm3601 = vcmp.lt.s32.totalorder %v3353, 0
      %vm3602 = vcmp.lt.s32.totalorder %v3364, 0
      %vm3603 = vcmp.lt.s32.totalorder %v3375, 0
      %vm3604 = vcmp.lt.s32.totalorder %v3386, 0
      %vm3605 = vcmp.lt.s32.totalorder %v3397, 0
      %vm3606 = vcmp.lt.s32.totalorder %v3408, 0
      %vm3607 = vcmp.lt.s32.totalorder %v3419, 0
      %vm3608 = vcmp.lt.s32.totalorder %v3430, 0
      %vm3609 = vcmp.lt.s32.totalorder %v3441, 0
      %vm3610 = vcmp.lt.s32.totalorder %v3452, 0
      %vm3611 = vcmp.lt.s32.totalorder %v3463, 0
      %vm3612 = vcmp.lt.s32.totalorder %v3474, 0
      %vm3613 = vcmp.lt.s32.totalorder %v3485, 0
      %vm3614 = vcmp.lt.s32.totalorder %v3496, 0
      %vm3615 = vcmp.lt.s32.totalorder %v3507, 0
      %vm3616 = vcmp.lt.s32.totalorder %v3518, 0
      %vm3617 = vcmp.lt.s32.totalorder %v3529, 0
      %vm3618 = vcmp.lt.s32.totalorder %v3540, 0
      %vm3619 = vcmp.lt.s32.totalorder %v3551, 0
      %vm3620 = vcmp.lt.s32.totalorder %v3562, 0
      %vm3621 = vcmp.lt.s32.totalorder %v3573, 0
      %vm3622 = vmand %vm3598, %vm3574
      %vm3623 = vmand %vm3599, %vm3575
      %vm3624 = vmand %vm3600, %vm3576
      %vm3625 = vmand %vm3601, %vm3577
      %vm3626 = vmand %vm3602, %vm3578
      %vm3627 = vmand %vm3603, %vm3579
      %vm3628 = vmand %vm3604, %vm3580
      %vm3629 = vmand %vm3605, %vm3581
      %vm3630 = vmand %vm3606, %vm3582
      %vm3631 = vmand %vm3607, %vm3583
      %vm3632 = vmand %vm3608, %vm3584
      %vm3633 = vmand %vm3609, %vm3585
      %vm3634 = vmand %vm3610, %vm3586
      %vm3635 = vmand %vm3611, %vm3587
      %vm3636 = vmand %vm3612, %vm3588
      %vm3637 = vmand %vm3613, %vm3589
      %vm3638 = vmand %vm3614, %vm3590
      %vm3639 = vmand %vm3615, %vm3591
      %vm3640 = vmand %vm3616, %vm3592
      %vm3641 = vmand %vm3617, %vm3593
      %vm3642 = vmand %vm3618, %vm3594
      %vm3643 = vmand %vm3619, %vm3595
      %vm3644 = vmand %vm3620, %vm3596
      %vm3645 = vmand %vm3621, %vm3597
      %v3646 = vadd.s32 %v3320, 24
      %v3647 = vadd.s32 %v3331, 24
      %v3648 = vadd.s32 %v3342, 24
      %v3649 = vadd.s32 %v3353, 24
      %v3650 = vadd.s32 %v3364, 24
      %v3651 = vadd.s32 %v3375, 24
      %v3652 = vadd.s32 %v3386, 24
      %v3653 = vadd.s32 %v3397, 24
      %v3654 = vadd.s32 %v3408, 24
      %v3655 = vadd.s32 %v3419, 24
      %v3656 = vadd.s32 %v3430, 24
      %v3657 = vadd.s32 %v3441, 24
      %v3658 = vadd.s32 %v3452, 24
      %v3659 = vadd.s32 %v3463, 24
      %v3660 = vadd.s32 %v3474, 24
      %v3661 = vadd.s32 %v3485, 24
      %v3662 = vadd.s32 %v3496, 24
      %v3663 = vadd.s32 %v3507, 24
      %v3664 = vadd.s32 %v3518, 24
      %v3665 = vadd.s32 %v3529, 24
      %v3666 = vadd.s32 %v3540, 24
      %v3667 = vadd.s32 %v3551, 24
      %v3668 = vadd.s32 %v3562, 24
      %v3669 = vadd.s32 %v3573, 24
      %v3670 = vsel %vm3622, %v3646, %v3320
      %v3671 = vsel %vm3623, %v3647, %v3331
      %v3672 = vsel %vm3624, %v3648, %v3342
      %v3673 = vsel %vm3625, %v3649, %v3353
      %v3674 = vsel %vm3626, %v3650, %v3364
      %v3675 = vsel %vm3627, %v3651, %v3375
      %v3676 = vsel %vm3628, %v3652, %v3386
      %v3677 = vsel %vm3629, %v3653, %v3397
      %v3678 = vsel %vm3630, %v3654, %v3408
      %v3679 = vsel %vm3631, %v3655, %v3419
      %v3680 = vsel %vm3632, %v3656, %v3430
      %v3681 = vsel %vm3633, %v3657, %v3441
      %v3682 = vsel %vm3634, %v3658, %v3452
      %v3683 = vsel %vm3635, %v3659, %v3463
      %v3684 = vsel %vm3636, %v3660, %v3474
      %v3685 = vsel %vm3637, %v3661, %v3485
      %v3686 = vsel %vm3638, %v3662, %v3496
      %v3687 = vsel %vm3639, %v3663, %v3507
      %v3688 = vsel %vm3640, %v3664, %v3518
      %v3689 = vsel %vm3641, %v3665, %v3529
      %v3690 = vsel %vm3642, %v3666, %v3540
      %v3691 = vsel %vm3643, %v3667, %v3551
      %v3692 = vsel %vm3644, %v3668, %v3562
      %v3693 = vsel %vm3645, %v3669, %v3573
      %vm3694 = vcmp.lt.s32.totalorder %v3670, 16
      %vm3695 = vcmp.lt.s32.totalorder %v3671, 16
      %vm3696 = vcmp.lt.s32.totalorder %v3672, 16
      %vm3697 = vcmp.lt.s32.totalorder %v3673, 16
      %vm3698 = vcmp.lt.s32.totalorder %v3674, 16
      %vm3699 = vcmp.lt.s32.totalorder %v3675, 16
      %vm3700 = vcmp.lt.s32.totalorder %v3676, 16
      %vm3701 = vcmp.lt.s32.totalorder %v3677, 16
      %vm3702 = vcmp.lt.s32.totalorder %v3678, 16
      %vm3703 = vcmp.lt.s32.totalorder %v3679, 16
      %vm3704 = vcmp.lt.s32.totalorder %v3680, 16
      %vm3705 = vcmp.lt.s32.totalorder %v3681, 16
      %vm3706 = vcmp.lt.s32.totalorder %v3682, 16
      %vm3707 = vcmp.lt.s32.totalorder %v3683, 16
      %vm3708 = vcmp.lt.s32.totalorder %v3684, 16
      %vm3709 = vcmp.lt.s32.totalorder %v3685, 16
      %vm3710 = vcmp.lt.s32.totalorder %v3686, 16
      %vm3711 = vcmp.lt.s32.totalorder %v3687, 16
      %vm3712 = vcmp.lt.s32.totalorder %v3688, 16
      %vm3713 = vcmp.lt.s32.totalorder %v3689, 16
      %vm3714 = vcmp.lt.s32.totalorder %v3690, 16
      %vm3715 = vcmp.lt.s32.totalorder %v3691, 16
      %vm3716 = vcmp.lt.s32.totalorder %v3692, 16
      %vm3717 = vcmp.lt.s32.totalorder %v3693, 16
      %v3718 = vsel %vm3694, 1, 0
      %v3719 = vsel %vm3695, 1, 0
      %v3720 = vsel %vm3696, 1, 0
      %v3721 = vsel %vm3697, 1, 0
      %v3722 = vsel %vm3698, 1, 0
      %v3723 = vsel %vm3699, 1, 0
      %v3724 = vsel %vm3700, 1, 0
      %v3725 = vsel %vm3701, 1, 0
      %v3726 = vsel %vm3702, 1, 0
      %v3727 = vsel %vm3703, 1, 0
      %v3728 = vsel %vm3704, 1, 0
      %v3729 = vsel %vm3705, 1, 0
      %v3730 = vsel %vm3706, 1, 0
      %v3731 = vsel %vm3707, 1, 0
      %v3732 = vsel %vm3708, 1, 0
      %v3733 = vsel %vm3709, 1, 0
      %v3734 = vsel %vm3710, 1, 0
      %v3735 = vsel %vm3711, 1, 0
      %v3736 = vsel %vm3712, 1, 0
      %v3737 = vsel %vm3713, 1, 0
      %v3738 = vsel %vm3714, 1, 0
      %v3739 = vsel %vm3715, 1, 0
      %v3740 = vsel %vm3716, 1, 0
      %v3741 = vsel %vm3717, 1, 0
      %vm3742 = vcmp.eq.s32.totalorder %v3718, 1
      %vm3743 = vcmp.eq.s32.totalorder %v3719, 1
      %vm3744 = vcmp.eq.s32.totalorder %v3720, 1
      %vm3745 = vcmp.eq.s32.totalorder %v3721, 1
      %vm3746 = vcmp.eq.s32.totalorder %v3722, 1
      %vm3747 = vcmp.eq.s32.totalorder %v3723, 1
      %vm3748 = vcmp.eq.s32.totalorder %v3724, 1
      %vm3749 = vcmp.eq.s32.totalorder %v3725, 1
      %vm3750 = vcmp.eq.s32.totalorder %v3726, 1
      %vm3751 = vcmp.eq.s32.totalorder %v3727, 1
      %vm3752 = vcmp.eq.s32.totalorder %v3728, 1
      %vm3753 = vcmp.eq.s32.totalorder %v3729, 1
      %vm3754 = vcmp.eq.s32.totalorder %v3730, 1
      %vm3755 = vcmp.eq.s32.totalorder %v3731, 1
      %vm3756 = vcmp.eq.s32.totalorder %v3732, 1
      %vm3757 = vcmp.eq.s32.totalorder %v3733, 1
      %vm3758 = vcmp.eq.s32.totalorder %v3734, 1
      %vm3759 = vcmp.eq.s32.totalorder %v3735, 1
      %vm3760 = vcmp.eq.s32.totalorder %v3736, 1
      %vm3761 = vcmp.eq.s32.totalorder %v3737, 1
      %vm3762 = vcmp.eq.s32.totalorder %v3738, 1
      %vm3763 = vcmp.eq.s32.totalorder %v3739, 1
      %vm3764 = vcmp.eq.s32.totalorder %v3740, 1
      %vm3765 = vcmp.eq.s32.totalorder %v3741, 1
      %v3766 = vsel %vm3742, %v3261, 0.0
      %v3767 = vsel %vm3743, %v3262, 0.0
      %v3768 = vsel %vm3744, %v3263, 0.0
      %v3769 = vsel %vm3745, %v3264, 0.0
      %v3770 = vsel %vm3746, %v3265, 0.0
      %v3771 = vsel %vm3747, %v3266, 0.0
      %v3772 = vsel %vm3748, %v3267, 0.0
      %v3773 = vsel %vm3749, %v3268, 0.0
      %v3774 = vsel %vm3750, %v3269, 0.0
      %v3775 = vsel %vm3751, %v3270, 0.0
      %v3776 = vsel %vm3752, %v3271, 0.0
      %v3777 = vsel %vm3753, %v3272, 0.0
      %v3778 = vsel %vm3754, %v3273, 0.0
      %v3779 = vsel %vm3755, %v3274, 0.0
      %v3780 = vsel %vm3756, %v3275, 0.0
      %v3781 = vsel %vm3757, %v3276, 0.0
      %v3782 = vsel %vm3758, %v3277, 0.0
      %v3783 = vsel %vm3759, %v3278, 0.0
      %v3784 = vsel %vm3760, %v3279, 0.0
      %v3785 = vsel %vm3761, %v3280, 0.0
      %v3786 = vsel %vm3762, %v3281, 0.0
      %v3787 = vsel %vm3763, %v3282, 0.0
      %v3788 = vsel %vm3764, %v3283, 0.0
      %v3789 = vsel %vm3765, %v3284, 0.0
      %v3790 = vpack.c.bf16 %v3767, %v3766
      %v3791 = vpack.c.bf16 %v3769, %v3768
      %v3792 = vpack.c.bf16 %v3771, %v3770
      %v3793 = vpack.c.bf16 %v3773, %v3772
      %v3794 = vpack.c.bf16 %v3775, %v3774
      %v3795 = vpack.c.bf16 %v3777, %v3776
      %v3796 = vpack.c.bf16 %v3779, %v3778
      %v3797 = vpack.c.bf16 %v3781, %v3780
      %v3798 = vpack.c.bf16 %v3783, %v3782
      %v3799 = vpack.c.bf16 %v3785, %v3784
      %v3800 = vpack.c.bf16 %v3787, %v3786
      %v3801 = vpack.c.bf16 %v3789, %v3788
      %v3814 = vunpack.c.l.b16 %v3790
      %v3815 = vunpack.c.h.b16 %v3790
      %v3816 = vunpack.c.l.b16 %v3791
      %v3817 = vunpack.c.h.b16 %v3791
      %v3818 = vunpack.c.l.b16 %v3792
      %v3819 = vunpack.c.h.b16 %v3792
      %v3820 = vunpack.c.l.b16 %v3793
      %v3821 = vunpack.c.h.b16 %v3793
      %v3822 = vunpack.c.l.b16 %v3794
      %v3823 = vunpack.c.h.b16 %v3794
      %v3824 = vunpack.c.l.b16 %v3795
      %v3825 = vunpack.c.h.b16 %v3795
      %v3826 = vunpack.c.l.b16 %v3796
      %v3827 = vunpack.c.h.b16 %v3796
      %v3828 = vunpack.c.l.b16 %v3797
      %v3829 = vunpack.c.h.b16 %v3797
      %v3830 = vunpack.c.l.b16 %v3798
      %v3831 = vunpack.c.h.b16 %v3798
      %v3832 = vunpack.c.l.b16 %v3799
      %v3833 = vunpack.c.h.b16 %v3799
      %v3834 = vunpack.c.l.b16 %v3800
      %v3835 = vunpack.c.h.b16 %v3800
      %v3836 = vunpack.c.l.b16 %v3801
      %v3837 = vunpack.c.h.b16 %v3801
      %v3838 = vpack.c.b16 %v3814, %v3814
      %v3839 = vpack.c.b16 %v3815, %v3815
      %v3840 = vpack.c.b16 %v3816, %v3816
      %v3841 = vpack.c.b16 %v3817, %v3817
      %v3842 = vpack.c.b16 %v3818, %v3818
      %v3843 = vpack.c.b16 %v3819, %v3819
      %v3844 = vpack.c.b16 %v3820, %v3820
      %v3845 = vpack.c.b16 %v3821, %v3821
      %v3846 = vpack.c.b16 %v3822, %v3822
      %v3847 = vpack.c.b16 %v3823, %v3823
      %v3848 = vpack.c.b16 %v3824, %v3824
      %v3849 = vpack.c.b16 %v3825, %v3825
      %v3850 = vpack.c.b16 %v3826, %v3826
      %v3851 = vpack.c.b16 %v3827, %v3827
      %v3852 = vpack.c.b16 %v3828, %v3828
      %v3853 = vpack.c.b16 %v3829, %v3829
      %v3854 = vpack.c.b16 %v3830, %v3830
      %v3855 = vpack.c.b16 %v3831, %v3831
      %v3856 = vpack.c.b16 %v3832, %v3832
      %v3857 = vpack.c.b16 %v3833, %v3833
      %v3858 = vpack.c.b16 %v3834, %v3834
      %v3859 = vpack.c.b16 %v3835, %v3835
      %v3860 = vpack.c.b16 %v3836, %v3836
      %v3861 = vpack.c.b16 %v3837, %v3837
      %3886 = vst.msk [vmem:[%s390] sm:$0xf] %vm552, %v3838
      %3887 = vst.msk [vmem:[%s390 + $0x4] sm:$0xf] %vm552, %v3839
      %3888 = vst.msk [vmem:[%s390 + $0x8] sm:$0xf] %vm552, %v3840
      %3889 = vst.msk [vmem:[%s390 + $0xc] sm:$0xf] %vm552, %v3841
      %3890 = vst.msk [vmem:[%s390 + $0x10] sm:$0xf] %vm552, %v3842
      %3891 = vst.msk [vmem:[%s390 + $0x14] sm:$0xf] %vm552, %v3843
      %3892 = vst.msk [vmem:[%s390 + $0x18] sm:$0xf] %vm552, %v3844
      %3893 = vst.msk [vmem:[%s390 + $0x1c] sm:$0xf] %vm552, %v3845
      %3894 = vst.msk [vmem:[%s390 + $0x20] sm:$0xf] %vm552, %v3846
      %3895 = vst.msk [vmem:[%s390 + $0x24] sm:$0xf] %vm552, %v3847
      %3896 = vst.msk [vmem:[%s390 + $0x28] sm:$0xf] %vm552, %v3848
      %3897 = vst.msk [vmem:[%s390 + $0x2c] sm:$0xf] %vm552, %v3849
      %3898 = vst.msk [vmem:[%s390 + $0x30] sm:$0xf] %vm552, %v3850
      %3899 = vst.msk [vmem:[%s390 + $0x34] sm:$0xf] %vm552, %v3851
      %3900 = vst.msk [vmem:[%s390 + $0x38] sm:$0xf] %vm552, %v3852
      %3901 = vst.msk [vmem:[%s390 + $0x3c] sm:$0xf] %vm552, %v3853
      %3902 = vst.msk [vmem:[%s390 + $0x40] sm:$0xf] %vm552, %v3854
      %3903 = vst.msk [vmem:[%s390 + $0x44] sm:$0xf] %vm552, %v3855
      %3904 = vst.msk [vmem:[%s390 + $0x48] sm:$0xf] %vm552, %v3856
      %3905 = vst.msk [vmem:[%s390 + $0x4c] sm:$0xf] %vm552, %v3857
      %3906 = vst.msk [vmem:[%s390 + $0x50] sm:$0xf] %vm552, %v3858
      %3907 = vst.msk [vmem:[%s390 + $0x54] sm:$0xf] %vm552, %v3859
      %3908 = vst.msk [vmem:[%s390 + $0x58] sm:$0xf] %vm552, %v3860
      %3909 = vst.msk [vmem:[%s390 + $0x5c] sm:$0xf] %vm552, %v3861
      %s3910 = smul.u32 24, %s21
      %p3911 = scmp.lt.s32.totalorder %s20, 1
      %s3912 = scalar_select %p3911, %s20, 1
      %p3913 = scmp.lt.s32.totalorder %s3910, 47
      %s3914 = scalar_select %p3913, %s3910, 47
      %s3915 = smul.addr %s3912, 48
      %s3916 = sadd.s32 %s3914, %s3915
      %s3917 = smul.addr %s3916, 4
      %s3918 = scalar_lea.vmem %s5, %s3917
      // Predicated region
      $region41: #{fcn_head_forward.3} parent=39 // pred_check
        %p3919 = pneg %p190
      $region42: #{fcn_head_forward.3} parent=39 // pred_check_branch
        %3921 = sbr.rel (%p3919) target = $region44
      $region43: #{fcn_head_forward.3} parent=39 // pred_region
        %s3922 = smul.u32 24, %s21
      $region44: #{fcn_head_forward.3} parent=39 // pred_fallthru
        _
    $region40: #{fcn_head_forward.3} parent=5 // pred_fallthru
      _
    %p3923 = scmp.le.s32.totalorder 2, %s11
    // Predicated region
    $region45: #{fcn_head_forward.3} parent=5 // pred_check
      %p3924 = pneg %p3923
    $region46: #{fcn_head_forward.3} parent=5 // pred_check_branch
      %3926 = sbr.rel (%p3924) target = $region48
    $region47: #{fcn_head_forward.3} parent=5 // pred_region
      %s3927 = ssub.s32 %s11, 2
      // Predicated region
      $region49: #{fcn_head_forward.3} parent=47 // pred_check
        %p3928 = pneg %p196
      $region50: #{fcn_head_forward.3} parent=47 // pred_check_branch
        %3930 = sbr.rel (%p3928) target = $region52
      $region51: #{fcn_head_forward.3} parent=47 // pred_region
        %s3931 = smul.u32 24, %s23
        %p3932 = scmp.lt.s32.totalorder %s22, 1
        %s3933 = scalar_select %p3932, %s22, 1
        %p3934 = scmp.lt.s32.totalorder %s3931, 47
        %s3935 = scalar_select %p3934, %s3931, 47
        %s3936 = smul.addr %s3933, 48
        %s3937 = sadd.s32 %s3935, %s3936
        %s3938 = smul.addr %s3937, 4
        %s3939 = scalar_lea.vmem %s5, %s3938
      $region52: #{fcn_head_forward.3} parent=47 // pred_fallthru
        _
    $region48: #{fcn_head_forward.3} parent=5 // pred_fallthru
      _
  $region6: #{fcn_head_forward.3} parent=0 // loop_footer
    %s15 = sadd.s32 1, %s11
  $region7: #{fcn_head_forward.3} parent=0 // loop_footer_branch
    %10 = sbr.rel target = $region3
  $region8: #{fcn_head_forward.3} parent=0 // loop_exit
    _

// kernel: fcn_head_forward.5
$region0: #{fcn_head_forward.5}
  #allocation0 [shape = 'u32[]', space=smem, size = 0x4, offset = 0x4, fixed_abs, tag = 'smem constant byte address 0x4 - core index']
  #allocation1 [shape = 'u32[144,128]{1,0:T(1,128)}', space=vmem, size = 0x12000, scoped, tag = 'internal scratch']
  #allocation2 [shape = 'bf16[272,64]{1,0:T(16,128)(2,1)}', space=vmem, size = 0x11000, scoped, tag = 'scratch operand']
  %s0 = inlined_call_operand.vmem [shape: bf16[2,384,32], index: 0, kind: input, shape index: {}, may-alias: {0,1,2}]
  %s1 = inlined_call_operand.vmem [shape: bf16[2,384,32], index: 1, kind: input, shape index: {}, may-alias: {0,1,2}]
  %s2 = inlined_call_operand.vmem [shape: bf16[2,384,32], index: 2, kind: input, shape index: {}, may-alias: {0,1,2}]
  %s3 = inlined_call_operand.vmem [shape: bf16[2,384,32], index: 3, kind: input, shape index: {}, may-alias: {3,4,5}]
  %s4 = inlined_call_operand.vmem [shape: bf16[2,384,32], index: 4, kind: input, shape index: {}, may-alias: {3,4,5}]
  %s5 = inlined_call_operand.vmem [shape: bf16[2,384,32], index: 5, kind: input, shape index: {}, may-alias: {3,4,5}]
  %s6 = inlined_call_operand.vmem [shape: bf16[9,64,32], index: 6, kind: input, shape index: {}]
  %s7 = inlined_call_operand.vmem [shape: f32[1,32], index: 7, kind: input, shape index: {}]
  %s8 = inlined_call_operand.vmem [shape: bf16[32,128], index: 8, kind: input, shape index: {}]
  %s9 = inlined_call_operand.vmem [shape: f32[1,128], index: 9, kind: input, shape index: {}]
  %s10 = inlined_call_operand.vmem [shape: bf16[2,384,128], index: 10, kind: output, shape index: {}]
  %s11 = sld [smem:[#allocation0]]
  $region73: #{fcn_head_forward.5} parent=0
    _
  %s13 = ssub.s32 1, %s11
  %s14 = scalar_select 0, %s13, %s11
  loop: start=0, step=1, limit=6
  $region2: #{fcn_head_forward.5} parent=0 // loop_pre_header
    _
  $region3: #{fcn_head_forward.5} parent=0 // loop_header
    %s16 = sphi 0, %s20
    %p17 = scmp.ge.s32.totalorder %s16, 6
    %s23 = sphi 0, %s35
    %s24 = sphi 0, %s31
    %s25 = sphi 0, %s23
    %s26 = sphi 0, %s24
    %s27 = sphi 0, %s25
    %s28 = sphi 0, %s26
    %s40 = sphi 0, %s42
    %s43 = sphi 0, %s40
    %s44 = sphi 0, %s43
    %s60 = sphi 0, %s44
    %s76 = sphi 0, %s78
    %s79 = sphi 0, %s76
    %s80 = sphi 0, %s79
    %s96 = sphi 0, %s80
    %s112 = sphi 0, %s114
    %s115 = sphi 0, %s112
    %s116 = sphi 0, %s115
    %s132 = sphi 0, %s116
    %s140 = sphi 0, %s142
    %s143 = sphi 0, %s140
    %s144 = sphi 0, %s143
    %s160 = sphi 0, %s144
    %s176 = sphi 0, %s178
    %s179 = sphi 0, %s176
    %s180 = sphi 0, %s179
    %s196 = sphi 0, %s180
    %s212 = sphi 0, %s214
    %s215 = sphi 0, %s212
    %s216 = sphi 0, %s215
    %s232 = sphi 0, %s216
    %s236 = sphi 0, %s236
    %s238 = sphi 0, %s236
    %s239 = sphi 0, %s238
    %s253 = sphi 0, %s239
    %s257 = sphi 0, %s257
    %s259 = sphi 0, %s257
    %s260 = sphi 0, %s259
    %s274 = sphi 0, %s260
    %s278 = sphi 0, %s278
    %s280 = sphi 0, %s278
    %s281 = sphi 0, %s280
    %s295 = sphi 0, %s281
    %s299 = sphi 0, %s299
    %s301 = sphi 0, %s299
    %s302 = sphi 0, %s301
    %s316 = sphi 0, %s302
    %s324 = sphi 0, %s326
    %s327 = sphi 0, %s324
    %s328 = sphi 0, %s327
    %s344 = sphi 0, %s328
  $region4: #{fcn_head_forward.5} parent=0 // loop_header_branch
    %19 = sbr.rel (%p17) target = $region8
  $region5: #{fcn_head_forward.5} parent=0 // loop_body
    %s21 = ssub.s32 %s16, 1
    %s22 = ssub.s32 %s16, 2
    %s29 = sadd.s32 1, %s24
    %p30 = scmp.ge.s32.totalorder %s29, 2
    %s31 = scalar_select %p30, 0, %s29
    %s32 = sadd.s32 1, %s23
    %s33 = scalar_select %p30, %s32, %s23
    %p34 = scmp.ge.s32.totalorder %s33, 2
    %s35 = scalar_select %p34, 0, %s33
    %s36 = ssub.s32 %s23, %s35
    %s37 = ssub.s32 %s24, %s31
    %s38 = sor.u32 %s36, %s37
    %p39 = scmp.eq.s32.totalorder %s38, 0
    %s41 = sadd.s32 %s40, 1
    %s42 = scalar_select %p39, %s40, %s41
    %p45 = pneg %p39
    %p46 = scmp.eq.s32.totalorder %s16, 3
    %p47 = por %p45, %p46
    %p48 = scmp.ne.s32.totalorder %s40, %s43
    %p49 = scmp.eq.s32.totalorder %s16, 0
    %p50 = por %p48, %p49
    %p51 = scmp.ne.s32.totalorder %s40, %s43
    %p52 = scmp.eq.s32.totalorder %s21, 3
    %p53 = por %p51, %p52
    %p54 = scmp.ne.s32.totalorder %s43, %s44
    %p55 = scmp.eq.s32.totalorder %s21, 0
    %p56 = por %p54, %p55
    %p57 = scmp.ne.s32.totalorder %s43, %s44
    %p58 = scmp.eq.s32.totalorder %s22, 3
    %p59 = por %p57, %p58
    %p61 = scmp.ne.s32.totalorder %s44, %s60
    %p62 = scmp.eq.s32.totalorder %s22, 0
    %p63 = por %p61, %p62
    %s64 = smul.u32 %s24, 8
    %s65 = ssub.s32 %s64, 1
    %p66 = scmp.gt.s32.totalorder %s65, 0
    %s67 = scalar_select %p66, %s65, 0
    %s68 = smul.u32 %s31, 8
    %s69 = ssub.s32 %s68, 1
    %p70 = scmp.gt.s32.totalorder %s69, 0
    %s71 = scalar_select %p70, %s69, 0
    %s72 = ssub.s32 %s23, %s35
    %s73 = ssub.s32 %s67, %s71
    %s74 = sor.u32 %s72, %s73
    %p75 = scmp.eq.s32.totalorder %s74, 0
    %s77 = sadd.s32 %s76, 1
    %s78 = scalar_select %p75, %s76, %s77
    %p81 = pneg %p75
    %p82 = scmp.eq.s32.totalorder %s16, 3
    %p83 = por %p81, %p82
    %p84 = scmp.ne.s32.totalorder %s76, %s79
    %p85 = scmp.eq.s32.totalorder %s16, 0
    %p86 = por %p84, %p85
    %p87 = scmp.ne.s32.totalorder %s76, %s79
    %p88 = scmp.eq.s32.totalorder %s21, 3
    %p89 = por %p87, %p88
    %p90 = scmp.ne.s32.totalorder %s79, %s80
    %p91 = scmp.eq.s32.totalorder %s21, 0
    %p92 = por %p90, %p91
    %p93 = scmp.ne.s32.totalorder %s79, %s80
    %p94 = scmp.eq.s32.totalorder %s22, 3
    %p95 = por %p93, %p94
    %p97 = scmp.ne.s32.totalorder %s80, %s96
    %p98 = scmp.eq.s32.totalorder %s22, 0
    %p99 = por %p97, %p98
    %s100 = smul.u32 %s24, 8
    %s101 = sadd.s32 %s100, 8
    %p102 = scmp.lt.s32.totalorder %s101, 15
    %s103 = scalar_select %p102, %s101, 15
    %s104 = smul.u32 %s31, 8
    %s105 = sadd.s32 %s104, 8
    %p106 = scmp.lt.s32.totalorder %s105, 15
    %s107 = scalar_select %p106, %s105, 15
    %s108 = ssub.s32 %s23, %s35
    %s109 = ssub.s32 %s103, %s107
    %s110 = sor.u32 %s108, %s109
    %p111 = scmp.eq.s32.totalorder %s110, 0
    %s113 = sadd.s32 %s112, 1
    %s114 = scalar_select %p111, %s112, %s113
    %p117 = pneg %p111
    %p118 = scmp.eq.s32.totalorder %s16, 3
    %p119 = por %p117, %p118
    %p120 = scmp.ne.s32.totalorder %s112, %s115
    %p121 = scmp.eq.s32.totalorder %s16, 0
    %p122 = por %p120, %p121
    %p123 = scmp.ne.s32.totalorder %s112, %s115
    %p124 = scmp.eq.s32.totalorder %s21, 3
    %p125 = por %p123, %p124
    %p126 = scmp.ne.s32.totalorder %s115, %s116
    %p127 = scmp.eq.s32.totalorder %s21, 0
    %p128 = por %p126, %p127
    %p129 = scmp.ne.s32.totalorder %s115, %s116
    %p130 = scmp.eq.s32.totalorder %s22, 3
    %p131 = por %p129, %p130
    %p133 = scmp.ne.s32.totalorder %s116, %s132
    %p134 = scmp.eq.s32.totalorder %s22, 0
    %p135 = por %p133, %p134
    %s136 = ssub.s32 %s23, %s35
    %s137 = ssub.s32 %s24, %s31
    %s138 = sor.u32 %s136, %s137
    %p139 = scmp.eq.s32.totalorder %s138, 0
    %s141 = sadd.s32 %s140, 1
    %s142 = scalar_select %p139, %s140, %s141
    %p145 = pneg %p139
    %p146 = scmp.eq.s32.totalorder %s16, 3
    %p147 = por %p145, %p146
    %p148 = scmp.ne.s32.totalorder %s140, %s143
    %p149 = scmp.eq.s32.totalorder %s16, 0
    %p150 = por %p148, %p149
    %p151 = scmp.ne.s32.totalorder %s140, %s143
    %p152 = scmp.eq.s32.totalorder %s21, 3
    %p153 = por %p151, %p152
    %p154 = scmp.ne.s32.totalorder %s143, %s144
    %p155 = scmp.eq.s32.totalorder %s21, 0
    %p156 = por %p154, %p155
    %p157 = scmp.ne.s32.totalorder %s143, %s144
    %p158 = scmp.eq.s32.totalorder %s22, 3
    %p159 = por %p157, %p158
    %p161 = scmp.ne.s32.totalorder %s144, %s160
    %p162 = scmp.eq.s32.totalorder %s22, 0
    %p163 = por %p161, %p162
    %s164 = smul.u32 %s24, 8
    %s165 = ssub.s32 %s164, 1
    %p166 = scmp.gt.s32.totalorder %s165, 0
    %s167 = scalar_select %p166, %s165, 0
    %s168 = smul.u32 %s31, 8
    %s169 = ssub.s32 %s168, 1
    %p170 = scmp.gt.s32.totalorder %s169, 0
    %s171 = scalar_select %p170, %s169, 0
    %s172 = ssub.s32 %s23, %s35
    %s173 = ssub.s32 %s167, %s171
    %s174 = sor.u32 %s172, %s173
    %p175 = scmp.eq.s32.totalorder %s174, 0
    %s177 = sadd.s32 %s176, 1
    %s178 = scalar_select %p175, %s176, %s177
    %p181 = pneg %p175
    %p182 = scmp.eq.s32.totalorder %s16, 3
    %p183 = por %p181, %p182
    %p184 = scmp.ne.s32.totalorder %s176, %s179
    %p185 = scmp.eq.s32.totalorder %s16, 0
    %p186 = por %p184, %p185
    %p187 = scmp.ne.s32.totalorder %s176, %s179
    %p188 = scmp.eq.s32.totalorder %s21, 3
    %p189 = por %p187, %p188
    %p190 = scmp.ne.s32.totalorder %s179, %s180
    %p191 = scmp.eq.s32.totalorder %s21, 0
    %p192 = por %p190, %p191
    %p193 = scmp.ne.s32.totalorder %s179, %s180
    %p194 = scmp.eq.s32.totalorder %s22, 3
    %p195 = por %p193, %p194
    %p197 = scmp.ne.s32.totalorder %s180, %s196
    %p198 = scmp.eq.s32.totalorder %s22, 0
    %p199 = por %p197, %p198
    %s200 = smul.u32 %s24, 8
    %s201 = sadd.s32 %s200, 8
    %p202 = scmp.lt.s32.totalorder %s201, 15
    %s203 = scalar_select %p202, %s201, 15
    %s204 = smul.u32 %s31, 8
    %s205 = sadd.s32 %s204, 8
    %p206 = scmp.lt.s32.totalorder %s205, 15
    %s207 = scalar_select %p206, %s205, 15
    %s208 = ssub.s32 %s23, %s35
    %s209 = ssub.s32 %s203, %s207
    %s210 = sor.u32 %s208, %s209
    %p211 = scmp.eq.s32.totalorder %s210, 0
    %s213 = sadd.s32 %s212, 1
    %s214 = scalar_select %p211, %s212, %s213
    %p217 = pneg %p211
    %p218 = scmp.eq.s32.totalorder %s16, 3
    %p219 = por %p217, %p218
    %p220 = scmp.ne.s32.totalorder %s212, %s215
    %p221 = scmp.eq.s32.totalorder %s16, 0
    %p222 = por %p220, %p221
    %p223 = scmp.ne.s32.totalorder %s212, %s215
    %p224 = scmp.eq.s32.totalorder %s21, 3
    %p225 = por %p223, %p224
    %p226 = scmp.ne.s32.totalorder %s215, %s216
    %p227 = scmp.eq.s32.totalorder %s21, 0
    %p228 = por %p226, %p227
    %p229 = scmp.ne.s32.totalorder %s215, %s216
    %p230 = scmp.eq.s32.totalorder %s22, 3
    %p231 = por %p229, %p230
    %p233 = scmp.ne.s32.totalorder %s216, %s232
    %p234 = scmp.eq.s32.totalorder %s22, 0
    %p235 = por %p233, %p234
    %s237 = sadd.s32 %s236, 1
    %p240 = scmp.eq.s32.totalorder %s16, 3
    %p241 = scmp.ne.s32.totalorder %s236, %s238
    %p242 = scmp.eq.s32.totalorder %s16, 0
    %p243 = por %p241, %p242
    %p244 = scmp.ne.s32.totalorder %s236, %s238
    %p245 = scmp.eq.s32.totalorder %s21, 3
    %p246 = por %p244, %p245
    %p247 = scmp.ne.s32.totalorder %s238, %s239
    %p248 = scmp.eq.s32.totalorder %s21, 0
    %p249 = por %p247, %p248
    %p250 = scmp.ne.s32.totalorder %s238, %s239
    %p251 = scmp.eq.s32.totalorder %s22, 3
    %p252 = por %p250, %p251
    %p254 = scmp.ne.s32.totalorder %s239, %s253
    %p255 = scmp.eq.s32.totalorder %s22, 0
    %p256 = por %p254, %p255
    %s258 = sadd.s32 %s257, 1
    %p261 = scmp.eq.s32.totalorder %s16, 3
    %p262 = scmp.ne.s32.totalorder %s257, %s259
    %p263 = scmp.eq.s32.totalorder %s16, 0
    %p264 = por %p262, %p263
    %p265 = scmp.ne.s32.totalorder %s257, %s259
    %p266 = scmp.eq.s32.totalorder %s21, 3
    %p267 = por %p265, %p266
    %p268 = scmp.ne.s32.totalorder %s259, %s260
    %p269 = scmp.eq.s32.totalorder %s21, 0
    %p270 = por %p268, %p269
    %p271 = scmp.ne.s32.totalorder %s259, %s260
    %p272 = scmp.eq.s32.totalorder %s22, 3
    %p273 = por %p271, %p272
    %p275 = scmp.ne.s32.totalorder %s260, %s274
    %p276 = scmp.eq.s32.totalorder %s22, 0
    %p277 = por %p275, %p276
    %s279 = sadd.s32 %s278, 1
    %p282 = scmp.eq.s32.totalorder %s16, 3
    %p283 = scmp.ne.s32.totalorder %s278, %s280
    %p284 = scmp.eq.s32.totalorder %s16, 0
    %p285 = por %p283, %p284
    %p286 = scmp.ne.s32.totalorder %s278, %s280
    %p287 = scmp.eq.s32.totalorder %s21, 3
    %p288 = por %p286, %p287
    %p289 = scmp.ne.s32.totalorder %s280, %s281
    %p290 = scmp.eq.s32.totalorder %s21, 0
    %p291 = por %p289, %p290
    %p292 = scmp.ne.s32.totalorder %s280, %s281
    %p293 = scmp.eq.s32.totalorder %s22, 3
    %p294 = por %p292, %p293
    %p296 = scmp.ne.s32.totalorder %s281, %s295
    %p297 = scmp.eq.s32.totalorder %s22, 0
    %p298 = por %p296, %p297
    %s300 = sadd.s32 %s299, 1
    %p303 = scmp.eq.s32.totalorder %s16, 3
    %p304 = scmp.ne.s32.totalorder %s299, %s301
    %p305 = scmp.eq.s32.totalorder %s16, 0
    %p306 = por %p304, %p305
    %p307 = scmp.ne.s32.totalorder %s299, %s301
    %p308 = scmp.eq.s32.totalorder %s21, 3
    %p309 = por %p307, %p308
    %p310 = scmp.ne.s32.totalorder %s301, %s302
    %p311 = scmp.eq.s32.totalorder %s21, 0
    %p312 = por %p310, %p311
    %p313 = scmp.ne.s32.totalorder %s301, %s302
    %p314 = scmp.eq.s32.totalorder %s22, 3
    %p315 = por %p313, %p314
    %p317 = scmp.ne.s32.totalorder %s302, %s316
    %p318 = scmp.eq.s32.totalorder %s22, 0
    %p319 = por %p317, %p318
    %s320 = ssub.s32 %s23, %s35
    %s321 = ssub.s32 %s24, %s31
    %s322 = sor.u32 %s320, %s321
    %p323 = scmp.eq.s32.totalorder %s322, 0
    %s325 = sadd.s32 %s324, 1
    %s326 = scalar_select %p323, %s324, %s325
    %p329 = pneg %p323
    %p330 = scmp.eq.s32.totalorder %s16, 3
    %p331 = por %p329, %p330
    %p332 = scmp.ne.s32.totalorder %s324, %s327
    %p333 = scmp.eq.s32.totalorder %s16, 0
    %p334 = por %p332, %p333
    %p335 = scmp.ne.s32.totalorder %s324, %s327
    %p336 = scmp.eq.s32.totalorder %s21, 3
    %p337 = por %p335, %p336
    %p338 = scmp.ne.s32.totalorder %s327, %s328
    %p339 = scmp.eq.s32.totalorder %s21, 0
    %p340 = por %p338, %p339
    %p341 = scmp.ne.s32.totalorder %s327, %s328
    %p342 = scmp.eq.s32.totalorder %s22, 3
    %p343 = por %p341, %p342
    %p345 = scmp.ne.s32.totalorder %s328, %s344
    %p346 = scmp.eq.s32.totalorder %s22, 0
    %p347 = por %p345, %p346
    %p348 = scmp.le.s32.totalorder 1, %s16
    %p349 = scmp.lt.s32.totalorder %s16, 5
    %p350 = pnand %p348, %p349
    %p351 = pneg %p350
    // Predicated region
    $region9: #{fcn_head_forward.5} parent=5 // pred_check
      _
    $region10: #{fcn_head_forward.5} parent=5 // pred_check_branch
      %353 = sbr.rel (%p350) target = $region12
    $region11: #{fcn_head_forward.5} parent=5 // pred_region
      %s354 = ssub.s32 %s16, 1
      // Predicated region
      $region13: #{fcn_head_forward.5} parent=11 // pred_check
        %p355 = pneg %p249
      $region14: #{fcn_head_forward.5} parent=11 // pred_check_branch
        %357 = sbr.rel (%p355) target = $region16
      $region15: #{fcn_head_forward.5} parent=11 // pred_region
        _
      $region16: #{fcn_head_forward.5} parent=11 // pred_fallthru
        _
      // Predicated region
      $region17: #{fcn_head_forward.5} parent=11 // pred_check
        %p358 = pneg %p270
      $region18: #{fcn_head_forward.5} parent=11 // pred_check_branch
        %360 = sbr.rel (%p358) target = $region20
      $region19: #{fcn_head_forward.5} parent=11 // pred_region
        _
      $region20: #{fcn_head_forward.5} parent=11 // pred_fallthru
        _
      // Predicated region
      $region21: #{fcn_head_forward.5} parent=11 // pred_check
        %p361 = pneg %p291
      $region22: #{fcn_head_forward.5} parent=11 // pred_check_branch
        %363 = sbr.rel (%p361) target = $region24
      $region23: #{fcn_head_forward.5} parent=11 // pred_region
        _
      $region24: #{fcn_head_forward.5} parent=11 // pred_fallthru
        _
      // Predicated region
      $region25: #{fcn_head_forward.5} parent=11 // pred_check
        %p364 = pneg %p312
      $region26: #{fcn_head_forward.5} parent=11 // pred_check_branch
        %366 = sbr.rel (%p364) target = $region28
      $region27: #{fcn_head_forward.5} parent=11 // pred_region
        _
      $region28: #{fcn_head_forward.5} parent=11 // pred_fallthru
        _
    $region12: #{fcn_head_forward.5} parent=5 // pred_fallthru
      _
    %p367 = scmp.lt.s32.totalorder %s16, 4
    // Predicated region
    $region29: #{fcn_head_forward.5} parent=5 // pred_check
      %p368 = pneg %p367
    $region30: #{fcn_head_forward.5} parent=5 // pred_check_branch
      %370 = sbr.rel (%p368) target = $region32
    $region31: #{fcn_head_forward.5} parent=5 // pred_region
      // Predicated region
      $region33: #{fcn_head_forward.5} parent=31 // pred_check
        %p371 = pneg %p50
      $region34: #{fcn_head_forward.5} parent=31 // pred_check_branch
        %373 = sbr.rel (%p371) target = $region36
      $region35: #{fcn_head_forward.5} parent=31 // pred_region
        %s374 = smul.u32 24, %s24
        %p375 = scmp.lt.s32.totalorder %s23, 1
        %s376 = scalar_select %p375, %s23, 1
        %p377 = scmp.lt.s32.totalorder %s374, 47
        %s378 = scalar_select %p377, %s374, 47
        %s379 = smul.addr %s376, 48
        %s380 = sadd.s32 %s378, %s379
        %s381 = smul.addr %s380, 4
        %s382 = scalar_lea.vmem %s0, %s381
        %s383 = smul.u32 24, %s24
      $region36: #{fcn_head_forward.5} parent=31 // pred_fallthru
        _
      // Predicated region
      $region37: #{fcn_head_forward.5} parent=31 // pred_check
        %p384 = pneg %p86
      $region38: #{fcn_head_forward.5} parent=31 // pred_check_branch
        %386 = sbr.rel (%p384) target = $region40
      $region39: #{fcn_head_forward.5} parent=31 // pred_region
        %s387 = smul.u32 %s24, 8
        %s388 = ssub.s32 %s387, 1
        %p389 = scmp.gt.s32.totalorder %s388, 0
        %s390 = scalar_select %p389, %s388, 0
        %s391 = smul.u32 3, %s390
        %p392 = scmp.lt.s32.totalorder %s23, 1
        %s393 = scalar_select %p392, %s23, 1
        %p394 = scmp.lt.s32.totalorder %s391, 47
        %s395 = scalar_select %p394, %s391, 47
        %s396 = smul.addr %s393, 48
        %s397 = sadd.s32 %s395, %s396
        %s398 = smul.addr %s397, 4
        %s399 = scalar_lea.vmem %s1, %s398
        %s400 = smul.u32 %s24, 8
        %s401 = ssub.s32 %s400, 1
        %p402 = scmp.gt.s32.totalorder %s401, 0
        %s403 = scalar_select %p402, %s401, 0
        %s404 = smul.u32 3, %s403
      $region40: #{fcn_head_forward.5} parent=31 // pred_fallthru
        _
      // Predicated region
      $region41: #{fcn_head_forward.5} parent=31 // pred_check
        %p405 = pneg %p122
      $region42: #{fcn_head_forward.5} parent=31 // pred_check_branch
        %407 = sbr.rel (%p405) target = $region44
      $region43: #{fcn_head_forward.5} parent=31 // pred_region
        %s408 = smul.u32 %s24, 8
        %s409 = sadd.s32 %s408, 8
        %p410 = scmp.lt.s32.totalorder %s409, 15
        %s411 = scalar_select %p410, %s409, 15
        %s412 = smul.u32 3, %s411
        %p413 = scmp.lt.s32.totalorder %s23, 1
        %s414 = scalar_select %p413, %s23, 1
        %p415 = scmp.lt.s32.totalorder %s412, 47
        %s416 = scalar_select %p415, %s412, 47
        %s417 = smul.addr %s414, 48
        %s418 = sadd.s32 %s416, %s417
        %s419 = smul.addr %s418, 4
        %s420 = scalar_lea.vmem %s2, %s419
        %s421 = smul.u32 %s24, 8
        %s422 = sadd.s32 %s421, 8
        %p423 = scmp.lt.s32.totalorder %s422, 15
        %s424 = scalar_select %p423, %s422, 15
        %s425 = smul.u32 3, %s424
      $region44: #{fcn_head_forward.5} parent=31 // pred_fallthru
        _
      // Predicated region
      $region45: #{fcn_head_forward.5} parent=31 // pred_check
        %p426 = pneg %p150
      $region46: #{fcn_head_forward.5} parent=31 // pred_check_branch
        %428 = sbr.rel (%p426) target = $region48
      $region47: #{fcn_head_forward.5} parent=31 // pred_region
        %s429 = smul.u32 24, %s24
        %p430 = scmp.lt.s32.totalorder %s23, 1
        %s431 = scalar_select %p430, %s23, 1
        %p432 = scmp.lt.s32.totalorder %s429, 47
        %s433 = scalar_select %p432, %s429, 47
        %s434 = smul.addr %s431, 48
        %s435 = sadd.s32 %s433, %s434
        %s436 = smul.addr %s435, 4
        %s437 = scalar_lea.vmem %s3, %s436
        %s438 = smul.u32 24, %s24
      $region48: #{fcn_head_forward.5} parent=31 // pred_fallthru
        _
      // Predicated region
      $region49: #{fcn_head_forward.5} parent=31 // pred_check
        %p439 = pneg %p186
      $region50: #{fcn_head_forward.5} parent=31 // pred_check_branch
        %441 = sbr.rel (%p439) target = $region52
      $region51: #{fcn_head_forward.5} parent=31 // pred_region
        %s442 = smul.u32 %s24, 8
        %s443 = ssub.s32 %s442, 1
        %p444 = scmp.gt.s32.totalorder %s443, 0
        %s445 = scalar_select %p444, %s443, 0
        %s446 = smul.u32 3, %s445
        %p447 = scmp.lt.s32.totalorder %s23, 1
        %s448 = scalar_select %p447, %s23, 1
        %p449 = scmp.lt.s32.totalorder %s446, 47
        %s450 = scalar_select %p449, %s446, 47
        %s451 = smul.addr %s448, 48
        %s452 = sadd.s32 %s450, %s451
        %s453 = smul.addr %s452, 4
        %s454 = scalar_lea.vmem %s4, %s453
        %s455 = smul.u32 %s24, 8
        %s456 = ssub.s32 %s455, 1
        %p457 = scmp.gt.s32.totalorder %s456, 0
        %s458 = scalar_select %p457, %s456, 0
        %s459 = smul.u32 3, %s458
      $region52: #{fcn_head_forward.5} parent=31 // pred_fallthru
        _
      // Predicated region
      $region53: #{fcn_head_forward.5} parent=31 // pred_check
        %p460 = pneg %p222
      $region54: #{fcn_head_forward.5} parent=31 // pred_check_branch
        %462 = sbr.rel (%p460) target = $region56
      $region55: #{fcn_head_forward.5} parent=31 // pred_region
        %s463 = smul.u32 %s24, 8
        %s464 = sadd.s32 %s463, 8
        %p465 = scmp.lt.s32.totalorder %s464, 15
        %s466 = scalar_select %p465, %s464, 15
        %s467 = smul.u32 3, %s466
        %p468 = scmp.lt.s32.totalorder %s23, 1
        %s469 = scalar_select %p468, %s23, 1
        %p470 = scmp.lt.s32.totalorder %s467, 47
        %s471 = scalar_select %p470, %s467, 47
        %s472 = smul.addr %s469, 48
        %s473 = sadd.s32 %s471, %s472
        %s474 = smul.addr %s473, 4
        %s475 = scalar_lea.vmem %s5, %s474
        %s476 = smul.u32 %s24, 8
        %s477 = sadd.s32 %s476, 8
        %p478 = scmp.lt.s32.totalorder %s477, 15
        %s479 = scalar_select %p478, %s477, 15
        %s480 = smul.u32 3, %s479
      $region56: #{fcn_head_forward.5} parent=31 // pred_fallthru
        _
    $region32: #{fcn_head_forward.5} parent=5 // pred_fallthru
      _
    %p481 = scmp.le.s32.totalorder 1, %s16
    %p482 = scmp.lt.s32.totalorder %s16, 5
    %p483 = pnand %p481, %p482
    %p484 = pneg %p483
    // Predicated region
    $region57: #{fcn_head_forward.5} parent=5 // pred_check
      _
    $region58: #{fcn_head_forward.5} parent=5 // pred_check_branch
      %486 = sbr.rel (%p483) target = $region60
    $region59: #{fcn_head_forward.5} parent=5 // pred_region
      %s487 = ssub.s32 %s16, 1
      %s488 = smul.u32 24, %s26
      %p489 = scmp.lt.s32.totalorder %s25, 1
      %s490 = scalar_select %p489, %s25, 1
      %p491 = scmp.lt.s32.totalorder %s488, 47
      %s492 = scalar_select %p491, %s488, 47
      %s493 = smul.addr %s490, 48
      %s494 = sadd.s32 %s492, %s493
      %s495 = smul.addr %s494, 4
      %s496 = scalar_lea.vmem %s0, %s495
      %p497 = pneg %p56
      %p498 = pneg %p53
      %s499 = smul.u32 %s26, 8
      %s500 = ssub.s32 %s499, 1
      %p501 = scmp.gt.s32.totalorder %s500, 0
      %s502 = scalar_select %p501, %s500, 0
      %s503 = smul.u32 3, %s502
      %p504 = scmp.lt.s32.totalorder %s25, 1
      %s505 = scalar_select %p504, %s25, 1
      %p506 = scmp.lt.s32.totalorder %s503, 47
      %s507 = scalar_select %p506, %s503, 47
      %s508 = smul.addr %s505, 48
      %s509 = sadd.s32 %s507, %s508
      %s510 = smul.addr %s509, 4
      %s511 = scalar_lea.vmem %s1, %s510
      %p512 = pneg %p92
      %p513 = pneg %p89
      %s514 = smul.u32 %s26, 8
      %s515 = sadd.s32 %s514, 8
      %p516 = scmp.lt.s32.totalorder %s515, 15
      %s517 = scalar_select %p516, %s515, 15
      %s518 = smul.u32 3, %s517
      %p519 = scmp.lt.s32.totalorder %s25, 1
      %s520 = scalar_select %p519, %s25, 1
      %p521 = scmp.lt.s32.totalorder %s518, 47
      %s522 = scalar_select %p521, %s518, 47
      %s523 = smul.addr %s520, 48
      %s524 = sadd.s32 %s522, %s523
      %s525 = smul.addr %s524, 4
      %s526 = scalar_lea.vmem %s2, %s525
      %p527 = pneg %p128
      %p528 = pneg %p125
      %s529 = smul.u32 24, %s26
      %p530 = scmp.lt.s32.totalorder %s25, 1
      %s531 = scalar_select %p530, %s25, 1
      %p532 = scmp.lt.s32.totalorder %s529, 47
      %s533 = scalar_select %p532, %s529, 47
      %s534 = smul.addr %s531, 48
      %s535 = sadd.s32 %s533, %s534
      %s536 = smul.addr %s535, 4
      %s537 = scalar_lea.vmem %s3, %s536
      %p538 = pneg %p156
      %p539 = pneg %p153
      %s540 = smul.u32 %s26, 8
      %s541 = ssub.s32 %s540, 1
      %p542 = scmp.gt.s32.totalorder %s541, 0
      %s543 = scalar_select %p542, %s541, 0
      %s544 = smul.u32 3, %s543
      %p545 = scmp.lt.s32.totalorder %s25, 1
      %s546 = scalar_select %p545, %s25, 1
      %p547 = scmp.lt.s32.totalorder %s544, 47
      %s548 = scalar_select %p547, %s544, 47
      %s549 = smul.addr %s546, 48
      %s550 = sadd.s32 %s548, %s549
      %s551 = smul.addr %s550, 4
      %s552 = scalar_lea.vmem %s4, %s551
      %p553 = pneg %p192
      %p554 = pneg %p189
      %s555 = smul.u32 %s26, 8
      %s556 = sadd.s32 %s555, 8
      %p557 = scmp.lt.s32.totalorder %s556, 15
      %s558 = scalar_select %p557, %s556, 15
      %s559 = smul.u32 3, %s558
      %p560 = scmp.lt.s32.totalorder %s25, 1
      %s561 = scalar_select %p560, %s25, 1
      %p562 = scmp.lt.s32.totalorder %s559, 47
      %s563 = scalar_select %p562, %s559, 47
      %s564 = smul.addr %s561, 48
      %s565 = sadd.s32 %s563, %s564
      %s566 = smul.addr %s565, 4
      %s567 = scalar_lea.vmem %s5, %s566
      %p568 = pneg %p228
      %p569 = pneg %p225
      %p570 = pneg %p249
      %p571 = pneg %p246
      %p572 = pneg %p270
      %p573 = pneg %p267
      %p574 = pneg %p291
      %p575 = pneg %p288
      %p576 = pneg %p312
      %p577 = pneg %p309
      %p578 = pneg %p340
      %p579 = pneg %p337
      %s580 = smul.u32 24, %s26
      %p581 = scmp.lt.s32.totalorder %s25, 1
      %s582 = scalar_select %p581, %s25, 1
      %p583 = scmp.lt.s32.totalorder %s580, 47
      %s584 = scalar_select %p583, %s580, 47
      %s585 = smul.addr %s582, 48
      %s586 = sadd.s32 %s584, %s585
      %s587 = smul.addr %s586, 4
      %s588 = scalar_lea.vmem %s10, %s587
      %s589 = smul.u32 24, %s26
      %p590 = scmp.lt.s32.totalorder %s25, 1
      %s591 = scalar_select %p590, %s25, 1
      %p592 = scmp.lt.s32.totalorder %s589, 47
      %s593 = scalar_select %p592, %s589, 47
      %s594 = smul.addr %s591, 48
      %s595 = sadd.s32 %s593, %s594
      %s596 = smul.addr %s595, 4
      %s597 = scalar_lea.vmem %s0, %s596
      %s598 = smul.u32 24, %s26
      %s599 = smul.u32 %s26, 8
      %s600 = ssub.s32 %s599, 1
      %p601 = scmp.gt.s32.totalorder %s600, 0
      %s602 = scalar_select %p601, %s600, 0
      %s603 = smul.u32 3, %s602
      %p604 = scmp.lt.s32.totalorder %s25, 1
      %s605 = scalar_select %p604, %s25, 1
      %p606 = scmp.lt.s32.totalorder %s603, 47
      %s607 = scalar_select %p606, %s603, 47
      %s608 = smul.addr %s605, 48
      %s609 = sadd.s32 %s607, %s608
      %s610 = smul.addr %s609, 4
      %s611 = scalar_lea.vmem %s1, %s610
      %s612 = smul.u32 %s26, 8
      %s613 = ssub.s32 %s612, 1
      %p614 = scmp.gt.s32.totalorder %s613, 0
      %s615 = scalar_select %p614, %s613, 0
      %s616 = smul.u32 3, %s615
      %s617 = smul.u32 %s26, 8
      %s618 = sadd.s32 %s617, 8
      %p619 = scmp.lt.s32.totalorder %s618, 15
      %s620 = scalar_select %p619, %s618, 15
      %s621 = smul.u32 3, %s620
      %p622 = scmp.lt.s32.totalorder %s25, 1
      %s623 = scalar_select %p622, %s25, 1
      %p624 = scmp.lt.s32.totalorder %s621, 47
      %s625 = scalar_select %p624, %s621, 47
      %s626 = smul.addr %s623, 48
      %s627 = sadd.s32 %s625, %s626
      %s628 = smul.addr %s627, 4
      %s629 = scalar_lea.vmem %s2, %s628
      %s630 = smul.u32 %s26, 8
      %s631 = sadd.s32 %s630, 8
      %p632 = scmp.lt.s32.totalorder %s631, 15
      %s633 = scalar_select %p632, %s631, 15
      %s634 = smul.u32 3, %s633
      %s635 = smul.u32 24, %s26
      %p636 = scmp.lt.s32.totalorder %s25, 1
      %s637 = scalar_select %p636, %s25, 1
      %p638 = scmp.lt.s32.totalorder %s635, 47
      %s639 = scalar_select %p638, %s635, 47
      %s640 = smul.addr %s637, 48
      %s641 = sadd.s32 %s639, %s640
      %s642 = smul.addr %s641, 4
      %s643 = scalar_lea.vmem %s3, %s642
      %s644 = smul.u32 24, %s26
      %s645 = smul.u32 %s26, 8
      %s646 = ssub.s32 %s645, 1
      %p647 = scmp.gt.s32.totalorder %s646, 0
      %s648 = scalar_select %p647, %s646, 0
      %s649 = smul.u32 3, %s648
      %p650 = scmp.lt.s32.totalorder %s25, 1
      %s651 = scalar_select %p650, %s25, 1
      %p652 = scmp.lt.s32.totalorder %s649, 47
      %s653 = scalar_select %p652, %s649, 47
      %s654 = smul.addr %s651, 48
      %s655 = sadd.s32 %s653, %s654
      %s656 = smul.addr %s655, 4
      %s657 = scalar_lea.vmem %s4, %s656
      %s658 = smul.u32 %s26, 8
      %s659 = ssub.s32 %s658, 1
      %p660 = scmp.gt.s32.totalorder %s659, 0
      %s661 = scalar_select %p660, %s659, 0
      %s662 = smul.u32 3, %s661
      %s663 = smul.u32 %s26, 8
      %s664 = sadd.s32 %s663, 8
      %p665 = scmp.lt.s32.totalorder %s664, 15
      %s666 = scalar_select %p665, %s664, 15
      %s667 = smul.u32 3, %s666
      %p668 = scmp.lt.s32.totalorder %s25, 1
      %s669 = scalar_select %p668, %s25, 1
      %p670 = scmp.lt.s32.totalorder %s667, 47
      %s671 = scalar_select %p670, %s667, 47
      %s672 = smul.addr %s669, 48
      %s673 = sadd.s32 %s671, %s672
      %s674 = smul.addr %s673, 4
      %s675 = scalar_lea.vmem %s5, %s674
      %s676 = smul.u32 %s26, 8
      %s677 = sadd.s32 %s676, 8
      %p678 = scmp.lt.s32.totalorder %s677, 15
      %s679 = scalar_select %p678, %s677, 15
      %s680 = smul.u32 3, %s679
      %s681 = smul.u32 24, %s26
      %p682 = scmp.lt.s32.totalorder %s25, 1
      %s683 = scalar_select %p682, %s25, 1
      %p684 = scmp.lt.s32.totalorder %s681, 47
      %s685 = scalar_select %p684, %s681, 47
      %s686 = smul.addr %s683, 48
      %s687 = sadd.s32 %s685, %s686
      %s688 = smul.addr %s687, 4
      %s689 = scalar_lea.vmem %s10, %s688
      %s690 = smul.u32 24, %s26
      %p692 = scmp.eq.s32.totalorder %s26, 0
      %p693 = scmp.eq.s32.totalorder %s26, 1
      %vm694 = vcmask 519171
      %vm695 = vsmask.f32 7950
      %vm696 = vmand %vm694, %vm695
      %v697 = vld [vmem:[#allocation2 + $0x8] sm:$0x8]
      %v698 = vsel %vm696, 0, %v697
      %699 = vst [vmem:[#allocation2 + $0x8] sm:$0x8] %v698
      %v700 = vld [vmem:[%s611] sm:$0xf]
      %v701 = vld [vmem:[%s611 + $0x4] sm:$0xf]
      %v702 = vld [vmem:[%s611 + $0x8] sm:$0xf]
      %v703 = vld [vmem:[%s629] sm:$0xf]
      %v704 = vld [vmem:[%s629 + $0x4] sm:$0xf]
      %v705 = vld [vmem:[%s629 + $0x8] sm:$0xf]
      %s706 = scalar_select %p692, 1, 0
      %v707 = vstv %s706
      %vm708 = vcmp.eq.s32.totalorder %v707, 1
      %v709 = vsel %vm708, 0, %v700
      %v710 = vsel %vm708, 0, %v701
      %v711 = vsel %vm708, 0, %v702
      %v715 = vunpack.c.l.b16 %v709
      %v716 = vunpack.c.l.b16 %v710
      %v717 = vunpack.c.l.b16 %v711
      %v718 = vpack.c.b16 %v715, %v715
      %v719 = vpack.c.b16 %v717, %v716
      %vm722 = vcmask 261124
      %723 = vst.msk [vmem:[#allocation2 + $0x8] sm:$0xf0] %vm722, %v718
      %vm724 = vcmask 261120
      %725 = vst.msk [vmem:[#allocation2 + $0x10] sm:$0xff] %vm724, %v719
      %v726 = vld [vmem:[%s597] sm:$0xf]
      %v727 = vld [vmem:[%s597 + $0x4] sm:$0xf]
      %v728 = vld [vmem:[%s597 + $0x8] sm:$0xf]
      %v729 = vld [vmem:[%s597 + $0xc] sm:$0xf]
      %v730 = vld [vmem:[%s597 + $0x10] sm:$0xf]
      %v731 = vld [vmem:[%s597 + $0x14] sm:$0xf]
      %v732 = vld [vmem:[%s597 + $0x18] sm:$0xf]
      %v733 = vld [vmem:[%s597 + $0x1c] sm:$0xf]
      %v734 = vld [vmem:[%s597 + $0x20] sm:$0xf]
      %v735 = vld [vmem:[%s597 + $0x24] sm:$0xf]
      %v736 = vld [vmem:[%s597 + $0x28] sm:$0xf]
      %v737 = vld [vmem:[%s597 + $0x2c] sm:$0xf]
      %v738 = vld [vmem:[%s597 + $0x30] sm:$0xf]
      %v739 = vld [vmem:[%s597 + $0x34] sm:$0xf]
      %v740 = vld [vmem:[%s597 + $0x38] sm:$0xf]
      %v741 = vld [vmem:[%s597 + $0x3c] sm:$0xf]
      %v742 = vld [vmem:[%s597 + $0x40] sm:$0xf]
      %v743 = vld [vmem:[%s597 + $0x44] sm:$0xf]
      %v744 = vld [vmem:[%s597 + $0x48] sm:$0xf]
      %v745 = vld [vmem:[%s597 + $0x4c] sm:$0xf]
      %v746 = vld [vmem:[%s597 + $0x50] sm:$0xf]
      %v747 = vld [vmem:[%s597 + $0x54] sm:$0xf]
      %v748 = vld [vmem:[%s597 + $0x58] sm:$0xf]
      %v749 = vld [vmem:[%s597 + $0x5c] sm:$0xf]
      %v774 = vunpack.c.l.b16 %v726
      %v775 = vunpack.c.l.b16 %v727
      %v776 = vunpack.c.l.b16 %v728
      %v777 = vunpack.c.l.b16 %v729
      %v778 = vunpack.c.l.b16 %v730
      %v779 = vunpack.c.l.b16 %v731
      %v780 = vunpack.c.l.b16 %v732
      %v781 = vunpack.c.l.b16 %v733
      %v782 = vunpack.c.l.b16 %v734
      %v783 = vunpack.c.l.b16 %v735
      %v784 = vunpack.c.l.b16 %v736
      %v785 = vunpack.c.l.b16 %v737
      %v786 = vunpack.c.l.b16 %v738
      %v787 = vunpack.c.l.b16 %v739
      %v788 = vunpack.c.l.b16 %v740
      %v789 = vunpack.c.l.b16 %v741
      %v790 = vunpack.c.l.b16 %v742
      %v791 = vunpack.c.l.b16 %v743
      %v792 = vunpack.c.l.b16 %v744
      %v793 = vunpack.c.l.b16 %v745
      %v794 = vunpack.c.l.b16 %v746
      %v795 = vunpack.c.l.b16 %v747
      %v796 = vunpack.c.l.b16 %v748
      %v797 = vunpack.c.l.b16 %v749
      %v798 = vpack.c.b16 %v775, %v774
      %v799 = vpack.c.b16 %v777, %v776
      %v800 = vpack.c.b16 %v779, %v778
      %v801 = vpack.c.b16 %v781, %v780
      %v802 = vpack.c.b16 %v783, %v782
      %v803 = vpack.c.b16 %v785, %v784
      %v804 = vpack.c.b16 %v787, %v786
      %v805 = vpack.c.b16 %v789, %v788
      %v806 = vpack.c.b16 %v791, %v790
      %v807 = vpack.c.b16 %v793, %v792
      %v808 = vpack.c.b16 %v795, %v794
      %v809 = vpack.c.b16 %v797, %v796
      %822 = vst.msk [vmem:[#allocation2 + $0x18] sm:$0xff] %vm724, %v798
      %823 = vst.msk [vmem:[#allocation2 + $0x20] sm:$0xff] %vm724, %v799
      %824 = vst.msk [vmem:[#allocation2 + $0x28] sm:$0xff] %vm724, %v800
      %825 = vst.msk [vmem:[#allocation2 + $0x30] sm:$0xff] %vm724, %v801
      %826 = vst.msk [vmem:[#allocation2 + $0x38] sm:$0xff] %vm724, %v802
      %827 = vst.msk [vmem:[#allocation2 + $0x40] sm:$0xff] %vm724, %v803
      %828 = vst.msk [vmem:[#allocation2 + $0x48] sm:$0xff] %vm724, %v804
      %829 = vst.msk [vmem:[#allocation2 + $0x50] sm:$0xff] %vm724, %v805
      %830 = vst.msk [vmem:[#allocation2 + $0x58] sm:$0xff] %vm724, %v806
      %831 = vst.msk [vmem:[#allocation2 + $0x60] sm:$0xff] %vm724, %v807
      %832 = vst.msk [vmem:[#allocation2 + $0x68] sm:$0xff] %vm724, %v808
      %833 = vst.msk [vmem:[#allocation2 + $0x70] sm:$0xff] %vm724, %v809
      %s834 = scalar_select %p693, 1, 0
      %v835 = vstv %s834
      %vm836 = vcmp.eq.s32.totalorder %v835, 1
      %v837 = vsel %vm836, 0, %v703
      %v838 = vsel %vm836, 0, %v704
      %v839 = vsel %vm836, 0, %v705
      %v843 = vunpack.c.l.b16 %v837
      %v844 = vunpack.c.l.b16 %v838
      %v845 = vunpack.c.l.b16 %v839
      %v846 = vpack.c.b16 %v844, %v843
      %v847 = vpack.c.b16 %v845, %v845
      %850 = vst.msk [vmem:[#allocation2 + $0x78] sm:$0xff] %vm724, %v846
      %vm851 = vcmask 257024
      %852 = vst.msk [vmem:[#allocation2 + $0x80] sm:$0xf] %vm851, %v847
      %v853 = vld [vmem:[%s657] sm:$0xf]
      %v854 = vld [vmem:[%s657 + $0x4] sm:$0xf]
      %v855 = vld [vmem:[%s657 + $0x8] sm:$0xf]
      %v856 = vld [vmem:[%s675] sm:$0xf]
      %v857 = vld [vmem:[%s675 + $0x4] sm:$0xf]
      %v858 = vld [vmem:[%s675 + $0x8] sm:$0xf]
      %v859 = vsel %vm708, 0, %v853
      %v860 = vsel %vm708, 0, %v854
      %v861 = vsel %vm708, 0, %v855
      %v865 = vunpack.c.l.b16 %v859
      %v866 = vunpack.c.l.b16 %v860
      %v867 = vunpack.c.l.b16 %v861
      %v868 = vpack.c.b16 %v865, %v865
      %v869 = vpack.c.b16 %v867, %v866
      %870 = vrot.lane.b32.xlu0 %v868, 32
      %v871 = vpop.permute.xlu0 %870
      %872 = vrot.lane.b32.xlu0 %v869, 32
      %v873 = vpop.permute.xlu0 %872
      %vm876 = vcmask 523524
      %877 = vst.msk [vmem:[#allocation2 + $0x8] sm:$0xf0] %vm876, %v871
      %vm878 = vcmask 523520
      %879 = vst.msk [vmem:[#allocation2 + $0x10] sm:$0xff] %vm878, %v873
      %v880 = vld [vmem:[%s643] sm:$0xf]
      %v881 = vld [vmem:[%s643 + $0x4] sm:$0xf]
      %v882 = vld [vmem:[%s643 + $0x8] sm:$0xf]
      %v883 = vld [vmem:[%s643 + $0xc] sm:$0xf]
      %v884 = vld [vmem:[%s643 + $0x10] sm:$0xf]
      %v885 = vld [vmem:[%s643 + $0x14] sm:$0xf]
      %v886 = vld [vmem:[%s643 + $0x18] sm:$0xf]
      %v887 = vld [vmem:[%s643 + $0x1c] sm:$0xf]
      %v888 = vld [vmem:[%s643 + $0x20] sm:$0xf]
      %v889 = vld [vmem:[%s643 + $0x24] sm:$0xf]
      %v890 = vld [vmem:[%s643 + $0x28] sm:$0xf]
      %v891 = vld [vmem:[%s643 + $0x2c] sm:$0xf]
      %v892 = vld [vmem:[%s643 + $0x30] sm:$0xf]
      %v893 = vld [vmem:[%s643 + $0x34] sm:$0xf]
      %v894 = vld [vmem:[%s643 + $0x38] sm:$0xf]
      %v895 = vld [vmem:[%s643 + $0x3c] sm:$0xf]
      %v896 = vld [vmem:[%s643 + $0x40] sm:$0xf]
      %v897 = vld [vmem:[%s643 + $0x44] sm:$0xf]
      %v898 = vld [vmem:[%s643 + $0x48] sm:$0xf]
      %v899 = vld [vmem:[%s643 + $0x4c] sm:$0xf]
      %v900 = vld [vmem:[%s643 + $0x50] sm:$0xf]
      %v901 = vld [vmem:[%s643 + $0x54] sm:$0xf]
      %v902 = vld [vmem:[%s643 + $0x58] sm:$0xf]
      %v903 = vld [vmem:[%s643 + $0x5c] sm:$0xf]
      %v928 = vunpack.c.l.b16 %v880
      %v929 = vunpack.c.l.b16 %v881
      %v930 = vunpack.c.l.b16 %v882
      %v931 = vunpack.c.l.b16 %v883
      %v932 = vunpack.c.l.b16 %v884
      %v933 = vunpack.c.l.b16 %v885
      %v934 = vunpack.c.l.b16 %v886
      %v935 = vunpack.c.l.b16 %v887
      %v936 = vunpack.c.l.b16 %v888
      %v937 = vunpack.c.l.b16 %v889
      %v938 = vunpack.c.l.b16 %v890
      %v939 = vunpack.c.l.b16 %v891
      %v940 = vunpack.c.l.b16 %v892
      %v941 = vunpack.c.l.b16 %v893
      %v942 = vunpack.c.l.b16 %v894
      %v943 = vunpack.c.l.b16 %v895
      %v944 = vunpack.c.l.b16 %v896
      %v945 = vunpack.c.l.b16 %v897
      %v946 = vunpack.c.l.b16 %v898
      %v947 = vunpack.c.l.b16 %v899
      %v948 = vunpack.c.l.b16 %v900
      %v949 = vunpack.c.l.b16 %v901
      %v950 = vunpack.c.l.b16 %v902
      %v951 = vunpack.c.l.b16 %v903
      %v952 = vpack.c.b16 %v929, %v928
      %v953 = vpack.c.b16 %v931, %v930
      %v954 = vpack.c.b16 %v933, %v932
      %v955 = vpack.c.b16 %v935, %v934
      %v956 = vpack.c.b16 %v937, %v936
      %v957 = vpack.c.b16 %v939, %v938
      %v958 = vpack.c.b16 %v941, %v940
      %v959 = vpack.c.b16 %v943, %v942
      %v960 = vpack.c.b16 %v945, %v944
      %v961 = vpack.c.b16 %v947, %v946
      %v962 = vpack.c.b16 %v949, %v948
      %v963 = vpack.c.b16 %v951, %v950
      %964 = vrot.lane.b32.xlu0 %v952, 32
      %v965 = vpop.permute.xlu0 %964
      %966 = vrot.lane.b32.xlu0 %v953, 32
      %v967 = vpop.permute.xlu0 %966
      %968 = vrot.lane.b32.xlu0 %v954, 32
      %v969 = vpop.permute.xlu0 %968
      %970 = vrot.lane.b32.xlu0 %v955, 32
      %v971 = vpop.permute.xlu0 %970
      %972 = vrot.lane.b32.xlu0 %v956, 32
      %v973 = vpop.permute.xlu0 %972
      %974 = vrot.lane.b32.xlu0 %v957, 32
      %v975 = vpop.permute.xlu0 %974
      %976 = vrot.lane.b32.xlu0 %v958, 32
      %v977 = vpop.permute.xlu0 %976
      %978 = vrot.lane.b32.xlu0 %v959, 32
      %v979 = vpop.permute.xlu0 %978
      %980 = vrot.lane.b32.xlu0 %v960, 32
      %v981 = vpop.permute.xlu0 %980
      %982 = vrot.lane.b32.xlu0 %v961, 32
      %v983 = vpop.permute.xlu0 %982
      %984 = vrot.lane.b32.xlu0 %v962, 32
      %v985 = vpop.permute.xlu0 %984
      %986 = vrot.lane.b32.xlu0 %v963, 32
      %v987 = vpop.permute.xlu0 %986
      %1000 = vst.msk [vmem:[#allocation2 + $0x18] sm:$0xff] %vm878, %v965
      %1001 = vst.msk [vmem:[#allocation2 + $0x20] sm:$0xff] %vm878, %v967
      %1002 = vst.msk [vmem:[#allocation2 + $0x28] sm:$0xff] %vm878, %v969
      %1003 = vst.msk [vmem:[#allocation2 + $0x30] sm:$0xff] %vm878, %v971
      %1004 = vst.msk [vmem:[#allocation2 + $0x38] sm:$0xff] %vm878, %v973
      %1005 = vst.msk [vmem:[#allocation2 + $0x40] sm:$0xff] %vm878, %v975
      %1006 = vst.msk [vmem:[#allocation2 + $0x48] sm:$0xff] %vm878, %v977
      %1007 = vst.msk [vmem:[#allocation2 + $0x50] sm:$0xff] %vm878, %v979
      %1008 = vst.msk [vmem:[#allocation2 + $0x58] sm:$0xff] %vm878, %v981
      %1009 = vst.msk [vmem:[#allocation2 + $0x60] sm:$0xff] %vm878, %v983
      %1010 = vst.msk [vmem:[#allocation2 + $0x68] sm:$0xff] %vm878, %v985
      %1011 = vst.msk [vmem:[#allocation2 + $0x70] sm:$0xff] %vm878, %v987
      %v1012 = vsel %vm836, 0, %v856
      %v1013 = vsel %vm836, 0, %v857
      %v1014 = vsel %vm836, 0, %v858
      %v1018 = vunpack.c.l.b16 %v1012
      %v1019 = vunpack.c.l.b16 %v1013
      %v1020 = vunpack.c.l.b16 %v1014
      %v1021 = vpack.c.b16 %v1019, %v1018
      %v1022 = vpack.c.b16 %v1020, %v1020
      %1023 = vrot.lane.b32.xlu0 %v1021, 32
      %v1024 = vpop.permute.xlu0 %1023
      %1025 = vrot.lane.b32.xlu0 %v1022, 32
      %v1026 = vpop.permute.xlu0 %1025
      %1029 = vst.msk [vmem:[#allocation2 + $0x78] sm:$0xff] %vm878, %v1024
      %vm1030 = vcmask 519424
      %1031 = vst.msk [vmem:[#allocation2 + $0x80] sm:$0xf] %vm1030, %v1026
      %v1032 = vld [vmem:[#allocation2 + $0x8] sm:$0xf8]
      %v1033 = vld [vmem:[#allocation2 + $0x10] sm:$0xff]
      %v1034 = vld [vmem:[#allocation2 + $0x18] sm:$0xff]
      %v1035 = vld [vmem:[#allocation2 + $0x20] sm:$0xff]
      %v1036 = vld [vmem:[#allocation2 + $0x28] sm:$0xff]
      %v1037 = vld [vmem:[#allocation2 + $0x30] sm:$0xff]
      %v1038 = vld [vmem:[#allocation2 + $0x38] sm:$0xff]
      %v1039 = vld [vmem:[#allocation2 + $0x40] sm:$0xff]
      %v1040 = vld [vmem:[#allocation2 + $0x48] sm:$0xff]
      %v1041 = vld [vmem:[#allocation2 + $0x50] sm:$0xff]
      %v1042 = vld [vmem:[#allocation2 + $0x58] sm:$0xff]
      %v1043 = vld [vmem:[#allocation2 + $0x60] sm:$0xff]
      %v1044 = vld [vmem:[#allocation2 + $0x68] sm:$0xf]
      %v1045 = vld [vmem:[%s6] sm:$0xf]
      %v1046 = vld [vmem:[%s6 + $0x4] sm:$0xf]
      %v1047 = vld [vmem:[%s6 + $0x8] sm:$0xf]
      %v1048 = vld [vmem:[%s6 + $0xc] sm:$0xf]
      %v1049 = vld [vmem:[%s6 + $0x10] sm:$0xf]
      %v1050 = vld [vmem:[%s6 + $0x14] sm:$0xf]
      %v1051 = vld [vmem:[%s6 + $0x18] sm:$0xf]
      %v1052 = vld [vmem:[%s6 + $0x1c] sm:$0xf]
      %v1053 = vld [vmem:[#allocation2 + $0x8] sm:$0xf0]
      %s1054 = scalar_lea.vmem %s6, 32
      %v1055 = vld [vmem:[%s1054] sm:$0xf]
      %v1056 = vld [vmem:[%s1054 + $0x4] sm:$0xf]
      %v1057 = vld [vmem:[%s1054 + $0x8] sm:$0xf]
      %v1058 = vld [vmem:[%s1054 + $0xc] sm:$0xf]
      %v1059 = vld [vmem:[%s1054 + $0x10] sm:$0xf]
      %v1060 = vld [vmem:[%s1054 + $0x14] sm:$0xf]
      %v1061 = vld [vmem:[%s1054 + $0x18] sm:$0xf]
      %v1062 = vld [vmem:[%s1054 + $0x1c] sm:$0xf]
      %vm1076 = vcmask 1043456
      %v1077 = vrot.slane %v1053, 4
      %v1078 = vrot.slane %v1033, 4
      %v1079 = vsel %vm1076, %v1077, %v1078
      %v1080 = vrot.slane %v1034, 4
      %v1081 = vsel %vm1076, %v1078, %v1080
      %v1082 = vrot.slane %v1035, 4
      %v1083 = vsel %vm1076, %v1080, %v1082
      %v1084 = vrot.slane %v1036, 4
      %v1085 = vsel %vm1076, %v1082, %v1084
      %v1086 = vrot.slane %v1037, 4
      %v1087 = vsel %vm1076, %v1084, %v1086
      %v1088 = vrot.slane %v1038, 4
      %v1089 = vsel %vm1076, %v1086, %v1088
      %v1090 = vrot.slane %v1039, 4
      %v1091 = vsel %vm1076, %v1088, %v1090
      %v1092 = vrot.slane %v1040, 4
      %v1093 = vsel %vm1076, %v1090, %v1092
      %v1094 = vrot.slane %v1041, 4
      %v1095 = vsel %vm1076, %v1092, %v1094
      %v1096 = vrot.slane %v1042, 4
      %v1097 = vsel %vm1076, %v1094, %v1096
      %v1098 = vrot.slane %v1043, 4
      %v1099 = vsel %vm1076, %v1096, %v1098
      %v1100 = vrot.slane %v1044, 4
      %v1101 = vsel %vm1076, %v1098, %v1100
      %v1110 = vunpack.c.l.b16 %v1055
      %v1111 = vunpack.c.l.b16 %v1056
      %v1112 = vunpack.c.l.b16 %v1057
      %v1113 = vunpack.c.l.b16 %v1058
      %v1114 = vunpack.c.l.b16 %v1059
      %v1115 = vunpack.c.l.b16 %v1060
      %v1116 = vunpack.c.l.b16 %v1061
      %v1117 = vunpack.c.l.b16 %v1062
      %v1118 = vpack.c.b16 %v1111, %v1110
      %v1119 = vpack.c.b16 %v1113, %v1112
      %v1120 = vpack.c.b16 %v1115, %v1114
      %v1121 = vpack.c.b16 %v1117, %v1116
      %vm1126 = vcmask 523264
      %v1128 = vsel %vm1126, %v1079, 0
      %v1131 = vsel %vm1126, %v1081, 0
      %v1134 = vsel %vm1126, %v1083, 0
      %v1137 = vsel %vm1126, %v1085, 0
      %v1140 = vsel %vm1126, %v1087, 0
      %v1143 = vsel %vm1126, %v1089, 0
      %v1146 = vsel %vm1126, %v1091, 0
      %v1149 = vsel %vm1126, %v1093, 0
      %v1152 = vsel %vm1126, %v1095, 0
      %v1155 = vsel %vm1126, %v1097, 0
      %v1158 = vsel %vm1126, %v1099, 0
      %v1161 = vsel %vm1126, %v1101, 0
      %1163 = vmatprep.subr.bf16.mxu0 0
      %1164 = vmatpush1.bf16.msra.mxu0 %v1118
      %1165 = vmatprep.subr.bf16.mxu0 0
      %1166 = vmatpush1.bf16.msra.mxu0 %v1119
      %1167 = vmatprep.subr.bf16.mxu0 0
      %1168 = vmatpush1.bf16.msra.mxu0 %v1120
      %1169 = vmatprep.subr.bf16.mxu0 0
      %1170 = vmatpush1.bf16.msra.mxu0 %v1121
      %1171 = vmatprep.subr.bf16.mxu0 0
      %1172 = vmatpush1.bf16.msra.mxu0 0
      %1173 = vmatprep.subr.bf16.mxu0 0
      %1174 = vmatpush1.bf16.msra.mxu0 0
      %1175 = vmatprep.subr.bf16.mxu0 0
      %1176 = vmatpush1.bf16.msra.mxu0 0
      %1177 = vmatprep.subr.bf16.mxu0 0
      %1178 = vmatpush1.bf16.msra.mxu0 0
      %1179 = vmatprep.subr.bf16.mxu0 0
      %1180 = vmatpush1.bf16.msra.mxu0 0
      %1181 = vmatprep.subr.bf16.mxu0 0
      %1182 = vmatpush1.bf16.msra.mxu0 0
      %1183 = vmatprep.subr.bf16.mxu0 0
      %1184 = vmatpush1.bf16.msra.mxu0 0
      %1185 = vmatprep.subr.bf16.mxu0 0
      %1186 = vmatpush1.bf16.msra.mxu0 0
      %1187 = vmatprep.subr.bf16.mxu0 0
      %1188 = vmatpush1.bf16.msra.mxu0 0
      %1189 = vmatprep.subr.bf16.mxu0 0
      %1190 = vmatpush1.bf16.msra.mxu0 0
      %1191 = vmatprep.subr.bf16.mxu0 0
      %1192 = vmatpush1.bf16.msra.mxu0 0
      %1193 = vmatprep.subr.bf16.mxu0 0
      %1194 = vmatpush1.bf16.msra.mxu0 0
      %1195 = vmatprep.mubr.bf16.mxu0 0
      %1196 = vmatmul.mubr.bf16.gmra.mrb[0].mxu0 %v1128
      %v1197 = vpop.f32.mrb[0].mxu0
      %v1198 = vadd.f32 0.0, %v1197
      %v1199 = vpop.f32.mrb[0].mxu0
      %v1200 = vpop.f32.mrb[0].mxu0
      %v1201 = vadd.f32 0.0, %v1200
      %v1202 = vpop.f32.mrb[0].mxu0
      %1203 = vmatprep.mubr.bf16.mxu0 0
      %1204 = vmatmul.mubr.bf16.gmra.mrb[0].mxu0 %v1131
      %v1205 = vpop.f32.mrb[0].mxu0
      %v1206 = vadd.f32 0.0, %v1205
      %v1207 = vpop.f32.mrb[0].mxu0
      %v1208 = vpop.f32.mrb[0].mxu0
      %v1209 = vadd.f32 0.0, %v1208
      %v1210 = vpop.f32.mrb[0].mxu0
      %1211 = vmatprep.mubr.bf16.mxu0 0
      %1212 = vmatmul.mubr.bf16.gmra.mrb[0].mxu0 %v1134
      %v1213 = vpop.f32.mrb[0].mxu0
      %v1214 = vadd.f32 0.0, %v1213
      %v1215 = vpop.f32.mrb[0].mxu0
      %v1216 = vpop.f32.mrb[0].mxu0
      %v1217 = vadd.f32 0.0, %v1216
      %v1218 = vpop.f32.mrb[0].mxu0
      %1219 = vmatprep.mubr.bf16.mxu0 0
      %1220 = vmatmul.mubr.bf16.gmra.mrb[0].mxu0 %v1137
      %v1221 = vpop.f32.mrb[0].mxu0
      %v1222 = vadd.f32 0.0, %v1221
      %v1223 = vpop.f32.mrb[0].mxu0
      %v1224 = vpop.f32.mrb[0].mxu0
      %v1225 = vadd.f32 0.0, %v1224
      %v1226 = vpop.f32.mrb[0].mxu0
      %1227 = vmatprep.mubr.bf16.mxu0 0
      %1228 = vmatmul.mubr.bf16.gmra.mrb[0].mxu0 %v1140
      %v1229 = vpop.f32.mrb[0].mxu0
      %v1230 = vadd.f32 0.0, %v1229
      %v1231 = vpop.f32.mrb[0].mxu0
      %v1232 = vpop.f32.mrb[0].mxu0
      %v1233 = vadd.f32 0.0, %v1232
      %v1234 = vpop.f32.mrb[0].mxu0
      %1235 = vmatprep.mubr.bf16.mxu0 0
      %1236 = vmatmul.mubr.bf16.gmra.mrb[0].mxu0 %v1143
      %v1237 = vpop.f32.mrb[0].mxu0
      %v1238 = vadd.f32 0.0, %v1237
      %v1239 = vpop.f32.mrb[0].mxu0
      %v1240 = vpop.f32.mrb[0].mxu0
      %v1241 = vadd.f32 0.0, %v1240
      %v1242 = vpop.f32.mrb[0].mxu0
      %1243 = vmatprep.mubr.bf16.mxu0 0
      %1244 = vmatmul.mubr.bf16.gmra.mrb[0].mxu0 %v1146
      %v1245 = vpop.f32.mrb[0].mxu0
      %v1246 = vadd.f32 0.0, %v1245
      %v1247 = vpop.f32.mrb[0].mxu0
      %v1248 = vpop.f32.mrb[0].mxu0
      %v1249 = vadd.f32 0.0, %v1248
      %v1250 = vpop.f32.mrb[0].mxu0
      %1251 = vmatprep.mubr.bf16.mxu0 0
      %1252 = vmatmul.mubr.bf16.gmra.mrb[0].mxu0 %v1149
      %v1253 = vpop.f32.mrb[0].mxu0
      %v1254 = vadd.f32 0.0, %v1253
      %v1255 = vpop.f32.mrb[0].mxu0
      %v1256 = vpop.f32.mrb[0].mxu0
      %v1257 = vadd.f32 0.0, %v1256
      %v1258 = vpop.f32.mrb[0].mxu0
      %1259 = vmatprep.mubr.bf16.mxu0 0
      %1260 = vmatmul.mubr.bf16.gmra.mrb[0].mxu0 %v1152
      %v1261 = vpop.f32.mrb[0].mxu0
      %v1262 = vadd.f32 0.0, %v1261
      %v1263 = vpop.f32.mrb[0].mxu0
      %v1264 = vpop.f32.mrb[0].mxu0
      %v1265 = vadd.f32 0.0, %v1264
      %v1266 = vpop.f32.mrb[0].mxu0
      %1267 = vmatprep.mubr.bf16.mxu0 0
      %1268 = vmatmul.mubr.bf16.gmra.mrb[0].mxu0 %v1155
      %v1269 = vpop.f32.mrb[0].mxu0
      %v1270 = vadd.f32 0.0, %v1269
      %v1271 = vpop.f32.mrb[0].mxu0
      %v1272 = vpop.f32.mrb[0].mxu0
      %v1273 = vadd.f32 0.0, %v1272
      %v1274 = vpop.f32.mrb[0].mxu0
      %1275 = vmatprep.mubr.bf16.mxu0 0
      %1276 = vmatmul.mubr.bf16.gmra.mrb[0].mxu0 %v1158
      %v1277 = vpop.f32.mrb[0].mxu0
      %v1278 = vadd.f32 0.0, %v1277
      %v1279 = vpop.f32.mrb[0].mxu0
      %v1280 = vpop.f32.mrb[0].mxu0
      %v1281 = vadd.f32 0.0, %v1280
      %v1282 = vpop.f32.mrb[0].mxu0
      %1283 = vmatprep.mubr.bf16.mxu0 0
      %1284 = vmatmul.mubr.bf16.gmra.mrb[0].mxu0 %v1161
      %v1285 = vpop.f32.mrb[0].mxu0
      %v1286 = vadd.f32 0.0, %v1285
      %v1287 = vpop.f32.mrb[0].mxu0
      %v1288 = vpop.f32.mrb[0].mxu0
      %v1289 = vadd.f32 0.0, %v1288
      %v1290 = vpop.f32.mrb[0].mxu0
      %1291 = vdwg.mxu0
      %vm1292 = vsmask.f32 4352
      %v1294 = vshrl.u32 %v1032, 16
      %v1296 = vrot.slane %v1294, 3
      %v1297 = vshll.u32 %v1032, 16
      %v1299 = vrot.slane %v1297, 4
      %v1300 = vor.u32 %v1296, %v1299
      %v1302 = vshrl.u32 %v1033, 16
      %v1304 = vrot.slane %v1302, 3
      %v1305 = vshll.u32 %v1033, 16
      %v1307 = vrot.slane %v1305, 4
      %v1308 = vor.u32 %v1304, %v1307
      %v1309 = vsel %vm1292, %v1300, %v1308
      %v1311 = vshrl.u32 %v1034, 16
      %v1313 = vrot.slane %v1311, 3
      %v1314 = vshll.u32 %v1034, 16
      %v1316 = vrot.slane %v1314, 4
      %v1317 = vor.u32 %v1313, %v1316
      %v1318 = vsel %vm1292, %v1308, %v1317
      %v1320 = vshrl.u32 %v1035, 16
      %v1322 = vrot.slane %v1320, 3
      %v1323 = vshll.u32 %v1035, 16
      %v1325 = vrot.slane %v1323, 4
      %v1326 = vor.u32 %v1322, %v1325
      %v1327 = vsel %vm1292, %v1317, %v1326
      %v1329 = vshrl.u32 %v1036, 16
      %v1331 = vrot.slane %v1329, 3
      %v1332 = vshll.u32 %v1036, 16
      %v1334 = vrot.slane %v1332, 4
      %v1335 = vor.u32 %v1331, %v1334
      %v1336 = vsel %vm1292, %v1326, %v1335
      %v1338 = vshrl.u32 %v1037, 16
      %v1340 = vrot.slane %v1338, 3
      %v1341 = vshll.u32 %v1037, 16
      %v1343 = vrot.slane %v1341, 4
      %v1344 = vor.u32 %v1340, %v1343
      %v1345 = vsel %vm1292, %v1335, %v1344
      %v1347 = vshrl.u32 %v1038, 16
      %v1349 = vrot.slane %v1347, 3
      %v1350 = vshll.u32 %v1038, 16
      %v1352 = vrot.slane %v1350, 4
      %v1353 = vor.u32 %v1349, %v1352
      %v1354 = vsel %vm1292, %v1344, %v1353
      %v1356 = vshrl.u32 %v1039, 16
      %v1358 = vrot.slane %v1356, 3
      %v1359 = vshll.u32 %v1039, 16
      %v1361 = vrot.slane %v1359, 4
      %v1362 = vor.u32 %v1358, %v1361
      %v1363 = vsel %vm1292, %v1353, %v1362
      %v1365 = vshrl.u32 %v1040, 16
      %v1367 = vrot.slane %v1365, 3
      %v1368 = vshll.u32 %v1040, 16
      %v1370 = vrot.slane %v1368, 4
      %v1371 = vor.u32 %v1367, %v1370
      %v1372 = vsel %vm1292, %v1362, %v1371
      %v1374 = vshrl.u32 %v1041, 16
      %v1376 = vrot.slane %v1374, 3
      %v1377 = vshll.u32 %v1041, 16
      %v1379 = vrot.slane %v1377, 4
      %v1380 = vor.u32 %v1376, %v1379
      %v1381 = vsel %vm1292, %v1371, %v1380
      %v1383 = vshrl.u32 %v1042, 16
      %v1385 = vrot.slane %v1383, 3
      %v1386 = vshll.u32 %v1042, 16
      %v1388 = vrot.slane %v1386, 4
      %v1389 = vor.u32 %v1385, %v1388
      %v1390 = vsel %vm1292, %v1380, %v1389
      %v1392 = vshrl.u32 %v1043, 16
      %v1394 = vrot.slane %v1392, 3
      %v1395 = vshll.u32 %v1043, 16
      %v1397 = vrot.slane %v1395, 4
      %v1398 = vor.u32 %v1394, %v1397
      %v1399 = vsel %vm1292, %v1389, %v1398
      %v1401 = vshrl.u32 %v1044, 16
      %v1403 = vrot.slane %v1401, 3
      %v1404 = vshll.u32 %v1044, 16
      %v1406 = vrot.slane %v1404, 4
      %v1407 = vor.u32 %v1403, %v1406
      %v1408 = vsel %vm1292, %v1398, %v1407
      %v1417 = vunpack.c.l.b16 %v1045
      %v1418 = vunpack.c.l.b16 %v1046
      %v1419 = vunpack.c.l.b16 %v1047
      %v1420 = vunpack.c.l.b16 %v1048
      %v1421 = vunpack.c.l.b16 %v1049
      %v1422 = vunpack.c.l.b16 %v1050
      %v1423 = vunpack.c.l.b16 %v1051
      %v1424 = vunpack.c.l.b16 %v1052
      %v1425 = vpack.c.b16 %v1418, %v1417
      %v1426 = vpack.c.b16 %v1420, %v1419
      %v1427 = vpack.c.b16 %v1422, %v1421
      %v1428 = vpack.c.b16 %v1424, %v1423
      %v1434 = vsel %vm1126, %v1309, 0
      %v1437 = vsel %vm1126, %v1318, 0
      %v1440 = vsel %vm1126, %v1327, 0
      %v1443 = vsel %vm1126, %v1336, 0
      %v1446 = vsel %vm1126, %v1345, 0
      %v1449 = vsel %vm1126, %v1354, 0
      %v1452 = vsel %vm1126, %v1363, 0
      %v1455 = vsel %vm1126, %v1372, 0
      %v1458 = vsel %vm1126, %v1381, 0
      %v1461 = vsel %vm1126, %v1390, 0
      %v1464 = vsel %vm1126, %v1399, 0
      %v1467 = vsel %vm1126, %v1408, 0
      %1469 = vmatprep.subr.bf16.mxu0 0
      %1470 = vmatpush1.bf16.msra.mxu0 %v1425
      %1471 = vmatprep.subr.bf16.mxu0 0
      %1472 = vmatpush1.bf16.msra.mxu0 %v1426
      %1473 = vmatprep.subr.bf16.mxu0 0
      %1474 = vmatpush1.bf16.msra.mxu0 %v1427
      %1475 = vmatprep.subr.bf16.mxu0 0
      %1476 = vmatpush1.bf16.msra.mxu0 %v1428
      %1477 = vmatprep.subr.bf16.mxu0 0
      %1478 = vmatpush1.bf16.msra.mxu0 0
      %1479 = vmatprep.subr.bf16.mxu0 0
      %1480 = vmatpush1.bf16.msra.mxu0 0
      %1481 = vmatprep.subr.bf16.mxu0 0
      %1482 = vmatpush1.bf16.msra.mxu0 0
      %1483 = vmatprep.subr.bf16.mxu0 0
      %1484 = vmatpush1.bf16.msra.mxu0 0
      %1485 = vmatprep.subr.bf16.mxu0 0
      %1486 = vmatpush1.bf16.msra.mxu0 0
      %1487 = vmatprep.subr.bf16.mxu0 0
      %1488 = vmatpush1.bf16.msra.mxu0 0
      %1489 = vmatprep.subr.bf16.mxu0 0
      %1490 = vmatpush1.bf16.msra.mxu0 0
      %1491 = vmatprep.subr.bf16.mxu0 0
      %1492 = vmatpush1.bf16.msra.mxu0 0
      %1493 = vmatprep.subr.bf16.mxu0 0
      %1494 = vmatpush1.bf16.msra.mxu0 0
      %1495 = vmatprep.subr.bf16.mxu0 0
      %1496 = vmatpush1.bf16.msra.mxu0 0
      %1497 = vmatprep.subr.bf16.mxu0 0
      %1498 = vmatpush1.bf16.msra.mxu0 0
      %1499 = vmatprep.subr.bf16.mxu0 0
      %1500 = vmatpush1.bf16.msra.mxu0 0
      %1501 = vmatprep.mubr.bf16.mxu0 0
      %1502 = vmatmul.mubr.bf16.gmra.mrb[0].mxu0 %v1434
      %v1503 = vpop.f32.mrb[0].mxu0
      %v1504 = vadd.f32 %v1198, %v1503
      %v1505 = vpop.f32.mrb[0].mxu0
      %v1506 = vpop.f32.mrb[0].mxu0
      %v1507 = vadd.f32 %v1201, %v1506
      %v1508 = vpop.f32.mrb[0].mxu0
      %1509 = vmatprep.mubr.bf16.mxu0 0
      %1510 = vmatmul.mubr.bf16.gmra.mrb[0].mxu0 %v1437
      %v1511 = vpop.f32.mrb[0].mxu0
      %v1512 = vadd.f32 %v1206, %v1511
      %v1513 = vpop.f32.mrb[0].mxu0
      %v1514 = vpop.f32.mrb[0].mxu0
      %v1515 = vadd.f32 %v1209, %v1514
      %v1516 = vpop.f32.mrb[0].mxu0
      %1517 = vmatprep.mubr.bf16.mxu0 0
      %1518 = vmatmul.mubr.bf16.gmra.mrb[0].mxu0 %v1440
      %v1519 = vpop.f32.mrb[0].mxu0
      %v1520 = vadd.f32 %v1214, %v1519
      %v1521 = vpop.f32.mrb[0].mxu0
      %v1522 = vpop.f32.mrb[0].mxu0
      %v1523 = vadd.f32 %v1217, %v1522
      %v1524 = vpop.f32.mrb[0].mxu0
      %1525 = vmatprep.mubr.bf16.mxu0 0
      %1526 = vmatmul.mubr.bf16.gmra.mrb[0].mxu0 %v1443
      %v1527 = vpop.f32.mrb[0].mxu0
      %v1528 = vadd.f32 %v1222, %v1527
      %v1529 = vpop.f32.mrb[0].mxu0
      %v1530 = vpop.f32.mrb[0].mxu0
      %v1531 = vadd.f32 %v1225, %v1530
      %v1532 = vpop.f32.mrb[0].mxu0
      %1533 = vmatprep.mubr.bf16.mxu0 0
      %1534 = vmatmul.mubr.bf16.gmra.mrb[0].mxu0 %v1446
      %v1535 = vpop.f32.mrb[0].mxu0
      %v1536 = vadd.f32 %v1230, %v1535
      %v1537 = vpop.f32.mrb[0].mxu0
      %v1538 = vpop.f32.mrb[0].mxu0
      %v1539 = vadd.f32 %v1233, %v1538
      %v1540 = vpop.f32.mrb[0].mxu0
      %1541 = vmatprep.mubr.bf16.mxu0 0
      %1542 = vmatmul.mubr.bf16.gmra.mrb[0].mxu0 %v1449
      %v1543 = vpop.f32.mrb[0].mxu0
      %v1544 = vadd.f32 %v1238, %v1543
      %v1545 = vpop.f32.mrb[0].mxu0
      %v1546 = vpop.f32.mrb[0].mxu0
      %v1547 = vadd.f32 %v1241, %v1546
      %v1548 = vpop.f32.mrb[0].mxu0
      %1549 = vmatprep.mubr.bf16.mxu0 0
      %1550 = vmatmul.mubr.bf16.gmra.mrb[0].mxu0 %v1452
      %v1551 = vpop.f32.mrb[0].mxu0
      %v1552 = vadd.f32 %v1246, %v1551
      %v1553 = vpop.f32.mrb[0].mxu0
      %v1554 = vpop.f32.mrb[0].mxu0
      %v1555 = vadd.f32 %v1249, %v1554
      %v1556 = vpop.f32.mrb[0].mxu0
      %1557 = vmatprep.mubr.bf16.mxu0 0
      %1558 = vmatmul.mubr.bf16.gmra.mrb[0].mxu0 %v1455
      %v1559 = vpop.f32.mrb[0].mxu0
      %v1560 = vadd.f32 %v1254, %v1559
      %v1561 = vpop.f32.mrb[0].mxu0
      %v1562 = vpop.f32.mrb[0].mxu0
      %v1563 = vadd.f32 %v1257, %v1562
      %v1564 = vpop.f32.mrb[0].mxu0
      %1565 = vmatprep.mubr.bf16.mxu0 0
      %1566 = vmatmul.mubr.bf16.gmra.mrb[0].mxu0 %v1458
      %v1567 = vpop.f32.mrb[0].mxu0
      %v1568 = vadd.f32 %v1262, %v1567
      %v1569 = vpop.f32.mrb[0].mxu0
      %v1570 = vpop.f32.mrb[0].mxu0
      %v1571 = vadd.f32 %v1265, %v1570
      %v1572 = vpop.f32.mrb[0].mxu0
      %1573 = vmatprep.mubr.bf16.mxu0 0
      %1574 = vmatmul.mubr.bf16.gmra.mrb[0].mxu0 %v1461
      %v1575 = vpop.f32.mrb[0].mxu0
      %v1576 = vadd.f32 %v1270, %v1575
      %v1577 = vpop.f32.mrb[0].mxu0
      %v1578 = vpop.f32.mrb[0].mxu0
      %v1579 = vadd.f32 %v1273, %v1578
      %v1580 = vpop.f32.mrb[0].mxu0
      %1581 = vmatprep.mubr.bf16.mxu0 0
      %1582 = vmatmul.mubr.bf16.gmra.mrb[0].mxu0 %v1464
      %v1583 = vpop.f32.mrb[0].mxu0
      %v1584 = vadd.f32 %v1278, %v1583
      %v1585 = vpop.f32.mrb[0].mxu0
      %v1586 = vpop.f32.mrb[0].mxu0
      %v1587 = vadd.f32 %v1281, %v1586
      %v1588 = vpop.f32.mrb[0].mxu0
      %1589 = vmatprep.mubr.bf16.mxu0 0
      %1590 = vmatmul.mubr.bf16.gmra.mrb[0].mxu0 %v1467
      %v1591 = vpop.f32.mrb[0].mxu0
      %v1592 = vadd.f32 %v1286, %v1591
      %v1593 = vpop.f32.mrb[0].mxu0
      %v1594 = vpop.f32.mrb[0].mxu0
      %v1595 = vadd.f32 %v1289, %v1594
      %v1596 = vpop.f32.mrb[0].mxu0
      %1597 = vdwg.mxu0
      %v1598 = vld [vmem:[#allocation2 + $0x68] sm:$0x1f]
      %s1599 = scalar_lea.vmem %s6, 64
      %v1600 = vld [vmem:[%s1599] sm:$0xf]
      %v1601 = vld [vmem:[%s1599 + $0x4] sm:$0xf]
      %v1602 = vld [vmem:[%s1599 + $0x8] sm:$0xf]
      %v1603 = vld [vmem:[%s1599 + $0xc] sm:$0xf]
      %v1604 = vld [vmem:[%s1599 + $0x10] sm:$0xf]
      %v1605 = vld [vmem:[%s1599 + $0x14] sm:$0xf]
      %v1606 = vld [vmem:[%s1599 + $0x18] sm:$0xf]
      %v1607 = vld [vmem:[%s1599 + $0x1c] sm:$0xf]
      %vm1608 = vsmask.f32 3328
      %v1610 = vshrl.u32 %v1053, 16
      %v1612 = vrot.slane %v1610, 4
      %v1613 = vshll.u32 %v1053, 16
      %v1615 = vrot.slane %v1613, 5
      %v1616 = vor.u32 %v1612, %v1615
      %v1617 = vrot.slane %v1302, 4
      %v1618 = vrot.slane %v1305, 5
      %v1619 = vor.u32 %v1617, %v1618
      %v1620 = vsel %vm1608, %v1616, %v1619
      %v1621 = vrot.slane %v1311, 4
      %v1622 = vrot.slane %v1314, 5
      %v1623 = vor.u32 %v1621, %v1622
      %v1624 = vsel %vm1608, %v1619, %v1623
      %v1625 = vrot.slane %v1320, 4
      %v1626 = vrot.slane %v1323, 5
      %v1627 = vor.u32 %v1625, %v1626
      %v1628 = vsel %vm1608, %v1623, %v1627
      %v1629 = vrot.slane %v1329, 4
      %v1630 = vrot.slane %v1332, 5
      %v1631 = vor.u32 %v1629, %v1630
      %v1632 = vsel %vm1608, %v1627, %v1631
      %v1633 = vrot.slane %v1338, 4
      %v1634 = vrot.slane %v1341, 5
      %v1635 = vor.u32 %v1633, %v1634
      %v1636 = vsel %vm1608, %v1631, %v1635
      %v1637 = vrot.slane %v1347, 4
      %v1638 = vrot.slane %v1350, 5
      %v1639 = vor.u32 %v1637, %v1638
      %v1640 = vsel %vm1608, %v1635, %v1639
      %v1641 = vrot.slane %v1356, 4
      %v1642 = vrot.slane %v1359, 5
      %v1643 = vor.u32 %v1641, %v1642
      %v1644 = vsel %vm1608, %v1639, %v1643
      %v1645 = vrot.slane %v1365, 4
      %v1646 = vrot.slane %v1368, 5
      %v1647 = vor.u32 %v1645, %v1646
      %v1648 = vsel %vm1608, %v1643, %v1647
      %v1649 = vrot.slane %v1374, 4
      %v1650 = vrot.slane %v1377, 5
      %v1651 = vor.u32 %v1649, %v1650
      %v1652 = vsel %vm1608, %v1647, %v1651
      %v1653 = vrot.slane %v1383, 4
      %v1654 = vrot.slane %v1386, 5
      %v1655 = vor.u32 %v1653, %v1654
      %v1656 = vsel %vm1608, %v1651, %v1655
      %v1657 = vrot.slane %v1392, 4
      %v1658 = vrot.slane %v1395, 5
      %v1659 = vor.u32 %v1657, %v1658
      %v1660 = vsel %vm1608, %v1655, %v1659
      %v1662 = vshrl.u32 %v1598, 16
      %v1664 = vrot.slane %v1662, 4
      %v1665 = vshll.u32 %v1598, 16
      %v1667 = vrot.slane %v1665, 5
      %v1668 = vor.u32 %v1664, %v1667
      %v1669 = vsel %vm1608, %v1659, %v1668
      %v1678 = vunpack.c.l.b16 %v1600
      %v1679 = vunpack.c.l.b16 %v1601
      %v1680 = vunpack.c.l.b16 %v1602
      %v1681 = vunpack.c.l.b16 %v1603
      %v1682 = vunpack.c.l.b16 %v1604
      %v1683 = vunpack.c.l.b16 %v1605
      %v1684 = vunpack.c.l.b16 %v1606
      %v1685 = vunpack.c.l.b16 %v1607
      %v1686 = vpack.c.b16 %v1679, %v1678
      %v1687 = vpack.c.b16 %v1681, %v1680
      %v1688 = vpack.c.b16 %v1683, %v1682
      %v1689 = vpack.c.b16 %v1685, %v1684
      %v1695 = vsel %vm1126, %v1620, 0
      %v1698 = vsel %vm1126, %v1624, 0
      %v1701 = vsel %vm1126, %v1628, 0
      %v1704 = vsel %vm1126, %v1632, 0
      %v1707 = vsel %vm1126, %v1636, 0
      %v1710 = vsel %vm1126, %v1640, 0
      %v1713 = vsel %vm1126, %v1644, 0
      %v1716 = vsel %vm1126, %v1648, 0
      %v1719 = vsel %vm1126, %v1652, 0
      %v1722 = vsel %vm1126, %v1656, 0
      %v1725 = vsel %vm1126, %v1660, 0
      %v1728 = vsel %vm1126, %v1669, 0
      %1730 = vmatprep.subr.bf16.mxu0 0
      %1731 = vmatpush1.bf16.msra.mxu0 %v1686
      %1732 = vmatprep.subr.bf16.mxu0 0
      %1733 = vmatpush1.bf16.msra.mxu0 %v1687
      %1734 = vmatprep.subr.bf16.mxu0 0
      %1735 = vmatpush1.bf16.msra.mxu0 %v1688
      %1736 = vmatprep.subr.bf16.mxu0 0
      %1737 = vmatpush1.bf16.msra.mxu0 %v1689
      %1738 = vmatprep.subr.bf16.mxu0 0
      %1739 = vmatpush1.bf16.msra.mxu0 0
      %1740 = vmatprep.subr.bf16.mxu0 0
      %1741 = vmatpush1.bf16.msra.mxu0 0
      %1742 = vmatprep.subr.bf16.mxu0 0
      %1743 = vmatpush1.bf16.msra.mxu0 0
      %1744 = vmatprep.subr.bf16.mxu0 0
      %1745 = vmatpush1.bf16.msra.mxu0 0
      %1746 = vmatprep.subr.bf16.mxu0 0
      %1747 = vmatpush1.bf16.msra.mxu0 0
      %1748 = vmatprep.subr.bf16.mxu0 0
      %1749 = vmatpush1.bf16.msra.mxu0 0
      %1750 = vmatprep.subr.bf16.mxu0 0
      %1751 = vmatpush1.bf16.msra.mxu0 0
      %1752 = vmatprep.subr.bf16.mxu0 0
      %1753 = vmatpush1.bf16.msra.mxu0 0
      %1754 = vmatprep.subr.bf16.mxu0 0
      %1755 = vmatpush1.bf16.msra.mxu0 0
      %1756 = vmatprep.subr.bf16.mxu0 0
      %1757 = vmatpush1.bf16.msra.mxu0 0
      %1758 = vmatprep.subr.bf16.mxu0 0
      %1759 = vmatpush1.bf16.msra.mxu0 0
      %1760 = vmatprep.subr.bf16.mxu0 0
      %1761 = vmatpush1.bf16.msra.mxu0 0
      %1762 = vmatprep.mubr.bf16.mxu0 0
      %1763 = vmatmul.mubr.bf16.gmra.mrb[0].mxu0 %v1695
      %v1764 = vpop.f32.mrb[0].mxu0
      %v1765 = vadd.f32 0.0, %v1764
      %v1766 = vpop.f32.mrb[0].mxu0
      %v1767 = vpop.f32.mrb[0].mxu0
      %v1768 = vadd.f32 0.0, %v1767
      %v1769 = vpop.f32.mrb[0].mxu0
      %1770 = vmatprep.mubr.bf16.mxu0 0
      %1771 = vmatmul.mubr.bf16.gmra.mrb[0].mxu0 %v1698
      %v1772 = vpop.f32.mrb[0].mxu0
      %v1773 = vadd.f32 0.0, %v1772
      %v1774 = vpop.f32.mrb[0].mxu0
      %v1775 = vpop.f32.mrb[0].mxu0
      %v1776 = vadd.f32 0.0, %v1775
      %v1777 = vpop.f32.mrb[0].mxu0
      %1778 = vmatprep.mubr.bf16.mxu0 0
      %1779 = vmatmul.mubr.bf16.gmra.mrb[0].mxu0 %v1701
      %v1780 = vpop.f32.mrb[0].mxu0
      %v1781 = vadd.f32 0.0, %v1780
      %v1782 = vpop.f32.mrb[0].mxu0
      %v1783 = vpop.f32.mrb[0].mxu0
      %v1784 = vadd.f32 0.0, %v1783
      %v1785 = vpop.f32.mrb[0].mxu0
      %1786 = vmatprep.mubr.bf16.mxu0 0
      %1787 = vmatmul.mubr.bf16.gmra.mrb[0].mxu0 %v1704
      %v1788 = vpop.f32.mrb[0].mxu0
      %v1789 = vadd.f32 0.0, %v1788
      %v1790 = vpop.f32.mrb[0].mxu0
      %v1791 = vpop.f32.mrb[0].mxu0
      %v1792 = vadd.f32 0.0, %v1791
      %v1793 = vpop.f32.mrb[0].mxu0
      %1794 = vmatprep.mubr.bf16.mxu0 0
      %1795 = vmatmul.mubr.bf16.gmra.mrb[0].mxu0 %v1707
      %v1796 = vpop.f32.mrb[0].mxu0
      %v1797 = vadd.f32 0.0, %v1796
      %v1798 = vpop.f32.mrb[0].mxu0
      %v1799 = vpop.f32.mrb[0].mxu0
      %v1800 = vadd.f32 0.0, %v1799
      %v1801 = vpop.f32.mrb[0].mxu0
      %1802 = vmatprep.mubr.bf16.mxu0 0
      %1803 = vmatmul.mubr.bf16.gmra.mrb[0].mxu0 %v1710
      %v1804 = vpop.f32.mrb[0].mxu0
      %v1805 = vadd.f32 0.0, %v1804
      %v1806 = vpop.f32.mrb[0].mxu0
      %v1807 = vpop.f32.mrb[0].mxu0
      %v1808 = vadd.f32 0.0, %v1807
      %v1809 = vpop.f32.mrb[0].mxu0
      %1810 = vmatprep.mubr.bf16.mxu0 0
      %1811 = vmatmul.mubr.bf16.gmra.mrb[0].mxu0 %v1713
      %v1812 = vpop.f32.mrb[0].mxu0
      %v1813 = vadd.f32 0.0, %v1812
      %v1814 = vpop.f32.mrb[0].mxu0
      %v1815 = vpop.f32.mrb[0].mxu0
      %v1816 = vadd.f32 0.0, %v1815
      %v1817 = vpop.f32.mrb[0].mxu0
      %1818 = vmatprep.mubr.bf16.mxu0 0
      %1819 = vmatmul.mubr.bf16.gmra.mrb[0].mxu0 %v1716
      %v1820 = vpop.f32.mrb[0].mxu0
      %v1821 = vadd.f32 0.0, %v1820
      %v1822 = vpop.f32.mrb[0].mxu0
      %v1823 = vpop.f32.mrb[0].mxu0
      %v1824 = vadd.f32 0.0, %v1823
      %v1825 = vpop.f32.mrb[0].mxu0
      %1826 = vmatprep.mubr.bf16.mxu0 0
      %1827 = vmatmul.mubr.bf16.gmra.mrb[0].mxu0 %v1719
      %v1828 = vpop.f32.mrb[0].mxu0
      %v1829 = vadd.f32 0.0, %v1828
      %v1830 = vpop.f32.mrb[0].mxu0
      %v1831 = vpop.f32.mrb[0].mxu0
      %v1832 = vadd.f32 0.0, %v1831
      %v1833 = vpop.f32.mrb[0].mxu0
      %1834 = vmatprep.mubr.bf16.mxu0 0
      %1835 = vmatmul.mubr.bf16.gmra.mrb[0].mxu0 %v1722
      %v1836 = vpop.f32.mrb[0].mxu0
      %v1837 = vadd.f32 0.0, %v1836
      %v1838 = vpop.f32.mrb[0].mxu0
      %v1839 = vpop.f32.mrb[0].mxu0
      %v1840 = vadd.f32 0.0, %v1839
      %v1841 = vpop.f32.mrb[0].mxu0
      %1842 = vmatprep.mubr.bf16.mxu0 0
      %1843 = vmatmul.mubr.bf16.gmra.mrb[0].mxu0 %v1725
      %v1844 = vpop.f32.mrb[0].mxu0
      %v1845 = vadd.f32 0.0, %v1844
      %v1846 = vpop.f32.mrb[0].mxu0
      %v1847 = vpop.f32.mrb[0].mxu0
      %v1848 = vadd.f32 0.0, %v1847
      %v1849 = vpop.f32.mrb[0].mxu0
      %1850 = vmatprep.mubr.bf16.mxu0 0
      %1851 = vmatmul.mubr.bf16.gmra.mrb[0].mxu0 %v1728
      %v1852 = vpop.f32.mrb[0].mxu0
      %v1853 = vadd.f32 0.0, %v1852
      %v1854 = vpop.f32.mrb[0].mxu0
      %v1855 = vpop.f32.mrb[0].mxu0
      %v1856 = vadd.f32 0.0, %v1855
      %v1857 = vpop.f32.mrb[0].mxu0
      %1858 = vdwg.mxu0
      %v1859 = vadd.f32 %v1504, %v1765
      %v1860 = vadd.f32 %v1507, %v1768
      %v1861 = vadd.f32 %v1512, %v1773
      %v1862 = vadd.f32 %v1515, %v1776
      %v1863 = vadd.f32 %v1520, %v1781
      %v1864 = vadd.f32 %v1523, %v1784
      %v1865 = vadd.f32 %v1528, %v1789
      %v1866 = vadd.f32 %v1531, %v1792
      %v1867 = vadd.f32 %v1536, %v1797
      %v1868 = vadd.f32 %v1539, %v1800
      %v1869 = vadd.f32 %v1544, %v1805
      %v1870 = vadd.f32 %v1547, %v1808
      %v1871 = vadd.f32 %v1552, %v1813
      %v1872 = vadd.f32 %v1555, %v1816
      %v1873 = vadd.f32 %v1560, %v1821
      %v1874 = vadd.f32 %v1563, %v1824
      %v1875 = vadd.f32 %v1568, %v1829
      %v1876 = vadd.f32 %v1571, %v1832
      %v1877 = vadd.f32 %v1576, %v1837
      %v1878 = vadd.f32 %v1579, %v1840
      %v1879 = vadd.f32 %v1584, %v1845
      %v1880 = vadd.f32 %v1587, %v1848
      %v1881 = vadd.f32 %v1592, %v1853
      %v1882 = vadd.f32 %v1595, %v1856
      %v1883 = vld [vmem:[#allocation2 + $0x10] sm:$0x80]
      %v1884 = vld [vmem:[#allocation2 + $0x18] sm:$0xff]
      %v1885 = vld [vmem:[#allocation2 + $0x20] sm:$0xff]
      %v1886 = vld [vmem:[#allocation2 + $0x28] sm:$0xff]
      %v1887 = vld [vmem:[#allocation2 + $0x30] sm:$0xff]
      %v1888 = vld [vmem:[#allocation2 + $0x38] sm:$0xff]
      %v1889 = vld [vmem:[#allocation2 + $0x40] sm:$0xff]
      %v1890 = vld [vmem:[#allocation2 + $0x48] sm:$0xff]
      %v1891 = vld [vmem:[#allocation2 + $0x50] sm:$0xff]
      %v1892 = vld [vmem:[#allocation2 + $0x58] sm:$0xff]
      %v1893 = vld [vmem:[#allocation2 + $0x60] sm:$0xff]
      %v1894 = vld [vmem:[#allocation2 + $0x68] sm:$0xff]
      %v1895 = vld [vmem:[#allocation2 + $0x70] sm:$0xff]
      %s1896 = scalar_lea.vmem %s6, 96
      %v1897 = vld [vmem:[%s1896] sm:$0xf]
      %v1898 = vld [vmem:[%s1896 + $0x4] sm:$0xf]
      %v1899 = vld [vmem:[%s1896 + $0x8] sm:$0xf]
      %v1900 = vld [vmem:[%s1896 + $0xc] sm:$0xf]
      %v1901 = vld [vmem:[%s1896 + $0x10] sm:$0xf]
      %v1902 = vld [vmem:[%s1896 + $0x14] sm:$0xf]
      %v1903 = vld [vmem:[%s1896 + $0x18] sm:$0xf]
      %v1904 = vld [vmem:[%s1896 + $0x1c] sm:$0xf]
      %vm1905 = vsmask.f32 256
      %v1907 = vshrl.u32 %v1883, 16
      %v1909 = vrot.slane %v1907, 7
      %v1911 = vshrl.u32 %v1884, 16
      %v1913 = vrot.slane %v1911, 7
      %v1914 = vshll.u32 %v1884, 16
      %v1916 = vor.u32 %v1913, %v1914
      %v1917 = vsel %vm1905, %v1909, %v1916
      %v1919 = vshrl.u32 %v1885, 16
      %v1921 = vrot.slane %v1919, 7
      %v1922 = vshll.u32 %v1885, 16
      %v1924 = vor.u32 %v1921, %v1922
      %v1925 = vsel %vm1905, %v1913, %v1924
      %v1927 = vshrl.u32 %v1886, 16
      %v1929 = vrot.slane %v1927, 7
      %v1930 = vshll.u32 %v1886, 16
      %v1932 = vor.u32 %v1929, %v1930
      %v1933 = vsel %vm1905, %v1921, %v1932
      %v1935 = vshrl.u32 %v1887, 16
      %v1937 = vrot.slane %v1935, 7
      %v1938 = vshll.u32 %v1887, 16
      %v1940 = vor.u32 %v1937, %v1938
      %v1941 = vsel %vm1905, %v1929, %v1940
      %v1943 = vshrl.u32 %v1888, 16
      %v1945 = vrot.slane %v1943, 7
      %v1946 = vshll.u32 %v1888, 16
      %v1948 = vor.u32 %v1945, %v1946
      %v1949 = vsel %vm1905, %v1937, %v1948
      %v1951 = vshrl.u32 %v1889, 16
      %v1953 = vrot.slane %v1951, 7
      %v1954 = vshll.u32 %v1889, 16
      %v1956 = vor.u32 %v1953, %v1954
      %v1957 = vsel %vm1905, %v1945, %v1956
      %v1959 = vshrl.u32 %v1890, 16
      %v1961 = vrot.slane %v1959, 7
      %v1962 = vshll.u32 %v1890, 16
      %v1964 = vor.u32 %v1961, %v1962
      %v1965 = vsel %vm1905, %v1953, %v1964
      %v1967 = vshrl.u32 %v1891, 16
      %v1969 = vrot.slane %v1967, 7
      %v1970 = vshll.u32 %v1891, 16
      %v1972 = vor.u32 %v1969, %v1970
      %v1973 = vsel %vm1905, %v1961, %v1972
      %v1975 = vshrl.u32 %v1892, 16
      %v1977 = vrot.slane %v1975, 7
      %v1978 = vshll.u32 %v1892, 16
      %v1980 = vor.u32 %v1977, %v1978
      %v1981 = vsel %vm1905, %v1969, %v1980
      %v1983 = vshrl.u32 %v1893, 16
      %v1985 = vrot.slane %v1983, 7
      %v1986 = vshll.u32 %v1893, 16
      %v1988 = vor.u32 %v1985, %v1986
      %v1989 = vsel %vm1905, %v1977, %v1988
      %v1991 = vshrl.u32 %v1894, 16
      %v1993 = vrot.slane %v1991, 7
      %v1994 = vshll.u32 %v1894, 16
      %v1996 = vor.u32 %v1993, %v1994
      %v1997 = vsel %vm1905, %v1985, %v1996
      %v1999 = vshrl.u32 %v1895, 16
      %v2001 = vrot.slane %v1999, 7
      %v2002 = vshll.u32 %v1895, 16
      %v2004 = vor.u32 %v2001, %v2002
      %v2005 = vsel %vm1905, %v1993, %v2004
      %v2014 = vunpack.c.l.b16 %v1897
      %v2015 = vunpack.c.l.b16 %v1898
      %v2016 = vunpack.c.l.b16 %v1899
      %v2017 = vunpack.c.l.b16 %v1900
      %v2018 = vunpack.c.l.b16 %v1901
      %v2019 = vunpack.c.l.b16 %v1902
      %v2020 = vunpack.c.l.b16 %v1903
      %v2021 = vunpack.c.l.b16 %v1904
      %v2022 = vpack.c.b16 %v2015, %v2014
      %v2023 = vpack.c.b16 %v2017, %v2016
      %v2024 = vpack.c.b16 %v2019, %v2018
      %v2025 = vpack.c.b16 %v2021, %v2020
      %v2031 = vsel %vm1126, %v1917, 0
      %v2034 = vsel %vm1126, %v1925, 0
      %v2037 = vsel %vm1126, %v1933, 0
      %v2040 = vsel %vm1126, %v1941, 0
      %v2043 = vsel %vm1126, %v1949, 0
      %v2046 = vsel %vm1126, %v1957, 0
      %v2049 = vsel %vm1126, %v1965, 0
      %v2052 = vsel %vm1126, %v1973, 0
      %v2055 = vsel %vm1126, %v1981, 0
      %v2058 = vsel %vm1126, %v1989, 0
      %v2061 = vsel %vm1126, %v1997, 0
      %v2064 = vsel %vm1126, %v2005, 0
      %2066 = vmatprep.subr.bf16.mxu0 0
      %2067 = vmatpush1.bf16.msra.mxu0 %v2022
      %2068 = vmatprep.subr.bf16.mxu0 0
      %2069 = vmatpush1.bf16.msra.mxu0 %v2023
      %2070 = vmatprep.subr.bf16.mxu0 0
      %2071 = vmatpush1.bf16.msra.mxu0 %v2024
      %2072 = vmatprep.subr.bf16.mxu0 0
      %2073 = vmatpush1.bf16.msra.mxu0 %v2025
      %2074 = vmatprep.subr.bf16.mxu0 0
      %2075 = vmatpush1.bf16.msra.mxu0 0
      %2076 = vmatprep.subr.bf16.mxu0 0
      %2077 = vmatpush1.bf16.msra.mxu0 0
      %2078 = vmatprep.subr.bf16.mxu0 0
      %2079 = vmatpush1.bf16.msra.mxu0 0
      %2080 = vmatprep.subr.bf16.mxu0 0
      %2081 = vmatpush1.bf16.msra.mxu0 0
      %2082 = vmatprep.subr.bf16.mxu0 0
      %2083 = vmatpush1.bf16.msra.mxu0 0
      %2084 = vmatprep.subr.bf16.mxu0 0
      %2085 = vmatpush1.bf16.msra.mxu0 0
      %2086 = vmatprep.subr.bf16.mxu0 0
      %2087 = vmatpush1.bf16.msra.mxu0 0
      %2088 = vmatprep.subr.bf16.mxu0 0
      %2089 = vmatpush1.bf16.msra.mxu0 0
      %2090 = vmatprep.subr.bf16.mxu0 0
      %2091 = vmatpush1.bf16.msra.mxu0 0
      %2092 = vmatprep.subr.bf16.mxu0 0
      %2093 = vmatpush1.bf16.msra.mxu0 0
      %2094 = vmatprep.subr.bf16.mxu0 0
      %2095 = vmatpush1.bf16.msra.mxu0 0
      %2096 = vmatprep.subr.bf16.mxu0 0
      %2097 = vmatpush1.bf16.msra.mxu0 0
      %2098 = vmatprep.mubr.bf16.mxu0 0
      %2099 = vmatmul.mubr.bf16.gmra.mrb[0].mxu0 %v2031
      %v2100 = vpop.f32.mrb[0].mxu0
      %v2101 = vadd.f32 0.0, %v2100
      %v2102 = vpop.f32.mrb[0].mxu0
      %v2103 = vpop.f32.mrb[0].mxu0
      %v2104 = vadd.f32 0.0, %v2103
      %v2105 = vpop.f32.mrb[0].mxu0
      %2106 = vmatprep.mubr.bf16.mxu0 0
      %2107 = vmatmul.mubr.bf16.gmra.mrb[0].mxu0 %v2034
      %v2108 = vpop.f32.mrb[0].mxu0
      %v2109 = vadd.f32 0.0, %v2108
      %v2110 = vpop.f32.mrb[0].mxu0
      %v2111 = vpop.f32.mrb[0].mxu0
      %v2112 = vadd.f32 0.0, %v2111
      %v2113 = vpop.f32.mrb[0].mxu0
      %2114 = vmatprep.mubr.bf16.mxu0 0
      %2115 = vmatmul.mubr.bf16.gmra.mrb[0].mxu0 %v2037
      %v2116 = vpop.f32.mrb[0].mxu0
      %v2117 = vadd.f32 0.0, %v2116
      %v2118 = vpop.f32.mrb[0].mxu0
      %v2119 = vpop.f32.mrb[0].mxu0
      %v2120 = vadd.f32 0.0, %v2119
      %v2121 = vpop.f32.mrb[0].mxu0
      %2122 = vmatprep.mubr.bf16.mxu0 0
      %2123 = vmatmul.mubr.bf16.gmra.mrb[0].mxu0 %v2040
      %v2124 = vpop.f32.mrb[0].mxu0
      %v2125 = vadd.f32 0.0, %v2124
      %v2126 = vpop.f32.mrb[0].mxu0
      %v2127 = vpop.f32.mrb[0].mxu0
      %v2128 = vadd.f32 0.0, %v2127
      %v2129 = vpop.f32.mrb[0].mxu0
      %2130 = vmatprep.mubr.bf16.mxu0 0
      %2131 = vmatmul.mubr.bf16.gmra.mrb[0].mxu0 %v2043
      %v2132 = vpop.f32.mrb[0].mxu0
      %v2133 = vadd.f32 0.0, %v2132
      %v2134 = vpop.f32.mrb[0].mxu0
      %v2135 = vpop.f32.mrb[0].mxu0
      %v2136 = vadd.f32 0.0, %v2135
      %v2137 = vpop.f32.mrb[0].mxu0
      %2138 = vmatprep.mubr.bf16.mxu0 0
      %2139 = vmatmul.mubr.bf16.gmra.mrb[0].mxu0 %v2046
      %v2140 = vpop.f32.mrb[0].mxu0
      %v2141 = vadd.f32 0.0, %v2140
      %v2142 = vpop.f32.mrb[0].mxu0
      %v2143 = vpop.f32.mrb[0].mxu0
      %v2144 = vadd.f32 0.0, %v2143
      %v2145 = vpop.f32.mrb[0].mxu0
      %2146 = vmatprep.mubr.bf16.mxu0 0
      %2147 = vmatmul.mubr.bf16.gmra.mrb[0].mxu0 %v2049
      %v2148 = vpop.f32.mrb[0].mxu0
      %v2149 = vadd.f32 0.0, %v2148
      %v2150 = vpop.f32.mrb[0].mxu0
      %v2151 = vpop.f32.mrb[0].mxu0
      %v2152 = vadd.f32 0.0, %v2151
      %v2153 = vpop.f32.mrb[0].mxu0
      %2154 = vmatprep.mubr.bf16.mxu0 0
      %2155 = vmatmul.mubr.bf16.gmra.mrb[0].mxu0 %v2052
      %v2156 = vpop.f32.mrb[0].mxu0
      %v2157 = vadd.f32 0.0, %v2156
      %v2158 = vpop.f32.mrb[0].mxu0
      %v2159 = vpop.f32.mrb[0].mxu0
      %v2160 = vadd.f32 0.0, %v2159
      %v2161 = vpop.f32.mrb[0].mxu0
      %2162 = vmatprep.mubr.bf16.mxu0 0
      %2163 = vmatmul.mubr.bf16.gmra.mrb[0].mxu0 %v2055
      %v2164 = vpop.f32.mrb[0].mxu0
      %v2165 = vadd.f32 0.0, %v2164
      %v2166 = vpop.f32.mrb[0].mxu0
      %v2167 = vpop.f32.mrb[0].mxu0
      %v2168 = vadd.f32 0.0, %v2167
      %v2169 = vpop.f32.mrb[0].mxu0
      %2170 = vmatprep.mubr.bf16.mxu0 0
      %2171 = vmatmul.mubr.bf16.gmra.mrb[0].mxu0 %v2058
      %v2172 = vpop.f32.mrb[0].mxu0
      %v2173 = vadd.f32 0.0, %v2172
      %v2174 = vpop.f32.mrb[0].mxu0
      %v2175 = vpop.f32.mrb[0].mxu0
      %v2176 = vadd.f32 0.0, %v2175
      %v2177 = vpop.f32.mrb[0].mxu0
      %2178 = vmatprep.mubr.bf16.mxu0 0
      %2179 = vmatmul.mubr.bf16.gmra.mrb[0].mxu0 %v2061
      %v2180 = vpop.f32.mrb[0].mxu0
      %v2181 = vadd.f32 0.0, %v2180
      %v2182 = vpop.f32.mrb[0].mxu0
      %v2183 = vpop.f32.mrb[0].mxu0
      %v2184 = vadd.f32 0.0, %v2183
      %v2185 = vpop.f32.mrb[0].mxu0
      %2186 = vmatprep.mubr.bf16.mxu0 0
      %2187 = vmatmul.mubr.bf16.gmra.mrb[0].mxu0 %v2064
      %v2188 = vpop.f32.mrb[0].mxu0
      %v2189 = vadd.f32 0.0, %v2188
      %v2190 = vpop.f32.mrb[0].mxu0
      %v2191 = vpop.f32.mrb[0].mxu0
      %v2192 = vadd.f32 0.0, %v2191
      %v2193 = vpop.f32.mrb[0].mxu0
      %2194 = vdwg.mxu0
      %v2195 = vadd.f32 %v1859, %v2101
      %v2196 = vadd.f32 %v1860, %v2104
      %v2197 = vadd.f32 %v1861, %v2109
      %v2198 = vadd.f32 %v1862, %v2112
      %v2199 = vadd.f32 %v1863, %v2117
      %v2200 = vadd.f32 %v1864, %v2120
      %v2201 = vadd.f32 %v1865, %v2125
      %v2202 = vadd.f32 %v1866, %v2128
      %v2203 = vadd.f32 %v1867, %v2133
      %v2204 = vadd.f32 %v1868, %v2136
      %v2205 = vadd.f32 %v1869, %v2141
      %v2206 = vadd.f32 %v1870, %v2144
      %v2207 = vadd.f32 %v1871, %v2149
      %v2208 = vadd.f32 %v1872, %v2152
      %v2209 = vadd.f32 %v1873, %v2157
      %v2210 = vadd.f32 %v1874, %v2160
      %v2211 = vadd.f32 %v1875, %v2165
      %v2212 = vadd.f32 %v1876, %v2168
      %v2213 = vadd.f32 %v1877, %v2173
      %v2214 = vadd.f32 %v1878, %v2176
      %v2215 = vadd.f32 %v1879, %v2181
      %v2216 = vadd.f32 %v1880, %v2184
      %v2217 = vadd.f32 %v1881, %v2189
      %v2218 = vadd.f32 %v1882, %v2192
      %s2219 = scalar_lea.vmem %s6, 128
      %v2220 = vld [vmem:[%s2219] sm:$0xf]
      %v2221 = vld [vmem:[%s2219 + $0x4] sm:$0xf]
      %v2222 = vld [vmem:[%s2219 + $0x8] sm:$0xf]
      %v2223 = vld [vmem:[%s2219 + $0xc] sm:$0xf]
      %v2224 = vld [vmem:[%s2219 + $0x10] sm:$0xf]
      %v2225 = vld [vmem:[%s2219 + $0x14] sm:$0xf]
      %v2226 = vld [vmem:[%s2219 + $0x18] sm:$0xf]
      %v2227 = vld [vmem:[%s2219 + $0x1c] sm:$0xf]
      %v2236 = vunpack.c.l.b16 %v2220
      %v2237 = vunpack.c.l.b16 %v2221
      %v2238 = vunpack.c.l.b16 %v2222
      %v2239 = vunpack.c.l.b16 %v2223
      %v2240 = vunpack.c.l.b16 %v2224
      %v2241 = vunpack.c.l.b16 %v2225
      %v2242 = vunpack.c.l.b16 %v2226
      %v2243 = vunpack.c.l.b16 %v2227
      %v2244 = vpack.c.b16 %v2237, %v2236
      %v2245 = vpack.c.b16 %v2239, %v2238
      %v2246 = vpack.c.b16 %v2241, %v2240
      %v2247 = vpack.c.b16 %v2243, %v2242
      %v2252 = vsel %vm1126, %v1884, 0
      %v2254 = vsel %vm1126, %v1885, 0
      %v2256 = vsel %vm1126, %v1886, 0
      %v2258 = vsel %vm1126, %v1887, 0
      %v2260 = vsel %vm1126, %v1888, 0
      %v2262 = vsel %vm1126, %v1889, 0
      %v2264 = vsel %vm1126, %v1890, 0
      %v2266 = vsel %vm1126, %v1891, 0
      %v2268 = vsel %vm1126, %v1892, 0
      %v2270 = vsel %vm1126, %v1893, 0
      %v2272 = vsel %vm1126, %v1894, 0
      %v2274 = vsel %vm1126, %v1895, 0
      %2276 = vmatprep.subr.bf16.mxu0 0
      %2277 = vmatpush1.bf16.msra.mxu0 %v2244
      %2278 = vmatprep.subr.bf16.mxu0 0
      %2279 = vmatpush1.bf16.msra.mxu0 %v2245
      %2280 = vmatprep.subr.bf16.mxu0 0
      %2281 = vmatpush1.bf16.msra.mxu0 %v2246
      %2282 = vmatprep.subr.bf16.mxu0 0
      %2283 = vmatpush1.bf16.msra.mxu0 %v2247
      %2284 = vmatprep.subr.bf16.mxu0 0
      %2285 = vmatpush1.bf16.msra.mxu0 0
      %2286 = vmatprep.subr.bf16.mxu0 0
      %2287 = vmatpush1.bf16.msra.mxu0 0
      %2288 = vmatprep.subr.bf16.mxu0 0
      %2289 = vmatpush1.bf16.msra.mxu0 0
      %2290 = vmatprep.subr.bf16.mxu0 0
      %2291 = vmatpush1.bf16.msra.mxu0 0
      %2292 = vmatprep.subr.bf16.mxu0 0
      %2293 = vmatpush1.bf16.msra.mxu0 0
      %2294 = vmatprep.subr.bf16.mxu0 0
      %2295 = vmatpush1.bf16.msra.mxu0 0
      %2296 = vmatprep.subr.bf16.mxu0 0
      %2297 = vmatpush1.bf16.msra.mxu0 0
      %2298 = vmatprep.subr.bf16.mxu0 0
      %2299 = vmatpush1.bf16.msra.mxu0 0
      %2300 = vmatprep.subr.bf16.mxu0 0
      %2301 = vmatpush1.bf16.msra.mxu0 0
      %2302 = vmatprep.subr.bf16.mxu0 0
      %2303 = vmatpush1.bf16.msra.mxu0 0
      %2304 = vmatprep.subr.bf16.mxu0 0
      %2305 = vmatpush1.bf16.msra.mxu0 0
      %2306 = vmatprep.subr.bf16.mxu0 0
      %2307 = vmatpush1.bf16.msra.mxu0 0
      %2308 = vmatprep.mubr.bf16.mxu0 0
      %2309 = vmatmul.mubr.bf16.gmra.mrb[0].mxu0 %v2252
      %v2310 = vpop.f32.mrb[0].mxu0
      %v2311 = vadd.f32 0.0, %v2310
      %v2312 = vpop.f32.mrb[0].mxu0
      %v2313 = vpop.f32.mrb[0].mxu0
      %v2314 = vadd.f32 0.0, %v2313
      %v2315 = vpop.f32.mrb[0].mxu0
      %2316 = vmatprep.mubr.bf16.mxu0 0
      %2317 = vmatmul.mubr.bf16.gmra.mrb[0].mxu0 %v2254
      %v2318 = vpop.f32.mrb[0].mxu0
      %v2319 = vadd.f32 0.0, %v2318
      %v2320 = vpop.f32.mrb[0].mxu0
      %v2321 = vpop.f32.mrb[0].mxu0
      %v2322 = vadd.f32 0.0, %v2321
      %v2323 = vpop.f32.mrb[0].mxu0
      %2324 = vmatprep.mubr.bf16.mxu0 0
      %2325 = vmatmul.mubr.bf16.gmra.mrb[0].mxu0 %v2256
      %v2326 = vpop.f32.mrb[0].mxu0
      %v2327 = vadd.f32 0.0, %v2326
      %v2328 = vpop.f32.mrb[0].mxu0
      %v2329 = vpop.f32.mrb[0].mxu0
      %v2330 = vadd.f32 0.0, %v2329
      %v2331 = vpop.f32.mrb[0].mxu0
      %2332 = vmatprep.mubr.bf16.mxu0 0
      %2333 = vmatmul.mubr.bf16.gmra.mrb[0].mxu0 %v2258
      %v2334 = vpop.f32.mrb[0].mxu0
      %v2335 = vadd.f32 0.0, %v2334
      %v2336 = vpop.f32.mrb[0].mxu0
      %v2337 = vpop.f32.mrb[0].mxu0
      %v2338 = vadd.f32 0.0, %v2337
      %v2339 = vpop.f32.mrb[0].mxu0
      %2340 = vmatprep.mubr.bf16.mxu0 0
      %2341 = vmatmul.mubr.bf16.gmra.mrb[0].mxu0 %v2260
      %v2342 = vpop.f32.mrb[0].mxu0
      %v2343 = vadd.f32 0.0, %v2342
      %v2344 = vpop.f32.mrb[0].mxu0
      %v2345 = vpop.f32.mrb[0].mxu0
      %v2346 = vadd.f32 0.0, %v2345
      %v2347 = vpop.f32.mrb[0].mxu0
      %2348 = vmatprep.mubr.bf16.mxu0 0
      %2349 = vmatmul.mubr.bf16.gmra.mrb[0].mxu0 %v2262
      %v2350 = vpop.f32.mrb[0].mxu0
      %v2351 = vadd.f32 0.0, %v2350
      %v2352 = vpop.f32.mrb[0].mxu0
      %v2353 = vpop.f32.mrb[0].mxu0
      %v2354 = vadd.f32 0.0, %v2353
      %v2355 = vpop.f32.mrb[0].mxu0
      %2356 = vmatprep.mubr.bf16.mxu0 0
      %2357 = vmatmul.mubr.bf16.gmra.mrb[0].mxu0 %v2264
      %v2358 = vpop.f32.mrb[0].mxu0
      %v2359 = vadd.f32 0.0, %v2358
      %v2360 = vpop.f32.mrb[0].mxu0
      %v2361 = vpop.f32.mrb[0].mxu0
      %v2362 = vadd.f32 0.0, %v2361
      %v2363 = vpop.f32.mrb[0].mxu0
      %2364 = vmatprep.mubr.bf16.mxu0 0
      %2365 = vmatmul.mubr.bf16.gmra.mrb[0].mxu0 %v2266
      %v2366 = vpop.f32.mrb[0].mxu0
      %v2367 = vadd.f32 0.0, %v2366
      %v2368 = vpop.f32.mrb[0].mxu0
      %v2369 = vpop.f32.mrb[0].mxu0
      %v2370 = vadd.f32 0.0, %v2369
      %v2371 = vpop.f32.mrb[0].mxu0
      %2372 = vmatprep.mubr.bf16.mxu0 0
      %2373 = vmatmul.mubr.bf16.gmra.mrb[0].mxu0 %v2268
      %v2374 = vpop.f32.mrb[0].mxu0
      %v2375 = vadd.f32 0.0, %v2374
      %v2376 = vpop.f32.mrb[0].mxu0
      %v2377 = vpop.f32.mrb[0].mxu0
      %v2378 = vadd.f32 0.0, %v2377
      %v2379 = vpop.f32.mrb[0].mxu0
      %2380 = vmatprep.mubr.bf16.mxu0 0
      %2381 = vmatmul.mubr.bf16.gmra.mrb[0].mxu0 %v2270
      %v2382 = vpop.f32.mrb[0].mxu0
      %v2383 = vadd.f32 0.0, %v2382
      %v2384 = vpop.f32.mrb[0].mxu0
      %v2385 = vpop.f32.mrb[0].mxu0
      %v2386 = vadd.f32 0.0, %v2385
      %v2387 = vpop.f32.mrb[0].mxu0
      %2388 = vmatprep.mubr.bf16.mxu0 0
      %2389 = vmatmul.mubr.bf16.gmra.mrb[0].mxu0 %v2272
      %v2390 = vpop.f32.mrb[0].mxu0
      %v2391 = vadd.f32 0.0, %v2390
      %v2392 = vpop.f32.mrb[0].mxu0
      %v2393 = vpop.f32.mrb[0].mxu0
      %v2394 = vadd.f32 0.0, %v2393
      %v2395 = vpop.f32.mrb[0].mxu0
      %2396 = vmatprep.mubr.bf16.mxu0 0
      %2397 = vmatmul.mubr.bf16.gmra.mrb[0].mxu0 %v2274
      %v2398 = vpop.f32.mrb[0].mxu0
      %v2399 = vadd.f32 0.0, %v2398
      %v2400 = vpop.f32.mrb[0].mxu0
      %v2401 = vpop.f32.mrb[0].mxu0
      %v2402 = vadd.f32 0.0, %v2401
      %v2403 = vpop.f32.mrb[0].mxu0
      %2404 = vdwg.mxu0
      %v2405 = vadd.f32 %v2195, %v2311
      %v2406 = vadd.f32 %v2196, %v2314
      %v2407 = vadd.f32 %v2197, %v2319
      %v2408 = vadd.f32 %v2198, %v2322
      %v2409 = vadd.f32 %v2199, %v2327
      %v2410 = vadd.f32 %v2200, %v2330
      %v2411 = vadd.f32 %v2201, %v2335
      %v2412 = vadd.f32 %v2202, %v2338
      %v2413 = vadd.f32 %v2203, %v2343
      %v2414 = vadd.f32 %v2204, %v2346
      %v2415 = vadd.f32 %v2205, %v2351
      %v2416 = vadd.f32 %v2206, %v2354
      %v2417 = vadd.f32 %v2207, %v2359
      %v2418 = vadd.f32 %v2208, %v2362
      %v2419 = vadd.f32 %v2209, %v2367
      %v2420 = vadd.f32 %v2210, %v2370
      %v2421 = vadd.f32 %v2211, %v2375
      %v2422 = vadd.f32 %v2212, %v2378
      %v2423 = vadd.f32 %v2213, %v2383
      %v2424 = vadd.f32 %v2214, %v2386
      %v2425 = vadd.f32 %v2215, %v2391
      %v2426 = vadd.f32 %v2216, %v2394
      %v2427 = vadd.f32 %v2217, %v2399
      %v2428 = vadd.f32 %v2218, %v2402
      %v2429 = vld [vmem:[#allocation2 + $0x18] sm:$0xff]
      %v2430 = vld [vmem:[#allocation2 + $0x20] sm:$0xff]
      %v2431 = vld [vmem:[#allocation2 + $0x28] sm:$0xff]
      %v2432 = vld [vmem:[#allocation2 + $0x30] sm:$0xff]
      %v2433 = vld [vmem:[#allocation2 + $0x38] sm:$0xff]
      %v2434 = vld [vmem:[#allocation2 + $0x40] sm:$0xff]
      %v2435 = vld [vmem:[#allocation2 + $0x48] sm:$0xff]
      %v2436 = vld [vmem:[#allocation2 + $0x50] sm:$0xff]
      %v2437 = vld [vmem:[#allocation2 + $0x58] sm:$0xff]
      %v2438 = vld [vmem:[#allocation2 + $0x60] sm:$0xff]
      %v2439 = vld [vmem:[#allocation2 + $0x68] sm:$0xff]
      %v2440 = vld [vmem:[#allocation2 + $0x70] sm:$0xff]
      %v2441 = vld [vmem:[#allocation2 + $0x78] sm:$0x1]
      %s2442 = scalar_lea.vmem %s6, 160
      %v2443 = vld [vmem:[%s2442] sm:$0xf]
      %v2444 = vld [vmem:[%s2442 + $0x4] sm:$0xf]
      %v2445 = vld [vmem:[%s2442 + $0x8] sm:$0xf]
      %v2446 = vld [vmem:[%s2442 + $0xc] sm:$0xf]
      %v2447 = vld [vmem:[%s2442 + $0x10] sm:$0xf]
      %v2448 = vld [vmem:[%s2442 + $0x14] sm:$0xf]
      %v2449 = vld [vmem:[%s2442 + $0x18] sm:$0xf]
      %v2450 = vld [vmem:[%s2442 + $0x1c] sm:$0xf]
      %vm2451 = vsmask.f32 7424
      %v2453 = vshrl.u32 %v2429, 16
      %v2455 = vshll.u32 %v2429, 16
      %v2457 = vrot.slane %v2455, 1
      %v2458 = vor.u32 %v2453, %v2457
      %v2460 = vshll.u32 %v2430, 16
      %v2462 = vrot.slane %v2460, 1
      %v2463 = vsel %vm2451, %v2458, %v2462
      %v2464 = vshrl.u32 %v2430, 16
      %v2466 = vor.u32 %v2464, %v2462
      %v2468 = vshll.u32 %v2431, 16
      %v2470 = vrot.slane %v2468, 1
      %v2471 = vsel %vm2451, %v2466, %v2470
      %v2472 = vshrl.u32 %v2431, 16
      %v2474 = vor.u32 %v2472, %v2470
      %v2476 = vshll.u32 %v2432, 16
      %v2478 = vrot.slane %v2476, 1
      %v2479 = vsel %vm2451, %v2474, %v2478
      %v2480 = vshrl.u32 %v2432, 16
      %v2482 = vor.u32 %v2480, %v2478
      %v2484 = vshll.u32 %v2433, 16
      %v2486 = vrot.slane %v2484, 1
      %v2487 = vsel %vm2451, %v2482, %v2486
      %v2488 = vshrl.u32 %v2433, 16
      %v2490 = vor.u32 %v2488, %v2486
      %v2492 = vshll.u32 %v2434, 16
      %v2494 = vrot.slane %v2492, 1
      %v2495 = vsel %vm2451, %v2490, %v2494
      %v2496 = vshrl.u32 %v2434, 16
      %v2498 = vor.u32 %v2496, %v2494
      %v2500 = vshll.u32 %v2435, 16
      %v2502 = vrot.slane %v2500, 1
      %v2503 = vsel %vm2451, %v2498, %v2502
      %v2504 = vshrl.u32 %v2435, 16
      %v2506 = vor.u32 %v2504, %v2502
      %v2508 = vshll.u32 %v2436, 16
      %v2510 = vrot.slane %v2508, 1
      %v2511 = vsel %vm2451, %v2506, %v2510
      %v2512 = vshrl.u32 %v2436, 16
      %v2514 = vor.u32 %v2512, %v2510
      %v2516 = vshll.u32 %v2437, 16
      %v2518 = vrot.slane %v2516, 1
      %v2519 = vsel %vm2451, %v2514, %v2518
      %v2520 = vshrl.u32 %v2437, 16
      %v2522 = vor.u32 %v2520, %v2518
      %v2524 = vshll.u32 %v2438, 16
      %v2526 = vrot.slane %v2524, 1
      %v2527 = vsel %vm2451, %v2522, %v2526
      %v2528 = vshrl.u32 %v2438, 16
      %v2530 = vor.u32 %v2528, %v2526
      %v2532 = vshll.u32 %v2439, 16
      %v2534 = vrot.slane %v2532, 1
      %v2535 = vsel %vm2451, %v2530, %v2534
      %v2536 = vshrl.u32 %v2439, 16
      %v2538 = vor.u32 %v2536, %v2534
      %v2540 = vshll.u32 %v2440, 16
      %v2542 = vrot.slane %v2540, 1
      %v2543 = vsel %vm2451, %v2538, %v2542
      %v2544 = vshrl.u32 %v2440, 16
      %v2546 = vor.u32 %v2544, %v2542
      %v2548 = vshll.u32 %v2441, 16
      %v2550 = vrot.slane %v2548, 1
      %v2551 = vsel %vm2451, %v2546, %v2550
      %v2560 = vunpack.c.l.b16 %v2443
      %v2561 = vunpack.c.l.b16 %v2444
      %v2562 = vunpack.c.l.b16 %v2445
      %v2563 = vunpack.c.l.b16 %v2446
      %v2564 = vunpack.c.l.b16 %v2447
      %v2565 = vunpack.c.l.b16 %v2448
      %v2566 = vunpack.c.l.b16 %v2449
      %v2567 = vunpack.c.l.b16 %v2450
      %v2568 = vpack.c.b16 %v2561, %v2560
      %v2569 = vpack.c.b16 %v2563, %v2562
      %v2570 = vpack.c.b16 %v2565, %v2564
      %v2571 = vpack.c.b16 %v2567, %v2566
      %v2577 = vsel %vm1126, %v2463, 0
      %v2580 = vsel %vm1126, %v2471, 0
      %v2583 = vsel %vm1126, %v2479, 0
      %v2586 = vsel %vm1126, %v2487, 0
      %v2589 = vsel %vm1126, %v2495, 0
      %v2592 = vsel %vm1126, %v2503, 0
      %v2595 = vsel %vm1126, %v2511, 0
      %v2598 = vsel %vm1126, %v2519, 0
      %v2601 = vsel %vm1126, %v2527, 0
      %v2604 = vsel %vm1126, %v2535, 0
      %v2607 = vsel %vm1126, %v2543, 0
      %v2610 = vsel %vm1126, %v2551, 0
      %2612 = vmatprep.subr.bf16.mxu0 0
      %2613 = vmatpush1.bf16.msra.mxu0 %v2568
      %2614 = vmatprep.subr.bf16.mxu0 0
      %2615 = vmatpush1.bf16.msra.mxu0 %v2569
      %2616 = vmatprep.subr.bf16.mxu0 0
      %2617 = vmatpush1.bf16.msra.mxu0 %v2570
      %2618 = vmatprep.subr.bf16.mxu0 0
      %2619 = vmatpush1.bf16.msra.mxu0 %v2571
      %2620 = vmatprep.subr.bf16.mxu0 0
      %2621 = vmatpush1.bf16.msra.mxu0 0
      %2622 = vmatprep.subr.bf16.mxu0 0
      %2623 = vmatpush1.bf16.msra.mxu0 0
      %2624 = vmatprep.subr.bf16.mxu0 0
      %2625 = vmatpush1.bf16.msra.mxu0 0
      %2626 = vmatprep.subr.bf16.mxu0 0
      %2627 = vmatpush1.bf16.msra.mxu0 0
      %2628 = vmatprep.subr.bf16.mxu0 0
      %2629 = vmatpush1.bf16.msra.mxu0 0
      %2630 = vmatprep.subr.bf16.mxu0 0
      %2631 = vmatpush1.bf16.msra.mxu0 0
      %2632 = vmatprep.subr.bf16.mxu0 0
      %2633 = vmatpush1.bf16.msra.mxu0 0
      %2634 = vmatprep.subr.bf16.mxu0 0
      %2635 = vmatpush1.bf16.msra.mxu0 0
      %2636 = vmatprep.subr.bf16.mxu0 0
      %2637 = vmatpush1.bf16.msra.mxu0 0
      %2638 = vmatprep.subr.bf16.mxu0 0
      %2639 = vmatpush1.bf16.msra.mxu0 0
      %2640 = vmatprep.subr.bf16.mxu0 0
      %2641 = vmatpush1.bf16.msra.mxu0 0
      %2642 = vmatprep.subr.bf16.mxu0 0
      %2643 = vmatpush1.bf16.msra.mxu0 0
      %2644 = vmatprep.mubr.bf16.mxu0 0
      %2645 = vmatmul.mubr.bf16.gmra.mrb[0].mxu0 %v2577
      %v2646 = vpop.f32.mrb[0].mxu0
      %v2647 = vadd.f32 0.0, %v2646
      %v2648 = vpop.f32.mrb[0].mxu0
      %v2649 = vpop.f32.mrb[0].mxu0
      %v2650 = vadd.f32 0.0, %v2649
      %v2651 = vpop.f32.mrb[0].mxu0
      %2652 = vmatprep.mubr.bf16.mxu0 0
      %2653 = vmatmul.mubr.bf16.gmra.mrb[0].mxu0 %v2580
      %v2654 = vpop.f32.mrb[0].mxu0
      %v2655 = vadd.f32 0.0, %v2654
      %v2656 = vpop.f32.mrb[0].mxu0
      %v2657 = vpop.f32.mrb[0].mxu0
      %v2658 = vadd.f32 0.0, %v2657
      %v2659 = vpop.f32.mrb[0].mxu0
      %2660 = vmatprep.mubr.bf16.mxu0 0
      %2661 = vmatmul.mubr.bf16.gmra.mrb[0].mxu0 %v2583
      %v2662 = vpop.f32.mrb[0].mxu0
      %v2663 = vadd.f32 0.0, %v2662
      %v2664 = vpop.f32.mrb[0].mxu0
      %v2665 = vpop.f32.mrb[0].mxu0
      %v2666 = vadd.f32 0.0, %v2665
      %v2667 = vpop.f32.mrb[0].mxu0
      %2668 = vmatprep.mubr.bf16.mxu0 0
      %2669 = vmatmul.mubr.bf16.gmra.mrb[0].mxu0 %v2586
      %v2670 = vpop.f32.mrb[0].mxu0
      %v2671 = vadd.f32 0.0, %v2670
      %v2672 = vpop.f32.mrb[0].mxu0
      %v2673 = vpop.f32.mrb[0].mxu0
      %v2674 = vadd.f32 0.0, %v2673
      %v2675 = vpop.f32.mrb[0].mxu0
      %2676 = vmatprep.mubr.bf16.mxu0 0
      %2677 = vmatmul.mubr.bf16.gmra.mrb[0].mxu0 %v2589
      %v2678 = vpop.f32.mrb[0].mxu0
      %v2679 = vadd.f32 0.0, %v2678
      %v2680 = vpop.f32.mrb[0].mxu0
      %v2681 = vpop.f32.mrb[0].mxu0
      %v2682 = vadd.f32 0.0, %v2681
      %v2683 = vpop.f32.mrb[0].mxu0
      %2684 = vmatprep.mubr.bf16.mxu0 0
      %2685 = vmatmul.mubr.bf16.gmra.mrb[0].mxu0 %v2592
      %v2686 = vpop.f32.mrb[0].mxu0
      %v2687 = vadd.f32 0.0, %v2686
      %v2688 = vpop.f32.mrb[0].mxu0
      %v2689 = vpop.f32.mrb[0].mxu0
      %v2690 = vadd.f32 0.0, %v2689
      %v2691 = vpop.f32.mrb[0].mxu0
      %2692 = vmatprep.mubr.bf16.mxu0 0
      %2693 = vmatmul.mubr.bf16.gmra.mrb[0].mxu0 %v2595
      %v2694 = vpop.f32.mrb[0].mxu0
      %v2695 = vadd.f32 0.0, %v2694
      %v2696 = vpop.f32.mrb[0].mxu0
      %v2697 = vpop.f32.mrb[0].mxu0
      %v2698 = vadd.f32 0.0, %v2697
      %v2699 = vpop.f32.mrb[0].mxu0
      %2700 = vmatprep.mubr.bf16.mxu0 0
      %2701 = vmatmul.mubr.bf16.gmra.mrb[0].mxu0 %v2598
      %v2702 = vpop.f32.mrb[0].mxu0
      %v2703 = vadd.f32 0.0, %v2702
      %v2704 = vpop.f32.mrb[0].mxu0
      %v2705 = vpop.f32.mrb[0].mxu0
      %v2706 = vadd.f32 0.0, %v2705
      %v2707 = vpop.f32.mrb[0].mxu0
      %2708 = vmatprep.mubr.bf16.mxu0 0
      %2709 = vmatmul.mubr.bf16.gmra.mrb[0].mxu0 %v2601
      %v2710 = vpop.f32.mrb[0].mxu0
      %v2711 = vadd.f32 0.0, %v2710
      %v2712 = vpop.f32.mrb[0].mxu0
      %v2713 = vpop.f32.mrb[0].mxu0
      %v2714 = vadd.f32 0.0, %v2713
      %v2715 = vpop.f32.mrb[0].mxu0
      %2716 = vmatprep.mubr.bf16.mxu0 0
      %2717 = vmatmul.mubr.bf16.gmra.mrb[0].mxu0 %v2604
      %v2718 = vpop.f32.mrb[0].mxu0
      %v2719 = vadd.f32 0.0, %v2718
      %v2720 = vpop.f32.mrb[0].mxu0
      %v2721 = vpop.f32.mrb[0].mxu0
      %v2722 = vadd.f32 0.0, %v2721
      %v2723 = vpop.f32.mrb[0].mxu0
      %2724 = vmatprep.mubr.bf16.mxu0 0
      %2725 = vmatmul.mubr.bf16.gmra.mrb[0].mxu0 %v2607
      %v2726 = vpop.f32.mrb[0].mxu0
      %v2727 = vadd.f32 0.0, %v2726
      %v2728 = vpop.f32.mrb[0].mxu0
      %v2729 = vpop.f32.mrb[0].mxu0
      %v2730 = vadd.f32 0.0, %v2729
      %v2731 = vpop.f32.mrb[0].mxu0
      %2732 = vmatprep.mubr.bf16.mxu0 0
      %2733 = vmatmul.mubr.bf16.gmra.mrb[0].mxu0 %v2610
      %v2734 = vpop.f32.mrb[0].mxu0
      %v2735 = vadd.f32 0.0, %v2734
      %v2736 = vpop.f32.mrb[0].mxu0
      %v2737 = vpop.f32.mrb[0].mxu0
      %v2738 = vadd.f32 0.0, %v2737
      %v2739 = vpop.f32.mrb[0].mxu0
      %2740 = vdwg.mxu0
      %v2741 = vadd.f32 %v2405, %v2647
      %v2742 = vadd.f32 %v2406, %v2650
      %v2743 = vadd.f32 %v2407, %v2655
      %v2744 = vadd.f32 %v2408, %v2658
      %v2745 = vadd.f32 %v2409, %v2663
      %v2746 = vadd.f32 %v2410, %v2666
      %v2747 = vadd.f32 %v2411, %v2671
      %v2748 = vadd.f32 %v2412, %v2674
      %v2749 = vadd.f32 %v2413, %v2679
      %v2750 = vadd.f32 %v2414, %v2682
      %v2751 = vadd.f32 %v2415, %v2687
      %v2752 = vadd.f32 %v2416, %v2690
      %v2753 = vadd.f32 %v2417, %v2695
      %v2754 = vadd.f32 %v2418, %v2698
      %v2755 = vadd.f32 %v2419, %v2703
      %v2756 = vadd.f32 %v2420, %v2706
      %v2757 = vadd.f32 %v2421, %v2711
      %v2758 = vadd.f32 %v2422, %v2714
      %v2759 = vadd.f32 %v2423, %v2719
      %v2760 = vadd.f32 %v2424, %v2722
      %v2761 = vadd.f32 %v2425, %v2727
      %v2762 = vadd.f32 %v2426, %v2730
      %v2763 = vadd.f32 %v2427, %v2735
      %v2764 = vadd.f32 %v2428, %v2738
      %v2765 = vld [vmem:[#allocation2 + $0x20] sm:$0xf8]
      %v2766 = vld [vmem:[#allocation2 + $0x28] sm:$0xff]
      %v2767 = vld [vmem:[#allocation2 + $0x30] sm:$0xff]
      %v2768 = vld [vmem:[#allocation2 + $0x38] sm:$0xff]
      %v2769 = vld [vmem:[#allocation2 + $0x40] sm:$0xff]
      %v2770 = vld [vmem:[#allocation2 + $0x48] sm:$0xff]
      %v2771 = vld [vmem:[#allocation2 + $0x50] sm:$0xff]
      %v2772 = vld [vmem:[#allocation2 + $0x58] sm:$0xff]
      %v2773 = vld [vmem:[#allocation2 + $0x60] sm:$0xff]
      %v2774 = vld [vmem:[#allocation2 + $0x68] sm:$0xff]
      %v2775 = vld [vmem:[#allocation2 + $0x70] sm:$0xff]
      %v2776 = vld [vmem:[#allocation2 + $0x78] sm:$0xff]
      %v2777 = vld [vmem:[#allocation2 + $0x80] sm:$0xf]
      %s2778 = scalar_lea.vmem %s6, 192
      %v2779 = vld [vmem:[%s2778] sm:$0xf]
      %v2780 = vld [vmem:[%s2778 + $0x4] sm:$0xf]
      %v2781 = vld [vmem:[%s2778 + $0x8] sm:$0xf]
      %v2782 = vld [vmem:[%s2778 + $0xc] sm:$0xf]
      %v2783 = vld [vmem:[%s2778 + $0x10] sm:$0xf]
      %v2784 = vld [vmem:[%s2778 + $0x14] sm:$0xf]
      %v2785 = vld [vmem:[%s2778 + $0x18] sm:$0xf]
      %v2786 = vld [vmem:[%s2778 + $0x1c] sm:$0xf]
      %v2788 = vshrl.u32 %v2765, 16
      %v2790 = vrot.slane %v2788, 3
      %v2791 = vshll.u32 %v2765, 16
      %v2793 = vrot.slane %v2791, 4
      %v2794 = vor.u32 %v2790, %v2793
      %v2796 = vshrl.u32 %v2766, 16
      %v2798 = vrot.slane %v2796, 3
      %v2799 = vshll.u32 %v2766, 16
      %v2801 = vrot.slane %v2799, 4
      %v2802 = vor.u32 %v2798, %v2801
      %v2803 = vsel %vm1292, %v2794, %v2802
      %v2805 = vshrl.u32 %v2767, 16
      %v2807 = vrot.slane %v2805, 3
      %v2808 = vshll.u32 %v2767, 16
      %v2810 = vrot.slane %v2808, 4
      %v2811 = vor.u32 %v2807, %v2810
      %v2812 = vsel %vm1292, %v2802, %v2811
      %v2814 = vshrl.u32 %v2768, 16
      %v2816 = vrot.slane %v2814, 3
      %v2817 = vshll.u32 %v2768, 16
      %v2819 = vrot.slane %v2817, 4
      %v2820 = vor.u32 %v2816, %v2819
      %v2821 = vsel %vm1292, %v2811, %v2820
      %v2823 = vshrl.u32 %v2769, 16
      %v2825 = vrot.slane %v2823, 3
      %v2826 = vshll.u32 %v2769, 16
      %v2828 = vrot.slane %v2826, 4
      %v2829 = vor.u32 %v2825, %v2828
      %v2830 = vsel %vm1292, %v2820, %v2829
      %v2832 = vshrl.u32 %v2770, 16
      %v2834 = vrot.slane %v2832, 3
      %v2835 = vshll.u32 %v2770, 16
      %v2837 = vrot.slane %v2835, 4
      %v2838 = vor.u32 %v2834, %v2837
      %v2839 = vsel %vm1292, %v2829, %v2838
      %v2841 = vshrl.u32 %v2771, 16
      %v2843 = vrot.slane %v2841, 3
      %v2844 = vshll.u32 %v2771, 16
      %v2846 = vrot.slane %v2844, 4
      %v2847 = vor.u32 %v2843, %v2846
      %v2848 = vsel %vm1292, %v2838, %v2847
      %v2850 = vshrl.u32 %v2772, 16
      %v2852 = vrot.slane %v2850, 3
      %v2853 = vshll.u32 %v2772, 16
      %v2855 = vrot.slane %v2853, 4
      %v2856 = vor.u32 %v2852, %v2855
      %v2857 = vsel %vm1292, %v2847, %v2856
      %v2859 = vshrl.u32 %v2773, 16
      %v2861 = vrot.slane %v2859, 3
      %v2862 = vshll.u32 %v2773, 16
      %v2864 = vrot.slane %v2862, 4
      %v2865 = vor.u32 %v2861, %v2864
      %v2866 = vsel %vm1292, %v2856, %v2865
      %v2868 = vshrl.u32 %v2774, 16
      %v2870 = vrot.slane %v2868, 3
      %v2871 = vshll.u32 %v2774, 16
      %v2873 = vrot.slane %v2871, 4
      %v2874 = vor.u32 %v2870, %v2873
      %v2875 = vsel %vm1292, %v2865, %v2874
      %v2877 = vshrl.u32 %v2775, 16
      %v2879 = vrot.slane %v2877, 3
      %v2880 = vshll.u32 %v2775, 16
      %v2882 = vrot.slane %v2880, 4
      %v2883 = vor.u32 %v2879, %v2882
      %v2884 = vsel %vm1292, %v2874, %v2883
      %v2886 = vshrl.u32 %v2776, 16
      %v2888 = vrot.slane %v2886, 3
      %v2889 = vshll.u32 %v2776, 16
      %v2891 = vrot.slane %v2889, 4
      %v2892 = vor.u32 %v2888, %v2891
      %v2893 = vsel %vm1292, %v2883, %v2892
      %v2895 = vshrl.u32 %v2777, 16
      %v2897 = vrot.slane %v2895, 3
      %v2898 = vshll.u32 %v2777, 16
      %v2900 = vrot.slane %v2898, 4
      %v2901 = vor.u32 %v2897, %v2900
      %v2902 = vsel %vm1292, %v2892, %v2901
      %v2911 = vunpack.c.l.b16 %v2779
      %v2912 = vunpack.c.l.b16 %v2780
      %v2913 = vunpack.c.l.b16 %v2781
      %v2914 = vunpack.c.l.b16 %v2782
      %v2915 = vunpack.c.l.b16 %v2783
      %v2916 = vunpack.c.l.b16 %v2784
      %v2917 = vunpack.c.l.b16 %v2785
      %v2918 = vunpack.c.l.b16 %v2786
      %v2919 = vpack.c.b16 %v2912, %v2911
      %v2920 = vpack.c.b16 %v2914, %v2913
      %v2921 = vpack.c.b16 %v2916, %v2915
      %v2922 = vpack.c.b16 %v2918, %v2917
      %v2928 = vsel %vm1126, %v2803, 0
      %v2931 = vsel %vm1126, %v2812, 0
      %v2934 = vsel %vm1126, %v2821, 0
      %v2937 = vsel %vm1126, %v2830, 0
      %v2940 = vsel %vm1126, %v2839, 0
      %v2943 = vsel %vm1126, %v2848, 0
      %v2946 = vsel %vm1126, %v2857, 0
      %v2949 = vsel %vm1126, %v2866, 0
      %v2952 = vsel %vm1126, %v2875, 0
      %v2955 = vsel %vm1126, %v2884, 0
      %v2958 = vsel %vm1126, %v2893, 0
      %v2961 = vsel %vm1126, %v2902, 0
      %2963 = vmatprep.subr.bf16.mxu0 0
      %2964 = vmatpush1.bf16.msra.mxu0 %v2919
      %2965 = vmatprep.subr.bf16.mxu0 0
      %2966 = vmatpush1.bf16.msra.mxu0 %v2920
      %2967 = vmatprep.subr.bf16.mxu0 0
      %2968 = vmatpush1.bf16.msra.mxu0 %v2921
      %2969 = vmatprep.subr.bf16.mxu0 0
      %2970 = vmatpush1.bf16.msra.mxu0 %v2922
      %2971 = vmatprep.subr.bf16.mxu0 0
      %2972 = vmatpush1.bf16.msra.mxu0 0
      %2973 = vmatprep.subr.bf16.mxu0 0
      %2974 = vmatpush1.bf16.msra.mxu0 0
      %2975 = vmatprep.subr.bf16.mxu0 0
      %2976 = vmatpush1.bf16.msra.mxu0 0
      %2977 = vmatprep.subr.bf16.mxu0 0
      %2978 = vmatpush1.bf16.msra.mxu0 0
      %2979 = vmatprep.subr.bf16.mxu0 0
      %2980 = vmatpush1.bf16.msra.mxu0 0
      %2981 = vmatprep.subr.bf16.mxu0 0
      %2982 = vmatpush1.bf16.msra.mxu0 0
      %2983 = vmatprep.subr.bf16.mxu0 0
      %2984 = vmatpush1.bf16.msra.mxu0 0
      %2985 = vmatprep.subr.bf16.mxu0 0
      %2986 = vmatpush1.bf16.msra.mxu0 0
      %2987 = vmatprep.subr.bf16.mxu0 0
      %2988 = vmatpush1.bf16.msra.mxu0 0
      %2989 = vmatprep.subr.bf16.mxu0 0
      %2990 = vmatpush1.bf16.msra.mxu0 0
      %2991 = vmatprep.subr.bf16.mxu0 0
      %2992 = vmatpush1.bf16.msra.mxu0 0
      %2993 = vmatprep.subr.bf16.mxu0 0
      %2994 = vmatpush1.bf16.msra.mxu0 0
      %2995 = vmatprep.mubr.bf16.mxu0 0
      %2996 = vmatmul.mubr.bf16.gmra.mrb[0].mxu0 %v2928
      %v2997 = vpop.f32.mrb[0].mxu0
      %v2998 = vadd.f32 0.0, %v2997
      %v2999 = vpop.f32.mrb[0].mxu0
      %v3000 = vpop.f32.mrb[0].mxu0
      %v3001 = vadd.f32 0.0, %v3000
      %v3002 = vpop.f32.mrb[0].mxu0
      %3003 = vmatprep.mubr.bf16.mxu0 0
      %3004 = vmatmul.mubr.bf16.gmra.mrb[0].mxu0 %v2931
      %v3005 = vpop.f32.mrb[0].mxu0
      %v3006 = vadd.f32 0.0, %v3005
      %v3007 = vpop.f32.mrb[0].mxu0
      %v3008 = vpop.f32.mrb[0].mxu0
      %v3009 = vadd.f32 0.0, %v3008
      %v3010 = vpop.f32.mrb[0].mxu0
      %3011 = vmatprep.mubr.bf16.mxu0 0
      %3012 = vmatmul.mubr.bf16.gmra.mrb[0].mxu0 %v2934
      %v3013 = vpop.f32.mrb[0].mxu0
      %v3014 = vadd.f32 0.0, %v3013
      %v3015 = vpop.f32.mrb[0].mxu0
      %v3016 = vpop.f32.mrb[0].mxu0
      %v3017 = vadd.f32 0.0, %v3016
      %v3018 = vpop.f32.mrb[0].mxu0
      %3019 = vmatprep.mubr.bf16.mxu0 0
      %3020 = vmatmul.mubr.bf16.gmra.mrb[0].mxu0 %v2937
      %v3021 = vpop.f32.mrb[0].mxu0
      %v3022 = vadd.f32 0.0, %v3021
      %v3023 = vpop.f32.mrb[0].mxu0
      %v3024 = vpop.f32.mrb[0].mxu0
      %v3025 = vadd.f32 0.0, %v3024
      %v3026 = vpop.f32.mrb[0].mxu0
      %3027 = vmatprep.mubr.bf16.mxu0 0
      %3028 = vmatmul.mubr.bf16.gmra.mrb[0].mxu0 %v2940
      %v3029 = vpop.f32.mrb[0].mxu0
      %v3030 = vadd.f32 0.0, %v3029
      %v3031 = vpop.f32.mrb[0].mxu0
      %v3032 = vpop.f32.mrb[0].mxu0
      %v3033 = vadd.f32 0.0, %v3032
      %v3034 = vpop.f32.mrb[0].mxu0
      %3035 = vmatprep.mubr.bf16.mxu0 0
      %3036 = vmatmul.mubr.bf16.gmra.mrb[0].mxu0 %v2943
      %v3037 = vpop.f32.mrb[0].mxu0
      %v3038 = vadd.f32 0.0, %v3037
      %v3039 = vpop.f32.mrb[0].mxu0
      %v3040 = vpop.f32.mrb[0].mxu0
      %v3041 = vadd.f32 0.0, %v3040
      %v3042 = vpop.f32.mrb[0].mxu0
      %3043 = vmatprep.mubr.bf16.mxu0 0
      %3044 = vmatmul.mubr.bf16.gmra.mrb[0].mxu0 %v2946
      %v3045 = vpop.f32.mrb[0].mxu0
      %v3046 = vadd.f32 0.0, %v3045
      %v3047 = vpop.f32.mrb[0].mxu0
      %v3048 = vpop.f32.mrb[0].mxu0
      %v3049 = vadd.f32 0.0, %v3048
      %v3050 = vpop.f32.mrb[0].mxu0
      %3051 = vmatprep.mubr.bf16.mxu0 0
      %3052 = vmatmul.mubr.bf16.gmra.mrb[0].mxu0 %v2949
      %v3053 = vpop.f32.mrb[0].mxu0
      %v3054 = vadd.f32 0.0, %v3053
      %v3055 = vpop.f32.mrb[0].mxu0
      %v3056 = vpop.f32.mrb[0].mxu0
      %v3057 = vadd.f32 0.0, %v3056
      %v3058 = vpop.f32.mrb[0].mxu0
      %3059 = vmatprep.mubr.bf16.mxu0 0
      %3060 = vmatmul.mubr.bf16.gmra.mrb[0].mxu0 %v2952
      %v3061 = vpop.f32.mrb[0].mxu0
      %v3062 = vadd.f32 0.0, %v3061
      %v3063 = vpop.f32.mrb[0].mxu0
      %v3064 = vpop.f32.mrb[0].mxu0
      %v3065 = vadd.f32 0.0, %v3064
      %v3066 = vpop.f32.mrb[0].mxu0
      %3067 = vmatprep.mubr.bf16.mxu0 0
      %3068 = vmatmul.mubr.bf16.gmra.mrb[0].mxu0 %v2955
      %v3069 = vpop.f32.mrb[0].mxu0
      %v3070 = vadd.f32 0.0, %v3069
      %v3071 = vpop.f32.mrb[0].mxu0
      %v3072 = vpop.f32.mrb[0].mxu0
      %v3073 = vadd.f32 0.0, %v3072
      %v3074 = vpop.f32.mrb[0].mxu0
      %3075 = vmatprep.mubr.bf16.mxu0 0
      %3076 = vmatmul.mubr.bf16.gmra.mrb[0].mxu0 %v2958
      %v3077 = vpop.f32.mrb[0].mxu0
      %v3078 = vadd.f32 0.0, %v3077
      %v3079 = vpop.f32.mrb[0].mxu0
      %v3080 = vpop.f32.mrb[0].mxu0
      %v3081 = vadd.f32 0.0, %v3080
      %v3082 = vpop.f32.mrb[0].mxu0
      %3083 = vmatprep.mubr.bf16.mxu0 0
      %3084 = vmatmul.mubr.bf16.gmra.mrb[0].mxu0 %v2961
      %v3085 = vpop.f32.mrb[0].mxu0
      %v3086 = vadd.f32 0.0, %v3085
      %v3087 = vpop.f32.mrb[0].mxu0
      %v3088 = vpop.f32.mrb[0].mxu0
      %v3089 = vadd.f32 0.0, %v3088
      %v3090 = vpop.f32.mrb[0].mxu0
      %3091 = vdwg.mxu0
      %v3092 = vadd.f32 %v2741, %v2998
      %v3093 = vadd.f32 %v2742, %v3001
      %v3094 = vadd.f32 %v2743, %v3006
      %v3095 = vadd.f32 %v2744, %v3009
      %v3096 = vadd.f32 %v2745, %v3014
      %v3097 = vadd.f32 %v2746, %v3017
      %v3098 = vadd.f32 %v2747, %v3022
      %v3099 = vadd.f32 %v2748, %v3025
      %v3100 = vadd.f32 %v2749, %v3030
      %v3101 = vadd.f32 %v2750, %v3033
      %v3102 = vadd.f32 %v2751, %v3038
      %v3103 = vadd.f32 %v2752, %v3041
      %v3104 = vadd.f32 %v2753, %v3046
      %v3105 = vadd.f32 %v2754, %v3049
      %v3106 = vadd.f32 %v2755, %v3054
      %v3107 = vadd.f32 %v2756, %v3057
      %v3108 = vadd.f32 %v2757, %v3062
      %v3109 = vadd.f32 %v2758, %v3065
      %v3110 = vadd.f32 %v2759, %v3070
      %v3111 = vadd.f32 %v2760, %v3073
      %v3112 = vadd.f32 %v2761, %v3078
      %v3113 = vadd.f32 %v2762, %v3081
      %v3114 = vadd.f32 %v2763, %v3086
      %v3115 = vadd.f32 %v2764, %v3089
      %v3116 = vld [vmem:[#allocation2 + $0x20] sm:$0xf0]
      %s3117 = scalar_lea.vmem %s6, 224
      %v3118 = vld [vmem:[%s3117] sm:$0xf]
      %v3119 = vld [vmem:[%s3117 + $0x4] sm:$0xf]
      %v3120 = vld [vmem:[%s3117 + $0x8] sm:$0xf]
      %v3121 = vld [vmem:[%s3117 + $0xc] sm:$0xf]
      %v3122 = vld [vmem:[%s3117 + $0x10] sm:$0xf]
      %v3123 = vld [vmem:[%s3117 + $0x14] sm:$0xf]
      %v3124 = vld [vmem:[%s3117 + $0x18] sm:$0xf]
      %v3125 = vld [vmem:[%s3117 + $0x1c] sm:$0xf]
      %v3139 = vrot.slane %v3116, 4
      %v3140 = vrot.slane %v2766, 4
      %v3141 = vsel %vm1076, %v3139, %v3140
      %v3142 = vrot.slane %v2767, 4
      %v3143 = vsel %vm1076, %v3140, %v3142
      %v3144 = vrot.slane %v2768, 4
      %v3145 = vsel %vm1076, %v3142, %v3144
      %v3146 = vrot.slane %v2769, 4
      %v3147 = vsel %vm1076, %v3144, %v3146
      %v3148 = vrot.slane %v2770, 4
      %v3149 = vsel %vm1076, %v3146, %v3148
      %v3150 = vrot.slane %v2771, 4
      %v3151 = vsel %vm1076, %v3148, %v3150
      %v3152 = vrot.slane %v2772, 4
      %v3153 = vsel %vm1076, %v3150, %v3152
      %v3154 = vrot.slane %v2773, 4
      %v3155 = vsel %vm1076, %v3152, %v3154
      %v3156 = vrot.slane %v2774, 4
      %v3157 = vsel %vm1076, %v3154, %v3156
      %v3158 = vrot.slane %v2775, 4
      %v3159 = vsel %vm1076, %v3156, %v3158
      %v3160 = vrot.slane %v2776, 4
      %v3161 = vsel %vm1076, %v3158, %v3160
      %v3162 = vrot.slane %v2777, 4
      %v3163 = vsel %vm1076, %v3160, %v3162
      %v3172 = vunpack.c.l.b16 %v3118
      %v3173 = vunpack.c.l.b16 %v3119
      %v3174 = vunpack.c.l.b16 %v3120
      %v3175 = vunpack.c.l.b16 %v3121
      %v3176 = vunpack.c.l.b16 %v3122
      %v3177 = vunpack.c.l.b16 %v3123
      %v3178 = vunpack.c.l.b16 %v3124
      %v3179 = vunpack.c.l.b16 %v3125
      %v3180 = vpack.c.b16 %v3173, %v3172
      %v3181 = vpack.c.b16 %v3175, %v3174
      %v3182 = vpack.c.b16 %v3177, %v3176
      %v3183 = vpack.c.b16 %v3179, %v3178
      %v3189 = vsel %vm1126, %v3141, 0
      %v3192 = vsel %vm1126, %v3143, 0
      %v3195 = vsel %vm1126, %v3145, 0
      %v3198 = vsel %vm1126, %v3147, 0
      %v3201 = vsel %vm1126, %v3149, 0
      %v3204 = vsel %vm1126, %v3151, 0
      %v3207 = vsel %vm1126, %v3153, 0
      %v3210 = vsel %vm1126, %v3155, 0
      %v3213 = vsel %vm1126, %v3157, 0
      %v3216 = vsel %vm1126, %v3159, 0
      %v3219 = vsel %vm1126, %v3161, 0
      %v3222 = vsel %vm1126, %v3163, 0
      %3224 = vmatprep.subr.bf16.mxu0 0
      %3225 = vmatpush1.bf16.msra.mxu0 %v3180
      %3226 = vmatprep.subr.bf16.mxu0 0
      %3227 = vmatpush1.bf16.msra.mxu0 %v3181
      %3228 = vmatprep.subr.bf16.mxu0 0
      %3229 = vmatpush1.bf16.msra.mxu0 %v3182
      %3230 = vmatprep.subr.bf16.mxu0 0
      %3231 = vmatpush1.bf16.msra.mxu0 %v3183
      %3232 = vmatprep.subr.bf16.mxu0 0
      %3233 = vmatpush1.bf16.msra.mxu0 0
      %3234 = vmatprep.subr.bf16.mxu0 0
      %3235 = vmatpush1.bf16.msra.mxu0 0
      %3236 = vmatprep.subr.bf16.mxu0 0
      %3237 = vmatpush1.bf16.msra.mxu0 0
      %3238 = vmatprep.subr.bf16.mxu0 0
      %3239 = vmatpush1.bf16.msra.mxu0 0
      %3240 = vmatprep.subr.bf16.mxu0 0
      %3241 = vmatpush1.bf16.msra.mxu0 0
      %3242 = vmatprep.subr.bf16.mxu0 0
      %3243 = vmatpush1.bf16.msra.mxu0 0
      %3244 = vmatprep.subr.bf16.mxu0 0
      %3245 = vmatpush1.bf16.msra.mxu0 0
      %3246 = vmatprep.subr.bf16.mxu0 0
      %3247 = vmatpush1.bf16.msra.mxu0 0
      %3248 = vmatprep.subr.bf16.mxu0 0
      %3249 = vmatpush1.bf16.msra.mxu0 0
      %3250 = vmatprep.subr.bf16.mxu0 0
      %3251 = vmatpush1.bf16.msra.mxu0 0
      %3252 = vmatprep.subr.bf16.mxu0 0
      %3253 = vmatpush1.bf16.msra.mxu0 0
      %3254 = vmatprep.subr.bf16.mxu0 0
      %3255 = vmatpush1.bf16.msra.mxu0 0
      %3256 = vmatprep.mubr.bf16.mxu0 0
      %3257 = vmatmul.mubr.bf16.gmra.mrb[0].mxu0 %v3189
      %v3258 = vpop.f32.mrb[0].mxu0
      %v3259 = vadd.f32 0.0, %v3258
      %v3260 = vpop.f32.mrb[0].mxu0
      %v3261 = vpop.f32.mrb[0].mxu0
      %v3262 = vadd.f32 0.0, %v3261
      %v3263 = vpop.f32.mrb[0].mxu0
      %3264 = vmatprep.mubr.bf16.mxu0 0
      %3265 = vmatmul.mubr.bf16.gmra.mrb[0].mxu0 %v3192
      %v3266 = vpop.f32.mrb[0].mxu0
      %v3267 = vadd.f32 0.0, %v3266
      %v3268 = vpop.f32.mrb[0].mxu0
      %v3269 = vpop.f32.mrb[0].mxu0
      %v3270 = vadd.f32 0.0, %v3269
      %v3271 = vpop.f32.mrb[0].mxu0
      %3272 = vmatprep.mubr.bf16.mxu0 0
      %3273 = vmatmul.mubr.bf16.gmra.mrb[0].mxu0 %v3195
      %v3274 = vpop.f32.mrb[0].mxu0
      %v3275 = vadd.f32 0.0, %v3274
      %v3276 = vpop.f32.mrb[0].mxu0
      %v3277 = vpop.f32.mrb[0].mxu0
      %v3278 = vadd.f32 0.0, %v3277
      %v3279 = vpop.f32.mrb[0].mxu0
      %3280 = vmatprep.mubr.bf16.mxu0 0
      %3281 = vmatmul.mubr.bf16.gmra.mrb[0].mxu0 %v3198
      %v3282 = vpop.f32.mrb[0].mxu0
      %v3283 = vadd.f32 0.0, %v3282
      %v3284 = vpop.f32.mrb[0].mxu0
      %v3285 = vpop.f32.mrb[0].mxu0
      %v3286 = vadd.f32 0.0, %v3285
      %v3287 = vpop.f32.mrb[0].mxu0
      %3288 = vmatprep.mubr.bf16.mxu0 0
      %3289 = vmatmul.mubr.bf16.gmra.mrb[0].mxu0 %v3201
      %v3290 = vpop.f32.mrb[0].mxu0
      %v3291 = vadd.f32 0.0, %v3290
      %v3292 = vpop.f32.mrb[0].mxu0
      %v3293 = vpop.f32.mrb[0].mxu0
      %v3294 = vadd.f32 0.0, %v3293
      %v3295 = vpop.f32.mrb[0].mxu0
      %3296 = vmatprep.mubr.bf16.mxu0 0
      %3297 = vmatmul.mubr.bf16.gmra.mrb[0].mxu0 %v3204
      %v3298 = vpop.f32.mrb[0].mxu0
      %v3299 = vadd.f32 0.0, %v3298
      %v3300 = vpop.f32.mrb[0].mxu0
      %v3301 = vpop.f32.mrb[0].mxu0
      %v3302 = vadd.f32 0.0, %v3301
      %v3303 = vpop.f32.mrb[0].mxu0
      %3304 = vmatprep.mubr.bf16.mxu0 0
      %3305 = vmatmul.mubr.bf16.gmra.mrb[0].mxu0 %v3207
      %v3306 = vpop.f32.mrb[0].mxu0
      %v3307 = vadd.f32 0.0, %v3306
      %v3308 = vpop.f32.mrb[0].mxu0
      %v3309 = vpop.f32.mrb[0].mxu0
      %v3310 = vadd.f32 0.0, %v3309
      %v3311 = vpop.f32.mrb[0].mxu0
      %3312 = vmatprep.mubr.bf16.mxu0 0
      %3313 = vmatmul.mubr.bf16.gmra.mrb[0].mxu0 %v3210
      %v3314 = vpop.f32.mrb[0].mxu0
      %v3315 = vadd.f32 0.0, %v3314
      %v3316 = vpop.f32.mrb[0].mxu0
      %v3317 = vpop.f32.mrb[0].mxu0
      %v3318 = vadd.f32 0.0, %v3317
      %v3319 = vpop.f32.mrb[0].mxu0
      %3320 = vmatprep.mubr.bf16.mxu0 0
      %3321 = vmatmul.mubr.bf16.gmra.mrb[0].mxu0 %v3213
      %v3322 = vpop.f32.mrb[0].mxu0
      %v3323 = vadd.f32 0.0, %v3322
      %v3324 = vpop.f32.mrb[0].mxu0
      %v3325 = vpop.f32.mrb[0].mxu0
      %v3326 = vadd.f32 0.0, %v3325
      %v3327 = vpop.f32.mrb[0].mxu0
      %3328 = vmatprep.mubr.bf16.mxu0 0
      %3329 = vmatmul.mubr.bf16.gmra.mrb[0].mxu0 %v3216
      %v3330 = vpop.f32.mrb[0].mxu0
      %v3331 = vadd.f32 0.0, %v3330
      %v3332 = vpop.f32.mrb[0].mxu0
      %v3333 = vpop.f32.mrb[0].mxu0
      %v3334 = vadd.f32 0.0, %v3333
      %v3335 = vpop.f32.mrb[0].mxu0
      %3336 = vmatprep.mubr.bf16.mxu0 0
      %3337 = vmatmul.mubr.bf16.gmra.mrb[0].mxu0 %v3219
      %v3338 = vpop.f32.mrb[0].mxu0
      %v3339 = vadd.f32 0.0, %v3338
      %v3340 = vpop.f32.mrb[0].mxu0
      %v3341 = vpop.f32.mrb[0].mxu0
      %v3342 = vadd.f32 0.0, %v3341
      %v3343 = vpop.f32.mrb[0].mxu0
      %3344 = vmatprep.mubr.bf16.mxu0 0
      %3345 = vmatmul.mubr.bf16.gmra.mrb[0].mxu0 %v3222
      %v3346 = vpop.f32.mrb[0].mxu0
      %v3347 = vadd.f32 0.0, %v3346
      %v3348 = vpop.f32.mrb[0].mxu0
      %v3349 = vpop.f32.mrb[0].mxu0
      %v3350 = vadd.f32 0.0, %v3349
      %v3351 = vpop.f32.mrb[0].mxu0
      %3352 = vdwg.mxu0
      %v3353 = vadd.f32 %v3092, %v3259
      %v3354 = vadd.f32 %v3093, %v3262
      %v3355 = vadd.f32 %v3094, %v3267
      %v3356 = vadd.f32 %v3095, %v3270
      %v3357 = vadd.f32 %v3096, %v3275
      %v3358 = vadd.f32 %v3097, %v3278
      %v3359 = vadd.f32 %v3098, %v3283
      %v3360 = vadd.f32 %v3099, %v3286
      %v3361 = vadd.f32 %v3100, %v3291
      %v3362 = vadd.f32 %v3101, %v3294
      %v3363 = vadd.f32 %v3102, %v3299
      %v3364 = vadd.f32 %v3103, %v3302
      %v3365 = vadd.f32 %v3104, %v3307
      %v3366 = vadd.f32 %v3105, %v3310
      %v3367 = vadd.f32 %v3106, %v3315
      %v3368 = vadd.f32 %v3107, %v3318
      %v3369 = vadd.f32 %v3108, %v3323
      %v3370 = vadd.f32 %v3109, %v3326
      %v3371 = vadd.f32 %v3110, %v3331
      %v3372 = vadd.f32 %v3111, %v3334
      %v3373 = vadd.f32 %v3112, %v3339
      %v3374 = vadd.f32 %v3113, %v3342
      %v3375 = vadd.f32 %v3114, %v3347
      %v3376 = vadd.f32 %v3115, %v3350
      %v3377 = vld [vmem:[#allocation2 + $0x80] sm:$0x1f]
      %s3378 = scalar_lea.vmem %s6, 256
      %v3379 = vld [vmem:[%s3378] sm:$0xf]
      %v3380 = vld [vmem:[%s3378 + $0x4] sm:$0xf]
      %v3381 = vld [vmem:[%s3378 + $0x8] sm:$0xf]
      %v3382 = vld [vmem:[%s3378 + $0xc] sm:$0xf]
      %v3383 = vld [vmem:[%s3378 + $0x10] sm:$0xf]
      %v3384 = vld [vmem:[%s3378 + $0x14] sm:$0xf]
      %v3385 = vld [vmem:[%s3378 + $0x18] sm:$0xf]
      %v3386 = vld [vmem:[%s3378 + $0x1c] sm:$0xf]
      %v3388 = vshrl.u32 %v3116, 16
      %v3390 = vrot.slane %v3388, 4
      %v3391 = vshll.u32 %v3116, 16
      %v3393 = vrot.slane %v3391, 5
      %v3394 = vor.u32 %v3390, %v3393
      %v3395 = vrot.slane %v2796, 4
      %v3396 = vrot.slane %v2799, 5
      %v3397 = vor.u32 %v3395, %v3396
      %v3398 = vsel %vm1608, %v3394, %v3397
      %v3399 = vrot.slane %v2805, 4
      %v3400 = vrot.slane %v2808, 5
      %v3401 = vor.u32 %v3399, %v3400
      %v3402 = vsel %vm1608, %v3397, %v3401
      %v3403 = vrot.slane %v2814, 4
      %v3404 = vrot.slane %v2817, 5
      %v3405 = vor.u32 %v3403, %v3404
      %v3406 = vsel %vm1608, %v3401, %v3405
      %v3407 = vrot.slane %v2823, 4
      %v3408 = vrot.slane %v2826, 5
      %v3409 = vor.u32 %v3407, %v3408
      %v3410 = vsel %vm1608, %v3405, %v3409
      %v3411 = vrot.slane %v2832, 4
      %v3412 = vrot.slane %v2835, 5
      %v3413 = vor.u32 %v3411, %v3412
      %v3414 = vsel %vm1608, %v3409, %v3413
      %v3415 = vrot.slane %v2841, 4
      %v3416 = vrot.slane %v2844, 5
      %v3417 = vor.u32 %v3415, %v3416
      %v3418 = vsel %vm1608, %v3413, %v3417
      %v3419 = vrot.slane %v2850, 4
      %v3420 = vrot.slane %v2853, 5
      %v3421 = vor.u32 %v3419, %v3420
      %v3422 = vsel %vm1608, %v3417, %v3421
      %v3423 = vrot.slane %v2859, 4
      %v3424 = vrot.slane %v2862, 5
      %v3425 = vor.u32 %v3423, %v3424
      %v3426 = vsel %vm1608, %v3421, %v3425
      %v3427 = vrot.slane %v2868, 4
      %v3428 = vrot.slane %v2871, 5
      %v3429 = vor.u32 %v3427, %v3428
      %v3430 = vsel %vm1608, %v3425, %v3429
      %v3431 = vrot.slane %v2877, 4
      %v3432 = vrot.slane %v2880, 5
      %v3433 = vor.u32 %v3431, %v3432
      %v3434 = vsel %vm1608, %v3429, %v3433
      %v3435 = vrot.slane %v2886, 4
      %v3436 = vrot.slane %v2889, 5
      %v3437 = vor.u32 %v3435, %v3436
      %v3438 = vsel %vm1608, %v3433, %v3437
      %v3440 = vshrl.u32 %v3377, 16
      %v3442 = vrot.slane %v3440, 4
      %v3443 = vshll.u32 %v3377, 16
      %v3445 = vrot.slane %v3443, 5
      %v3446 = vor.u32 %v3442, %v3445
      %v3447 = vsel %vm1608, %v3437, %v3446
      %v3456 = vunpack.c.l.b16 %v3379
      %v3457 = vunpack.c.l.b16 %v3380
      %v3458 = vunpack.c.l.b16 %v3381
      %v3459 = vunpack.c.l.b16 %v3382
      %v3460 = vunpack.c.l.b16 %v3383
      %v3461 = vunpack.c.l.b16 %v3384
      %v3462 = vunpack.c.l.b16 %v3385
      %v3463 = vunpack.c.l.b16 %v3386
      %v3464 = vpack.c.b16 %v3457, %v3456
      %v3465 = vpack.c.b16 %v3459, %v3458
      %v3466 = vpack.c.b16 %v3461, %v3460
      %v3467 = vpack.c.b16 %v3463, %v3462
      %v3473 = vsel %vm1126, %v3398, 0
      %v3476 = vsel %vm1126, %v3402, 0
      %v3479 = vsel %vm1126, %v3406, 0
      %v3482 = vsel %vm1126, %v3410, 0
      %v3485 = vsel %vm1126, %v3414, 0
      %v3488 = vsel %vm1126, %v3418, 0
      %v3491 = vsel %vm1126, %v3422, 0
      %v3494 = vsel %vm1126, %v3426, 0
      %v3497 = vsel %vm1126, %v3430, 0
      %v3500 = vsel %vm1126, %v3434, 0
      %v3503 = vsel %vm1126, %v3438, 0
      %v3506 = vsel %vm1126, %v3447, 0
      %3508 = vmatprep.subr.bf16.mxu0 0
      %3509 = vmatpush1.bf16.msra.mxu0 %v3464
      %3510 = vmatprep.subr.bf16.mxu0 0
      %3511 = vmatpush1.bf16.msra.mxu0 %v3465
      %3512 = vmatprep.subr.bf16.mxu0 0
      %3513 = vmatpush1.bf16.msra.mxu0 %v3466
      %3514 = vmatprep.subr.bf16.mxu0 0
      %3515 = vmatpush1.bf16.msra.mxu0 %v3467
      %3516 = vmatprep.subr.bf16.mxu0 0
      %3517 = vmatpush1.bf16.msra.mxu0 0
      %3518 = vmatprep.subr.bf16.mxu0 0
      %3519 = vmatpush1.bf16.msra.mxu0 0
      %3520 = vmatprep.subr.bf16.mxu0 0
      %3521 = vmatpush1.bf16.msra.mxu0 0
      %3522 = vmatprep.subr.bf16.mxu0 0
      %3523 = vmatpush1.bf16.msra.mxu0 0
      %3524 = vmatprep.subr.bf16.mxu0 0
      %3525 = vmatpush1.bf16.msra.mxu0 0
      %3526 = vmatprep.subr.bf16.mxu0 0
      %3527 = vmatpush1.bf16.msra.mxu0 0
      %3528 = vmatprep.subr.bf16.mxu0 0
      %3529 = vmatpush1.bf16.msra.mxu0 0
      %3530 = vmatprep.subr.bf16.mxu0 0
      %3531 = vmatpush1.bf16.msra.mxu0 0
      %3532 = vmatprep.subr.bf16.mxu0 0
      %3533 = vmatpush1.bf16.msra.mxu0 0
      %3534 = vmatprep.subr.bf16.mxu0 0
      %3535 = vmatpush1.bf16.msra.mxu0 0
      %3536 = vmatprep.subr.bf16.mxu0 0
      %3537 = vmatpush1.bf16.msra.mxu0 0
      %3538 = vmatprep.subr.bf16.mxu0 0
      %3539 = vmatpush1.bf16.msra.mxu0 0
      %3540 = vmatprep.mubr.bf16.mxu0 0
      %3541 = vmatmul.mubr.bf16.gmra.mrb[0].mxu0 %v3473
      %v3542 = vpop.f32.mrb[0].mxu0
      %v3543 = vadd.f32 0.0, %v3542
      %v3544 = vpop.f32.mrb[0].mxu0
      %v3545 = vpop.f32.mrb[0].mxu0
      %v3546 = vadd.f32 0.0, %v3545
      %v3547 = vpop.f32.mrb[0].mxu0
      %3548 = vmatprep.mubr.bf16.mxu0 0
      %3549 = vmatmul.mubr.bf16.gmra.mrb[0].mxu0 %v3476
      %v3550 = vpop.f32.mrb[0].mxu0
      %v3551 = vadd.f32 0.0, %v3550
      %v3552 = vpop.f32.mrb[0].mxu0
      %v3553 = vpop.f32.mrb[0].mxu0
      %v3554 = vadd.f32 0.0, %v3553
      %v3555 = vpop.f32.mrb[0].mxu0
      %3556 = vmatprep.mubr.bf16.mxu0 0
      %3557 = vmatmul.mubr.bf16.gmra.mrb[0].mxu0 %v3479
      %v3558 = vpop.f32.mrb[0].mxu0
      %v3559 = vadd.f32 0.0, %v3558
      %v3560 = vpop.f32.mrb[0].mxu0
      %v3561 = vpop.f32.mrb[0].mxu0
      %v3562 = vadd.f32 0.0, %v3561
      %v3563 = vpop.f32.mrb[0].mxu0
      %3564 = vmatprep.mubr.bf16.mxu0 0
      %3565 = vmatmul.mubr.bf16.gmra.mrb[0].mxu0 %v3482
      %v3566 = vpop.f32.mrb[0].mxu0
      %v3567 = vadd.f32 0.0, %v3566
      %v3568 = vpop.f32.mrb[0].mxu0
      %v3569 = vpop.f32.mrb[0].mxu0
      %v3570 = vadd.f32 0.0, %v3569
      %v3571 = vpop.f32.mrb[0].mxu0
      %3572 = vmatprep.mubr.bf16.mxu0 0
      %3573 = vmatmul.mubr.bf16.gmra.mrb[0].mxu0 %v3485
      %v3574 = vpop.f32.mrb[0].mxu0
      %v3575 = vadd.f32 0.0, %v3574
      %v3576 = vpop.f32.mrb[0].mxu0
      %v3577 = vpop.f32.mrb[0].mxu0
      %v3578 = vadd.f32 0.0, %v3577
      %v3579 = vpop.f32.mrb[0].mxu0
      %3580 = vmatprep.mubr.bf16.mxu0 0
      %3581 = vmatmul.mubr.bf16.gmra.mrb[0].mxu0 %v3488
      %v3582 = vpop.f32.mrb[0].mxu0
      %v3583 = vadd.f32 0.0, %v3582
      %v3584 = vpop.f32.mrb[0].mxu0
      %v3585 = vpop.f32.mrb[0].mxu0
      %v3586 = vadd.f32 0.0, %v3585
      %v3587 = vpop.f32.mrb[0].mxu0
      %3588 = vmatprep.mubr.bf16.mxu0 0
      %3589 = vmatmul.mubr.bf16.gmra.mrb[0].mxu0 %v3491
      %v3590 = vpop.f32.mrb[0].mxu0
      %v3591 = vadd.f32 0.0, %v3590
      %v3592 = vpop.f32.mrb[0].mxu0
      %v3593 = vpop.f32.mrb[0].mxu0
      %v3594 = vadd.f32 0.0, %v3593
      %v3595 = vpop.f32.mrb[0].mxu0
      %3596 = vmatprep.mubr.bf16.mxu0 0
      %3597 = vmatmul.mubr.bf16.gmra.mrb[0].mxu0 %v3494
      %v3598 = vpop.f32.mrb[0].mxu0
      %v3599 = vadd.f32 0.0, %v3598
      %v3600 = vpop.f32.mrb[0].mxu0
      %v3601 = vpop.f32.mrb[0].mxu0
      %v3602 = vadd.f32 0.0, %v3601
      %v3603 = vpop.f32.mrb[0].mxu0
      %3604 = vmatprep.mubr.bf16.mxu0 0
      %3605 = vmatmul.mubr.bf16.gmra.mrb[0].mxu0 %v3497
      %v3606 = vpop.f32.mrb[0].mxu0
      %v3607 = vadd.f32 0.0, %v3606
      %v3608 = vpop.f32.mrb[0].mxu0
      %v3609 = vpop.f32.mrb[0].mxu0
      %v3610 = vadd.f32 0.0, %v3609
      %v3611 = vpop.f32.mrb[0].mxu0
      %3612 = vmatprep.mubr.bf16.mxu0 0
      %3613 = vmatmul.mubr.bf16.gmra.mrb[0].mxu0 %v3500
      %v3614 = vpop.f32.mrb[0].mxu0
      %v3615 = vadd.f32 0.0, %v3614
      %v3616 = vpop.f32.mrb[0].mxu0
      %v3617 = vpop.f32.mrb[0].mxu0
      %v3618 = vadd.f32 0.0, %v3617
      %v3619 = vpop.f32.mrb[0].mxu0
      %3620 = vmatprep.mubr.bf16.mxu0 0
      %3621 = vmatmul.mubr.bf16.gmra.mrb[0].mxu0 %v3503
      %v3622 = vpop.f32.mrb[0].mxu0
      %v3623 = vadd.f32 0.0, %v3622
      %v3624 = vpop.f32.mrb[0].mxu0
      %v3625 = vpop.f32.mrb[0].mxu0
      %v3626 = vadd.f32 0.0, %v3625
      %v3627 = vpop.f32.mrb[0].mxu0
      %3628 = vmatprep.mubr.bf16.mxu0 0
      %3629 = vmatmul.mubr.bf16.gmra.mrb[0].mxu0 %v3506
      %v3630 = vpop.f32.mrb[0].mxu0
      %v3631 = vadd.f32 0.0, %v3630
      %v3632 = vpop.f32.mrb[0].mxu0
      %v3633 = vpop.f32.mrb[0].mxu0
      %v3634 = vadd.f32 0.0, %v3633
      %v3635 = vpop.f32.mrb[0].mxu0
      %3636 = vdwg.mxu0
      %v3637 = vadd.f32 %v3353, %v3543
      %v3638 = vadd.f32 %v3354, %v3546
      %v3639 = vadd.f32 %v3355, %v3551
      %v3640 = vadd.f32 %v3356, %v3554
      %v3641 = vadd.f32 %v3357, %v3559
      %v3642 = vadd.f32 %v3358, %v3562
      %v3643 = vadd.f32 %v3359, %v3567
      %v3644 = vadd.f32 %v3360, %v3570
      %v3645 = vadd.f32 %v3361, %v3575
      %v3646 = vadd.f32 %v3362, %v3578
      %v3647 = vadd.f32 %v3363, %v3583
      %v3648 = vadd.f32 %v3364, %v3586
      %v3649 = vadd.f32 %v3365, %v3591
      %v3650 = vadd.f32 %v3366, %v3594
      %v3651 = vadd.f32 %v3367, %v3599
      %v3652 = vadd.f32 %v3368, %v3602
      %v3653 = vadd.f32 %v3369, %v3607
      %v3654 = vadd.f32 %v3370, %v3610
      %v3655 = vadd.f32 %v3371, %v3615
      %v3656 = vadd.f32 %v3372, %v3618
      %v3657 = vadd.f32 %v3373, %v3623
      %v3658 = vadd.f32 %v3374, %v3626
      %v3659 = vadd.f32 %v3375, %v3631
      %v3660 = vadd.f32 %v3376, %v3634
      %v3661 = vld [vmem:[%s7] sm:$0x1]
      %v3663 = vlaneseq
      %v3664 = vshrl.u32 %v3663, 7
      %v3665 = vsub.s32 0, %v3664
      %v3666 = vrot.slane %v3661, %v3665
      %v3668 = vadd.f32 %v3637, %v3666
      %v3669 = vadd.f32 %v3638, %v3666
      %v3670 = vadd.f32 %v3639, %v3666
      %v3671 = vadd.f32 %v3640, %v3666
      %v3672 = vadd.f32 %v3641, %v3666
      %v3673 = vadd.f32 %v3642, %v3666
      %v3674 = vadd.f32 %v3643, %v3666
      %v3675 = vadd.f32 %v3644, %v3666
      %v3676 = vadd.f32 %v3645, %v3666
      %v3677 = vadd.f32 %v3646, %v3666
      %v3678 = vadd.f32 %v3647, %v3666
      %v3679 = vadd.f32 %v3648, %v3666
      %v3680 = vadd.f32 %v3649, %v3666
      %v3681 = vadd.f32 %v3650, %v3666
      %v3682 = vadd.f32 %v3651, %v3666
      %v3683 = vadd.f32 %v3652, %v3666
      %v3684 = vadd.f32 %v3653, %v3666
      %v3685 = vadd.f32 %v3654, %v3666
      %v3686 = vadd.f32 %v3655, %v3666
      %v3687 = vadd.f32 %v3656, %v3666
      %v3688 = vadd.f32 %v3657, %v3666
      %v3689 = vadd.f32 %v3658, %v3666
      %v3690 = vadd.f32 %v3659, %v3666
      %v3691 = vadd.f32 %v3660, %v3666
      %v3692 = vmul.f32 %v3668, 0.5
      %v3693 = vmul.f32 %v3669, 0.5
      %v3694 = vmul.f32 %v3670, 0.5
      %v3695 = vmul.f32 %v3671, 0.5
      %v3696 = vmul.f32 %v3672, 0.5
      %v3697 = vmul.f32 %v3673, 0.5
      %v3698 = vmul.f32 %v3674, 0.5
      %v3699 = vmul.f32 %v3675, 0.5
      %v3700 = vmul.f32 %v3676, 0.5
      %v3701 = vmul.f32 %v3677, 0.5
      %v3702 = vmul.f32 %v3678, 0.5
      %v3703 = vmul.f32 %v3679, 0.5
      %v3704 = vmul.f32 %v3680, 0.5
      %v3705 = vmul.f32 %v3681, 0.5
      %v3706 = vmul.f32 %v3682, 0.5
      %v3707 = vmul.f32 %v3683, 0.5
      %v3708 = vmul.f32 %v3684, 0.5
      %v3709 = vmul.f32 %v3685, 0.5
      %v3710 = vmul.f32 %v3686, 0.5
      %v3711 = vmul.f32 %v3687, 0.5
      %v3712 = vmul.f32 %v3688, 0.5
      %v3713 = vmul.f32 %v3689, 0.5
      %v3714 = vmul.f32 %v3690, 0.5
      %v3715 = vmul.f32 %v3691, 0.5
      %v3716 = vmul.f32 %v3668, 0.044715
      %v3717 = vmul.f32 %v3669, 0.044715
      %v3718 = vmul.f32 %v3670, 0.044715
      %v3719 = vmul.f32 %v3671, 0.044715
      %v3720 = vmul.f32 %v3672, 0.044715
      %v3721 = vmul.f32 %v3673, 0.044715
      %v3722 = vmul.f32 %v3674, 0.044715
      %v3723 = vmul.f32 %v3675, 0.044715
      %v3724 = vmul.f32 %v3676, 0.044715
      %v3725 = vmul.f32 %v3677, 0.044715
      %v3726 = vmul.f32 %v3678, 0.044715
      %v3727 = vmul.f32 %v3679, 0.044715
      %v3728 = vmul.f32 %v3680, 0.044715
      %v3729 = vmul.f32 %v3681, 0.044715
      %v3730 = vmul.f32 %v3682, 0.044715
      %v3731 = vmul.f32 %v3683, 0.044715
      %v3732 = vmul.f32 %v3684, 0.044715
      %v3733 = vmul.f32 %v3685, 0.044715
      %v3734 = vmul.f32 %v3686, 0.044715
      %v3735 = vmul.f32 %v3687, 0.044715
      %v3736 = vmul.f32 %v3688, 0.044715
      %v3737 = vmul.f32 %v3689, 0.044715
      %v3738 = vmul.f32 %v3690, 0.044715
      %v3739 = vmul.f32 %v3691, 0.044715
      %v3740 = vmul.f32 %v3716, %v3668
      %v3741 = vmul.f32 %v3717, %v3669
      %v3742 = vmul.f32 %v3718, %v3670
      %v3743 = vmul.f32 %v3719, %v3671
      %v3744 = vmul.f32 %v3720, %v3672
      %v3745 = vmul.f32 %v3721, %v3673
      %v3746 = vmul.f32 %v3722, %v3674
      %v3747 = vmul.f32 %v3723, %v3675
      %v3748 = vmul.f32 %v3724, %v3676
      %v3749 = vmul.f32 %v3725, %v3677
      %v3750 = vmul.f32 %v3726, %v3678
      %v3751 = vmul.f32 %v3727, %v3679
      %v3752 = vmul.f32 %v3728, %v3680
      %v3753 = vmul.f32 %v3729, %v3681
      %v3754 = vmul.f32 %v3730, %v3682
      %v3755 = vmul.f32 %v3731, %v3683
      %v3756 = vmul.f32 %v3732, %v3684
      %v3757 = vmul.f32 %v3733, %v3685
      %v3758 = vmul.f32 %v3734, %v3686
      %v3759 = vmul.f32 %v3735, %v3687
      %v3760 = vmul.f32 %v3736, %v3688
      %v3761 = vmul.f32 %v3737, %v3689
      %v3762 = vmul.f32 %v3738, %v3690
      %v3763 = vmul.f32 %v3739, %v3691
      %v3764 = vmul.f32 %v3740, %v3668
      %v3765 = vmul.f32 %v3741, %v3669
      %v3766 = vmul.f32 %v3742, %v3670
      %v3767 = vmul.f32 %v3743, %v3671
      %v3768 = vmul.f32 %v3744, %v3672
      %v3769 = vmul.f32 %v3745, %v3673
      %v3770 = vmul.f32 %v3746, %v3674
      %v3771 = vmul.f32 %v3747, %v3675
      %v3772 = vmul.f32 %v3748, %v3676
      %v3773 = vmul.f32 %v3749, %v3677
      %v3774 = vmul.f32 %v3750, %v3678
      %v3775 = vmul.f32 %v3751, %v3679
      %v3776 = vmul.f32 %v3752, %v3680
      %v3777 = vmul.f32 %v3753, %v3681
      %v3778 = vmul.f32 %v3754, %v3682
      %v3779 = vmul.f32 %v3755, %v3683
      %v3780 = vmul.f32 %v3756, %v3684
      %v3781 = vmul.f32 %v3757, %v3685
      %v3782 = vmul.f32 %v3758, %v3686
      %v3783 = vmul.f32 %v3759, %v3687
      %v3784 = vmul.f32 %v3760, %v3688
      %v3785 = vmul.f32 %v3761, %v3689
      %v3786 = vmul.f32 %v3762, %v3690
      %v3787 = vmul.f32 %v3763, %v3691
      %v3788 = vadd.f32 %v3668, %v3764
      %v3789 = vadd.f32 %v3669, %v3765
      %v3790 = vadd.f32 %v3670, %v3766
      %v3791 = vadd.f32 %v3671, %v3767
      %v3792 = vadd.f32 %v3672, %v3768
      %v3793 = vadd.f32 %v3673, %v3769
      %v3794 = vadd.f32 %v3674, %v3770
      %v3795 = vadd.f32 %v3675, %v3771
      %v3796 = vadd.f32 %v3676, %v3772
      %v3797 = vadd.f32 %v3677, %v3773
      %v3798 = vadd.f32 %v3678, %v3774
      %v3799 = vadd.f32 %v3679, %v3775
      %v3800 = vadd.f32 %v3680, %v3776
      %v3801 = vadd.f32 %v3681, %v3777
      %v3802 = vadd.f32 %v3682, %v3778
      %v3803 = vadd.f32 %v3683, %v3779
      %v3804 = vadd.f32 %v3684, %v3780
      %v3805 = vadd.f32 %v3685, %v3781
      %v3806 = vadd.f32 %v3686, %v3782
      %v3807 = vadd.f32 %v3687, %v3783
      %v3808 = vadd.f32 %v3688, %v3784
      %v3809 = vadd.f32 %v3689, %v3785
      %v3810 = vadd.f32 %v3690, %v3786
      %v3811 = vadd.f32 %v3691, %v3787
      %v3812 = vmul.f32 %v3788, 0.7978846
      %v3813 = vmul.f32 %v3789, 0.7978846
      %v3814 = vmul.f32 %v3790, 0.7978846
      %v3815 = vmul.f32 %v3791, 0.7978846
      %v3816 = vmul.f32 %v3792, 0.7978846
      %v3817 = vmul.f32 %v3793, 0.7978846
      %v3818 = vmul.f32 %v3794, 0.7978846
      %v3819 = vmul.f32 %v3795, 0.7978846
      %v3820 = vmul.f32 %v3796, 0.7978846
      %v3821 = vmul.f32 %v3797, 0.7978846
      %v3822 = vmul.f32 %v3798, 0.7978846
      %v3823 = vmul.f32 %v3799, 0.7978846
      %v3824 = vmul.f32 %v3800, 0.7978846
      %v3825 = vmul.f32 %v3801, 0.7978846
      %v3826 = vmul.f32 %v3802, 0.7978846
      %v3827 = vmul.f32 %v3803, 0.7978846
      %v3828 = vmul.f32 %v3804, 0.7978846
      %v3829 = vmul.f32 %v3805, 0.7978846
      %v3830 = vmul.f32 %v3806, 0.7978846
      %v3831 = vmul.f32 %v3807, 0.7978846
      %v3832 = vmul.f32 %v3808, 0.7978846
      %v3833 = vmul.f32 %v3809, 0.7978846
      %v3834 = vmul.f32 %v3810, 0.7978846
      %v3835 = vmul.f32 %v3811, 0.7978846
      %v3836 = vtanh.pop %v3812
      %v3837 = vtanh.pop %v3813
      %v3838 = vtanh.pop %v3814
      %v3839 = vtanh.pop %v3815
      %v3840 = vtanh.pop %v3816
      %v3841 = vtanh.pop %v3817
      %v3842 = vtanh.pop %v3818
      %v3843 = vtanh.pop %v3819
      %v3844 = vtanh.pop %v3820
      %v3845 = vtanh.pop %v3821
      %v3846 = vtanh.pop %v3822
      %v3847 = vtanh.pop %v3823
      %v3848 = vtanh.pop %v3824
      %v3849 = vtanh.pop %v3825
      %v3850 = vtanh.pop %v3826
      %v3851 = vtanh.pop %v3827
      %v3852 = vtanh.pop %v3828
      %v3853 = vtanh.pop %v3829
      %v3854 = vtanh.pop %v3830
      %v3855 = vtanh.pop %v3831
      %v3856 = vtanh.pop %v3832
      %v3857 = vtanh.pop %v3833
      %v3858 = vtanh.pop %v3834
      %v3859 = vtanh.pop %v3835
      %v3860 = vadd.f32 %v3836, 1.0
      %v3861 = vadd.f32 %v3837, 1.0
      %v3862 = vadd.f32 %v3838, 1.0
      %v3863 = vadd.f32 %v3839, 1.0
      %v3864 = vadd.f32 %v3840, 1.0
      %v3865 = vadd.f32 %v3841, 1.0
      %v3866 = vadd.f32 %v3842, 1.0
      %v3867 = vadd.f32 %v3843, 1.0
      %v3868 = vadd.f32 %v3844, 1.0
      %v3869 = vadd.f32 %v3845, 1.0
      %v3870 = vadd.f32 %v3846, 1.0
      %v3871 = vadd.f32 %v3847, 1.0
      %v3872 = vadd.f32 %v3848, 1.0
      %v3873 = vadd.f32 %v3849, 1.0
      %v3874 = vadd.f32 %v3850, 1.0
      %v3875 = vadd.f32 %v3851, 1.0
      %v3876 = vadd.f32 %v3852, 1.0
      %v3877 = vadd.f32 %v3853, 1.0
      %v3878 = vadd.f32 %v3854, 1.0
      %v3879 = vadd.f32 %v3855, 1.0
      %v3880 = vadd.f32 %v3856, 1.0
      %v3881 = vadd.f32 %v3857, 1.0
      %v3882 = vadd.f32 %v3858, 1.0
      %v3883 = vadd.f32 %v3859, 1.0
      %v3884 = vmul.f32 %v3692, %v3860
      %v3885 = vmul.f32 %v3693, %v3861
      %v3886 = vmul.f32 %v3694, %v3862
      %v3887 = vmul.f32 %v3695, %v3863
      %v3888 = vmul.f32 %v3696, %v3864
      %v3889 = vmul.f32 %v3697, %v3865
      %v3890 = vmul.f32 %v3698, %v3866
      %v3891 = vmul.f32 %v3699, %v3867
      %v3892 = vmul.f32 %v3700, %v3868
      %v3893 = vmul.f32 %v3701, %v3869
      %v3894 = vmul.f32 %v3702, %v3870
      %v3895 = vmul.f32 %v3703, %v3871
      %v3896 = vmul.f32 %v3704, %v3872
      %v3897 = vmul.f32 %v3705, %v3873
      %v3898 = vmul.f32 %v3706, %v3874
      %v3899 = vmul.f32 %v3707, %v3875
      %v3900 = vmul.f32 %v3708, %v3876
      %v3901 = vmul.f32 %v3709, %v3877
      %v3902 = vmul.f32 %v3710, %v3878
      %v3903 = vmul.f32 %v3711, %v3879
      %v3904 = vmul.f32 %v3712, %v3880
      %v3905 = vmul.f32 %v3713, %v3881
      %v3906 = vmul.f32 %v3714, %v3882
      %v3907 = vmul.f32 %v3715, %v3883
      %v3908 = vpack.c.bf16 %v3885, %v3884
      %v3909 = vpack.c.bf16 %v3887, %v3886
      %v3910 = vpack.c.bf16 %v3889, %v3888
      %v3911 = vpack.c.bf16 %v3891, %v3890
      %v3912 = vpack.c.bf16 %v3893, %v3892
      %v3913 = vpack.c.bf16 %v3895, %v3894
      %v3914 = vpack.c.bf16 %v3897, %v3896
      %v3915 = vpack.c.bf16 %v3899, %v3898
      %v3916 = vpack.c.bf16 %v3901, %v3900
      %v3917 = vpack.c.bf16 %v3903, %v3902
      %v3918 = vpack.c.bf16 %v3905, %v3904
      %v3919 = vpack.c.bf16 %v3907, %v3906
      %v3920 = vld [vmem:[%s8] sm:$0xf]
      %v3921 = vld [vmem:[%s8 + $0x4] sm:$0xf]
      %v3922 = vld [vmem:[%s8 + $0x8] sm:$0xf]
      %v3923 = vld [vmem:[%s8 + $0xc] sm:$0xf]
      %v3924 = vld [vmem:[%s9] sm:$0x1]
      %v3926 = vlaneseq
      %v3927 = vshrl.u32 %v3926, 7
      %v3928 = vsub.s32 0, %v3927
      %v3929 = vrot.slane %v3924, %v3928
      %v3935 = vunpack.c.l.b16 %v3920
      %v3936 = vunpack.c.l.b16 %v3921
      %v3937 = vunpack.c.l.b16 %v3922
      %v3938 = vunpack.c.l.b16 %v3923
      %v3939 = vpack.c.b16 %v3936, %v3935
      %v3940 = vpack.c.b16 %v3938, %v3937
      %v3944 = vsel %vm724, %v3908, 0
      %v3947 = vsel %vm724, %v3909, 0
      %v3950 = vsel %vm724, %v3910, 0
      %v3953 = vsel %vm724, %v3911, 0
      %v3956 = vsel %vm724, %v3912, 0
      %v3959 = vsel %vm724, %v3913, 0
      %v3962 = vsel %vm724, %v3914, 0
      %v3965 = vsel %vm724, %v3915, 0
      %v3968 = vsel %vm724, %v3916, 0
      %v3971 = vsel %vm724, %v3917, 0
      %v3974 = vsel %vm724, %v3918, 0
      %v3977 = vsel %vm724, %v3919, 0
      %3979 = vmatprep.subr.bf16.mxu0 0
      %3980 = vmatpush1.bf16.msra.mxu0 %v3939
      %3981 = vmatprep.subr.bf16.mxu0 0
      %3982 = vmatpush1.bf16.msra.mxu0 %v3940
      %3983 = vmatprep.subr.bf16.mxu0 0
      %3984 = vmatpush1.bf16.msra.mxu0 0
      %3985 = vmatprep.subr.bf16.mxu0 0
      %3986 = vmatpush1.bf16.msra.mxu0 0
      %3987 = vmatprep.subr.bf16.mxu0 0
      %3988 = vmatpush1.bf16.msra.mxu0 0
      %3989 = vmatprep.subr.bf16.mxu0 0
      %3990 = vmatpush1.bf16.msra.mxu0 0
      %3991 = vmatprep.subr.bf16.mxu0 0
      %3992 = vmatpush1.bf16.msra.mxu0 0
      %3993 = vmatprep.subr.bf16.mxu0 0
      %3994 = vmatpush1.bf16.msra.mxu0 0
      %3995 = vmatprep.subr.bf16.mxu0 0
      %3996 = vmatpush1.bf16.msra.mxu0 0
      %3997 = vmatprep.subr.bf16.mxu0 0
      %3998 = vmatpush1.bf16.msra.mxu0 0
      %3999 = vmatprep.subr.bf16.mxu0 0
      %4000 = vmatpush1.bf16.msra.mxu0 0
      %4001 = vmatprep.subr.bf16.mxu0 0
      %4002 = vmatpush1.bf16.msra.mxu0 0
      %4003 = vmatprep.subr.bf16.mxu0 0
      %4004 = vmatpush1.bf16.msra.mxu0 0
      %4005 = vmatprep.subr.bf16.mxu0 0
      %4006 = vmatpush1.bf16.msra.mxu0 0
      %4007 = vmatprep.subr.bf16.mxu0 0
      %4008 = vmatpush1.bf16.msra.mxu0 0
      %4009 = vmatprep.subr.bf16.mxu0 0
      %4010 = vmatpush1.bf16.msra.mxu0 0
      %4011 = vmatprep.mubr.bf16.mxu0 0
      %4012 = vmatmul.mubr.bf16.gmra.mrb[0].mxu0 %v3944
      %v4013 = vpop.f32.mrb[0].mxu0
      %v4014 = vadd.f32 %v3929, %v4013
      %v4015 = vpop.f32.mrb[0].mxu0
      %v4016 = vpop.f32.mrb[0].mxu0
      %v4017 = vadd.f32 %v3929, %v4016
      %v4018 = vpop.f32.mrb[0].mxu0
      %4019 = vmatprep.mubr.bf16.mxu0 0
      %4020 = vmatmul.mubr.bf16.gmra.mrb[0].mxu0 %v3947
      %v4021 = vpop.f32.mrb[0].mxu0
      %v4022 = vadd.f32 %v3929, %v4021
      %v4023 = vpop.f32.mrb[0].mxu0
      %v4024 = vpop.f32.mrb[0].mxu0
      %v4025 = vadd.f32 %v3929, %v4024
      %v4026 = vpop.f32.mrb[0].mxu0
      %4027 = vmatprep.mubr.bf16.mxu0 0
      %4028 = vmatmul.mubr.bf16.gmra.mrb[0].mxu0 %v3950
      %v4029 = vpop.f32.mrb[0].mxu0
      %v4030 = vadd.f32 %v3929, %v4029
      %v4031 = vpop.f32.mrb[0].mxu0
      %v4032 = vpop.f32.mrb[0].mxu0
      %v4033 = vadd.f32 %v3929, %v4032
      %v4034 = vpop.f32.mrb[0].mxu0
      %4035 = vmatprep.mubr.bf16.mxu0 0
      %4036 = vmatmul.mubr.bf16.gmra.mrb[0].mxu0 %v3953
      %v4037 = vpop.f32.mrb[0].mxu0
      %v4038 = vadd.f32 %v3929, %v4037
      %v4039 = vpop.f32.mrb[0].mxu0
      %v4040 = vpop.f32.mrb[0].mxu0
      %v4041 = vadd.f32 %v3929, %v4040
      %v4042 = vpop.f32.mrb[0].mxu0
      %4043 = vmatprep.mubr.bf16.mxu0 0
      %4044 = vmatmul.mubr.bf16.gmra.mrb[0].mxu0 %v3956
      %v4045 = vpop.f32.mrb[0].mxu0
      %v4046 = vadd.f32 %v3929, %v4045
      %v4047 = vpop.f32.mrb[0].mxu0
      %v4048 = vpop.f32.mrb[0].mxu0
      %v4049 = vadd.f32 %v3929, %v4048
      %v4050 = vpop.f32.mrb[0].mxu0
      %4051 = vmatprep.mubr.bf16.mxu0 0
      %4052 = vmatmul.mubr.bf16.gmra.mrb[0].mxu0 %v3959
      %v4053 = vpop.f32.mrb[0].mxu0
      %v4054 = vadd.f32 %v3929, %v4053
      %v4055 = vpop.f32.mrb[0].mxu0
      %v4056 = vpop.f32.mrb[0].mxu0
      %v4057 = vadd.f32 %v3929, %v4056
      %v4058 = vpop.f32.mrb[0].mxu0
      %4059 = vmatprep.mubr.bf16.mxu0 0
      %4060 = vmatmul.mubr.bf16.gmra.mrb[0].mxu0 %v3962
      %v4061 = vpop.f32.mrb[0].mxu0
      %v4062 = vadd.f32 %v3929, %v4061
      %v4063 = vpop.f32.mrb[0].mxu0
      %v4064 = vpop.f32.mrb[0].mxu0
      %v4065 = vadd.f32 %v3929, %v4064
      %v4066 = vpop.f32.mrb[0].mxu0
      %4067 = vmatprep.mubr.bf16.mxu0 0
      %4068 = vmatmul.mubr.bf16.gmra.mrb[0].mxu0 %v3965
      %v4069 = vpop.f32.mrb[0].mxu0
      %v4070 = vadd.f32 %v3929, %v4069
      %v4071 = vpop.f32.mrb[0].mxu0
      %v4072 = vpop.f32.mrb[0].mxu0
      %v4073 = vadd.f32 %v3929, %v4072
      %v4074 = vpop.f32.mrb[0].mxu0
      %4075 = vmatprep.mubr.bf16.mxu0 0
      %4076 = vmatmul.mubr.bf16.gmra.mrb[0].mxu0 %v3968
      %v4077 = vpop.f32.mrb[0].mxu0
      %v4078 = vadd.f32 %v3929, %v4077
      %v4079 = vpop.f32.mrb[0].mxu0
      %v4080 = vpop.f32.mrb[0].mxu0
      %v4081 = vadd.f32 %v3929, %v4080
      %v4082 = vpop.f32.mrb[0].mxu0
      %4083 = vmatprep.mubr.bf16.mxu0 0
      %4084 = vmatmul.mubr.bf16.gmra.mrb[0].mxu0 %v3971
      %v4085 = vpop.f32.mrb[0].mxu0
      %v4086 = vadd.f32 %v3929, %v4085
      %v4087 = vpop.f32.mrb[0].mxu0
      %v4088 = vpop.f32.mrb[0].mxu0
      %v4089 = vadd.f32 %v3929, %v4088
      %v4090 = vpop.f32.mrb[0].mxu0
      %4091 = vmatprep.mubr.bf16.mxu0 0
      %4092 = vmatmul.mubr.bf16.gmra.mrb[0].mxu0 %v3974
      %v4093 = vpop.f32.mrb[0].mxu0
      %v4094 = vadd.f32 %v3929, %v4093
      %v4095 = vpop.f32.mrb[0].mxu0
      %v4096 = vpop.f32.mrb[0].mxu0
      %v4097 = vadd.f32 %v3929, %v4096
      %v4098 = vpop.f32.mrb[0].mxu0
      %4099 = vmatprep.mubr.bf16.mxu0 0
      %4100 = vmatmul.mubr.bf16.gmra.mrb[0].mxu0 %v3977
      %v4101 = vpop.f32.mrb[0].mxu0
      %v4102 = vadd.f32 %v3929, %v4101
      %v4103 = vpop.f32.mrb[0].mxu0
      %v4104 = vpop.f32.mrb[0].mxu0
      %v4105 = vadd.f32 %v3929, %v4104
      %v4106 = vpop.f32.mrb[0].mxu0
      %4107 = vdwg.mxu0
      %v4108 = vpack.c.bf16 %v4017, %v4014
      %v4109 = vpack.c.bf16 %v4025, %v4022
      %v4110 = vpack.c.bf16 %v4033, %v4030
      %v4111 = vpack.c.bf16 %v4041, %v4038
      %v4112 = vpack.c.bf16 %v4049, %v4046
      %v4113 = vpack.c.bf16 %v4057, %v4054
      %v4114 = vpack.c.bf16 %v4065, %v4062
      %v4115 = vpack.c.bf16 %v4073, %v4070
      %v4116 = vpack.c.bf16 %v4081, %v4078
      %v4117 = vpack.c.bf16 %v4089, %v4086
      %v4118 = vpack.c.bf16 %v4097, %v4094
      %v4119 = vpack.c.bf16 %v4105, %v4102
      %v4132 = vunpack.c.l.b16 %v4108
      %v4133 = vunpack.c.h.b16 %v4108
      %v4134 = vunpack.c.l.b16 %v4109
      %v4135 = vunpack.c.h.b16 %v4109
      %v4136 = vunpack.c.l.b16 %v4110
      %v4137 = vunpack.c.h.b16 %v4110
      %v4138 = vunpack.c.l.b16 %v4111
      %v4139 = vunpack.c.h.b16 %v4111
      %v4140 = vunpack.c.l.b16 %v4112
      %v4141 = vunpack.c.h.b16 %v4112
      %v4142 = vunpack.c.l.b16 %v4113
      %v4143 = vunpack.c.h.b16 %v4113
      %v4144 = vunpack.c.l.b16 %v4114
      %v4145 = vunpack.c.h.b16 %v4114
      %v4146 = vunpack.c.l.b16 %v4115
      %v4147 = vunpack.c.h.b16 %v4115
      %v4148 = vunpack.c.l.b16 %v4116
      %v4149 = vunpack.c.h.b16 %v4116
      %v4150 = vunpack.c.l.b16 %v4117
      %v4151 = vunpack.c.h.b16 %v4117
      %v4152 = vunpack.c.l.b16 %v4118
      %v4153 = vunpack.c.h.b16 %v4118
      %v4154 = vunpack.c.l.b16 %v4119
      %v4155 = vunpack.c.h.b16 %v4119
      %v4156 = vpack.c.b16 %v4132, %v4132
      %v4157 = vpack.c.b16 %v4133, %v4133
      %v4158 = vpack.c.b16 %v4134, %v4134
      %v4159 = vpack.c.b16 %v4135, %v4135
      %v4160 = vpack.c.b16 %v4136, %v4136
      %v4161 = vpack.c.b16 %v4137, %v4137
      %v4162 = vpack.c.b16 %v4138, %v4138
      %v4163 = vpack.c.b16 %v4139, %v4139
      %v4164 = vpack.c.b16 %v4140, %v4140
      %v4165 = vpack.c.b16 %v4141, %v4141
      %v4166 = vpack.c.b16 %v4142, %v4142
      %v4167 = vpack.c.b16 %v4143, %v4143
      %v4168 = vpack.c.b16 %v4144, %v4144
      %v4169 = vpack.c.b16 %v4145, %v4145
      %v4170 = vpack.c.b16 %v4146, %v4146
      %v4171 = vpack.c.b16 %v4147, %v4147
      %v4172 = vpack.c.b16 %v4148, %v4148
      %v4173 = vpack.c.b16 %v4149, %v4149
      %v4174 = vpack.c.b16 %v4150, %v4150
      %v4175 = vpack.c.b16 %v4151, %v4151
      %v4176 = vpack.c.b16 %v4152, %v4152
      %v4177 = vpack.c.b16 %v4153, %v4153
      %v4178 = vpack.c.b16 %v4154, %v4154
      %v4179 = vpack.c.b16 %v4155, %v4155
      %4204 = vst [vmem:[%s689] sm:$0xf] %v4156
      %4205 = vst [vmem:[%s689 + $0x4] sm:$0xf] %v4157
      %4206 = vst [vmem:[%s689 + $0x8] sm:$0xf] %v4158
      %4207 = vst [vmem:[%s689 + $0xc] sm:$0xf] %v4159
      %4208 = vst [vmem:[%s689 + $0x10] sm:$0xf] %v4160
      %4209 = vst [vmem:[%s689 + $0x14] sm:$0xf] %v4161
      %4210 = vst [vmem:[%s689 + $0x18] sm:$0xf] %v4162
      %4211 = vst [vmem:[%s689 + $0x1c] sm:$0xf] %v4163
      %4212 = vst [vmem:[%s689 + $0x20] sm:$0xf] %v4164
      %4213 = vst [vmem:[%s689 + $0x24] sm:$0xf] %v4165
      %4214 = vst [vmem:[%s689 + $0x28] sm:$0xf] %v4166
      %4215 = vst [vmem:[%s689 + $0x2c] sm:$0xf] %v4167
      %4216 = vst [vmem:[%s689 + $0x30] sm:$0xf] %v4168
      %4217 = vst [vmem:[%s689 + $0x34] sm:$0xf] %v4169
      %4218 = vst [vmem:[%s689 + $0x38] sm:$0xf] %v4170
      %4219 = vst [vmem:[%s689 + $0x3c] sm:$0xf] %v4171
      %4220 = vst [vmem:[%s689 + $0x40] sm:$0xf] %v4172
      %4221 = vst [vmem:[%s689 + $0x44] sm:$0xf] %v4173
      %4222 = vst [vmem:[%s689 + $0x48] sm:$0xf] %v4174
      %4223 = vst [vmem:[%s689 + $0x4c] sm:$0xf] %v4175
      %4224 = vst [vmem:[%s689 + $0x50] sm:$0xf] %v4176
      %4225 = vst [vmem:[%s689 + $0x54] sm:$0xf] %v4177
      %4226 = vst [vmem:[%s689 + $0x58] sm:$0xf] %v4178
      %4227 = vst [vmem:[%s689 + $0x5c] sm:$0xf] %v4179
      %s4228 = smul.u32 24, %s26
      %p4229 = scmp.lt.s32.totalorder %s25, 1
      %s4230 = scalar_select %p4229, %s25, 1
      %p4231 = scmp.lt.s32.totalorder %s4228, 47
      %s4232 = scalar_select %p4231, %s4228, 47
      %s4233 = smul.addr %s4230, 48
      %s4234 = sadd.s32 %s4232, %s4233
      %s4235 = smul.addr %s4234, 4
      %s4236 = scalar_lea.vmem %s10, %s4235
      // Predicated region
      $region61: #{fcn_head_forward.5} parent=59 // pred_check
        %p4237 = pneg %p337
      $region62: #{fcn_head_forward.5} parent=59 // pred_check_branch
        %4239 = sbr.rel (%p4237) target = $region64
      $region63: #{fcn_head_forward.5} parent=59 // pred_region
        %s4240 = smul.u32 24, %s26
      $region64: #{fcn_head_forward.5} parent=59 // pred_fallthru
        _
    $region60: #{fcn_head_forward.5} parent=5 // pred_fallthru
      _
    %p4241 = scmp.le.s32.totalorder 2, %s16
    // Predicated region
    $region65: #{fcn_head_forward.5} parent=5 // pred_check
      %p4242 = pneg %p4241
    $region66: #{fcn_head_forward.5} parent=5 // pred_check_branch
      %4244 = sbr.rel (%p4242) target = $region68
    $region67: #{fcn_head_forward.5} parent=5 // pred_region
      %s4245 = ssub.s32 %s16, 2
      // Predicated region
      $region69: #{fcn_head_forward.5} parent=67 // pred_check
        %p4246 = pneg %p343
      $region70: #{fcn_head_forward.5} parent=67 // pred_check_branch
        %4248 = sbr.rel (%p4246) target = $region72
      $region71: #{fcn_head_forward.5} parent=67 // pred_region
        %s4249 = smul.u32 24, %s28
        %p4250 = scmp.lt.s32.totalorder %s27, 1
        %s4251 = scalar_select %p4250, %s27, 1
        %p4252 = scmp.lt.s32.totalorder %s4249, 47
        %s4253 = scalar_select %p4252, %s4249, 47
        %s4254 = smul.addr %s4251, 48
        %s4255 = sadd.s32 %s4253, %s4254
        %s4256 = smul.addr %s4255, 4
        %s4257 = scalar_lea.vmem %s10, %s4256
      $region72: #{fcn_head_forward.5} parent=67 // pred_fallthru
        _
    $region68: #{fcn_head_forward.5} parent=5 // pred_fallthru
      _
  $region6: #{fcn_head_forward.5} parent=0 // loop_footer
    %s20 = sadd.s32 1, %s16
  $region7: #{fcn_head_forward.5} parent=0 // loop_footer_branch
    %15 = sbr.rel target = $region3
  $region8: #{fcn_head_forward.5} parent=0 // loop_exit
    _

</llo_original>
